<compile_context>
chip_gen: v6e
topology: v6e:2x2x1
jax: 0.10.0
libtpu: 0.0.40
codegen_flags: <defaults>
</compile_context>

<pallas_src>
import jax
import jax.numpy as jnp
from jax.experimental import pallas as pl
from jax.experimental.pallas import tpu as pltpu


# ----------------------------- Pallas kernel --------------------------------

def decoder_kernel(
    emb_ref,            # (T-1, B, WD) time-major embedded teacher-forcing words
    enc_ref,            # (B, S, H)    encoder sequence output
    h0_ref,             # (B, H)       initial decoder hidden state
    w1e_ref, b1_ref,    # attention fc_hidden_1, encoder half: (H, H), (1, H)
    w2_ref, b2_ref,     # attention fc_hidden_2: (H, H), (1, H)
    w3_ref, b3_ref,     # attention fc_hidden_3: (H, H), (1, H)
    wp_ref,             # attention weight_projtcn: (H, 1)
    wiw_ref,            # LSTM word->gate weights, stacked per gate: (4, WD, H)
    wic_ref,            # LSTM context->gate weights, per gate:      (4, H, H)
    whh_ref,            # LSTM hidden->gate weights, per gate:       (4, H, H)
    bl_ref,             # LSTM per-gate bias (b_ih + b_hh):          (4, 1, H)
    wo_ref, bo_ref,     # final_output_projtcn, lane-padded: (H, Vp), (1, Vp)
    seq_ref,            # out: (T-1, B, Vp) logits
):
    n_steps, B, WD = emb_ref.shape
    _, S, H = enc_ref.shape

    enc = enc_ref[...]                                   # (B, S, H)
    h0 = h0_ref[...].astype(jnp.float32)                 # (B, H)

    # ---------------- Attention (hoisted: time-invariant) -------------------
    # The attention stack is purely linear, so the hidden-state contribution
    # to the pre-softmax logits is a per-batch constant over S; softmax over S
    # cancels it exactly.  Hence attention weights and context are identical
    # on every timestep and depend only on the encoder output.
    enc_flat = enc.reshape(B * S, H)
    x = jnp.dot(enc_flat, w1e_ref[...], preferred_element_type=jnp.float32) + b1_ref[...]
    x = jnp.dot(x, w2_ref[...], preferred_element_type=jnp.float32) + b2_ref[...]
    x = jnp.dot(x, w3_ref[...], preferred_element_type=jnp.float32) + b3_ref[...]
    aw = jnp.dot(x, wp_ref[...], preferred_element_type=jnp.float32).reshape(B, S)
    aw = jax.nn.softmax(aw, axis=1)                      # (B, S)
    context = jnp.sum(aw[:, :, None] * enc, axis=1)      # (B, H)  (one-time)

    # Context- and bias-dependent halves of the gate pre-activations are also
    # time-invariant; precompute them once (gate order: i, f, g, o).
    ctx_term = [
        jnp.dot(context, wic_ref[k], preferred_element_type=jnp.float32) + bl_ref[k]
        for k in range(4)
    ]
    wiw = [wiw_ref[k] for k in range(4)]                 # (WD, H) each
    whh = [whh_ref[k] for k in range(4)]                 # (H, H) each
    wo = wo_ref[...]                                     # (H, Vp)
    bo = bo_ref[...]                                     # (1, Vp)

    # -------------------- Recurrence over decoder timesteps -----------------
    # n_steps is a small compile-time constant -> fully unrolled straight-line
    # code (for long sequences, switch to lax.fori_loop(..., unroll=True)).
    h = h0
    c = jnp.zeros_like(h0)
    for t in range(n_steps):
        word = emb_ref[t].astype(jnp.float32)            # (B, WD)

        def gate(k, _word=word, _h=h):
            return (jnp.dot(_word, wiw[k], preferred_element_type=jnp.float32)
                    + jnp.dot(_h, whh[k], preferred_element_type=jnp.float32)
                    + ctx_term[k])

        i_g = jax.nn.sigmoid(gate(0))
        f_g = jax.nn.sigmoid(gate(1))
        g_g = jnp.tanh(gate(2))
        o_g = jax.nn.sigmoid(gate(3))

        c = f_g * c + i_g * g_g
        h = o_g * jnp.tanh(c)

        logits = jnp.dot(h, wo, preferred_element_type=jnp.float32) + bo   # (B, Vp)
        seq_ref[t] = logits.astype(seq_ref.dtype)


# ----------------------------- Python wrapper --------------------------------

@jax.jit
def decoder_net_forward(params, last_encoder_hidden_state, encoderseqoutput, targets):
    """Mirrors Decoder_net.forward with teacher forcing on every step.

    Returns:
      seq:         (B, T-1, V) float32 logits.
      predict_seq: (B, T-1) int32 argmax tokens.
    """
    B, T = targets.shape
    _, S, H = encoderseqoutput.shape
    WD = params["embedding"].shape[1]
    V = params["wo"].shape[1]
    n_steps = T - 1
    Vp = ((V + 127) // 128) * 128            # lane-dense padded output width

    # Embedding lookup directly in time-major order (transpose the tiny int
    # index array rather than the embedded activations).
    emb_tm = params["embedding"][targets[:, :n_steps].T]       # (T-1, B, WD)
    h0 = last_encoder_hidden_state.reshape(B, H)

    # Attention fc_hidden_1: only the encoder half of the weight is needed
    # (the hidden-state half cancels under softmax; see kernel comment).
    w1_enc = params["w1"][:H, :]

    # Split LSTM weights per gate (i, f, g, o) and per input source, so the
    # kernel needs no lane-axis concatenations and no 32-lane gate slices.
    w_ih, w_hh, b_lstm = params["w_ih"], params["w_hh"], params["b_lstm"]
    wiw = jnp.stack([w_ih[:WD, k * H:(k + 1) * H] for k in range(4)])    # (4, WD, H)
    wic = jnp.stack([w_ih[WD:, k * H:(k + 1) * H] for k in range(4)])    # (4, H, H)
    whh = jnp.stack([w_hh[:, k * H:(k + 1) * H] for k in range(4)])      # (4, H, H)
    bl = jnp.stack([b_lstm[:, k * H:(k + 1) * H] for k in range(4)])     # (4, 1, H)

    # Zero-pad the final projection to 128 lanes for unmasked stores.
    wo_p = jnp.zeros((H, Vp), jnp.float32).at[:, :V].set(params["wo"])
    bo_p = jnp.zeros((1, Vp), jnp.float32).at[:, :V].set(params["bo"])

    def full_spec(shape):
        zeros = (0,) * len(shape)
        return pl.BlockSpec(shape, lambda i, z=zeros: z)

    grid_spec = pltpu.PrefetchScalarGridSpec(
        num_scalar_prefetch=0,
        grid=(1,),     # entire recurrence fused into one kernel invocation
        in_specs=[
            full_spec((n_steps, B, WD)),               # emb (time-major)
            full_spec((B, S, H)),                      # encoder output
            full_spec((B, H)),                         # h0
            full_spec((H, H)), full_spec((1, H)),      # w1_enc, b1
            full_spec((H, H)), full_spec((1, H)),      # w2, b2
            full_spec((H, H)), full_spec((1, H)),      # w3, b3
            full_spec((H, 1)),                         # wp
            full_spec((4, WD, H)),                     # word -> gates
            full_spec((4, H, H)),                      # context -> gates
            full_spec((4, H, H)),                      # hidden -> gates
            full_spec((4, 1, H)),                      # gate biases
            full_spec((H, Vp)), full_spec((1, Vp)),    # wo, bo (padded)
        ],
        out_specs=full_spec((n_steps, B, Vp)),
    )

    seq_tm = pl.pallas_call(
        decoder_kernel,
        out_shape=jax.ShapeDtypeStruct((n_steps, B, Vp), jnp.float32),
        grid_spec=grid_spec,
        compiler_params=pltpu.CompilerParams(
            dimension_semantics=("arbitrary",)),
    )(
        emb_tm, encoderseqoutput, h0,
        w1_enc, params["b1"], params["w2"], params["b2"],
        params["w3"], params["b3"], params["wp"],
        wiw, wic, whh, bl, wo_p, bo_p,
    )

    seq = jnp.transpose(seq_tm[:, :, :V], (1, 0, 2))    # (B, T-1, V)
    predict_seq = jnp.argmax(seq, axis=2).astype(jnp.int32)
    return seq, predict_seq


# ----------------------------- Reference (plain JAX) -------------------------

def decoder_net_reference(params, last_encoder_hidden_state, encoderseqoutput, targets):
    B, T = targets.shape
    _, S, H = encoderseqoutput.shape
    emb = params["embedding"][targets]
    h = last_encoder_hidden_state.reshape(B, H)
    c = jnp.zeros_like(h)
    outs = []
    for i in range(T - 1):
        word = emb[:, i, :]
        h_rep = jnp.broadcast_to(h[:, None, :], (B, S, H))
        match = jnp.concatenate([encoderseqoutput, h_rep], axis=2).reshape(B * S, 2 * H)
        x = match @ params["w1"] + params["b1"]
        x = x @ params["w2"] + params["b2"]
        x = x @ params["w3"] + params["b3"]
        aw = (x @ params["wp"]).reshape(B, S)
        aw = jax.nn.softmax(aw, axis=1)
        context = jnp.einsum("bs,bsh->bh", aw, encoderseqoutput)
        lstm_in = jnp.concatenate([word, context], axis=1)
        gates = lstm_in @ params["w_ih"] + h @ params["w_hh"] + params["b_lstm"]
        i_g = jax.nn.sigmoid(gates[:, 0 * H:1 * H])
        f_g = jax.nn.sigmoid(gates[:, 1 * H:2 * H])
        g_g = jnp.tanh(gates[:, 2 * H:3 * H])
        o_g = jax.nn.sigmoid(gates[:, 3 * H:4 * H])
        c = f_g * c + i_g * g_g
        h = o_g * jnp.tanh(c)
        outs.append(h @ params["wo"] + params["bo"])
    seq = jnp.stack(outs, axis=1)
    return seq, jnp.argmax(seq, axis=2).astype(jnp.int32)


# ----------------------------- Parameter init --------------------------------

def init_params(key, *, hidsize, worddim, vocabsize, outputsize):
    ks = jax.random.split(key, 12)
    H, WD, V = hidsize, worddim, outputsize
    scale = 0.1
    return {
        "embedding": scale * jax.random.normal(ks[0], (vocabsize, WD), jnp.float32),
        # Attention MLP (stored as x @ W + b, i.e. PyTorch weight transposed)
        "w1": scale * jax.random.normal(ks[1], (2 * H, H), jnp.float32),
        "b1": scale * jax.random.normal(ks[2], (1, H), jnp.float32),
        "w2": scale * jax.random.normal(ks[3], (H, H), jnp.float32),
        "b2": scale * jax.random.normal(ks[4], (1, H), jnp.float32),
        "w3": scale * jax.random.normal(ks[5], (H, H), jnp.float32),
        "b3": scale * jax.random.normal(ks[6], (1, H), jnp.float32),
        "wp": scale * jax.random.normal(ks[7], (H, 1), jnp.float32),
        # LSTM (gate order i, f, g, o; bias = b_ih + b_hh)
        "w_ih": scale * jax.random.normal(ks[8], (WD + H, 4 * H), jnp.float32),
        "w_hh": scale * jax.random.normal(ks[9], (H, 4 * H), jnp.float32),
        "b_lstm": scale * jax.random.normal(ks[10], (1, 4 * H), jnp.float32),
        # Final output projection
        "wo": scale * jax.random.normal(ks[11], (H, V), jnp.float32),
        "bo": jnp.zeros((1, V), jnp.float32),
    }


# ----------------------------- Main -------------------------------------------

if __name__ == "__main__":
    B, S, H, WD, V, T = 2, 8, 32, 32, 24, 8   # small shapes consistent with the module

    key = jax.random.PRNGKey(0)
    kp, kh, ke, kt = jax.random.split(key, 4)

    params = init_params(kp, hidsize=H, worddim=WD, vocabsize=V, outputsize=V)
    last_encoder_hidden_state = jax.random.normal(kh, (1, B, H), jnp.float32)
    encoderseqoutput = jax.random.normal(ke, (B, S, H), jnp.float32)
    targets = jax.random.randint(kt, (B, T), 0, V, dtype=jnp.int32)

    seq, predict_seq = decoder_net_forward(
        params, last_encoder_hidden_state, encoderseqoutput, targets)
    seq = jax.block_until_ready(seq)
    predict_seq = jax.block_until_ready(predict_seq)

    # Sanity check vs plain-JAX reference (which keeps the full per-step
    # attention computation, validating the hoisting identity numerically).
    seq_ref, pred_ref = decoder_net_reference(
        params, last_encoder_hidden_state, encoderseqoutput, targets)
    assert seq.shape == (B, T - 1, V)
    assert predict_seq.shape == (B, T - 1)
    assert jnp.all(jnp.isfinite(seq))
    assert jnp.allclose(seq, seq_ref, rtol=1e-2, atol=1e-2)
    # Argmax must agree except (at most) at numerical near-ties in the logits.
    ref_top = jnp.take_along_axis(seq_ref, pred_ref[:, :, None], axis=2)[..., 0]
    got_top = jnp.take_along_axis(seq_ref, predict_seq[:, :, None], axis=2)[..., 0]
    assert jnp.all(ref_top - got_top <= 2e-2)

    print("KERNEL_OK")
</pallas_src>

<mosaic_0001>
module attributes {stable_mosaic.version = 11 : i64} {
  func.func @decoder_kernel(%arg0: i32, %arg1: memref<7x2x32xf32, #tpu.memory_space<vmem>>, %arg2: memref<2x8x32xf32, #tpu.memory_space<vmem>>, %arg3: memref<2x32xf32, #tpu.memory_space<vmem>>, %arg4: memref<32x32xf32, #tpu.memory_space<vmem>>, %arg5: memref<1x32xf32, #tpu.memory_space<vmem>>, %arg6: memref<32x32xf32, #tpu.memory_space<vmem>>, %arg7: memref<1x32xf32, #tpu.memory_space<vmem>>, %arg8: memref<32x32xf32, #tpu.memory_space<vmem>>, %arg9: memref<1x32xf32, #tpu.memory_space<vmem>>, %arg10: memref<32x1xf32, #tpu.memory_space<vmem>>, %arg11: memref<4x32x32xf32, #tpu.memory_space<vmem>>, %arg12: memref<4x32x32xf32, #tpu.memory_space<vmem>>, %arg13: memref<4x32x32xf32, #tpu.memory_space<vmem>>, %arg14: memref<4x1x32xf32, #tpu.memory_space<vmem>>, %arg15: memref<32x128xf32, #tpu.memory_space<vmem>>, %arg16: memref<1x128xf32, #tpu.memory_space<vmem>>, %arg17: memref<7x2x128xf32, #tpu.memory_space<vmem>>) attributes {dimension_semantics = [#tpu.dimension_semantics<arbitrary>], iteration_bounds = array<i64: 1>, scalar_prefetch = 0 : i64, scratch_operands = 0 : i64, tpu.core_type = #tpu.core_type<tc>, window_params = [{pipeline_mode = #tpu.pipeline_mode<synchronous>, transform_indices = @transform_0, window_bounds = array<i64: 7, 2, 32>}, {pipeline_mode = #tpu.pipeline_mode<synchronous>, transform_indices = @transform_1, window_bounds = array<i64: 2, 8, 32>}, {pipeline_mode = #tpu.pipeline_mode<synchronous>, transform_indices = @transform_2, window_bounds = array<i64: 2, 32>}, {pipeline_mode = #tpu.pipeline_mode<synchronous>, transform_indices = @transform_3, window_bounds = array<i64: 32, 32>}, {pipeline_mode = #tpu.pipeline_mode<synchronous>, transform_indices = @transform_4, window_bounds = array<i64: 1, 32>}, {pipeline_mode = #tpu.pipeline_mode<synchronous>, transform_indices = @transform_5, window_bounds = array<i64: 32, 32>}, {pipeline_mode = #tpu.pipeline_mode<synchronous>, transform_indices = @transform_6, window_bounds = array<i64: 1, 32>}, {pipeline_mode = #tpu.pipeline_mode<synchronous>, transform_indices = @transform_7, window_bounds = array<i64: 32, 32>}, {pipeline_mode = #tpu.pipeline_mode<synchronous>, transform_indices = @transform_8, window_bounds = array<i64: 1, 32>}, {pipeline_mode = #tpu.pipeline_mode<synchronous>, transform_indices = @transform_9, window_bounds = array<i64: 32, 1>}, {pipeline_mode = #tpu.pipeline_mode<synchronous>, transform_indices = @transform_10, window_bounds = array<i64: 4, 32, 32>}, {pipeline_mode = #tpu.pipeline_mode<synchronous>, transform_indices = @transform_11, window_bounds = array<i64: 4, 32, 32>}, {pipeline_mode = #tpu.pipeline_mode<synchronous>, transform_indices = @transform_12, window_bounds = array<i64: 4, 32, 32>}, {pipeline_mode = #tpu.pipeline_mode<synchronous>, transform_indices = @transform_13, window_bounds = array<i64: 4, 1, 32>}, {pipeline_mode = #tpu.pipeline_mode<synchronous>, transform_indices = @transform_14, window_bounds = array<i64: 32, 128>}, {pipeline_mode = #tpu.pipeline_mode<synchronous>, transform_indices = @transform_15, window_bounds = array<i64: 1, 128>}, {pipeline_mode = #tpu.pipeline_mode<synchronous>, transform_indices = @transform_16, window_bounds = array<i64: 7, 2, 128>}]} {
    %c0 = arith.constant 0 : index
    %c0_0 = arith.constant 0 : index
    %c0_1 = arith.constant 0 : index
    %0 = vector.load %arg2[%c0, %c0_0, %c0_1] : memref<2x8x32xf32, #tpu.memory_space<vmem>>, vector<2x8x32xf32>
    %c0_2 = arith.constant 0 : index
    %c0_3 = arith.constant 0 : index
    %1 = vector.load %arg3[%c0_2, %c0_3] : memref<2x32xf32, #tpu.memory_space<vmem>>, vector<2x32xf32>
    %2 = vector.shape_cast %0 : vector<2x8x32xf32> to vector<16x32xf32>
    %c0_4 = arith.constant 0 : index
    %c0_5 = arith.constant 0 : index
    %3 = vector.load %arg4[%c0_4, %c0_5] : memref<32x32xf32, #tpu.memory_space<vmem>>, vector<32x32xf32>
    %cst = arith.constant dense<0.000000e+00> : vector<16x32xf32>
    %4 = tpu.matmul %2, %3, %cst {dimension_numbers = #tpu.dot_dimension_numbers<[1], [0], [0], [1], [0, 0, 1, 1], [], []>} : vector<16x32xf32>, vector<32x32xf32>, vector<16x32xf32> -> vector<16x32xf32>
    %c0_6 = arith.constant 0 : index
    %c0_7 = arith.constant 0 : index
    %5 = vector.load %arg5[%c0_6, %c0_7] : memref<1x32xf32, #tpu.memory_space<vmem>>, vector<1x32xf32>
    %6 = vector.broadcast %5 : vector<1x32xf32> to vector<16x32xf32>
    %7 = arith.addf %4, %6 : vector<16x32xf32>
    %c0_8 = arith.constant 0 : index
    %c0_9 = arith.constant 0 : index
    %8 = vector.load %arg6[%c0_8, %c0_9] : memref<32x32xf32, #tpu.memory_space<vmem>>, vector<32x32xf32>
    %cst_10 = arith.constant dense<0.000000e+00> : vector<16x32xf32>
    %9 = tpu.matmul %7, %8, %cst_10 {dimension_numbers = #tpu.dot_dimension_numbers<[1], [0], [0], [1], [0, 0, 1, 1], [], []>} : vector<16x32xf32>, vector<32x32xf32>, vector<16x32xf32> -> vector<16x32xf32>
    %c0_11 = arith.constant 0 : index
    %c0_12 = arith.constant 0 : index
    %10 = vector.load %arg7[%c0_11, %c0_12] : memref<1x32xf32, #tpu.memory_space<vmem>>, vector<1x32xf32>
    %11 = vector.broadcast %10 : vector<1x32xf32> to vector<16x32xf32>
    %12 = arith.addf %9, %11 : vector<16x32xf32>
    %c0_13 = arith.constant 0 : index
    %c0_14 = arith.constant 0 : index
    %13 = vector.load %arg8[%c0_13, %c0_14] : memref<32x32xf32, #tpu.memory_space<vmem>>, vector<32x32xf32>
    %cst_15 = arith.constant dense<0.000000e+00> : vector<16x32xf32>
    %14 = tpu.matmul %12, %13, %cst_15 {dimension_numbers = #tpu.dot_dimension_numbers<[1], [0], [0], [1], [0, 0, 1, 1], [], []>} : vector<16x32xf32>, vector<32x32xf32>, vector<16x32xf32> -> vector<16x32xf32>
    %c0_16 = arith.constant 0 : index
    %c0_17 = arith.constant 0 : index
    %15 = vector.load %arg9[%c0_16, %c0_17] : memref<1x32xf32, #tpu.memory_space<vmem>>, vector<1x32xf32>
    %16 = vector.broadcast %15 : vector<1x32xf32> to vector<16x32xf32>
    %17 = arith.addf %14, %16 : vector<16x32xf32>
    %c0_18 = arith.constant 0 : index
    %c0_19 = arith.constant 0 : index
    %18 = vector.load %arg10[%c0_18, %c0_19] : memref<32x1xf32, #tpu.memory_space<vmem>>, vector<32x1xf32>
    %cst_20 = arith.constant dense<0.000000e+00> : vector<16x1xf32>
    %19 = tpu.matmul %17, %18, %cst_20 {dimension_numbers = #tpu.dot_dimension_numbers<[1], [0], [0], [1], [0, 0, 1, 1], [], []>} : vector<16x32xf32>, vector<32x1xf32>, vector<16x1xf32> -> vector<16x1xf32>
    %20 = vector.shape_cast %19 : vector<16x1xf32> to vector<2x8xf32>
    %cst_21 = arith.constant dense<0xFF800000> : vector<2xf32>
    %21 = vector.multi_reduction <maximumf>, %20, %cst_21 [1] : vector<2x8xf32> to vector<2xf32>
    %cst_22 = arith.constant 0xFF800000 : f32
    %22 = vector.broadcast %cst_22 : f32 to vector<2xf32>
    %23 = arith.maximumf %22, %21 : vector<2xf32>
    %24 = vector.shape_cast %23 : vector<2xf32> to vector<2x1xf32>
    %25 = vector.broadcast %24 : vector<2x1xf32> to vector<2x8xf32>
    %26 = arith.subf %20, %25 : vector<2x8xf32>
    %27 = math.exp %26 : vector<2x8xf32>
    %cst_23 = arith.constant dense<0.000000e+00> : vector<2xf32>
    %28 = vector.multi_reduction <add>, %27, %cst_23 [1] : vector<2x8xf32> to vector<2xf32>
    %29 = vector.shape_cast %28 : vector<2xf32> to vector<2x1xf32>
    %30 = vector.broadcast %29 : vector<2x1xf32> to vector<2x8xf32>
    %31 = arith.divf %27, %30 : vector<2x8xf32>
    %32 = vector.shape_cast %31 : vector<2x8xf32> to vector<2x8x1xf32>
    %33 = vector.broadcast %32 : vector<2x8x1xf32> to vector<2x8x32xf32>
    %34 = arith.mulf %33, %0 : vector<2x8x32xf32>
    %cst_24 = arith.constant dense<0.000000e+00> : vector<2x32xf32>
    %35 = vector.multi_reduction <add>, %34, %cst_24 [1] : vector<2x8x32xf32> to vector<2x32xf32>
    %c0_25 = arith.constant 0 : index
    %c0_26 = arith.constant 0 : index
    %c0_27 = arith.constant 0 : index
    %36 = vector.load %arg12[%c0_25, %c0_26, %c0_27] : memref<4x32x32xf32, #tpu.memory_space<vmem>>, vector<1x32x32xf32>
    %37 = vector.shape_cast %36 : vector<1x32x32xf32> to vector<32x32xf32>
    %cst_28 = arith.constant dense<0.000000e+00> : vector<2x32xf32>
    %38 = tpu.matmul %35, %37, %cst_28 {dimension_numbers = #tpu.dot_dimension_numbers<[1], [0], [0], [1], [0, 0, 1, 1], [], []>} : vector<2x32xf32>, vector<32x32xf32>, vector<2x32xf32> -> vector<2x32xf32>
    %c0_29 = arith.constant 0 : index
    %c0_30 = arith.constant 0 : index
    %c0_31 = arith.constant 0 : index
    %39 = vector.load %arg14[%c0_29, %c0_30, %c0_31] : memref<4x1x32xf32, #tpu.memory_space<vmem>>, vector<1x1x32xf32>
    %40 = vector.shape_cast %39 : vector<1x1x32xf32> to vector<1x32xf32>
    %41 = vector.broadcast %40 : vector<1x32xf32> to vector<2x32xf32>
    %42 = arith.addf %38, %41 : vector<2x32xf32>
    %c1 = arith.constant 1 : index
    %c0_32 = arith.constant 0 : index
    %c0_33 = arith.constant 0 : index
    %43 = vector.load %arg12[%c1, %c0_32, %c0_33] : memref<4x32x32xf32, #tpu.memory_space<vmem>>, vector<1x32x32xf32>
    %44 = vector.shape_cast %43 : vector<1x32x32xf32> to vector<32x32xf32>
    %cst_34 = arith.constant dense<0.000000e+00> : vector<2x32xf32>
    %45 = tpu.matmul %35, %44, %cst_34 {dimension_numbers = #tpu.dot_dimension_numbers<[1], [0], [0], [1], [0, 0, 1, 1], [], []>} : vector<2x32xf32>, vector<32x32xf32>, vector<2x32xf32> -> vector<2x32xf32>
    %c1_35 = arith.constant 1 : index
    %c0_36 = arith.constant 0 : index
    %c0_37 = arith.constant 0 : index
    %46 = vector.load %arg14[%c1_35, %c0_36, %c0_37] : memref<4x1x32xf32, #tpu.memory_space<vmem>>, vector<1x1x32xf32>
    %47 = vector.shape_cast %46 : vector<1x1x32xf32> to vector<1x32xf32>
    %48 = vector.broadcast %47 : vector<1x32xf32> to vector<2x32xf32>
    %49 = arith.addf %45, %48 : vector<2x32xf32>
    %c2 = arith.constant 2 : index
    %c0_38 = arith.constant 0 : index
    %c0_39 = arith.constant 0 : index
    %50 = vector.load %arg12[%c2, %c0_38, %c0_39] : memref<4x32x32xf32, #tpu.memory_space<vmem>>, vector<1x32x32xf32>
    %51 = vector.shape_cast %50 : vector<1x32x32xf32> to vector<32x32xf32>
    %cst_40 = arith.constant dense<0.000000e+00> : vector<2x32xf32>
    %52 = tpu.matmul %35, %51, %cst_40 {dimension_numbers = #tpu.dot_dimension_numbers<[1], [0], [0], [1], [0, 0, 1, 1], [], []>} : vector<2x32xf32>, vector<32x32xf32>, vector<2x32xf32> -> vector<2x32xf32>
    %c2_41 = arith.constant 2 : index
    %c0_42 = arith.constant 0 : index
    %c0_43 = arith.constant 0 : index
    %53 = vector.load %arg14[%c2_41, %c0_42, %c0_43] : memref<4x1x32xf32, #tpu.memory_space<vmem>>, vector<1x1x32xf32>
    %54 = vector.shape_cast %53 : vector<1x1x32xf32> to vector<1x32xf32>
    %55 = vector.broadcast %54 : vector<1x32xf32> to vector<2x32xf32>
    %56 = arith.addf %52, %55 : vector<2x32xf32>
    %c3 = arith.constant 3 : index
    %c0_44 = arith.constant 0 : index
    %c0_45 = arith.constant 0 : index
    %57 = vector.load %arg12[%c3, %c0_44, %c0_45] : memref<4x32x32xf32, #tpu.memory_space<vmem>>, vector<1x32x32xf32>
    %58 = vector.shape_cast %57 : vector<1x32x32xf32> to vector<32x32xf32>
    %cst_46 = arith.constant dense<0.000000e+00> : vector<2x32xf32>
    %59 = tpu.matmul %35, %58, %cst_46 {dimension_numbers = #tpu.dot_dimension_numbers<[1], [0], [0], [1], [0, 0, 1, 1], [], []>} : vector<2x32xf32>, vector<32x32xf32>, vector<2x32xf32> -> vector<2x32xf32>
    %c3_47 = arith.constant 3 : index
    %c0_48 = arith.constant 0 : index
    %c0_49 = arith.constant 0 : index
    %60 = vector.load %arg14[%c3_47, %c0_48, %c0_49] : memref<4x1x32xf32, #tpu.memory_space<vmem>>, vector<1x1x32xf32>
    %61 = vector.shape_cast %60 : vector<1x1x32xf32> to vector<1x32xf32>
    %62 = vector.broadcast %61 : vector<1x32xf32> to vector<2x32xf32>
    %63 = arith.addf %59, %62 : vector<2x32xf32>
    %c0_50 = arith.constant 0 : index
    %c0_51 = arith.constant 0 : index
    %c0_52 = arith.constant 0 : index
    %64 = vector.load %arg11[%c0_50, %c0_51, %c0_52] : memref<4x32x32xf32, #tpu.memory_space<vmem>>, vector<1x32x32xf32>
    %65 = vector.shape_cast %64 : vector<1x32x32xf32> to vector<32x32xf32>
    %c1_53 = arith.constant 1 : index
    %c0_54 = arith.constant 0 : index
    %c0_55 = arith.constant 0 : index
    %66 = vector.load %arg11[%c1_53, %c0_54, %c0_55] : memref<4x32x32xf32, #tpu.memory_space<vmem>>, vector<1x32x32xf32>
    %67 = vector.shape_cast %66 : vector<1x32x32xf32> to vector<32x32xf32>
    %c2_56 = arith.constant 2 : index
    %c0_57 = arith.constant 0 : index
    %c0_58 = arith.constant 0 : index
    %68 = vector.load %arg11[%c2_56, %c0_57, %c0_58] : memref<4x32x32xf32, #tpu.memory_space<vmem>>, vector<1x32x32xf32>
    %69 = vector.shape_cast %68 : vector<1x32x32xf32> to vector<32x32xf32>
    %c3_59 = arith.constant 3 : index
    %c0_60 = arith.constant 0 : index
    %c0_61 = arith.constant 0 : index
    %70 = vector.load %arg11[%c3_59, %c0_60, %c0_61] : memref<4x32x32xf32, #tpu.memory_space<vmem>>, vector<1x32x32xf32>
    %71 = vector.shape_cast %70 : vector<1x32x32xf32> to vector<32x32xf32>
    %c0_62 = arith.constant 0 : index
    %c0_63 = arith.constant 0 : index
    %c0_64 = arith.constant 0 : index
    %72 = vector.load %arg13[%c0_62, %c0_63, %c0_64] : memref<4x32x32xf32, #tpu.memory_space<vmem>>, vector<1x32x32xf32>
    %73 = vector.shape_cast %72 : vector<1x32x32xf32> to vector<32x32xf32>
    %c1_65 = arith.constant 1 : index
    %c0_66 = arith.constant 0 : index
    %c0_67 = arith.constant 0 : index
    %74 = vector.load %arg13[%c1_65, %c0_66, %c0_67] : memref<4x32x32xf32, #tpu.memory_space<vmem>>, vector<1x32x32xf32>
    %75 = vector.shape_cast %74 : vector<1x32x32xf32> to vector<32x32xf32>
    %c2_68 = arith.constant 2 : index
    %c0_69 = arith.constant 0 : index
    %c0_70 = arith.constant 0 : index
    %76 = vector.load %arg13[%c2_68, %c0_69, %c0_70] : memref<4x32x32xf32, #tpu.memory_space<vmem>>, vector<1x32x32xf32>
    %77 = vector.shape_cast %76 : vector<1x32x32xf32> to vector<32x32xf32>
    %c3_71 = arith.constant 3 : index
    %c0_72 = arith.constant 0 : index
    %c0_73 = arith.constant 0 : index
    %78 = vector.load %arg13[%c3_71, %c0_72, %c0_73] : memref<4x32x32xf32, #tpu.memory_space<vmem>>, vector<1x32x32xf32>
    %79 = vector.shape_cast %78 : vector<1x32x32xf32> to vector<32x32xf32>
    %c0_74 = arith.constant 0 : index
    %c0_75 = arith.constant 0 : index
    %80 = vector.load %arg15[%c0_74, %c0_75] : memref<32x128xf32, #tpu.memory_space<vmem>>, vector<32x128xf32>
    %c0_76 = arith.constant 0 : index
    %c0_77 = arith.constant 0 : index
    %81 = vector.load %arg16[%c0_76, %c0_77] : memref<1x128xf32, #tpu.memory_space<vmem>>, vector<1x128xf32>
    %cst_78 = arith.constant 0.000000e+00 : f32
    %82 = vector.broadcast %cst_78 : f32 to vector<2x32xf32>
    %c0_79 = arith.constant 0 : index
    %c0_80 = arith.constant 0 : index
    %c0_81 = arith.constant 0 : index
    %83 = vector.load %arg1[%c0_79, %c0_80, %c0_81] : memref<7x2x32xf32, #tpu.memory_space<vmem>>, vector<1x2x32xf32>
    %84 = vector.shape_cast %83 : vector<1x2x32xf32> to vector<2x32xf32>
    %cst_82 = arith.constant dense<0.000000e+00> : vector<2x32xf32>
    %85 = tpu.matmul %84, %65, %cst_82 {dimension_numbers = #tpu.dot_dimension_numbers<[1], [0], [0], [1], [0, 0, 1, 1], [], []>} : vector<2x32xf32>, vector<32x32xf32>, vector<2x32xf32> -> vector<2x32xf32>
    %cst_83 = arith.constant dense<0.000000e+00> : vector<2x32xf32>
    %86 = tpu.matmul %1, %73, %cst_83 {dimension_numbers = #tpu.dot_dimension_numbers<[1], [0], [0], [1], [0, 0, 1, 1], [], []>} : vector<2x32xf32>, vector<32x32xf32>, vector<2x32xf32> -> vector<2x32xf32>
    %87 = arith.addf %85, %86 : vector<2x32xf32>
    %88 = arith.addf %87, %42 : vector<2x32xf32>
    %89 = arith.negf %88 : vector<2x32xf32>
    %90 = math.exp %89 : vector<2x32xf32>
    %cst_84 = arith.constant 1.000000e+00 : f32
    %91 = vector.broadcast %cst_84 : f32 to vector<2x32xf32>
    %92 = arith.addf %91, %90 : vector<2x32xf32>
    %93 = arith.divf %91, %92 : vector<2x32xf32>
    %cst_85 = arith.constant dense<0.000000e+00> : vector<2x32xf32>
    %94 = tpu.matmul %84, %67, %cst_85 {dimension_numbers = #tpu.dot_dimension_numbers<[1], [0], [0], [1], [0, 0, 1, 1], [], []>} : vector<2x32xf32>, vector<32x32xf32>, vector<2x32xf32> -> vector<2x32xf32>
    %cst_86 = arith.constant dense<0.000000e+00> : vector<2x32xf32>
    %95 = tpu.matmul %1, %75, %cst_86 {dimension_numbers = #tpu.dot_dimension_numbers<[1], [0], [0], [1], [0, 0, 1, 1], [], []>} : vector<2x32xf32>, vector<32x32xf32>, vector<2x32xf32> -> vector<2x32xf32>
    %96 = arith.addf %94, %95 : vector<2x32xf32>
    %97 = arith.addf %96, %49 : vector<2x32xf32>
    %98 = arith.negf %97 : vector<2x32xf32>
    %99 = math.exp %98 : vector<2x32xf32>
    %cst_87 = arith.constant 1.000000e+00 : f32
    %100 = vector.broadcast %cst_87 : f32 to vector<2x32xf32>
    %101 = arith.addf %100, %99 : vector<2x32xf32>
    %102 = arith.divf %100, %101 : vector<2x32xf32>
    %cst_88 = arith.constant dense<0.000000e+00> : vector<2x32xf32>
    %103 = tpu.matmul %84, %69, %cst_88 {dimension_numbers = #tpu.dot_dimension_numbers<[1], [0], [0], [1], [0, 0, 1, 1], [], []>} : vector<2x32xf32>, vector<32x32xf32>, vector<2x32xf32> -> vector<2x32xf32>
    %cst_89 = arith.constant dense<0.000000e+00> : vector<2x32xf32>
    %104 = tpu.matmul %1, %77, %cst_89 {dimension_numbers = #tpu.dot_dimension_numbers<[1], [0], [0], [1], [0, 0, 1, 1], [], []>} : vector<2x32xf32>, vector<32x32xf32>, vector<2x32xf32> -> vector<2x32xf32>
    %105 = arith.addf %103, %104 : vector<2x32xf32>
    %106 = arith.addf %105, %56 : vector<2x32xf32>
    %107 = math.tanh %106 : vector<2x32xf32>
    %cst_90 = arith.constant dense<0.000000e+00> : vector<2x32xf32>
    %108 = tpu.matmul %84, %71, %cst_90 {dimension_numbers = #tpu.dot_dimension_numbers<[1], [0], [0], [1], [0, 0, 1, 1], [], []>} : vector<2x32xf32>, vector<32x32xf32>, vector<2x32xf32> -> vector<2x32xf32>
    %cst_91 = arith.constant dense<0.000000e+00> : vector<2x32xf32>
    %109 = tpu.matmul %1, %79, %cst_91 {dimension_numbers = #tpu.dot_dimension_numbers<[1], [0], [0], [1], [0, 0, 1, 1], [], []>} : vector<2x32xf32>, vector<32x32xf32>, vector<2x32xf32> -> vector<2x32xf32>
    %110 = arith.addf %108, %109 : vector<2x32xf32>
    %111 = arith.addf %110, %63 : vector<2x32xf32>
    %112 = arith.negf %111 : vector<2x32xf32>
    %113 = math.exp %112 : vector<2x32xf32>
    %cst_92 = arith.constant 1.000000e+00 : f32
    %114 = vector.broadcast %cst_92 : f32 to vector<2x32xf32>
    %115 = arith.addf %114, %113 : vector<2x32xf32>
    %116 = arith.divf %114, %115 : vector<2x32xf32>
    %117 = arith.mulf %102, %82 : vector<2x32xf32>
    %118 = arith.mulf %93, %107 : vector<2x32xf32>
    %119 = arith.addf %117, %118 : vector<2x32xf32>
    %120 = math.tanh %119 : vector<2x32xf32>
    %121 = arith.mulf %116, %120 : vector<2x32xf32>
    %cst_93 = arith.constant dense<0.000000e+00> : vector<2x128xf32>
    %122 = tpu.matmul %121, %80, %cst_93 {dimension_numbers = #tpu.dot_dimension_numbers<[1], [0], [0], [1], [0, 0, 1, 1], [], []>} : vector<2x32xf32>, vector<32x128xf32>, vector<2x128xf32> -> vector<2x128xf32>
    %123 = vector.broadcast %81 : vector<1x128xf32> to vector<2x128xf32>
    %124 = arith.addf %122, %123 : vector<2x128xf32>
    %c0_94 = arith.constant 0 : index
    %c0_95 = arith.constant 0 : index
    %c0_96 = arith.constant 0 : index
    %125 = vector.load %arg17[%c0_94, %c0_95, %c0_96] : memref<7x2x128xf32, #tpu.memory_space<vmem>>, vector<1x2x128xf32>
    %126 = vector.shape_cast %125 : vector<1x2x128xf32> to vector<2x128xf32>
    %127 = vector.shape_cast %124 : vector<2x128xf32> to vector<1x2x128xf32>
    tpu.vector_store %arg17[%c0_94, %c0_95, %c0_96], %127 {strides = array<i32>} : memref<7x2x128xf32, #tpu.memory_space<vmem>>, vector<1x2x128xf32>,
    %c1_97 = arith.constant 1 : index
    %c0_98 = arith.constant 0 : index
    %c0_99 = arith.constant 0 : index
    %128 = vector.load %arg1[%c1_97, %c0_98, %c0_99] : memref<7x2x32xf32, #tpu.memory_space<vmem>>, vector<1x2x32xf32>
    %129 = vector.shape_cast %128 : vector<1x2x32xf32> to vector<2x32xf32>
    %cst_100 = arith.constant dense<0.000000e+00> : vector<2x32xf32>
    %130 = tpu.matmul %129, %65, %cst_100 {dimension_numbers = #tpu.dot_dimension_numbers<[1], [0], [0], [1], [0, 0, 1, 1], [], []>} : vector<2x32xf32>, vector<32x32xf32>, vector<2x32xf32> -> vector<2x32xf32>
    %cst_101 = arith.constant dense<0.000000e+00> : vector<2x32xf32>
    %131 = tpu.matmul %121, %73, %cst_101 {dimension_numbers = #tpu.dot_dimension_numbers<[1], [0], [0], [1], [0, 0, 1, 1], [], []>} : vector<2x32xf32>, vector<32x32xf32>, vector<2x32xf32> -> vector<2x32xf32>
    %132 = arith.addf %130, %131 : vector<2x32xf32>
    %133 = arith.addf %132, %42 : vector<2x32xf32>
    %134 = arith.negf %133 : vector<2x32xf32>
    %135 = math.exp %134 : vector<2x32xf32>
    %cst_102 = arith.constant 1.000000e+00 : f32
    %136 = vector.broadcast %cst_102 : f32 to vector<2x32xf32>
    %137 = arith.addf %136, %135 : vector<2x32xf32>
    %138 = arith.divf %136, %137 : vector<2x32xf32>
    %cst_103 = arith.constant dense<0.000000e+00> : vector<2x32xf32>
    %139 = tpu.matmul %129, %67, %cst_103 {dimension_numbers = #tpu.dot_dimension_numbers<[1], [0], [0], [1], [0, 0, 1, 1], [], []>} : vector<2x32xf32>, vector<32x32xf32>, vector<2x32xf32> -> vector<2x32xf32>
    %cst_104 = arith.constant dense<0.000000e+00> : vector<2x32xf32>
    %140 = tpu.matmul %121, %75, %cst_104 {dimension_numbers = #tpu.dot_dimension_numbers<[1], [0], [0], [1], [0, 0, 1, 1], [], []>} : vector<2x32xf32>, vector<32x32xf32>, vector<2x32xf32> -> vector<2x32xf32>
    %141 = arith.addf %139, %140 : vector<2x32xf32>
    %142 = arith.addf %141, %49 : vector<2x32xf32>
    %143 = arith.negf %142 : vector<2x32xf32>
    %144 = math.exp %143 : vector<2x32xf32>
    %cst_105 = arith.constant 1.000000e+00 : f32
    %145 = vector.broadcast %cst_105 : f32 to vector<2x32xf32>
    %146 = arith.addf %145, %144 : vector<2x32xf32>
    %147 = arith.divf %145, %146 : vector<2x32xf32>
    %cst_106 = arith.constant dense<0.000000e+00> : vector<2x32xf32>
    %148 = tpu.matmul %129, %69, %cst_106 {dimension_numbers = #tpu.dot_dimension_numbers<[1], [0], [0], [1], [0, 0, 1, 1], [], []>} : vector<2x32xf32>, vector<32x32xf32>, vector<2x32xf32> -> vector<2x32xf32>
    %cst_107 = arith.constant dense<0.000000e+00> : vector<2x32xf32>
    %149 = tpu.matmul %121, %77, %cst_107 {dimension_numbers = #tpu.dot_dimension_numbers<[1], [0], [0], [1], [0, 0, 1, 1], [], []>} : vector<2x32xf32>, vector<32x32xf32>, vector<2x32xf32> -> vector<2x32xf32>
    %150 = arith.addf %148, %149 : vector<2x32xf32>
    %151 = arith.addf %150, %56 : vector<2x32xf32>
    %152 = math.tanh %151 : vector<2x32xf32>
    %cst_108 = arith.constant dense<0.000000e+00> : vector<2x32xf32>
    %153 = tpu.matmul %129, %71, %cst_108 {dimension_numbers = #tpu.dot_dimension_numbers<[1], [0], [0], [1], [0, 0, 1, 1], [], []>} : vector<2x32xf32>, vector<32x32xf32>, vector<2x32xf32> -> vector<2x32xf32>
    %cst_109 = arith.constant dense<0.000000e+00> : vector<2x32xf32>
    %154 = tpu.matmul %121, %79, %cst_109 {dimension_numbers = #tpu.dot_dimension_numbers<[1], [0], [0], [1], [0, 0, 1, 1], [], []>} : vector<2x32xf32>, vector<32x32xf32>, vector<2x32xf32> -> vector<2x32xf32>
    %155 = arith.addf %153, %154 : vector<2x32xf32>
    %156 = arith.addf %155, %63 : vector<2x32xf32>
    %157 = arith.negf %156 : vector<2x32xf32>
    %158 = math.exp %157 : vector<2x32xf32>
    %cst_110 = arith.constant 1.000000e+00 : f32
    %159 = vector.broadcast %cst_110 : f32 to vector<2x32xf32>
    %160 = arith.addf %159, %158 : vector<2x32xf32>
    %161 = arith.divf %159, %160 : vector<2x32xf32>
    %162 = arith.mulf %147, %119 : vector<2x32xf32>
    %163 = arith.mulf %138, %152 : vector<2x32xf32>
    %164 = arith.addf %162, %163 : vector<2x32xf32>
    %165 = math.tanh %164 : vector<2x32xf32>
    %166 = arith.mulf %161, %165 : vector<2x32xf32>
    %cst_111 = arith.constant dense<0.000000e+00> : vector<2x128xf32>
    %167 = tpu.matmul %166, %80, %cst_111 {dimension_numbers = #tpu.dot_dimension_numbers<[1], [0], [0], [1], [0, 0, 1, 1], [], []>} : vector<2x32xf32>, vector<32x128xf32>, vector<2x128xf32> -> vector<2x128xf32>
    %168 = vector.broadcast %81 : vector<1x128xf32> to vector<2x128xf32>
    %169 = arith.addf %167, %168 : vector<2x128xf32>
    %c1_112 = arith.constant 1 : index
    %c0_113 = arith.constant 0 : index
    %c0_114 = arith.constant 0 : index
    %170 = vector.load %arg17[%c1_112, %c0_113, %c0_114] : memref<7x2x128xf32, #tpu.memory_space<vmem>>, vector<1x2x128xf32>
    %171 = vector.shape_cast %170 : vector<1x2x128xf32> to vector<2x128xf32>
    %172 = vector.shape_cast %169 : vector<2x128xf32> to vector<1x2x128xf32>
    tpu.vector_store %arg17[%c1_112, %c0_113, %c0_114], %172 {strides = array<i32>} : memref<7x2x128xf32, #tpu.memory_space<vmem>>, vector<1x2x128xf32>,
    %c2_115 = arith.constant 2 : index
    %c0_116 = arith.constant 0 : index
    %c0_117 = arith.constant 0 : index
    %173 = vector.load %arg1[%c2_115, %c0_116, %c0_117] : memref<7x2x32xf32, #tpu.memory_space<vmem>>, vector<1x2x32xf32>
    %174 = vector.shape_cast %173 : vector<1x2x32xf32> to vector<2x32xf32>
    %cst_118 = arith.constant dense<0.000000e+00> : vector<2x32xf32>
    %175 = tpu.matmul %174, %65, %cst_118 {dimension_numbers = #tpu.dot_dimension_numbers<[1], [0], [0], [1], [0, 0, 1, 1], [], []>} : vector<2x32xf32>, vector<32x32xf32>, vector<2x32xf32> -> vector<2x32xf32>
    %cst_119 = arith.constant dense<0.000000e+00> : vector<2x32xf32>
    %176 = tpu.matmul %166, %73, %cst_119 {dimension_numbers = #tpu.dot_dimension_numbers<[1], [0], [0], [1], [0, 0, 1, 1], [], []>} : vector<2x32xf32>, vector<32x32xf32>, vector<2x32xf32> -> vector<2x32xf32>
    %177 = arith.addf %175, %176 : vector<2x32xf32>
    %178 = arith.addf %177, %42 : vector<2x32xf32>
    %179 = arith.negf %178 : vector<2x32xf32>
    %180 = math.exp %179 : vector<2x32xf32>
    %cst_120 = arith.constant 1.000000e+00 : f32
    %181 = vector.broadcast %cst_120 : f32 to vector<2x32xf32>
    %182 = arith.addf %181, %180 : vector<2x32xf32>
    %183 = arith.divf %181, %182 : vector<2x32xf32>
    %cst_121 = arith.constant dense<0.000000e+00> : vector<2x32xf32>
    %184 = tpu.matmul %174, %67, %cst_121 {dimension_numbers = #tpu.dot_dimension_numbers<[1], [0], [0], [1], [0, 0, 1, 1], [], []>} : vector<2x32xf32>, vector<32x32xf32>, vector<2x32xf32> -> vector<2x32xf32>
    %cst_122 = arith.constant dense<0.000000e+00> : vector<2x32xf32>
    %185 = tpu.matmul %166, %75, %cst_122 {dimension_numbers = #tpu.dot_dimension_numbers<[1], [0], [0], [1], [0, 0, 1, 1], [], []>} : vector<2x32xf32>, vector<32x32xf32>, vector<2x32xf32> -> vector<2x32xf32>
    %186 = arith.addf %184, %185 : vector<2x32xf32>
    %187 = arith.addf %186, %49 : vector<2x32xf32>
    %188 = arith.negf %187 : vector<2x32xf32>
    %189 = math.exp %188 : vector<2x32xf32>
    %cst_123 = arith.constant 1.000000e+00 : f32
    %190 = vector.broadcast %cst_123 : f32 to vector<2x32xf32>
    %191 = arith.addf %190, %189 : vector<2x32xf32>
    %192 = arith.divf %190, %191 : vector<2x32xf32>
    %cst_124 = arith.constant dense<0.000000e+00> : vector<2x32xf32>
    %193 = tpu.matmul %174, %69, %cst_124 {dimension_numbers = #tpu.dot_dimension_numbers<[1], [0], [0], [1], [0, 0, 1, 1], [], []>} : vector<2x32xf32>, vector<32x32xf32>, vector<2x32xf32> -> vector<2x32xf32>
    %cst_125 = arith.constant dense<0.000000e+00> : vector<2x32xf32>
    %194 = tpu.matmul %166, %77, %cst_125 {dimension_numbers = #tpu.dot_dimension_numbers<[1], [0], [0], [1], [0, 0, 1, 1], [], []>} : vector<2x32xf32>, vector<32x32xf32>, vector<2x32xf32> -> vector<2x32xf32>
    %195 = arith.addf %193, %194 : vector<2x32xf32>
    %196 = arith.addf %195, %56 : vector<2x32xf32>
    %197 = math.tanh %196 : vector<2x32xf32>
    %cst_126 = arith.constant dense<0.000000e+00> : vector<2x32xf32>
    %198 = tpu.matmul %174, %71, %cst_126 {dimension_numbers = #tpu.dot_dimension_numbers<[1], [0], [0], [1], [0, 0, 1, 1], [], []>} : vector<2x32xf32>, vector<32x32xf32>, vector<2x32xf32> -> vector<2x32xf32>
    %cst_127 = arith.constant dense<0.000000e+00> : vector<2x32xf32>
    %199 = tpu.matmul %166, %79, %cst_127 {dimension_numbers = #tpu.dot_dimension_numbers<[1], [0], [0], [1], [0, 0, 1, 1], [], []>} : vector<2x32xf32>, vector<32x32xf32>, vector<2x32xf32> -> vector<2x32xf32>
    %200 = arith.addf %198, %199 : vector<2x32xf32>
    %201 = arith.addf %200, %63 : vector<2x32xf32>
    %202 = arith.negf %201 : vector<2x32xf32>
    %203 = math.exp %202 : vector<2x32xf32>
    %cst_128 = arith.constant 1.000000e+00 : f32
    %204 = vector.broadcast %cst_128 : f32 to vector<2x32xf32>
    %205 = arith.addf %204, %203 : vector<2x32xf32>
    %206 = arith.divf %204, %205 : vector<2x32xf32>
    %207 = arith.mulf %192, %164 : vector<2x32xf32>
    %208 = arith.mulf %183, %197 : vector<2x32xf32>
    %209 = arith.addf %207, %208 : vector<2x32xf32>
    %210 = math.tanh %209 : vector<2x32xf32>
    %211 = arith.mulf %206, %210 : vector<2x32xf32>
    %cst_129 = arith.constant dense<0.000000e+00> : vector<2x128xf32>
    %212 = tpu.matmul %211, %80, %cst_129 {dimension_numbers = #tpu.dot_dimension_numbers<[1], [0], [0], [1], [0, 0, 1, 1], [], []>} : vector<2x32xf32>, vector<32x128xf32>, vector<2x128xf32> -> vector<2x128xf32>
    %213 = vector.broadcast %81 : vector<1x128xf32> to vector<2x128xf32>
    %214 = arith.addf %212, %213 : vector<2x128xf32>
    %c2_130 = arith.constant 2 : index
    %c0_131 = arith.constant 0 : index
    %c0_132 = arith.constant 0 : index
    %215 = vector.load %arg17[%c2_130, %c0_131, %c0_132] : memref<7x2x128xf32, #tpu.memory_space<vmem>>, vector<1x2x128xf32>
    %216 = vector.shape_cast %215 : vector<1x2x128xf32> to vector<2x128xf32>
    %217 = vector.shape_cast %214 : vector<2x128xf32> to vector<1x2x128xf32>
    tpu.vector_store %arg17[%c2_130, %c0_131, %c0_132], %217 {strides = array<i32>} : memref<7x2x128xf32, #tpu.memory_space<vmem>>, vector<1x2x128xf32>,
    %c3_133 = arith.constant 3 : index
    %c0_134 = arith.constant 0 : index
    %c0_135 = arith.constant 0 : index
    %218 = vector.load %arg1[%c3_133, %c0_134, %c0_135] : memref<7x2x32xf32, #tpu.memory_space<vmem>>, vector<1x2x32xf32>
    %219 = vector.shape_cast %218 : vector<1x2x32xf32> to vector<2x32xf32>
    %cst_136 = arith.constant dense<0.000000e+00> : vector<2x32xf32>
    %220 = tpu.matmul %219, %65, %cst_136 {dimension_numbers = #tpu.dot_dimension_numbers<[1], [0], [0], [1], [0, 0, 1, 1], [], []>} : vector<2x32xf32>, vector<32x32xf32>, vector<2x32xf32> -> vector<2x32xf32>
    %cst_137 = arith.constant dense<0.000000e+00> : vector<2x32xf32>
    %221 = tpu.matmul %211, %73, %cst_137 {dimension_numbers = #tpu.dot_dimension_numbers<[1], [0], [0], [1], [0, 0, 1, 1], [], []>} : vector<2x32xf32>, vector<32x32xf32>, vector<2x32xf32> -> vector<2x32xf32>
    %222 = arith.addf %220, %221 : vector<2x32xf32>
    %223 = arith.addf %222, %42 : vector<2x32xf32>
    %224 = arith.negf %223 : vector<2x32xf32>
    %225 = math.exp %224 : vector<2x32xf32>
    %cst_138 = arith.constant 1.000000e+00 : f32
    %226 = vector.broadcast %cst_138 : f32 to vector<2x32xf32>
    %227 = arith.addf %226, %225 : vector<2x32xf32>
    %228 = arith.divf %226, %227 : vector<2x32xf32>
    %cst_139 = arith.constant dense<0.000000e+00> : vector<2x32xf32>
    %229 = tpu.matmul %219, %67, %cst_139 {dimension_numbers = #tpu.dot_dimension_numbers<[1], [0], [0], [1], [0, 0, 1, 1], [], []>} : vector<2x32xf32>, vector<32x32xf32>, vector<2x32xf32> -> vector<2x32xf32>
    %cst_140 = arith.constant dense<0.000000e+00> : vector<2x32xf32>
    %230 = tpu.matmul %211, %75, %cst_140 {dimension_numbers = #tpu.dot_dimension_numbers<[1], [0], [0], [1], [0, 0, 1, 1], [], []>} : vector<2x32xf32>, vector<32x32xf32>, vector<2x32xf32> -> vector<2x32xf32>
    %231 = arith.addf %229, %230 : vector<2x32xf32>
    %232 = arith.addf %231, %49 : vector<2x32xf32>
    %233 = arith.negf %232 : vector<2x32xf32>
    %234 = math.exp %233 : vector<2x32xf32>
    %cst_141 = arith.constant 1.000000e+00 : f32
    %235 = vector.broadcast %cst_141 : f32 to vector<2x32xf32>
    %236 = arith.addf %235, %234 : vector<2x32xf32>
    %237 = arith.divf %235, %236 : vector<2x32xf32>
    %cst_142 = arith.constant dense<0.000000e+00> : vector<2x32xf32>
    %238 = tpu.matmul %219, %69, %cst_142 {dimension_numbers = #tpu.dot_dimension_numbers<[1], [0], [0], [1], [0, 0, 1, 1], [], []>} : vector<2x32xf32>, vector<32x32xf32>, vector<2x32xf32> -> vector<2x32xf32>
    %cst_143 = arith.constant dense<0.000000e+00> : vector<2x32xf32>
    %239 = tpu.matmul %211, %77, %cst_143 {dimension_numbers = #tpu.dot_dimension_numbers<[1], [0], [0], [1], [0, 0, 1, 1], [], []>} : vector<2x32xf32>, vector<32x32xf32>, vector<2x32xf32> -> vector<2x32xf32>
    %240 = arith.addf %238, %239 : vector<2x32xf32>
    %241 = arith.addf %240, %56 : vector<2x32xf32>
    %242 = math.tanh %241 : vector<2x32xf32>
    %cst_144 = arith.constant dense<0.000000e+00> : vector<2x32xf32>
    %243 = tpu.matmul %219, %71, %cst_144 {dimension_numbers = #tpu.dot_dimension_numbers<[1], [0], [0], [1], [0, 0, 1, 1], [], []>} : vector<2x32xf32>, vector<32x32xf32>, vector<2x32xf32> -> vector<2x32xf32>
    %cst_145 = arith.constant dense<0.000000e+00> : vector<2x32xf32>
    %244 = tpu.matmul %211, %79, %cst_145 {dimension_numbers = #tpu.dot_dimension_numbers<[1], [0], [0], [1], [0, 0, 1, 1], [], []>} : vector<2x32xf32>, vector<32x32xf32>, vector<2x32xf32> -> vector<2x32xf32>
    %245 = arith.addf %243, %244 : vector<2x32xf32>
    %246 = arith.addf %245, %63 : vector<2x32xf32>
    %247 = arith.negf %246 : vector<2x32xf32>
    %248 = math.exp %247 : vector<2x32xf32>
    %cst_146 = arith.constant 1.000000e+00 : f32
    %249 = vector.broadcast %cst_146 : f32 to vector<2x32xf32>
    %250 = arith.addf %249, %248 : vector<2x32xf32>
    %251 = arith.divf %249, %250 : vector<2x32xf32>
    %252 = arith.mulf %237, %209 : vector<2x32xf32>
    %253 = arith.mulf %228, %242 : vector<2x32xf32>
    %254 = arith.addf %252, %253 : vector<2x32xf32>
    %255 = math.tanh %254 : vector<2x32xf32>
    %256 = arith.mulf %251, %255 : vector<2x32xf32>
    %cst_147 = arith.constant dense<0.000000e+00> : vector<2x128xf32>
    %257 = tpu.matmul %256, %80, %cst_147 {dimension_numbers = #tpu.dot_dimension_numbers<[1], [0], [0], [1], [0, 0, 1, 1], [], []>} : vector<2x32xf32>, vector<32x128xf32>, vector<2x128xf32> -> vector<2x128xf32>
    %258 = vector.broadcast %81 : vector<1x128xf32> to vector<2x128xf32>
    %259 = arith.addf %257, %258 : vector<2x128xf32>
    %c3_148 = arith.constant 3 : index
    %c0_149 = arith.constant 0 : index
    %c0_150 = arith.constant 0 : index
    %260 = vector.load %arg17[%c3_148, %c0_149, %c0_150] : memref<7x2x128xf32, #tpu.memory_space<vmem>>, vector<1x2x128xf32>
    %261 = vector.shape_cast %260 : vector<1x2x128xf32> to vector<2x128xf32>
    %262 = vector.shape_cast %259 : vector<2x128xf32> to vector<1x2x128xf32>
    tpu.vector_store %arg17[%c3_148, %c0_149, %c0_150], %262 {strides = array<i32>} : memref<7x2x128xf32, #tpu.memory_space<vmem>>, vector<1x2x128xf32>,
    %c4 = arith.constant 4 : index
    %c0_151 = arith.constant 0 : index
    %c0_152 = arith.constant 0 : index
    %263 = vector.load %arg1[%c4, %c0_151, %c0_152] : memref<7x2x32xf32, #tpu.memory_space<vmem>>, vector<1x2x32xf32>
    %264 = vector.shape_cast %263 : vector<1x2x32xf32> to vector<2x32xf32>
    %cst_153 = arith.constant dense<0.000000e+00> : vector<2x32xf32>
    %265 = tpu.matmul %264, %65, %cst_153 {dimension_numbers = #tpu.dot_dimension_numbers<[1], [0], [0], [1], [0, 0, 1, 1], [], []>} : vector<2x32xf32>, vector<32x32xf32>, vector<2x32xf32> -> vector<2x32xf32>
    %cst_154 = arith.constant dense<0.000000e+00> : vector<2x32xf32>
    %266 = tpu.matmul %256, %73, %cst_154 {dimension_numbers = #tpu.dot_dimension_numbers<[1], [0], [0], [1], [0, 0, 1, 1], [], []>} : vector<2x32xf32>, vector<32x32xf32>, vector<2x32xf32> -> vector<2x32xf32>
    %267 = arith.addf %265, %266 : vector<2x32xf32>
    %268 = arith.addf %267, %42 : vector<2x32xf32>
    %269 = arith.negf %268 : vector<2x32xf32>
    %270 = math.exp %269 : vector<2x32xf32>
    %cst_155 = arith.constant 1.000000e+00 : f32
    %271 = vector.broadcast %cst_155 : f32 to vector<2x32xf32>
    %272 = arith.addf %271, %270 : vector<2x32xf32>
    %273 = arith.divf %271, %272 : vector<2x32xf32>
    %cst_156 = arith.constant dense<0.000000e+00> : vector<2x32xf32>
    %274 = tpu.matmul %264, %67, %cst_156 {dimension_numbers = #tpu.dot_dimension_numbers<[1], [0], [0], [1], [0, 0, 1, 1], [], []>} : vector<2x32xf32>, vector<32x32xf32>, vector<2x32xf32> -> vector<2x32xf32>
    %cst_157 = arith.constant dense<0.000000e+00> : vector<2x32xf32>
    %275 = tpu.matmul %256, %75, %cst_157 {dimension_numbers = #tpu.dot_dimension_numbers<[1], [0], [0], [1], [0, 0, 1, 1], [], []>} : vector<2x32xf32>, vector<32x32xf32>, vector<2x32xf32> -> vector<2x32xf32>
    %276 = arith.addf %274, %275 : vector<2x32xf32>
    %277 = arith.addf %276, %49 : vector<2x32xf32>
    %278 = arith.negf %277 : vector<2x32xf32>
    %279 = math.exp %278 : vector<2x32xf32>
    %cst_158 = arith.constant 1.000000e+00 : f32
    %280 = vector.broadcast %cst_158 : f32 to vector<2x32xf32>
    %281 = arith.addf %280, %279 : vector<2x32xf32>
    %282 = arith.divf %280, %281 : vector<2x32xf32>
    %cst_159 = arith.constant dense<0.000000e+00> : vector<2x32xf32>
    %283 = tpu.matmul %264, %69, %cst_159 {dimension_numbers = #tpu.dot_dimension_numbers<[1], [0], [0], [1], [0, 0, 1, 1], [], []>} : vector<2x32xf32>, vector<32x32xf32>, vector<2x32xf32> -> vector<2x32xf32>
    %cst_160 = arith.constant dense<0.000000e+00> : vector<2x32xf32>
    %284 = tpu.matmul %256, %77, %cst_160 {dimension_numbers = #tpu.dot_dimension_numbers<[1], [0], [0], [1], [0, 0, 1, 1], [], []>} : vector<2x32xf32>, vector<32x32xf32>, vector<2x32xf32> -> vector<2x32xf32>
    %285 = arith.addf %283, %284 : vector<2x32xf32>
    %286 = arith.addf %285, %56 : vector<2x32xf32>
    %287 = math.tanh %286 : vector<2x32xf32>
    %cst_161 = arith.constant dense<0.000000e+00> : vector<2x32xf32>
    %288 = tpu.matmul %264, %71, %cst_161 {dimension_numbers = #tpu.dot_dimension_numbers<[1], [0], [0], [1], [0, 0, 1, 1], [], []>} : vector<2x32xf32>, vector<32x32xf32>, vector<2x32xf32> -> vector<2x32xf32>
    %cst_162 = arith.constant dense<0.000000e+00> : vector<2x32xf32>
    %289 = tpu.matmul %256, %79, %cst_162 {dimension_numbers = #tpu.dot_dimension_numbers<[1], [0], [0], [1], [0, 0, 1, 1], [], []>} : vector<2x32xf32>, vector<32x32xf32>, vector<2x32xf32> -> vector<2x32xf32>
    %290 = arith.addf %288, %289 : vector<2x32xf32>
    %291 = arith.addf %290, %63 : vector<2x32xf32>
    %292 = arith.negf %291 : vector<2x32xf32>
    %293 = math.exp %292 : vector<2x32xf32>
    %cst_163 = arith.constant 1.000000e+00 : f32
    %294 = vector.broadcast %cst_163 : f32 to vector<2x32xf32>
    %295 = arith.addf %294, %293 : vector<2x32xf32>
    %296 = arith.divf %294, %295 : vector<2x32xf32>
    %297 = arith.mulf %282, %254 : vector<2x32xf32>
    %298 = arith.mulf %273, %287 : vector<2x32xf32>
    %299 = arith.addf %297, %298 : vector<2x32xf32>
    %300 = math.tanh %299 : vector<2x32xf32>
    %301 = arith.mulf %296, %300 : vector<2x32xf32>
    %cst_164 = arith.constant dense<0.000000e+00> : vector<2x128xf32>
    %302 = tpu.matmul %301, %80, %cst_164 {dimension_numbers = #tpu.dot_dimension_numbers<[1], [0], [0], [1], [0, 0, 1, 1], [], []>} : vector<2x32xf32>, vector<32x128xf32>, vector<2x128xf32> -> vector<2x128xf32>
    %303 = vector.broadcast %81 : vector<1x128xf32> to vector<2x128xf32>
    %304 = arith.addf %302, %303 : vector<2x128xf32>
    %c4_165 = arith.constant 4 : index
    %c0_166 = arith.constant 0 : index
    %c0_167 = arith.constant 0 : index
    %305 = vector.load %arg17[%c4_165, %c0_166, %c0_167] : memref<7x2x128xf32, #tpu.memory_space<vmem>>, vector<1x2x128xf32>
    %306 = vector.shape_cast %305 : vector<1x2x128xf32> to vector<2x128xf32>
    %307 = vector.shape_cast %304 : vector<2x128xf32> to vector<1x2x128xf32>
    tpu.vector_store %arg17[%c4_165, %c0_166, %c0_167], %307 {strides = array<i32>} : memref<7x2x128xf32, #tpu.memory_space<vmem>>, vector<1x2x128xf32>,
    %c5 = arith.constant 5 : index
    %c0_168 = arith.constant 0 : index
    %c0_169 = arith.constant 0 : index
    %308 = vector.load %arg1[%c5, %c0_168, %c0_169] : memref<7x2x32xf32, #tpu.memory_space<vmem>>, vector<1x2x32xf32>
    %309 = vector.shape_cast %308 : vector<1x2x32xf32> to vector<2x32xf32>
    %cst_170 = arith.constant dense<0.000000e+00> : vector<2x32xf32>
    %310 = tpu.matmul %309, %65, %cst_170 {dimension_numbers = #tpu.dot_dimension_numbers<[1], [0], [0], [1], [0, 0, 1, 1], [], []>} : vector<2x32xf32>, vector<32x32xf32>, vector<2x32xf32> -> vector<2x32xf32>
    %cst_171 = arith.constant dense<0.000000e+00> : vector<2x32xf32>
    %311 = tpu.matmul %301, %73, %cst_171 {dimension_numbers = #tpu.dot_dimension_numbers<[1], [0], [0], [1], [0, 0, 1, 1], [], []>} : vector<2x32xf32>, vector<32x32xf32>, vector<2x32xf32> -> vector<2x32xf32>
    %312 = arith.addf %310, %311 : vector<2x32xf32>
    %313 = arith.addf %312, %42 : vector<2x32xf32>
    %314 = arith.negf %313 : vector<2x32xf32>
    %315 = math.exp %314 : vector<2x32xf32>
    %cst_172 = arith.constant 1.000000e+00 : f32
    %316 = vector.broadcast %cst_172 : f32 to vector<2x32xf32>
    %317 = arith.addf %316, %315 : vector<2x32xf32>
    %318 = arith.divf %316, %317 : vector<2x32xf32>
    %cst_173 = arith.constant dense<0.000000e+00> : vector<2x32xf32>
    %319 = tpu.matmul %309, %67, %cst_173 {dimension_numbers = #tpu.dot_dimension_numbers<[1], [0], [0], [1], [0, 0, 1, 1], [], []>} : vector<2x32xf32>, vector<32x32xf32>, vector<2x32xf32> -> vector<2x32xf32>
    %cst_174 = arith.constant dense<0.000000e+00> : vector<2x32xf32>
    %320 = tpu.matmul %301, %75, %cst_174 {dimension_numbers = #tpu.dot_dimension_numbers<[1], [0], [0], [1], [0, 0, 1, 1], [], []>} : vector<2x32xf32>, vector<32x32xf32>, vector<2x32xf32> -> vector<2x32xf32>
    %321 = arith.addf %319, %320 : vector<2x32xf32>
    %322 = arith.addf %321, %49 : vector<2x32xf32>
    %323 = arith.negf %322 : vector<2x32xf32>
    %324 = math.exp %323 : vector<2x32xf32>
    %cst_175 = arith.constant 1.000000e+00 : f32
    %325 = vector.broadcast %cst_175 : f32 to vector<2x32xf32>
    %326 = arith.addf %325, %324 : vector<2x32xf32>
    %327 = arith.divf %325, %326 : vector<2x32xf32>
    %cst_176 = arith.constant dense<0.000000e+00> : vector<2x32xf32>
    %328 = tpu.matmul %309, %69, %cst_176 {dimension_numbers = #tpu.dot_dimension_numbers<[1], [0], [0], [1], [0, 0, 1, 1], [], []>} : vector<2x32xf32>, vector<32x32xf32>, vector<2x32xf32> -> vector<2x32xf32>
    %cst_177 = arith.constant dense<0.000000e+00> : vector<2x32xf32>
    %329 = tpu.matmul %301, %77, %cst_177 {dimension_numbers = #tpu.dot_dimension_numbers<[1], [0], [0], [1], [0, 0, 1, 1], [], []>} : vector<2x32xf32>, vector<32x32xf32>, vector<2x32xf32> -> vector<2x32xf32>
    %330 = arith.addf %328, %329 : vector<2x32xf32>
    %331 = arith.addf %330, %56 : vector<2x32xf32>
    %332 = math.tanh %331 : vector<2x32xf32>
    %cst_178 = arith.constant dense<0.000000e+00> : vector<2x32xf32>
    %333 = tpu.matmul %309, %71, %cst_178 {dimension_numbers = #tpu.dot_dimension_numbers<[1], [0], [0], [1], [0, 0, 1, 1], [], []>} : vector<2x32xf32>, vector<32x32xf32>, vector<2x32xf32> -> vector<2x32xf32>
    %cst_179 = arith.constant dense<0.000000e+00> : vector<2x32xf32>
    %334 = tpu.matmul %301, %79, %cst_179 {dimension_numbers = #tpu.dot_dimension_numbers<[1], [0], [0], [1], [0, 0, 1, 1], [], []>} : vector<2x32xf32>, vector<32x32xf32>, vector<2x32xf32> -> vector<2x32xf32>
    %335 = arith.addf %333, %334 : vector<2x32xf32>
    %336 = arith.addf %335, %63 : vector<2x32xf32>
    %337 = arith.negf %336 : vector<2x32xf32>
    %338 = math.exp %337 : vector<2x32xf32>
    %cst_180 = arith.constant 1.000000e+00 : f32
    %339 = vector.broadcast %cst_180 : f32 to vector<2x32xf32>
    %340 = arith.addf %339, %338 : vector<2x32xf32>
    %341 = arith.divf %339, %340 : vector<2x32xf32>
    %342 = arith.mulf %327, %299 : vector<2x32xf32>
    %343 = arith.mulf %318, %332 : vector<2x32xf32>
    %344 = arith.addf %342, %343 : vector<2x32xf32>
    %345 = math.tanh %344 : vector<2x32xf32>
    %346 = arith.mulf %341, %345 : vector<2x32xf32>
    %cst_181 = arith.constant dense<0.000000e+00> : vector<2x128xf32>
    %347 = tpu.matmul %346, %80, %cst_181 {dimension_numbers = #tpu.dot_dimension_numbers<[1], [0], [0], [1], [0, 0, 1, 1], [], []>} : vector<2x32xf32>, vector<32x128xf32>, vector<2x128xf32> -> vector<2x128xf32>
    %348 = vector.broadcast %81 : vector<1x128xf32> to vector<2x128xf32>
    %349 = arith.addf %347, %348 : vector<2x128xf32>
    %c5_182 = arith.constant 5 : index
    %c0_183 = arith.constant 0 : index
    %c0_184 = arith.constant 0 : index
    %350 = vector.load %arg17[%c5_182, %c0_183, %c0_184] : memref<7x2x128xf32, #tpu.memory_space<vmem>>, vector<1x2x128xf32>
    %351 = vector.shape_cast %350 : vector<1x2x128xf32> to vector<2x128xf32>
    %352 = vector.shape_cast %349 : vector<2x128xf32> to vector<1x2x128xf32>
    tpu.vector_store %arg17[%c5_182, %c0_183, %c0_184], %352 {strides = array<i32>} : memref<7x2x128xf32, #tpu.memory_space<vmem>>, vector<1x2x128xf32>,
    %c6 = arith.constant 6 : index
    %c0_185 = arith.constant 0 : index
    %c0_186 = arith.constant 0 : index
    %353 = vector.load %arg1[%c6, %c0_185, %c0_186] : memref<7x2x32xf32, #tpu.memory_space<vmem>>, vector<1x2x32xf32>
    %354 = vector.shape_cast %353 : vector<1x2x32xf32> to vector<2x32xf32>
    %cst_187 = arith.constant dense<0.000000e+00> : vector<2x32xf32>
    %355 = tpu.matmul %354, %65, %cst_187 {dimension_numbers = #tpu.dot_dimension_numbers<[1], [0], [0], [1], [0, 0, 1, 1], [], []>} : vector<2x32xf32>, vector<32x32xf32>, vector<2x32xf32> -> vector<2x32xf32>
    %cst_188 = arith.constant dense<0.000000e+00> : vector<2x32xf32>
    %356 = tpu.matmul %346, %73, %cst_188 {dimension_numbers = #tpu.dot_dimension_numbers<[1], [0], [0], [1], [0, 0, 1, 1], [], []>} : vector<2x32xf32>, vector<32x32xf32>, vector<2x32xf32> -> vector<2x32xf32>
    %357 = arith.addf %355, %356 : vector<2x32xf32>
    %358 = arith.addf %357, %42 : vector<2x32xf32>
    %359 = arith.negf %358 : vector<2x32xf32>
    %360 = math.exp %359 : vector<2x32xf32>
    %cst_189 = arith.constant 1.000000e+00 : f32
    %361 = vector.broadcast %cst_189 : f32 to vector<2x32xf32>
    %362 = arith.addf %361, %360 : vector<2x32xf32>
    %363 = arith.divf %361, %362 : vector<2x32xf32>
    %cst_190 = arith.constant dense<0.000000e+00> : vector<2x32xf32>
    %364 = tpu.matmul %354, %67, %cst_190 {dimension_numbers = #tpu.dot_dimension_numbers<[1], [0], [0], [1], [0, 0, 1, 1], [], []>} : vector<2x32xf32>, vector<32x32xf32>, vector<2x32xf32> -> vector<2x32xf32>
    %cst_191 = arith.constant dense<0.000000e+00> : vector<2x32xf32>
    %365 = tpu.matmul %346, %75, %cst_191 {dimension_numbers = #tpu.dot_dimension_numbers<[1], [0], [0], [1], [0, 0, 1, 1], [], []>} : vector<2x32xf32>, vector<32x32xf32>, vector<2x32xf32> -> vector<2x32xf32>
    %366 = arith.addf %364, %365 : vector<2x32xf32>
    %367 = arith.addf %366, %49 : vector<2x32xf32>
    %368 = arith.negf %367 : vector<2x32xf32>
    %369 = math.exp %368 : vector<2x32xf32>
    %cst_192 = arith.constant 1.000000e+00 : f32
    %370 = vector.broadcast %cst_192 : f32 to vector<2x32xf32>
    %371 = arith.addf %370, %369 : vector<2x32xf32>
    %372 = arith.divf %370, %371 : vector<2x32xf32>
    %cst_193 = arith.constant dense<0.000000e+00> : vector<2x32xf32>
    %373 = tpu.matmul %354, %69, %cst_193 {dimension_numbers = #tpu.dot_dimension_numbers<[1], [0], [0], [1], [0, 0, 1, 1], [], []>} : vector<2x32xf32>, vector<32x32xf32>, vector<2x32xf32> -> vector<2x32xf32>
    %cst_194 = arith.constant dense<0.000000e+00> : vector<2x32xf32>
    %374 = tpu.matmul %346, %77, %cst_194 {dimension_numbers = #tpu.dot_dimension_numbers<[1], [0], [0], [1], [0, 0, 1, 1], [], []>} : vector<2x32xf32>, vector<32x32xf32>, vector<2x32xf32> -> vector<2x32xf32>
    %375 = arith.addf %373, %374 : vector<2x32xf32>
    %376 = arith.addf %375, %56 : vector<2x32xf32>
    %377 = math.tanh %376 : vector<2x32xf32>
    %cst_195 = arith.constant dense<0.000000e+00> : vector<2x32xf32>
    %378 = tpu.matmul %354, %71, %cst_195 {dimension_numbers = #tpu.dot_dimension_numbers<[1], [0], [0], [1], [0, 0, 1, 1], [], []>} : vector<2x32xf32>, vector<32x32xf32>, vector<2x32xf32> -> vector<2x32xf32>
    %cst_196 = arith.constant dense<0.000000e+00> : vector<2x32xf32>
    %379 = tpu.matmul %346, %79, %cst_196 {dimension_numbers = #tpu.dot_dimension_numbers<[1], [0], [0], [1], [0, 0, 1, 1], [], []>} : vector<2x32xf32>, vector<32x32xf32>, vector<2x32xf32> -> vector<2x32xf32>
    %380 = arith.addf %378, %379 : vector<2x32xf32>
    %381 = arith.addf %380, %63 : vector<2x32xf32>
    %382 = arith.negf %381 : vector<2x32xf32>
    %383 = math.exp %382 : vector<2x32xf32>
    %cst_197 = arith.constant 1.000000e+00 : f32
    %384 = vector.broadcast %cst_197 : f32 to vector<2x32xf32>
    %385 = arith.addf %384, %383 : vector<2x32xf32>
    %386 = arith.divf %384, %385 : vector<2x32xf32>
    %387 = arith.mulf %372, %344 : vector<2x32xf32>
    %388 = arith.mulf %363, %377 : vector<2x32xf32>
    %389 = arith.addf %387, %388 : vector<2x32xf32>
    %390 = math.tanh %389 : vector<2x32xf32>
    %391 = arith.mulf %386, %390 : vector<2x32xf32>
    %cst_198 = arith.constant dense<0.000000e+00> : vector<2x128xf32>
    %392 = tpu.matmul %391, %80, %cst_198 {dimension_numbers = #tpu.dot_dimension_numbers<[1], [0], [0], [1], [0, 0, 1, 1], [], []>} : vector<2x32xf32>, vector<32x128xf32>, vector<2x128xf32> -> vector<2x128xf32>
    %393 = vector.broadcast %81 : vector<1x128xf32> to vector<2x128xf32>
    %394 = arith.addf %392, %393 : vector<2x128xf32>
    %c6_199 = arith.constant 6 : index
    %c0_200 = arith.constant 0 : index
    %c0_201 = arith.constant 0 : index
    %395 = vector.load %arg17[%c6_199, %c0_200, %c0_201] : memref<7x2x128xf32, #tpu.memory_space<vmem>>, vector<1x2x128xf32>
    %396 = vector.shape_cast %395 : vector<1x2x128xf32> to vector<2x128xf32>
    %397 = vector.shape_cast %394 : vector<2x128xf32> to vector<1x2x128xf32>
    tpu.vector_store %arg17[%c6_199, %c0_200, %c0_201], %397 {strides = array<i32>} : memref<7x2x128xf32, #tpu.memory_space<vmem>>, vector<1x2x128xf32>,
    return
  }
  func.func @transform_0(%arg0: i32) -> (i32, i32, i32) {
    %c0_i32 = arith.constant 0 : i32
    %c0_i32_0 = arith.constant 0 : i32
    %c0_i32_1 = arith.constant 0 : i32
    %c0_i32_2 = arith.constant 0 : i32
    return %c0_i32, %c0_i32_0, %c0_i32_1 : i32, i32, i32
  }
  func.func @transform_1(%arg0: i32) -> (i32, i32, i32) {
    %c0_i32 = arith.constant 0 : i32
    %c0_i32_0 = arith.constant 0 : i32
    %c0_i32_1 = arith.constant 0 : i32
    %c0_i32_2 = arith.constant 0 : i32
    return %c0_i32, %c0_i32_0, %c0_i32_1 : i32, i32, i32
  }
  func.func @transform_2(%arg0: i32) -> (i32, i32) {
    %c0_i32 = arith.constant 0 : i32
    %c0_i32_0 = arith.constant 0 : i32
    %c0_i32_1 = arith.constant 0 : i32
    return %c0_i32, %c0_i32_0 : i32, i32
  }
  func.func @transform_3(%arg0: i32) -> (i32, i32) {
    %c0_i32 = arith.constant 0 : i32
    %c0_i32_0 = arith.constant 0 : i32
    %c0_i32_1 = arith.constant 0 : i32
    return %c0_i32, %c0_i32_0 : i32, i32
  }
  func.func @transform_4(%arg0: i32) -> (i32, i32) {
    %c0_i32 = arith.constant 0 : i32
    %c0_i32_0 = arith.constant 0 : i32
    %c0_i32_1 = arith.constant 0 : i32
    return %c0_i32, %c0_i32_0 : i32, i32
  }
  func.func @transform_5(%arg0: i32) -> (i32, i32) {
    %c0_i32 = arith.constant 0 : i32
    %c0_i32_0 = arith.constant 0 : i32
    %c0_i32_1 = arith.constant 0 : i32
    return %c0_i32, %c0_i32_0 : i32, i32
  }
  func.func @transform_6(%arg0: i32) -> (i32, i32) {
    %c0_i32 = arith.constant 0 : i32
    %c0_i32_0 = arith.constant 0 : i32
    %c0_i32_1 = arith.constant 0 : i32
    return %c0_i32, %c0_i32_0 : i32, i32
  }
  func.func @transform_7(%arg0: i32) -> (i32, i32) {
    %c0_i32 = arith.constant 0 : i32
    %c0_i32_0 = arith.constant 0 : i32
    %c0_i32_1 = arith.constant 0 : i32
    return %c0_i32, %c0_i32_0 : i32, i32
  }
  func.func @transform_8(%arg0: i32) -> (i32, i32) {
    %c0_i32 = arith.constant 0 : i32
    %c0_i32_0 = arith.constant 0 : i32
    %c0_i32_1 = arith.constant 0 : i32
    return %c0_i32, %c0_i32_0 : i32, i32
  }
  func.func @transform_9(%arg0: i32) -> (i32, i32) {
    %c0_i32 = arith.constant 0 : i32
    %c0_i32_0 = arith.constant 0 : i32
    %c0_i32_1 = arith.constant 0 : i32
    return %c0_i32, %c0_i32_0 : i32, i32
  }
  func.func @transform_10(%arg0: i32) -> (i32, i32, i32) {
    %c0_i32 = arith.constant 0 : i32
    %c0_i32_0 = arith.constant 0 : i32
    %c0_i32_1 = arith.constant 0 : i32
    %c0_i32_2 = arith.constant 0 : i32
    return %c0_i32, %c0_i32_0, %c0_i32_1 : i32, i32, i32
  }
  func.func @transform_11(%arg0: i32) -> (i32, i32, i32) {
    %c0_i32 = arith.constant 0 : i32
    %c0_i32_0 = arith.constant 0 : i32
    %c0_i32_1 = arith.constant 0 : i32
    %c0_i32_2 = arith.constant 0 : i32
    return %c0_i32, %c0_i32_0, %c0_i32_1 : i32, i32, i32
  }
  func.func @transform_12(%arg0: i32) -> (i32, i32, i32) {
    %c0_i32 = arith.constant 0 : i32
    %c0_i32_0 = arith.constant 0 : i32
    %c0_i32_1 = arith.constant 0 : i32
    %c0_i32_2 = arith.constant 0 : i32
    return %c0_i32, %c0_i32_0, %c0_i32_1 : i32, i32, i32
  }
  func.func @transform_13(%arg0: i32) -> (i32, i32, i32) {
    %c0_i32 = arith.constant 0 : i32
    %c0_i32_0 = arith.constant 0 : i32
    %c0_i32_1 = arith.constant 0 : i32
    %c0_i32_2 = arith.constant 0 : i32
    return %c0_i32, %c0_i32_0, %c0_i32_1 : i32, i32, i32
  }
  func.func @transform_14(%arg0: i32) -> (i32, i32) {
    %c0_i32 = arith.constant 0 : i32
    %c0_i32_0 = arith.constant 0 : i32
    %c0_i32_1 = arith.constant 0 : i32
    return %c0_i32, %c0_i32_0 : i32, i32
  }
  func.func @transform_15(%arg0: i32) -> (i32, i32) {
    %c0_i32 = arith.constant 0 : i32
    %c0_i32_0 = arith.constant 0 : i32
    %c0_i32_1 = arith.constant 0 : i32
    return %c0_i32, %c0_i32_0 : i32, i32
  }
  func.func @transform_16(%arg0: i32) -> (i32, i32, i32) {
    %c0_i32 = arith.constant 0 : i32
    %c0_i32_0 = arith.constant 0 : i32
    %c0_i32_1 = arith.constant 0 : i32
    %c0_i32_2 = arith.constant 0 : i32
    return %c0_i32, %c0_i32_0, %c0_i32_1 : i32, i32, i32
  }
}

</mosaic_0001>

<llo_original>
// kernel: decoder_net_forward.1
$region0: #{decoder_net_forward.1}
  #allocation0 [shape = 'u32[]', space=smem, size = 0x4, offset = 0x4, fixed_abs, tag = 'smem constant byte address 0x4 - core index']
  #allocation1 [shape = 'u32[144,128]{1,0:T(1,128)}', space=vmem, size = 0x12000, scoped, tag = 'internal scratch']
  %s0 = inlined_call_operand.vmem [shape: f32[7,2,32], index: 0, kind: input, shape index: {}]
  %s1 = inlined_call_operand.vmem [shape: f32[2,8,32], index: 1, kind: input, shape index: {}]
  %s2 = inlined_call_operand.vmem [shape: f32[2,32], index: 2, kind: input, shape index: {}]
  %s3 = inlined_call_operand.vmem [shape: f32[32,32], index: 3, kind: input, shape index: {}]
  %s4 = inlined_call_operand.vmem [shape: f32[1,32], index: 4, kind: input, shape index: {}]
  %s5 = inlined_call_operand.vmem [shape: f32[32,32], index: 5, kind: input, shape index: {}]
  %s6 = inlined_call_operand.vmem [shape: f32[1,32], index: 6, kind: input, shape index: {}]
  %s7 = inlined_call_operand.vmem [shape: f32[32,32], index: 7, kind: input, shape index: {}]
  %s8 = inlined_call_operand.vmem [shape: f32[1,32], index: 8, kind: input, shape index: {}]
  %s9 = inlined_call_operand.vmem [shape: f32[32,1], index: 9, kind: input, shape index: {}]
  %s10 = inlined_call_operand.vmem [shape: f32[4,32,32], index: 10, kind: input, shape index: {}]
  %s11 = inlined_call_operand.vmem [shape: f32[4,32,32], index: 11, kind: input, shape index: {}]
  %s12 = inlined_call_operand.vmem [shape: f32[4,32,32], index: 12, kind: input, shape index: {}]
  %s13 = inlined_call_operand.vmem [shape: f32[4,1,32], index: 13, kind: input, shape index: {}]
  %s14 = inlined_call_operand.vmem [shape: f32[32,128], index: 14, kind: input, shape index: {}]
  %s15 = inlined_call_operand.vmem [shape: f32[1,128], index: 15, kind: input, shape index: {}]
  %s16 = inlined_call_operand.vmem [shape: f32[7,2,128], index: 16, kind: output, shape index: {}]
  %s17 = sld [smem:[#allocation0]]
  $region74: #{decoder_net_forward.1} parent=0
    _
  %s19 = ssub.s32 1, %s17
  %s20 = scalar_select 0, %s19, %s17
  // Predicated region
  $region2: #{decoder_net_forward.1} parent=0 // pred_check
    _
  $region3: #{decoder_net_forward.1} parent=0 // pred_check_branch
    %22 = sbr.rel (0) target = $region5
  $region4: #{decoder_net_forward.1} parent=0 // pred_region
    _
  $region5: #{decoder_net_forward.1} parent=0 // pred_fallthru
    _
  // Predicated region
  $region6: #{decoder_net_forward.1} parent=0 // pred_check
    _
  $region7: #{decoder_net_forward.1} parent=0 // pred_check_branch
    %24 = sbr.rel (0) target = $region9
  $region8: #{decoder_net_forward.1} parent=0 // pred_region
    _
  $region9: #{decoder_net_forward.1} parent=0 // pred_fallthru
    _
  // Predicated region
  $region10: #{decoder_net_forward.1} parent=0 // pred_check
    _
  $region11: #{decoder_net_forward.1} parent=0 // pred_check_branch
    %26 = sbr.rel (0) target = $region13
  $region12: #{decoder_net_forward.1} parent=0 // pred_region
    _
  $region13: #{decoder_net_forward.1} parent=0 // pred_fallthru
    _
  // Predicated region
  $region14: #{decoder_net_forward.1} parent=0 // pred_check
    _
  $region15: #{decoder_net_forward.1} parent=0 // pred_check_branch
    %28 = sbr.rel (0) target = $region17
  $region16: #{decoder_net_forward.1} parent=0 // pred_region
    _
  $region17: #{decoder_net_forward.1} parent=0 // pred_fallthru
    _
  // Predicated region
  $region18: #{decoder_net_forward.1} parent=0 // pred_check
    _
  $region19: #{decoder_net_forward.1} parent=0 // pred_check_branch
    %30 = sbr.rel (0) target = $region21
  $region20: #{decoder_net_forward.1} parent=0 // pred_region
    _
  $region21: #{decoder_net_forward.1} parent=0 // pred_fallthru
    _
  // Predicated region
  $region22: #{decoder_net_forward.1} parent=0 // pred_check
    _
  $region23: #{decoder_net_forward.1} parent=0 // pred_check_branch
    %32 = sbr.rel (0) target = $region25
  $region24: #{decoder_net_forward.1} parent=0 // pred_region
    _
  $region25: #{decoder_net_forward.1} parent=0 // pred_fallthru
    _
  // Predicated region
  $region26: #{decoder_net_forward.1} parent=0 // pred_check
    _
  $region27: #{decoder_net_forward.1} parent=0 // pred_check_branch
    %34 = sbr.rel (0) target = $region29
  $region28: #{decoder_net_forward.1} parent=0 // pred_region
    _
  $region29: #{decoder_net_forward.1} parent=0 // pred_fallthru
    _
  // Predicated region
  $region30: #{decoder_net_forward.1} parent=0 // pred_check
    _
  $region31: #{decoder_net_forward.1} parent=0 // pred_check_branch
    %36 = sbr.rel (0) target = $region33
  $region32: #{decoder_net_forward.1} parent=0 // pred_region
    _
  $region33: #{decoder_net_forward.1} parent=0 // pred_fallthru
    _
  // Predicated region
  $region34: #{decoder_net_forward.1} parent=0 // pred_check
    _
  $region35: #{decoder_net_forward.1} parent=0 // pred_check_branch
    %38 = sbr.rel (0) target = $region37
  $region36: #{decoder_net_forward.1} parent=0 // pred_region
    _
  $region37: #{decoder_net_forward.1} parent=0 // pred_fallthru
    _
  // Predicated region
  $region38: #{decoder_net_forward.1} parent=0 // pred_check
    _
  $region39: #{decoder_net_forward.1} parent=0 // pred_check_branch
    %40 = sbr.rel (0) target = $region41
  $region40: #{decoder_net_forward.1} parent=0 // pred_region
    _
  $region41: #{decoder_net_forward.1} parent=0 // pred_fallthru
    _
  // Predicated region
  $region42: #{decoder_net_forward.1} parent=0 // pred_check
    _
  $region43: #{decoder_net_forward.1} parent=0 // pred_check_branch
    %42 = sbr.rel (0) target = $region45
  $region44: #{decoder_net_forward.1} parent=0 // pred_region
    _
  $region45: #{decoder_net_forward.1} parent=0 // pred_fallthru
    _
  // Predicated region
  $region46: #{decoder_net_forward.1} parent=0 // pred_check
    _
  $region47: #{decoder_net_forward.1} parent=0 // pred_check_branch
    %44 = sbr.rel (0) target = $region49
  $region48: #{decoder_net_forward.1} parent=0 // pred_region
    _
  $region49: #{decoder_net_forward.1} parent=0 // pred_fallthru
    _
  // Predicated region
  $region50: #{decoder_net_forward.1} parent=0 // pred_check
    _
  $region51: #{decoder_net_forward.1} parent=0 // pred_check_branch
    %46 = sbr.rel (0) target = $region53
  $region52: #{decoder_net_forward.1} parent=0 // pred_region
    _
  $region53: #{decoder_net_forward.1} parent=0 // pred_fallthru
    _
  // Predicated region
  $region54: #{decoder_net_forward.1} parent=0 // pred_check
    _
  $region55: #{decoder_net_forward.1} parent=0 // pred_check_branch
    %48 = sbr.rel (0) target = $region57
  $region56: #{decoder_net_forward.1} parent=0 // pred_region
    _
  $region57: #{decoder_net_forward.1} parent=0 // pred_fallthru
    _
  // Predicated region
  $region58: #{decoder_net_forward.1} parent=0 // pred_check
    _
  $region59: #{decoder_net_forward.1} parent=0 // pred_check_branch
    %50 = sbr.rel (0) target = $region61
  $region60: #{decoder_net_forward.1} parent=0 // pred_region
    _
  $region61: #{decoder_net_forward.1} parent=0 // pred_fallthru
    _
  // Predicated region
  $region62: #{decoder_net_forward.1} parent=0 // pred_check
    _
  $region63: #{decoder_net_forward.1} parent=0 // pred_check_branch
    %52 = sbr.rel (0) target = $region65
  $region64: #{decoder_net_forward.1} parent=0 // pred_region
    _
  $region65: #{decoder_net_forward.1} parent=0 // pred_fallthru
    _
  %v53 = vld [vmem:[%s1] sm:$0xff]
  %v54 = vld [vmem:[%s1 + $0x8] sm:$0xff]
  %v55 = vld [vmem:[%s2] sm:$0x3]
  %v56 = vld [vmem:[%s3] sm:$0xff]
  %v57 = vld [vmem:[%s3 + $0x8] sm:$0xff]
  %v58 = vld [vmem:[%s3 + $0x10] sm:$0xff]
  %v59 = vld [vmem:[%s3 + $0x18] sm:$0xff]
  %v60 = vld [vmem:[%s4] sm:$0x1]
  %v62 = vlaneseq
  %v63 = vshrl.u32 %v62, 7
  %v64 = vsub.s32 0, %v63
  %v65 = vrot.slane %v60, %v64
  %vm67 = vcmask 261120
  %v69 = vsel %vm67, %v53, 0
  %v72 = vsel %vm67, %v54, 0
  %74 = vmatprep.subr.mxu0 0.0
  %75 = vmatpush1.msra.mxu0 0.0
  %76 = vmatprep.subr.mxu0 0.0
  %77 = vmatpush1.msra.mxu0 0.0
  %78 = vmatprep.subr.mxu0 0.0
  %79 = vmatpush1.msra.mxu0 0.0
  %80 = vmatprep.subr.mxu0 0.0
  %81 = vmatpush1.msra.mxu0 0.0
  %82 = vmatprep.subr.mxu0 0.0
  %83 = vmatpush1.msra.mxu0 0.0
  %84 = vmatprep.subr.mxu0 0.0
  %85 = vmatpush1.msra.mxu0 0.0
  %86 = vmatprep.subr.mxu0 0.0
  %87 = vmatpush1.msra.mxu0 0.0
  %88 = vmatprep.subr.mxu0 0.0
  %89 = vmatpush1.msra.mxu0 0.0
  %90 = vmatprep.subr.mxu0 0.0
  %91 = vmatpush1.msra.mxu0 0.0
  %92 = vmatprep.subr.mxu0 0.0
  %93 = vmatpush1.msra.mxu0 0.0
  %94 = vmatprep.subr.mxu0 0.0
  %95 = vmatpush1.msra.mxu0 0.0
  %96 = vmatprep.subr.mxu0 0.0
  %97 = vmatpush1.msra.mxu0 0.0
  %98 = vmatprep.subr.mxu0 0.0
  %99 = vmatpush1.msra.mxu0 %v59
  %100 = vmatprep.subr.mxu0 0.0
  %101 = vmatpush1.msra.mxu0 %v58
  %102 = vmatprep.subr.mxu0 0.0
  %103 = vmatpush1.msra.mxu0 %v57
  %104 = vmatprep.subr.mxu0 0.0
  %105 = vmatpush1.msra.mxu0 %v56
  %106 = vmatprep.subr.mxu0 0.0
  %107 = vmatpush2.msra.mxu0 0.0
  %108 = vmatprep.subr.mxu0 0.0
  %109 = vmatpush2.msra.mxu0 0.0
  %110 = vmatprep.subr.mxu0 0.0
  %111 = vmatpush2.msra.mxu0 0.0
  %112 = vmatprep.subr.mxu0 0.0
  %113 = vmatpush2.msra.mxu0 0.0
  %114 = vmatprep.subr.mxu0 0.0
  %115 = vmatpush2.msra.mxu0 0.0
  %116 = vmatprep.subr.mxu0 0.0
  %117 = vmatpush2.msra.mxu0 0.0
  %118 = vmatprep.subr.mxu0 0.0
  %119 = vmatpush2.msra.mxu0 0.0
  %120 = vmatprep.subr.mxu0 0.0
  %121 = vmatpush2.msra.mxu0 0.0
  %122 = vmatprep.subr.mxu0 0.0
  %123 = vmatpush2.msra.mxu0 0.0
  %124 = vmatprep.subr.mxu0 0.0
  %125 = vmatpush2.msra.mxu0 0.0
  %126 = vmatprep.subr.mxu0 0.0
  %127 = vmatpush2.msra.mxu0 0.0
  %128 = vmatprep.subr.mxu0 0.0
  %129 = vmatpush2.msra.mxu0 0.0
  %130 = vmatprep.subr.mxu0 0.0
  %131 = vmatpush2.msra.mxu0 0.0
  %132 = vmatprep.subr.mxu0 0.0
  %133 = vmatpush2.msra.mxu0 0.0
  %134 = vmatprep.subr.mxu0 0.0
  %135 = vmatpush2.msra.mxu0 0.0
  %136 = vmatprep.subr.mxu0 0.0
  %137 = vmatpush2.msra.mxu0 0.0
  %138 = vmatprep.mubr.f32.mxu0 0.0
  %139 = vmatmul.mubr.f32.gmra.mxu0 %v69
  %v140 = vpop.f32.mrf.mxu0
  %v141 = vadd.f32 %v65, %v140
  %v142 = vpop.f32.mrf.mxu0
  %143 = vmatprep.mubr.f32.mxu0 0.0
  %144 = vmatmul.mubr.f32.gmra.mxu0 %v72
  %v145 = vpop.f32.mrf.mxu0
  %v146 = vadd.f32 %v65, %v145
  %v147 = vpop.f32.mrf.mxu0
  %148 = vdwg.mxu0
  %v149 = vld [vmem:[%s5] sm:$0xff]
  %v150 = vld [vmem:[%s5 + $0x8] sm:$0xff]
  %v151 = vld [vmem:[%s5 + $0x10] sm:$0xff]
  %v152 = vld [vmem:[%s5 + $0x18] sm:$0xff]
  %v153 = vld [vmem:[%s6] sm:$0x1]
  %v155 = vlaneseq
  %v156 = vshrl.u32 %v155, 7
  %v157 = vsub.s32 0, %v156
  %v158 = vrot.slane %v153, %v157
  %v161 = vsel %vm67, %v141, 0
  %v164 = vsel %vm67, %v146, 0
  %166 = vmatprep.subr.mxu0 0.0
  %167 = vmatpush1.msra.mxu0 0.0
  %168 = vmatprep.subr.mxu0 0.0
  %169 = vmatpush1.msra.mxu0 0.0
  %170 = vmatprep.subr.mxu0 0.0
  %171 = vmatpush1.msra.mxu0 0.0
  %172 = vmatprep.subr.mxu0 0.0
  %173 = vmatpush1.msra.mxu0 0.0
  %174 = vmatprep.subr.mxu0 0.0
  %175 = vmatpush1.msra.mxu0 0.0
  %176 = vmatprep.subr.mxu0 0.0
  %177 = vmatpush1.msra.mxu0 0.0
  %178 = vmatprep.subr.mxu0 0.0
  %179 = vmatpush1.msra.mxu0 0.0
  %180 = vmatprep.subr.mxu0 0.0
  %181 = vmatpush1.msra.mxu0 0.0
  %182 = vmatprep.subr.mxu0 0.0
  %183 = vmatpush1.msra.mxu0 0.0
  %184 = vmatprep.subr.mxu0 0.0
  %185 = vmatpush1.msra.mxu0 0.0
  %186 = vmatprep.subr.mxu0 0.0
  %187 = vmatpush1.msra.mxu0 0.0
  %188 = vmatprep.subr.mxu0 0.0
  %189 = vmatpush1.msra.mxu0 0.0
  %190 = vmatprep.subr.mxu0 0.0
  %191 = vmatpush1.msra.mxu0 %v152
  %192 = vmatprep.subr.mxu0 0.0
  %193 = vmatpush1.msra.mxu0 %v151
  %194 = vmatprep.subr.mxu0 0.0
  %195 = vmatpush1.msra.mxu0 %v150
  %196 = vmatprep.subr.mxu0 0.0
  %197 = vmatpush1.msra.mxu0 %v149
  %198 = vmatprep.subr.mxu0 0.0
  %199 = vmatpush2.msra.mxu0 0.0
  %200 = vmatprep.subr.mxu0 0.0
  %201 = vmatpush2.msra.mxu0 0.0
  %202 = vmatprep.subr.mxu0 0.0
  %203 = vmatpush2.msra.mxu0 0.0
  %204 = vmatprep.subr.mxu0 0.0
  %205 = vmatpush2.msra.mxu0 0.0
  %206 = vmatprep.subr.mxu0 0.0
  %207 = vmatpush2.msra.mxu0 0.0
  %208 = vmatprep.subr.mxu0 0.0
  %209 = vmatpush2.msra.mxu0 0.0
  %210 = vmatprep.subr.mxu0 0.0
  %211 = vmatpush2.msra.mxu0 0.0
  %212 = vmatprep.subr.mxu0 0.0
  %213 = vmatpush2.msra.mxu0 0.0
  %214 = vmatprep.subr.mxu0 0.0
  %215 = vmatpush2.msra.mxu0 0.0
  %216 = vmatprep.subr.mxu0 0.0
  %217 = vmatpush2.msra.mxu0 0.0
  %218 = vmatprep.subr.mxu0 0.0
  %219 = vmatpush2.msra.mxu0 0.0
  %220 = vmatprep.subr.mxu0 0.0
  %221 = vmatpush2.msra.mxu0 0.0
  %222 = vmatprep.subr.mxu0 0.0
  %223 = vmatpush2.msra.mxu0 0.0
  %224 = vmatprep.subr.mxu0 0.0
  %225 = vmatpush2.msra.mxu0 0.0
  %226 = vmatprep.subr.mxu0 0.0
  %227 = vmatpush2.msra.mxu0 0.0
  %228 = vmatprep.subr.mxu0 0.0
  %229 = vmatpush2.msra.mxu0 0.0
  %230 = vmatprep.mubr.f32.mxu0 0.0
  %231 = vmatmul.mubr.f32.gmra.mxu0 %v161
  %v232 = vpop.f32.mrf.mxu0
  %v233 = vadd.f32 %v158, %v232
  %v234 = vpop.f32.mrf.mxu0
  %235 = vmatprep.mubr.f32.mxu0 0.0
  %236 = vmatmul.mubr.f32.gmra.mxu0 %v164
  %v237 = vpop.f32.mrf.mxu0
  %v238 = vadd.f32 %v158, %v237
  %v239 = vpop.f32.mrf.mxu0
  %240 = vdwg.mxu0
  %v241 = vld [vmem:[%s7] sm:$0xff]
  %v242 = vld [vmem:[%s7 + $0x8] sm:$0xff]
  %v243 = vld [vmem:[%s7 + $0x10] sm:$0xff]
  %v244 = vld [vmem:[%s7 + $0x18] sm:$0xff]
  %v245 = vld [vmem:[%s8] sm:$0x1]
  %v247 = vlaneseq
  %v248 = vshrl.u32 %v247, 7
  %v249 = vsub.s32 0, %v248
  %v250 = vrot.slane %v245, %v249
  %v253 = vsel %vm67, %v233, 0
  %v256 = vsel %vm67, %v238, 0
  %258 = vmatprep.subr.mxu0 0.0
  %259 = vmatpush1.msra.mxu0 0.0
  %260 = vmatprep.subr.mxu0 0.0
  %261 = vmatpush1.msra.mxu0 0.0
  %262 = vmatprep.subr.mxu0 0.0
  %263 = vmatpush1.msra.mxu0 0.0
  %264 = vmatprep.subr.mxu0 0.0
  %265 = vmatpush1.msra.mxu0 0.0
  %266 = vmatprep.subr.mxu0 0.0
  %267 = vmatpush1.msra.mxu0 0.0
  %268 = vmatprep.subr.mxu0 0.0
  %269 = vmatpush1.msra.mxu0 0.0
  %270 = vmatprep.subr.mxu0 0.0
  %271 = vmatpush1.msra.mxu0 0.0
  %272 = vmatprep.subr.mxu0 0.0
  %273 = vmatpush1.msra.mxu0 0.0
  %274 = vmatprep.subr.mxu0 0.0
  %275 = vmatpush1.msra.mxu0 0.0
  %276 = vmatprep.subr.mxu0 0.0
  %277 = vmatpush1.msra.mxu0 0.0
  %278 = vmatprep.subr.mxu0 0.0
  %279 = vmatpush1.msra.mxu0 0.0
  %280 = vmatprep.subr.mxu0 0.0
  %281 = vmatpush1.msra.mxu0 0.0
  %282 = vmatprep.subr.mxu0 0.0
  %283 = vmatpush1.msra.mxu0 %v244
  %284 = vmatprep.subr.mxu0 0.0
  %285 = vmatpush1.msra.mxu0 %v243
  %286 = vmatprep.subr.mxu0 0.0
  %287 = vmatpush1.msra.mxu0 %v242
  %288 = vmatprep.subr.mxu0 0.0
  %289 = vmatpush1.msra.mxu0 %v241
  %290 = vmatprep.subr.mxu0 0.0
  %291 = vmatpush2.msra.mxu0 0.0
  %292 = vmatprep.subr.mxu0 0.0
  %293 = vmatpush2.msra.mxu0 0.0
  %294 = vmatprep.subr.mxu0 0.0
  %295 = vmatpush2.msra.mxu0 0.0
  %296 = vmatprep.subr.mxu0 0.0
  %297 = vmatpush2.msra.mxu0 0.0
  %298 = vmatprep.subr.mxu0 0.0
  %299 = vmatpush2.msra.mxu0 0.0
  %300 = vmatprep.subr.mxu0 0.0
  %301 = vmatpush2.msra.mxu0 0.0
  %302 = vmatprep.subr.mxu0 0.0
  %303 = vmatpush2.msra.mxu0 0.0
  %304 = vmatprep.subr.mxu0 0.0
  %305 = vmatpush2.msra.mxu0 0.0
  %306 = vmatprep.subr.mxu0 0.0
  %307 = vmatpush2.msra.mxu0 0.0
  %308 = vmatprep.subr.mxu0 0.0
  %309 = vmatpush2.msra.mxu0 0.0
  %310 = vmatprep.subr.mxu0 0.0
  %311 = vmatpush2.msra.mxu0 0.0
  %312 = vmatprep.subr.mxu0 0.0
  %313 = vmatpush2.msra.mxu0 0.0
  %314 = vmatprep.subr.mxu0 0.0
  %315 = vmatpush2.msra.mxu0 0.0
  %316 = vmatprep.subr.mxu0 0.0
  %317 = vmatpush2.msra.mxu0 0.0
  %318 = vmatprep.subr.mxu0 0.0
  %319 = vmatpush2.msra.mxu0 0.0
  %320 = vmatprep.subr.mxu0 0.0
  %321 = vmatpush2.msra.mxu0 0.0
  %322 = vmatprep.mubr.f32.mxu0 0.0
  %323 = vmatmul.mubr.f32.gmra.mxu0 %v253
  %v324 = vpop.f32.mrf.mxu0
  %v325 = vadd.f32 %v250, %v324
  %v326 = vpop.f32.mrf.mxu0
  %327 = vmatprep.mubr.f32.mxu0 0.0
  %328 = vmatmul.mubr.f32.gmra.mxu0 %v256
  %v329 = vpop.f32.mrf.mxu0
  %v330 = vadd.f32 %v250, %v329
  %v331 = vpop.f32.mrf.mxu0
  %332 = vdwg.mxu0
  %v333 = vld [vmem:[%s9] sm:$0xff]
  %v334 = vld [vmem:[%s9 + $0x8] sm:$0xff]
  %v335 = vld [vmem:[%s9 + $0x10] sm:$0xff]
  %v336 = vld [vmem:[%s9 + $0x18] sm:$0xff]
  %v338 = vsel %vm67, %v325, 0
  %v341 = vsel %vm67, %v330, 0
  %343 = vmatprep.subr.mxu0 0.0
  %344 = vmatpush1.msra.mxu0 0.0
  %345 = vmatprep.subr.mxu0 0.0
  %346 = vmatpush1.msra.mxu0 0.0
  %347 = vmatprep.subr.mxu0 0.0
  %348 = vmatpush1.msra.mxu0 0.0
  %349 = vmatprep.subr.mxu0 0.0
  %350 = vmatpush1.msra.mxu0 0.0
  %351 = vmatprep.subr.mxu0 0.0
  %352 = vmatpush1.msra.mxu0 0.0
  %353 = vmatprep.subr.mxu0 0.0
  %354 = vmatpush1.msra.mxu0 0.0
  %355 = vmatprep.subr.mxu0 0.0
  %356 = vmatpush1.msra.mxu0 0.0
  %357 = vmatprep.subr.mxu0 0.0
  %358 = vmatpush1.msra.mxu0 0.0
  %359 = vmatprep.subr.mxu0 0.0
  %360 = vmatpush1.msra.mxu0 0.0
  %361 = vmatprep.subr.mxu0 0.0
  %362 = vmatpush1.msra.mxu0 0.0
  %363 = vmatprep.subr.mxu0 0.0
  %364 = vmatpush1.msra.mxu0 0.0
  %365 = vmatprep.subr.mxu0 0.0
  %366 = vmatpush1.msra.mxu0 0.0
  %367 = vmatprep.subr.mxu0 0.0
  %368 = vmatpush1.msra.mxu0 %v336
  %369 = vmatprep.subr.mxu0 0.0
  %370 = vmatpush1.msra.mxu0 %v335
  %371 = vmatprep.subr.mxu0 0.0
  %372 = vmatpush1.msra.mxu0 %v334
  %373 = vmatprep.subr.mxu0 0.0
  %374 = vmatpush1.msra.mxu0 %v333
  %375 = vmatprep.subr.mxu0 0.0
  %376 = vmatpush2.msra.mxu0 0.0
  %377 = vmatprep.subr.mxu0 0.0
  %378 = vmatpush2.msra.mxu0 0.0
  %379 = vmatprep.subr.mxu0 0.0
  %380 = vmatpush2.msra.mxu0 0.0
  %381 = vmatprep.subr.mxu0 0.0
  %382 = vmatpush2.msra.mxu0 0.0
  %383 = vmatprep.subr.mxu0 0.0
  %384 = vmatpush2.msra.mxu0 0.0
  %385 = vmatprep.subr.mxu0 0.0
  %386 = vmatpush2.msra.mxu0 0.0
  %387 = vmatprep.subr.mxu0 0.0
  %388 = vmatpush2.msra.mxu0 0.0
  %389 = vmatprep.subr.mxu0 0.0
  %390 = vmatpush2.msra.mxu0 0.0
  %391 = vmatprep.subr.mxu0 0.0
  %392 = vmatpush2.msra.mxu0 0.0
  %393 = vmatprep.subr.mxu0 0.0
  %394 = vmatpush2.msra.mxu0 0.0
  %395 = vmatprep.subr.mxu0 0.0
  %396 = vmatpush2.msra.mxu0 0.0
  %397 = vmatprep.subr.mxu0 0.0
  %398 = vmatpush2.msra.mxu0 0.0
  %399 = vmatprep.subr.mxu0 0.0
  %400 = vmatpush2.msra.mxu0 0.0
  %401 = vmatprep.subr.mxu0 0.0
  %402 = vmatpush2.msra.mxu0 0.0
  %403 = vmatprep.subr.mxu0 0.0
  %404 = vmatpush2.msra.mxu0 0.0
  %405 = vmatprep.subr.mxu0 0.0
  %406 = vmatpush2.msra.mxu0 0.0
  %407 = vmatprep.mubr.f32.mxu0 0.0
  %408 = vmatmul.mubr.f32.gmra.mxu0 %v338
  %v409 = vpop.f32.mrf.mxu0
  %v410 = vadd.f32 0.0, %v409
  %v411 = vpop.f32.mrf.mxu0
  %412 = vmatprep.mubr.f32.mxu0 0.0
  %413 = vmatmul.mubr.f32.gmra.mxu0 %v341
  %v414 = vpop.f32.mrf.mxu0
  %v415 = vadd.f32 0.0, %v414
  %v416 = vpop.f32.mrf.mxu0
  %417 = vdwg.mxu0
  %420 = vset.pattern.permute.xlu0 0
  %421 = vperm.xlu0 %420, %v410
  %v422 = vpop.permute.xlu0 %421
  %423 = vset.pattern.permute.xlu0 0
  %424 = vperm.xlu0 %423, %v415
  %v425 = vpop.permute.xlu0 %424
  %v426 = vlaneseq
  %v427 = vand.u32 %v426, 127
  %v428 = vlaneseq
  %v429 = vshrl.u32 %v428, 7
  %v430 = vsub.s32 %v427, %v429
  %v431 = vrot.slane %v422, %v430
  %v432 = vlaneseq
  %v433 = vshrl.u32 %v432, 7
  %v434 = vsub.s32 %v427, %v433
  %v435 = vrot.slane %v425, %v434
  %vm436 = vcmask 1041409
  %v437 = vsel %vm436, %v435, %v431
  %vm439 = vcmask 58368
  %v440 = vsel %vm439, %v437, -inf
  %441 = vmax.xlane.f32.xlu0 %v440
  %v442 = vpop.xlane.xlu0 %441
  %v444 = vlaneseq
  %v445 = vshrl.u32 %v444, 7
  %v446 = vsub.s32 0, %v445
  %v447 = vrot.slane %v442, %v446
  %v448 = vlaneseq
  %v449 = vshrl.u32 %v448, 7
  %v450 = vsub.s32 1, %v449
  %v451 = vrot.slane %v442, %v450
  %v454 = vsub.f32 %v410, %v447
  %v455 = vsub.f32 %v415, %v451
  %v456 = vmul.f32 %v454, 1.442695
  %v457 = vpow.pop %v456
  %v458 = vmul.f32 %v455, 1.442695
  %v459 = vpow.pop %v458
  %462 = vset.pattern.permute.xlu0 0
  %463 = vperm.xlu0 %462, %v457
  %v464 = vpop.permute.xlu0 %463
  %465 = vset.pattern.permute.xlu0 0
  %466 = vperm.xlu0 %465, %v459
  %v467 = vpop.permute.xlu0 %466
  %v468 = vlaneseq
  %v469 = vshrl.u32 %v468, 7
  %v470 = vsub.s32 %v427, %v469
  %v471 = vrot.slane %v464, %v470
  %v472 = vlaneseq
  %v473 = vshrl.u32 %v472, 7
  %v474 = vsub.s32 %v427, %v473
  %v475 = vrot.slane %v467, %v474
  %v476 = vsel %vm436, %v475, %v471
  %v478 = vsel %vm439, %v476, 0.0
  %479 = vadd.xlane.f32.xlu0 %v478
  %v480 = vpop.xlane.xlu0 %479
  %v482 = vlaneseq
  %v483 = vshrl.u32 %v482, 7
  %v484 = vsub.s32 0, %v483
  %v485 = vrot.slane %v480, %v484
  %v486 = vlaneseq
  %v487 = vshrl.u32 %v486, 7
  %v488 = vsub.s32 1, %v487
  %v489 = vrot.slane %v480, %v488
  %v492 = vrcp.pop %v485
  %v493 = vmul.f32 %v457, %v492
  %v494 = vrcp.pop %v489
  %v495 = vmul.f32 %v459, %v494
  %497 = vset.pattern.permute.xlu0 0
  %498 = vperm.xlu0 %497, %v493
  %v499 = vpop.permute.xlu0 %498
  %502 = vset.pattern.permute.xlu0 0
  %503 = vperm.xlu0 %502, %v495
  %v504 = vpop.permute.xlu0 %503
  %v506 = vmul.f32 %v499, %v53
  %v507 = vmul.f32 %v504, %v54
  %v508 = vsel %vm67, %v506, 0.0
  %v509 = vrot.slane %v508, 4
  %v510 = vadd.f32 %v508, %v509
  %v511 = vrot.slane %v510, 2
  %v512 = vadd.f32 %v510, %v511
  %v513 = vrot.slane %v512, 1
  %v514 = vadd.f32 %v512, %v513
  %v515 = vsel %vm67, %v507, 0.0
  %v516 = vrot.slane %v515, 4
  %v517 = vadd.f32 %v515, %v516
  %v518 = vrot.slane %v517, 2
  %v519 = vadd.f32 %v517, %v518
  %v520 = vrot.slane %v519, 1
  %v521 = vadd.f32 %v519, %v520
  %v522 = vld [vmem:[%s11] sm:$0xff]
  %v523 = vld [vmem:[%s11 + $0x8] sm:$0xff]
  %v524 = vld [vmem:[%s11 + $0x10] sm:$0xff]
  %v525 = vld [vmem:[%s11 + $0x18] sm:$0xff]
  %v526 = vld [vmem:[%s13] sm:$0x1]
  %v528 = vlaneseq
  %v529 = vshrl.u32 %v528, 7
  %v530 = vsub.s32 0, %v529
  %v531 = vrot.slane %v526, %v530
  %v535 = vsel %vm436, %v521, %v514
  %v536 = vsel %vm67, %v535, 0
  %538 = vmatprep.subr.mxu0 0.0
  %539 = vmatpush1.msra.mxu0 0.0
  %540 = vmatprep.subr.mxu0 0.0
  %541 = vmatpush1.msra.mxu0 0.0
  %542 = vmatprep.subr.mxu0 0.0
  %543 = vmatpush1.msra.mxu0 0.0
  %544 = vmatprep.subr.mxu0 0.0
  %545 = vmatpush1.msra.mxu0 0.0
  %546 = vmatprep.subr.mxu0 0.0
  %547 = vmatpush1.msra.mxu0 0.0
  %548 = vmatprep.subr.mxu0 0.0
  %549 = vmatpush1.msra.mxu0 0.0
  %550 = vmatprep.subr.mxu0 0.0
  %551 = vmatpush1.msra.mxu0 0.0
  %552 = vmatprep.subr.mxu0 0.0
  %553 = vmatpush1.msra.mxu0 0.0
  %554 = vmatprep.subr.mxu0 0.0
  %555 = vmatpush1.msra.mxu0 0.0
  %556 = vmatprep.subr.mxu0 0.0
  %557 = vmatpush1.msra.mxu0 0.0
  %558 = vmatprep.subr.mxu0 0.0
  %559 = vmatpush1.msra.mxu0 0.0
  %560 = vmatprep.subr.mxu0 0.0
  %561 = vmatpush1.msra.mxu0 0.0
  %562 = vmatprep.subr.mxu0 0.0
  %563 = vmatpush1.msra.mxu0 %v525
  %564 = vmatprep.subr.mxu0 0.0
  %565 = vmatpush1.msra.mxu0 %v524
  %566 = vmatprep.subr.mxu0 0.0
  %567 = vmatpush1.msra.mxu0 %v523
  %568 = vmatprep.subr.mxu0 0.0
  %569 = vmatpush1.msra.mxu0 %v522
  %570 = vmatprep.subr.mxu0 0.0
  %571 = vmatpush2.msra.mxu0 0.0
  %572 = vmatprep.subr.mxu0 0.0
  %573 = vmatpush2.msra.mxu0 0.0
  %574 = vmatprep.subr.mxu0 0.0
  %575 = vmatpush2.msra.mxu0 0.0
  %576 = vmatprep.subr.mxu0 0.0
  %577 = vmatpush2.msra.mxu0 0.0
  %578 = vmatprep.subr.mxu0 0.0
  %579 = vmatpush2.msra.mxu0 0.0
  %580 = vmatprep.subr.mxu0 0.0
  %581 = vmatpush2.msra.mxu0 0.0
  %582 = vmatprep.subr.mxu0 0.0
  %583 = vmatpush2.msra.mxu0 0.0
  %584 = vmatprep.subr.mxu0 0.0
  %585 = vmatpush2.msra.mxu0 0.0
  %586 = vmatprep.subr.mxu0 0.0
  %587 = vmatpush2.msra.mxu0 0.0
  %588 = vmatprep.subr.mxu0 0.0
  %589 = vmatpush2.msra.mxu0 0.0
  %590 = vmatprep.subr.mxu0 0.0
  %591 = vmatpush2.msra.mxu0 0.0
  %592 = vmatprep.subr.mxu0 0.0
  %593 = vmatpush2.msra.mxu0 0.0
  %594 = vmatprep.subr.mxu0 0.0
  %595 = vmatpush2.msra.mxu0 0.0
  %596 = vmatprep.subr.mxu0 0.0
  %597 = vmatpush2.msra.mxu0 0.0
  %598 = vmatprep.subr.mxu0 0.0
  %599 = vmatpush2.msra.mxu0 0.0
  %600 = vmatprep.subr.mxu0 0.0
  %601 = vmatpush2.msra.mxu0 0.0
  %602 = vmatprep.mubr.f32.mxu0 0.0
  %603 = vmatmul.mubr.f32.gmra.mxu0 %v536
  %v604 = vpop.f32.mrf.mxu0
  %v605 = vadd.f32 %v531, %v604
  %v606 = vpop.f32.mrf.mxu0
  %607 = vdwg.mxu0
  %s608 = scalar_lea.vmem %s11, 32
  %v609 = vld [vmem:[%s608] sm:$0xff]
  %v610 = vld [vmem:[%s608 + $0x8] sm:$0xff]
  %v611 = vld [vmem:[%s608 + $0x10] sm:$0xff]
  %v612 = vld [vmem:[%s608 + $0x18] sm:$0xff]
  %s613 = scalar_lea.vmem %s13, 1
  %v614 = vld [vmem:[%s613] sm:$0x1]
  %v616 = vlaneseq
  %v617 = vshrl.u32 %v616, 7
  %v618 = vsub.s32 0, %v617
  %v619 = vrot.slane %v614, %v618
  %621 = vmatprep.subr.mxu0 0.0
  %622 = vmatpush1.msra.mxu0 0.0
  %623 = vmatprep.subr.mxu0 0.0
  %624 = vmatpush1.msra.mxu0 0.0
  %625 = vmatprep.subr.mxu0 0.0
  %626 = vmatpush1.msra.mxu0 0.0
  %627 = vmatprep.subr.mxu0 0.0
  %628 = vmatpush1.msra.mxu0 0.0
  %629 = vmatprep.subr.mxu0 0.0
  %630 = vmatpush1.msra.mxu0 0.0
  %631 = vmatprep.subr.mxu0 0.0
  %632 = vmatpush1.msra.mxu0 0.0
  %633 = vmatprep.subr.mxu0 0.0
  %634 = vmatpush1.msra.mxu0 0.0
  %635 = vmatprep.subr.mxu0 0.0
  %636 = vmatpush1.msra.mxu0 0.0
  %637 = vmatprep.subr.mxu0 0.0
  %638 = vmatpush1.msra.mxu0 0.0
  %639 = vmatprep.subr.mxu0 0.0
  %640 = vmatpush1.msra.mxu0 0.0
  %641 = vmatprep.subr.mxu0 0.0
  %642 = vmatpush1.msra.mxu0 0.0
  %643 = vmatprep.subr.mxu0 0.0
  %644 = vmatpush1.msra.mxu0 0.0
  %645 = vmatprep.subr.mxu0 0.0
  %646 = vmatpush1.msra.mxu0 %v612
  %647 = vmatprep.subr.mxu0 0.0
  %648 = vmatpush1.msra.mxu0 %v611
  %649 = vmatprep.subr.mxu0 0.0
  %650 = vmatpush1.msra.mxu0 %v610
  %651 = vmatprep.subr.mxu0 0.0
  %652 = vmatpush1.msra.mxu0 %v609
  %653 = vmatprep.subr.mxu0 0.0
  %654 = vmatpush2.msra.mxu0 0.0
  %655 = vmatprep.subr.mxu0 0.0
  %656 = vmatpush2.msra.mxu0 0.0
  %657 = vmatprep.subr.mxu0 0.0
  %658 = vmatpush2.msra.mxu0 0.0
  %659 = vmatprep.subr.mxu0 0.0
  %660 = vmatpush2.msra.mxu0 0.0
  %661 = vmatprep.subr.mxu0 0.0
  %662 = vmatpush2.msra.mxu0 0.0
  %663 = vmatprep.subr.mxu0 0.0
  %664 = vmatpush2.msra.mxu0 0.0
  %665 = vmatprep.subr.mxu0 0.0
  %666 = vmatpush2.msra.mxu0 0.0
  %667 = vmatprep.subr.mxu0 0.0
  %668 = vmatpush2.msra.mxu0 0.0
  %669 = vmatprep.subr.mxu0 0.0
  %670 = vmatpush2.msra.mxu0 0.0
  %671 = vmatprep.subr.mxu0 0.0
  %672 = vmatpush2.msra.mxu0 0.0
  %673 = vmatprep.subr.mxu0 0.0
  %674 = vmatpush2.msra.mxu0 0.0
  %675 = vmatprep.subr.mxu0 0.0
  %676 = vmatpush2.msra.mxu0 0.0
  %677 = vmatprep.subr.mxu0 0.0
  %678 = vmatpush2.msra.mxu0 0.0
  %679 = vmatprep.subr.mxu0 0.0
  %680 = vmatpush2.msra.mxu0 0.0
  %681 = vmatprep.subr.mxu0 0.0
  %682 = vmatpush2.msra.mxu0 0.0
  %683 = vmatprep.subr.mxu0 0.0
  %684 = vmatpush2.msra.mxu0 0.0
  %685 = vmatprep.mubr.f32.mxu0 0.0
  %686 = vmatmul.mubr.f32.gmra.mxu0 %v536
  %v687 = vpop.f32.mrf.mxu0
  %v688 = vadd.f32 %v619, %v687
  %v689 = vpop.f32.mrf.mxu0
  %690 = vdwg.mxu0
  %s691 = scalar_lea.vmem %s11, 64
  %v692 = vld [vmem:[%s691] sm:$0xff]
  %v693 = vld [vmem:[%s691 + $0x8] sm:$0xff]
  %v694 = vld [vmem:[%s691 + $0x10] sm:$0xff]
  %v695 = vld [vmem:[%s691 + $0x18] sm:$0xff]
  %s696 = scalar_lea.vmem %s13, 2
  %v697 = vld [vmem:[%s696] sm:$0x1]
  %v699 = vlaneseq
  %v700 = vshrl.u32 %v699, 7
  %v701 = vsub.s32 0, %v700
  %v702 = vrot.slane %v697, %v701
  %704 = vmatprep.subr.mxu0 0.0
  %705 = vmatpush1.msra.mxu0 0.0
  %706 = vmatprep.subr.mxu0 0.0
  %707 = vmatpush1.msra.mxu0 0.0
  %708 = vmatprep.subr.mxu0 0.0
  %709 = vmatpush1.msra.mxu0 0.0
  %710 = vmatprep.subr.mxu0 0.0
  %711 = vmatpush1.msra.mxu0 0.0
  %712 = vmatprep.subr.mxu0 0.0
  %713 = vmatpush1.msra.mxu0 0.0
  %714 = vmatprep.subr.mxu0 0.0
  %715 = vmatpush1.msra.mxu0 0.0
  %716 = vmatprep.subr.mxu0 0.0
  %717 = vmatpush1.msra.mxu0 0.0
  %718 = vmatprep.subr.mxu0 0.0
  %719 = vmatpush1.msra.mxu0 0.0
  %720 = vmatprep.subr.mxu0 0.0
  %721 = vmatpush1.msra.mxu0 0.0
  %722 = vmatprep.subr.mxu0 0.0
  %723 = vmatpush1.msra.mxu0 0.0
  %724 = vmatprep.subr.mxu0 0.0
  %725 = vmatpush1.msra.mxu0 0.0
  %726 = vmatprep.subr.mxu0 0.0
  %727 = vmatpush1.msra.mxu0 0.0
  %728 = vmatprep.subr.mxu0 0.0
  %729 = vmatpush1.msra.mxu0 %v695
  %730 = vmatprep.subr.mxu0 0.0
  %731 = vmatpush1.msra.mxu0 %v694
  %732 = vmatprep.subr.mxu0 0.0
  %733 = vmatpush1.msra.mxu0 %v693
  %734 = vmatprep.subr.mxu0 0.0
  %735 = vmatpush1.msra.mxu0 %v692
  %736 = vmatprep.subr.mxu0 0.0
  %737 = vmatpush2.msra.mxu0 0.0
  %738 = vmatprep.subr.mxu0 0.0
  %739 = vmatpush2.msra.mxu0 0.0
  %740 = vmatprep.subr.mxu0 0.0
  %741 = vmatpush2.msra.mxu0 0.0
  %742 = vmatprep.subr.mxu0 0.0
  %743 = vmatpush2.msra.mxu0 0.0
  %744 = vmatprep.subr.mxu0 0.0
  %745 = vmatpush2.msra.mxu0 0.0
  %746 = vmatprep.subr.mxu0 0.0
  %747 = vmatpush2.msra.mxu0 0.0
  %748 = vmatprep.subr.mxu0 0.0
  %749 = vmatpush2.msra.mxu0 0.0
  %750 = vmatprep.subr.mxu0 0.0
  %751 = vmatpush2.msra.mxu0 0.0
  %752 = vmatprep.subr.mxu0 0.0
  %753 = vmatpush2.msra.mxu0 0.0
  %754 = vmatprep.subr.mxu0 0.0
  %755 = vmatpush2.msra.mxu0 0.0
  %756 = vmatprep.subr.mxu0 0.0
  %757 = vmatpush2.msra.mxu0 0.0
  %758 = vmatprep.subr.mxu0 0.0
  %759 = vmatpush2.msra.mxu0 0.0
  %760 = vmatprep.subr.mxu0 0.0
  %761 = vmatpush2.msra.mxu0 0.0
  %762 = vmatprep.subr.mxu0 0.0
  %763 = vmatpush2.msra.mxu0 0.0
  %764 = vmatprep.subr.mxu0 0.0
  %765 = vmatpush2.msra.mxu0 0.0
  %766 = vmatprep.subr.mxu0 0.0
  %767 = vmatpush2.msra.mxu0 0.0
  %768 = vmatprep.mubr.f32.mxu0 0.0
  %769 = vmatmul.mubr.f32.gmra.mxu0 %v536
  %v770 = vpop.f32.mrf.mxu0
  %v771 = vadd.f32 %v702, %v770
  %v772 = vpop.f32.mrf.mxu0
  %773 = vdwg.mxu0
  %s774 = scalar_lea.vmem %s11, 96
  %v775 = vld [vmem:[%s774] sm:$0xff]
  %v776 = vld [vmem:[%s774 + $0x8] sm:$0xff]
  %v777 = vld [vmem:[%s774 + $0x10] sm:$0xff]
  %v778 = vld [vmem:[%s774 + $0x18] sm:$0xff]
  %s779 = scalar_lea.vmem %s13, 3
  %v780 = vld [vmem:[%s779] sm:$0x1]
  %v782 = vlaneseq
  %v783 = vshrl.u32 %v782, 7
  %v784 = vsub.s32 0, %v783
  %v785 = vrot.slane %v780, %v784
  %787 = vmatprep.subr.mxu0 0.0
  %788 = vmatpush1.msra.mxu0 0.0
  %789 = vmatprep.subr.mxu0 0.0
  %790 = vmatpush1.msra.mxu0 0.0
  %791 = vmatprep.subr.mxu0 0.0
  %792 = vmatpush1.msra.mxu0 0.0
  %793 = vmatprep.subr.mxu0 0.0
  %794 = vmatpush1.msra.mxu0 0.0
  %795 = vmatprep.subr.mxu0 0.0
  %796 = vmatpush1.msra.mxu0 0.0
  %797 = vmatprep.subr.mxu0 0.0
  %798 = vmatpush1.msra.mxu0 0.0
  %799 = vmatprep.subr.mxu0 0.0
  %800 = vmatpush1.msra.mxu0 0.0
  %801 = vmatprep.subr.mxu0 0.0
  %802 = vmatpush1.msra.mxu0 0.0
  %803 = vmatprep.subr.mxu0 0.0
  %804 = vmatpush1.msra.mxu0 0.0
  %805 = vmatprep.subr.mxu0 0.0
  %806 = vmatpush1.msra.mxu0 0.0
  %807 = vmatprep.subr.mxu0 0.0
  %808 = vmatpush1.msra.mxu0 0.0
  %809 = vmatprep.subr.mxu0 0.0
  %810 = vmatpush1.msra.mxu0 0.0
  %811 = vmatprep.subr.mxu0 0.0
  %812 = vmatpush1.msra.mxu0 %v778
  %813 = vmatprep.subr.mxu0 0.0
  %814 = vmatpush1.msra.mxu0 %v777
  %815 = vmatprep.subr.mxu0 0.0
  %816 = vmatpush1.msra.mxu0 %v776
  %817 = vmatprep.subr.mxu0 0.0
  %818 = vmatpush1.msra.mxu0 %v775
  %819 = vmatprep.subr.mxu0 0.0
  %820 = vmatpush2.msra.mxu0 0.0
  %821 = vmatprep.subr.mxu0 0.0
  %822 = vmatpush2.msra.mxu0 0.0
  %823 = vmatprep.subr.mxu0 0.0
  %824 = vmatpush2.msra.mxu0 0.0
  %825 = vmatprep.subr.mxu0 0.0
  %826 = vmatpush2.msra.mxu0 0.0
  %827 = vmatprep.subr.mxu0 0.0
  %828 = vmatpush2.msra.mxu0 0.0
  %829 = vmatprep.subr.mxu0 0.0
  %830 = vmatpush2.msra.mxu0 0.0
  %831 = vmatprep.subr.mxu0 0.0
  %832 = vmatpush2.msra.mxu0 0.0
  %833 = vmatprep.subr.mxu0 0.0
  %834 = vmatpush2.msra.mxu0 0.0
  %835 = vmatprep.subr.mxu0 0.0
  %836 = vmatpush2.msra.mxu0 0.0
  %837 = vmatprep.subr.mxu0 0.0
  %838 = vmatpush2.msra.mxu0 0.0
  %839 = vmatprep.subr.mxu0 0.0
  %840 = vmatpush2.msra.mxu0 0.0
  %841 = vmatprep.subr.mxu0 0.0
  %842 = vmatpush2.msra.mxu0 0.0
  %843 = vmatprep.subr.mxu0 0.0
  %844 = vmatpush2.msra.mxu0 0.0
  %845 = vmatprep.subr.mxu0 0.0
  %846 = vmatpush2.msra.mxu0 0.0
  %847 = vmatprep.subr.mxu0 0.0
  %848 = vmatpush2.msra.mxu0 0.0
  %849 = vmatprep.subr.mxu0 0.0
  %850 = vmatpush2.msra.mxu0 0.0
  %851 = vmatprep.mubr.f32.mxu0 0.0
  %852 = vmatmul.mubr.f32.gmra.mxu0 %v536
  %v853 = vpop.f32.mrf.mxu0
  %v854 = vadd.f32 %v785, %v853
  %v855 = vpop.f32.mrf.mxu0
  %856 = vdwg.mxu0
  %v857 = vld [vmem:[%s10] sm:$0xff]
  %v858 = vld [vmem:[%s10 + $0x8] sm:$0xff]
  %v859 = vld [vmem:[%s10 + $0x10] sm:$0xff]
  %v860 = vld [vmem:[%s10 + $0x18] sm:$0xff]
  %s861 = scalar_lea.vmem %s10, 32
  %v862 = vld [vmem:[%s861] sm:$0xff]
  %v863 = vld [vmem:[%s861 + $0x8] sm:$0xff]
  %v864 = vld [vmem:[%s861 + $0x10] sm:$0xff]
  %v865 = vld [vmem:[%s861 + $0x18] sm:$0xff]
  %s866 = scalar_lea.vmem %s10, 64
  %v867 = vld [vmem:[%s866] sm:$0xff]
  %v868 = vld [vmem:[%s866 + $0x8] sm:$0xff]
  %v869 = vld [vmem:[%s866 + $0x10] sm:$0xff]
  %v870 = vld [vmem:[%s866 + $0x18] sm:$0xff]
  %s871 = scalar_lea.vmem %s10, 96
  %v872 = vld [vmem:[%s871] sm:$0xff]
  %v873 = vld [vmem:[%s871 + $0x8] sm:$0xff]
  %v874 = vld [vmem:[%s871 + $0x10] sm:$0xff]
  %v875 = vld [vmem:[%s871 + $0x18] sm:$0xff]
  %v876 = vld [vmem:[%s12] sm:$0xff]
  %v877 = vld [vmem:[%s12 + $0x8] sm:$0xff]
  %v878 = vld [vmem:[%s12 + $0x10] sm:$0xff]
  %v879 = vld [vmem:[%s12 + $0x18] sm:$0xff]
  %s880 = scalar_lea.vmem %s12, 32
  %v881 = vld [vmem:[%s880] sm:$0xff]
  %v882 = vld [vmem:[%s880 + $0x8] sm:$0xff]
  %v883 = vld [vmem:[%s880 + $0x10] sm:$0xff]
  %v884 = vld [vmem:[%s880 + $0x18] sm:$0xff]
  %s885 = scalar_lea.vmem %s12, 64
  %v886 = vld [vmem:[%s885] sm:$0xff]
  %v887 = vld [vmem:[%s885 + $0x8] sm:$0xff]
  %v888 = vld [vmem:[%s885 + $0x10] sm:$0xff]
  %v889 = vld [vmem:[%s885 + $0x18] sm:$0xff]
  %s890 = scalar_lea.vmem %s12, 96
  %v891 = vld [vmem:[%s890] sm:$0xff]
  %v892 = vld [vmem:[%s890 + $0x8] sm:$0xff]
  %v893 = vld [vmem:[%s890 + $0x10] sm:$0xff]
  %v894 = vld [vmem:[%s890 + $0x18] sm:$0xff]
  %v895 = vld [vmem:[%s14] sm:$0xff]
  %v896 = vld [vmem:[%s14 + $0x8] sm:$0xff]
  %v897 = vld [vmem:[%s14 + $0x10] sm:$0xff]
  %v898 = vld [vmem:[%s14 + $0x18] sm:$0xff]
  %v899 = vld [vmem:[%s15] sm:$0x1]
  %v900 = vld [vmem:[%s0] sm:$0x3]
  %v902 = vsel %vm67, %v55, 0
  %904 = vmatprep.subr.mxu0 0.0
  %905 = vmatpush1.msra.mxu0 0.0
  %906 = vmatprep.subr.mxu0 0.0
  %907 = vmatpush1.msra.mxu0 0.0
  %908 = vmatprep.subr.mxu0 0.0
  %909 = vmatpush1.msra.mxu0 0.0
  %910 = vmatprep.subr.mxu0 0.0
  %911 = vmatpush1.msra.mxu0 0.0
  %912 = vmatprep.subr.mxu0 0.0
  %913 = vmatpush1.msra.mxu0 0.0
  %914 = vmatprep.subr.mxu0 0.0
  %915 = vmatpush1.msra.mxu0 0.0
  %916 = vmatprep.subr.mxu0 0.0
  %917 = vmatpush1.msra.mxu0 0.0
  %918 = vmatprep.subr.mxu0 0.0
  %919 = vmatpush1.msra.mxu0 0.0
  %920 = vmatprep.subr.mxu0 0.0
  %921 = vmatpush1.msra.mxu0 0.0
  %922 = vmatprep.subr.mxu0 0.0
  %923 = vmatpush1.msra.mxu0 0.0
  %924 = vmatprep.subr.mxu0 0.0
  %925 = vmatpush1.msra.mxu0 0.0
  %926 = vmatprep.subr.mxu0 0.0
  %927 = vmatpush1.msra.mxu0 0.0
  %928 = vmatprep.subr.mxu0 0.0
  %929 = vmatpush1.msra.mxu0 %v879
  %930 = vmatprep.subr.mxu0 0.0
  %931 = vmatpush1.msra.mxu0 %v878
  %932 = vmatprep.subr.mxu0 0.0
  %933 = vmatpush1.msra.mxu0 %v877
  %934 = vmatprep.subr.mxu0 0.0
  %935 = vmatpush1.msra.mxu0 %v876
  %936 = vmatprep.subr.mxu0 0.0
  %937 = vmatpush2.msra.mxu0 0.0
  %938 = vmatprep.subr.mxu0 0.0
  %939 = vmatpush2.msra.mxu0 0.0
  %940 = vmatprep.subr.mxu0 0.0
  %941 = vmatpush2.msra.mxu0 0.0
  %942 = vmatprep.subr.mxu0 0.0
  %943 = vmatpush2.msra.mxu0 0.0
  %944 = vmatprep.subr.mxu0 0.0
  %945 = vmatpush2.msra.mxu0 0.0
  %946 = vmatprep.subr.mxu0 0.0
  %947 = vmatpush2.msra.mxu0 0.0
  %948 = vmatprep.subr.mxu0 0.0
  %949 = vmatpush2.msra.mxu0 0.0
  %950 = vmatprep.subr.mxu0 0.0
  %951 = vmatpush2.msra.mxu0 0.0
  %952 = vmatprep.subr.mxu0 0.0
  %953 = vmatpush2.msra.mxu0 0.0
  %954 = vmatprep.subr.mxu0 0.0
  %955 = vmatpush2.msra.mxu0 0.0
  %956 = vmatprep.subr.mxu0 0.0
  %957 = vmatpush2.msra.mxu0 0.0
  %958 = vmatprep.subr.mxu0 0.0
  %959 = vmatpush2.msra.mxu0 0.0
  %960 = vmatprep.subr.mxu0 0.0
  %961 = vmatpush2.msra.mxu0 0.0
  %962 = vmatprep.subr.mxu0 0.0
  %963 = vmatpush2.msra.mxu0 0.0
  %964 = vmatprep.subr.mxu0 0.0
  %965 = vmatpush2.msra.mxu0 0.0
  %966 = vmatprep.subr.mxu0 0.0
  %967 = vmatpush2.msra.mxu0 0.0
  %968 = vmatprep.mubr.f32.mxu0 0.0
  %969 = vmatmul.mubr.f32.gmra.mxu0 %v902
  %v970 = vpop.f32.mrf.mxu0
  %v971 = vadd.f32 0.0, %v970
  %v972 = vpop.f32.mrf.mxu0
  %973 = vdwg.mxu0
  %v975 = vsel %vm67, %v900, 0
  %977 = vmatprep.subr.mxu0 0.0
  %978 = vmatpush1.msra.mxu0 0.0
  %979 = vmatprep.subr.mxu0 0.0
  %980 = vmatpush1.msra.mxu0 0.0
  %981 = vmatprep.subr.mxu0 0.0
  %982 = vmatpush1.msra.mxu0 0.0
  %983 = vmatprep.subr.mxu0 0.0
  %984 = vmatpush1.msra.mxu0 0.0
  %985 = vmatprep.subr.mxu0 0.0
  %986 = vmatpush1.msra.mxu0 0.0
  %987 = vmatprep.subr.mxu0 0.0
  %988 = vmatpush1.msra.mxu0 0.0
  %989 = vmatprep.subr.mxu0 0.0
  %990 = vmatpush1.msra.mxu0 0.0
  %991 = vmatprep.subr.mxu0 0.0
  %992 = vmatpush1.msra.mxu0 0.0
  %993 = vmatprep.subr.mxu0 0.0
  %994 = vmatpush1.msra.mxu0 0.0
  %995 = vmatprep.subr.mxu0 0.0
  %996 = vmatpush1.msra.mxu0 0.0
  %997 = vmatprep.subr.mxu0 0.0
  %998 = vmatpush1.msra.mxu0 0.0
  %999 = vmatprep.subr.mxu0 0.0
  %1000 = vmatpush1.msra.mxu0 0.0
  %1001 = vmatprep.subr.mxu0 0.0
  %1002 = vmatpush1.msra.mxu0 %v860
  %1003 = vmatprep.subr.mxu0 0.0
  %1004 = vmatpush1.msra.mxu0 %v859
  %1005 = vmatprep.subr.mxu0 0.0
  %1006 = vmatpush1.msra.mxu0 %v858
  %1007 = vmatprep.subr.mxu0 0.0
  %1008 = vmatpush1.msra.mxu0 %v857
  %1009 = vmatprep.subr.mxu0 0.0
  %1010 = vmatpush2.msra.mxu0 0.0
  %1011 = vmatprep.subr.mxu0 0.0
  %1012 = vmatpush2.msra.mxu0 0.0
  %1013 = vmatprep.subr.mxu0 0.0
  %1014 = vmatpush2.msra.mxu0 0.0
  %1015 = vmatprep.subr.mxu0 0.0
  %1016 = vmatpush2.msra.mxu0 0.0
  %1017 = vmatprep.subr.mxu0 0.0
  %1018 = vmatpush2.msra.mxu0 0.0
  %1019 = vmatprep.subr.mxu0 0.0
  %1020 = vmatpush2.msra.mxu0 0.0
  %1021 = vmatprep.subr.mxu0 0.0
  %1022 = vmatpush2.msra.mxu0 0.0
  %1023 = vmatprep.subr.mxu0 0.0
  %1024 = vmatpush2.msra.mxu0 0.0
  %1025 = vmatprep.subr.mxu0 0.0
  %1026 = vmatpush2.msra.mxu0 0.0
  %1027 = vmatprep.subr.mxu0 0.0
  %1028 = vmatpush2.msra.mxu0 0.0
  %1029 = vmatprep.subr.mxu0 0.0
  %1030 = vmatpush2.msra.mxu0 0.0
  %1031 = vmatprep.subr.mxu0 0.0
  %1032 = vmatpush2.msra.mxu0 0.0
  %1033 = vmatprep.subr.mxu0 0.0
  %1034 = vmatpush2.msra.mxu0 0.0
  %1035 = vmatprep.subr.mxu0 0.0
  %1036 = vmatpush2.msra.mxu0 0.0
  %1037 = vmatprep.subr.mxu0 0.0
  %1038 = vmatpush2.msra.mxu0 0.0
  %1039 = vmatprep.subr.mxu0 0.0
  %1040 = vmatpush2.msra.mxu0 0.0
  %1041 = vmatprep.mubr.f32.mxu0 0.0
  %1042 = vmatmul.mubr.f32.gmra.mxu0 %v975
  %v1043 = vpop.f32.mrf.mxu0
  %v1044 = vadd.f32 %v971, %v1043
  %v1045 = vpop.f32.mrf.mxu0
  %1046 = vdwg.mxu0
  %v1047 = vadd.f32 %v1044, %v605
  %v1048 = vxor.u32 %v1047, 2147483648
  %v1049 = vmul.f32 %v1048, 1.442695
  %v1050 = vpow.pop %v1049
  %v1051 = vadd.f32 %v1050, 1.0
  %v1052 = vrcp.pop %v1051
  %v1053 = vmul.f32 1.0, %v1052
  %1054 = vmatprep.subr.mxu0 0.0
  %1055 = vmatpush1.msra.mxu0 0.0
  %1056 = vmatprep.subr.mxu0 0.0
  %1057 = vmatpush1.msra.mxu0 0.0
  %1058 = vmatprep.subr.mxu0 0.0
  %1059 = vmatpush1.msra.mxu0 0.0
  %1060 = vmatprep.subr.mxu0 0.0
  %1061 = vmatpush1.msra.mxu0 0.0
  %1062 = vmatprep.subr.mxu0 0.0
  %1063 = vmatpush1.msra.mxu0 0.0
  %1064 = vmatprep.subr.mxu0 0.0
  %1065 = vmatpush1.msra.mxu0 0.0
  %1066 = vmatprep.subr.mxu0 0.0
  %1067 = vmatpush1.msra.mxu0 0.0
  %1068 = vmatprep.subr.mxu0 0.0
  %1069 = vmatpush1.msra.mxu0 0.0
  %1070 = vmatprep.subr.mxu0 0.0
  %1071 = vmatpush1.msra.mxu0 0.0
  %1072 = vmatprep.subr.mxu0 0.0
  %1073 = vmatpush1.msra.mxu0 0.0
  %1074 = vmatprep.subr.mxu0 0.0
  %1075 = vmatpush1.msra.mxu0 0.0
  %1076 = vmatprep.subr.mxu0 0.0
  %1077 = vmatpush1.msra.mxu0 0.0
  %1078 = vmatprep.subr.mxu0 0.0
  %1079 = vmatpush1.msra.mxu0 %v884
  %1080 = vmatprep.subr.mxu0 0.0
  %1081 = vmatpush1.msra.mxu0 %v883
  %1082 = vmatprep.subr.mxu0 0.0
  %1083 = vmatpush1.msra.mxu0 %v882
  %1084 = vmatprep.subr.mxu0 0.0
  %1085 = vmatpush1.msra.mxu0 %v881
  %1086 = vmatprep.subr.mxu0 0.0
  %1087 = vmatpush2.msra.mxu0 0.0
  %1088 = vmatprep.subr.mxu0 0.0
  %1089 = vmatpush2.msra.mxu0 0.0
  %1090 = vmatprep.subr.mxu0 0.0
  %1091 = vmatpush2.msra.mxu0 0.0
  %1092 = vmatprep.subr.mxu0 0.0
  %1093 = vmatpush2.msra.mxu0 0.0
  %1094 = vmatprep.subr.mxu0 0.0
  %1095 = vmatpush2.msra.mxu0 0.0
  %1096 = vmatprep.subr.mxu0 0.0
  %1097 = vmatpush2.msra.mxu0 0.0
  %1098 = vmatprep.subr.mxu0 0.0
  %1099 = vmatpush2.msra.mxu0 0.0
  %1100 = vmatprep.subr.mxu0 0.0
  %1101 = vmatpush2.msra.mxu0 0.0
  %1102 = vmatprep.subr.mxu0 0.0
  %1103 = vmatpush2.msra.mxu0 0.0
  %1104 = vmatprep.subr.mxu0 0.0
  %1105 = vmatpush2.msra.mxu0 0.0
  %1106 = vmatprep.subr.mxu0 0.0
  %1107 = vmatpush2.msra.mxu0 0.0
  %1108 = vmatprep.subr.mxu0 0.0
  %1109 = vmatpush2.msra.mxu0 0.0
  %1110 = vmatprep.subr.mxu0 0.0
  %1111 = vmatpush2.msra.mxu0 0.0
  %1112 = vmatprep.subr.mxu0 0.0
  %1113 = vmatpush2.msra.mxu0 0.0
  %1114 = vmatprep.subr.mxu0 0.0
  %1115 = vmatpush2.msra.mxu0 0.0
  %1116 = vmatprep.subr.mxu0 0.0
  %1117 = vmatpush2.msra.mxu0 0.0
  %1118 = vmatprep.mubr.f32.mxu0 0.0
  %1119 = vmatmul.mubr.f32.gmra.mxu0 %v902
  %v1120 = vpop.f32.mrf.mxu0
  %v1121 = vadd.f32 0.0, %v1120
  %v1122 = vpop.f32.mrf.mxu0
  %1123 = vdwg.mxu0
  %1124 = vmatprep.subr.mxu0 0.0
  %1125 = vmatpush1.msra.mxu0 0.0
  %1126 = vmatprep.subr.mxu0 0.0
  %1127 = vmatpush1.msra.mxu0 0.0
  %1128 = vmatprep.subr.mxu0 0.0
  %1129 = vmatpush1.msra.mxu0 0.0
  %1130 = vmatprep.subr.mxu0 0.0
  %1131 = vmatpush1.msra.mxu0 0.0
  %1132 = vmatprep.subr.mxu0 0.0
  %1133 = vmatpush1.msra.mxu0 0.0
  %1134 = vmatprep.subr.mxu0 0.0
  %1135 = vmatpush1.msra.mxu0 0.0
  %1136 = vmatprep.subr.mxu0 0.0
  %1137 = vmatpush1.msra.mxu0 0.0
  %1138 = vmatprep.subr.mxu0 0.0
  %1139 = vmatpush1.msra.mxu0 0.0
  %1140 = vmatprep.subr.mxu0 0.0
  %1141 = vmatpush1.msra.mxu0 0.0
  %1142 = vmatprep.subr.mxu0 0.0
  %1143 = vmatpush1.msra.mxu0 0.0
  %1144 = vmatprep.subr.mxu0 0.0
  %1145 = vmatpush1.msra.mxu0 0.0
  %1146 = vmatprep.subr.mxu0 0.0
  %1147 = vmatpush1.msra.mxu0 0.0
  %1148 = vmatprep.subr.mxu0 0.0
  %1149 = vmatpush1.msra.mxu0 %v865
  %1150 = vmatprep.subr.mxu0 0.0
  %1151 = vmatpush1.msra.mxu0 %v864
  %1152 = vmatprep.subr.mxu0 0.0
  %1153 = vmatpush1.msra.mxu0 %v863
  %1154 = vmatprep.subr.mxu0 0.0
  %1155 = vmatpush1.msra.mxu0 %v862
  %1156 = vmatprep.subr.mxu0 0.0
  %1157 = vmatpush2.msra.mxu0 0.0
  %1158 = vmatprep.subr.mxu0 0.0
  %1159 = vmatpush2.msra.mxu0 0.0
  %1160 = vmatprep.subr.mxu0 0.0
  %1161 = vmatpush2.msra.mxu0 0.0
  %1162 = vmatprep.subr.mxu0 0.0
  %1163 = vmatpush2.msra.mxu0 0.0
  %1164 = vmatprep.subr.mxu0 0.0
  %1165 = vmatpush2.msra.mxu0 0.0
  %1166 = vmatprep.subr.mxu0 0.0
  %1167 = vmatpush2.msra.mxu0 0.0
  %1168 = vmatprep.subr.mxu0 0.0
  %1169 = vmatpush2.msra.mxu0 0.0
  %1170 = vmatprep.subr.mxu0 0.0
  %1171 = vmatpush2.msra.mxu0 0.0
  %1172 = vmatprep.subr.mxu0 0.0
  %1173 = vmatpush2.msra.mxu0 0.0
  %1174 = vmatprep.subr.mxu0 0.0
  %1175 = vmatpush2.msra.mxu0 0.0
  %1176 = vmatprep.subr.mxu0 0.0
  %1177 = vmatpush2.msra.mxu0 0.0
  %1178 = vmatprep.subr.mxu0 0.0
  %1179 = vmatpush2.msra.mxu0 0.0
  %1180 = vmatprep.subr.mxu0 0.0
  %1181 = vmatpush2.msra.mxu0 0.0
  %1182 = vmatprep.subr.mxu0 0.0
  %1183 = vmatpush2.msra.mxu0 0.0
  %1184 = vmatprep.subr.mxu0 0.0
  %1185 = vmatpush2.msra.mxu0 0.0
  %1186 = vmatprep.subr.mxu0 0.0
  %1187 = vmatpush2.msra.mxu0 0.0
  %1188 = vmatprep.mubr.f32.mxu0 0.0
  %1189 = vmatmul.mubr.f32.gmra.mxu0 %v975
  %v1190 = vpop.f32.mrf.mxu0
  %v1191 = vadd.f32 %v1121, %v1190
  %v1192 = vpop.f32.mrf.mxu0
  %1193 = vdwg.mxu0
  %v1194 = vadd.f32 %v1191, %v688
  %v1195 = vxor.u32 %v1194, 2147483648
  %v1196 = vmul.f32 %v1195, 1.442695
  %v1197 = vpow.pop %v1196
  %v1198 = vadd.f32 %v1197, 1.0
  %v1199 = vrcp.pop %v1198
  %v1200 = vmul.f32 1.0, %v1199
  %1201 = vmatprep.subr.mxu0 0.0
  %1202 = vmatpush1.msra.mxu0 0.0
  %1203 = vmatprep.subr.mxu0 0.0
  %1204 = vmatpush1.msra.mxu0 0.0
  %1205 = vmatprep.subr.mxu0 0.0
  %1206 = vmatpush1.msra.mxu0 0.0
  %1207 = vmatprep.subr.mxu0 0.0
  %1208 = vmatpush1.msra.mxu0 0.0
  %1209 = vmatprep.subr.mxu0 0.0
  %1210 = vmatpush1.msra.mxu0 0.0
  %1211 = vmatprep.subr.mxu0 0.0
  %1212 = vmatpush1.msra.mxu0 0.0
  %1213 = vmatprep.subr.mxu0 0.0
  %1214 = vmatpush1.msra.mxu0 0.0
  %1215 = vmatprep.subr.mxu0 0.0
  %1216 = vmatpush1.msra.mxu0 0.0
  %1217 = vmatprep.subr.mxu0 0.0
  %1218 = vmatpush1.msra.mxu0 0.0
  %1219 = vmatprep.subr.mxu0 0.0
  %1220 = vmatpush1.msra.mxu0 0.0
  %1221 = vmatprep.subr.mxu0 0.0
  %1222 = vmatpush1.msra.mxu0 0.0
  %1223 = vmatprep.subr.mxu0 0.0
  %1224 = vmatpush1.msra.mxu0 0.0
  %1225 = vmatprep.subr.mxu0 0.0
  %1226 = vmatpush1.msra.mxu0 %v889
  %1227 = vmatprep.subr.mxu0 0.0
  %1228 = vmatpush1.msra.mxu0 %v888
  %1229 = vmatprep.subr.mxu0 0.0
  %1230 = vmatpush1.msra.mxu0 %v887
  %1231 = vmatprep.subr.mxu0 0.0
  %1232 = vmatpush1.msra.mxu0 %v886
  %1233 = vmatprep.subr.mxu0 0.0
  %1234 = vmatpush2.msra.mxu0 0.0
  %1235 = vmatprep.subr.mxu0 0.0
  %1236 = vmatpush2.msra.mxu0 0.0
  %1237 = vmatprep.subr.mxu0 0.0
  %1238 = vmatpush2.msra.mxu0 0.0
  %1239 = vmatprep.subr.mxu0 0.0
  %1240 = vmatpush2.msra.mxu0 0.0
  %1241 = vmatprep.subr.mxu0 0.0
  %1242 = vmatpush2.msra.mxu0 0.0
  %1243 = vmatprep.subr.mxu0 0.0
  %1244 = vmatpush2.msra.mxu0 0.0
  %1245 = vmatprep.subr.mxu0 0.0
  %1246 = vmatpush2.msra.mxu0 0.0
  %1247 = vmatprep.subr.mxu0 0.0
  %1248 = vmatpush2.msra.mxu0 0.0
  %1249 = vmatprep.subr.mxu0 0.0
  %1250 = vmatpush2.msra.mxu0 0.0
  %1251 = vmatprep.subr.mxu0 0.0
  %1252 = vmatpush2.msra.mxu0 0.0
  %1253 = vmatprep.subr.mxu0 0.0
  %1254 = vmatpush2.msra.mxu0 0.0
  %1255 = vmatprep.subr.mxu0 0.0
  %1256 = vmatpush2.msra.mxu0 0.0
  %1257 = vmatprep.subr.mxu0 0.0
  %1258 = vmatpush2.msra.mxu0 0.0
  %1259 = vmatprep.subr.mxu0 0.0
  %1260 = vmatpush2.msra.mxu0 0.0
  %1261 = vmatprep.subr.mxu0 0.0
  %1262 = vmatpush2.msra.mxu0 0.0
  %1263 = vmatprep.subr.mxu0 0.0
  %1264 = vmatpush2.msra.mxu0 0.0
  %1265 = vmatprep.mubr.f32.mxu0 0.0
  %1266 = vmatmul.mubr.f32.gmra.mxu0 %v902
  %v1267 = vpop.f32.mrf.mxu0
  %v1268 = vadd.f32 0.0, %v1267
  %v1269 = vpop.f32.mrf.mxu0
  %1270 = vdwg.mxu0
  %1271 = vmatprep.subr.mxu0 0.0
  %1272 = vmatpush1.msra.mxu0 0.0
  %1273 = vmatprep.subr.mxu0 0.0
  %1274 = vmatpush1.msra.mxu0 0.0
  %1275 = vmatprep.subr.mxu0 0.0
  %1276 = vmatpush1.msra.mxu0 0.0
  %1277 = vmatprep.subr.mxu0 0.0
  %1278 = vmatpush1.msra.mxu0 0.0
  %1279 = vmatprep.subr.mxu0 0.0
  %1280 = vmatpush1.msra.mxu0 0.0
  %1281 = vmatprep.subr.mxu0 0.0
  %1282 = vmatpush1.msra.mxu0 0.0
  %1283 = vmatprep.subr.mxu0 0.0
  %1284 = vmatpush1.msra.mxu0 0.0
  %1285 = vmatprep.subr.mxu0 0.0
  %1286 = vmatpush1.msra.mxu0 0.0
  %1287 = vmatprep.subr.mxu0 0.0
  %1288 = vmatpush1.msra.mxu0 0.0
  %1289 = vmatprep.subr.mxu0 0.0
  %1290 = vmatpush1.msra.mxu0 0.0
  %1291 = vmatprep.subr.mxu0 0.0
  %1292 = vmatpush1.msra.mxu0 0.0
  %1293 = vmatprep.subr.mxu0 0.0
  %1294 = vmatpush1.msra.mxu0 0.0
  %1295 = vmatprep.subr.mxu0 0.0
  %1296 = vmatpush1.msra.mxu0 %v870
  %1297 = vmatprep.subr.mxu0 0.0
  %1298 = vmatpush1.msra.mxu0 %v869
  %1299 = vmatprep.subr.mxu0 0.0
  %1300 = vmatpush1.msra.mxu0 %v868
  %1301 = vmatprep.subr.mxu0 0.0
  %1302 = vmatpush1.msra.mxu0 %v867
  %1303 = vmatprep.subr.mxu0 0.0
  %1304 = vmatpush2.msra.mxu0 0.0
  %1305 = vmatprep.subr.mxu0 0.0
  %1306 = vmatpush2.msra.mxu0 0.0
  %1307 = vmatprep.subr.mxu0 0.0
  %1308 = vmatpush2.msra.mxu0 0.0
  %1309 = vmatprep.subr.mxu0 0.0
  %1310 = vmatpush2.msra.mxu0 0.0
  %1311 = vmatprep.subr.mxu0 0.0
  %1312 = vmatpush2.msra.mxu0 0.0
  %1313 = vmatprep.subr.mxu0 0.0
  %1314 = vmatpush2.msra.mxu0 0.0
  %1315 = vmatprep.subr.mxu0 0.0
  %1316 = vmatpush2.msra.mxu0 0.0
  %1317 = vmatprep.subr.mxu0 0.0
  %1318 = vmatpush2.msra.mxu0 0.0
  %1319 = vmatprep.subr.mxu0 0.0
  %1320 = vmatpush2.msra.mxu0 0.0
  %1321 = vmatprep.subr.mxu0 0.0
  %1322 = vmatpush2.msra.mxu0 0.0
  %1323 = vmatprep.subr.mxu0 0.0
  %1324 = vmatpush2.msra.mxu0 0.0
  %1325 = vmatprep.subr.mxu0 0.0
  %1326 = vmatpush2.msra.mxu0 0.0
  %1327 = vmatprep.subr.mxu0 0.0
  %1328 = vmatpush2.msra.mxu0 0.0
  %1329 = vmatprep.subr.mxu0 0.0
  %1330 = vmatpush2.msra.mxu0 0.0
  %1331 = vmatprep.subr.mxu0 0.0
  %1332 = vmatpush2.msra.mxu0 0.0
  %1333 = vmatprep.subr.mxu0 0.0
  %1334 = vmatpush2.msra.mxu0 0.0
  %1335 = vmatprep.mubr.f32.mxu0 0.0
  %1336 = vmatmul.mubr.f32.gmra.mxu0 %v975
  %v1337 = vpop.f32.mrf.mxu0
  %v1338 = vadd.f32 %v1268, %v1337
  %v1339 = vpop.f32.mrf.mxu0
  %1340 = vdwg.mxu0
  %v1341 = vadd.f32 %v1338, %v771
  %v1342 = vtanh.pop %v1341
  %1343 = vmatprep.subr.mxu0 0.0
  %1344 = vmatpush1.msra.mxu0 0.0
  %1345 = vmatprep.subr.mxu0 0.0
  %1346 = vmatpush1.msra.mxu0 0.0
  %1347 = vmatprep.subr.mxu0 0.0
  %1348 = vmatpush1.msra.mxu0 0.0
  %1349 = vmatprep.subr.mxu0 0.0
  %1350 = vmatpush1.msra.mxu0 0.0
  %1351 = vmatprep.subr.mxu0 0.0
  %1352 = vmatpush1.msra.mxu0 0.0
  %1353 = vmatprep.subr.mxu0 0.0
  %1354 = vmatpush1.msra.mxu0 0.0
  %1355 = vmatprep.subr.mxu0 0.0
  %1356 = vmatpush1.msra.mxu0 0.0
  %1357 = vmatprep.subr.mxu0 0.0
  %1358 = vmatpush1.msra.mxu0 0.0
  %1359 = vmatprep.subr.mxu0 0.0
  %1360 = vmatpush1.msra.mxu0 0.0
  %1361 = vmatprep.subr.mxu0 0.0
  %1362 = vmatpush1.msra.mxu0 0.0
  %1363 = vmatprep.subr.mxu0 0.0
  %1364 = vmatpush1.msra.mxu0 0.0
  %1365 = vmatprep.subr.mxu0 0.0
  %1366 = vmatpush1.msra.mxu0 0.0
  %1367 = vmatprep.subr.mxu0 0.0
  %1368 = vmatpush1.msra.mxu0 %v894
  %1369 = vmatprep.subr.mxu0 0.0
  %1370 = vmatpush1.msra.mxu0 %v893
  %1371 = vmatprep.subr.mxu0 0.0
  %1372 = vmatpush1.msra.mxu0 %v892
  %1373 = vmatprep.subr.mxu0 0.0
  %1374 = vmatpush1.msra.mxu0 %v891
  %1375 = vmatprep.subr.mxu0 0.0
  %1376 = vmatpush2.msra.mxu0 0.0
  %1377 = vmatprep.subr.mxu0 0.0
  %1378 = vmatpush2.msra.mxu0 0.0
  %1379 = vmatprep.subr.mxu0 0.0
  %1380 = vmatpush2.msra.mxu0 0.0
  %1381 = vmatprep.subr.mxu0 0.0
  %1382 = vmatpush2.msra.mxu0 0.0
  %1383 = vmatprep.subr.mxu0 0.0
  %1384 = vmatpush2.msra.mxu0 0.0
  %1385 = vmatprep.subr.mxu0 0.0
  %1386 = vmatpush2.msra.mxu0 0.0
  %1387 = vmatprep.subr.mxu0 0.0
  %1388 = vmatpush2.msra.mxu0 0.0
  %1389 = vmatprep.subr.mxu0 0.0
  %1390 = vmatpush2.msra.mxu0 0.0
  %1391 = vmatprep.subr.mxu0 0.0
  %1392 = vmatpush2.msra.mxu0 0.0
  %1393 = vmatprep.subr.mxu0 0.0
  %1394 = vmatpush2.msra.mxu0 0.0
  %1395 = vmatprep.subr.mxu0 0.0
  %1396 = vmatpush2.msra.mxu0 0.0
  %1397 = vmatprep.subr.mxu0 0.0
  %1398 = vmatpush2.msra.mxu0 0.0
  %1399 = vmatprep.subr.mxu0 0.0
  %1400 = vmatpush2.msra.mxu0 0.0
  %1401 = vmatprep.subr.mxu0 0.0
  %1402 = vmatpush2.msra.mxu0 0.0
  %1403 = vmatprep.subr.mxu0 0.0
  %1404 = vmatpush2.msra.mxu0 0.0
  %1405 = vmatprep.subr.mxu0 0.0
  %1406 = vmatpush2.msra.mxu0 0.0
  %1407 = vmatprep.mubr.f32.mxu0 0.0
  %1408 = vmatmul.mubr.f32.gmra.mxu0 %v902
  %v1409 = vpop.f32.mrf.mxu0
  %v1410 = vadd.f32 0.0, %v1409
  %v1411 = vpop.f32.mrf.mxu0
  %1412 = vdwg.mxu0
  %1413 = vmatprep.subr.mxu0 0.0
  %1414 = vmatpush1.msra.mxu0 0.0
  %1415 = vmatprep.subr.mxu0 0.0
  %1416 = vmatpush1.msra.mxu0 0.0
  %1417 = vmatprep.subr.mxu0 0.0
  %1418 = vmatpush1.msra.mxu0 0.0
  %1419 = vmatprep.subr.mxu0 0.0
  %1420 = vmatpush1.msra.mxu0 0.0
  %1421 = vmatprep.subr.mxu0 0.0
  %1422 = vmatpush1.msra.mxu0 0.0
  %1423 = vmatprep.subr.mxu0 0.0
  %1424 = vmatpush1.msra.mxu0 0.0
  %1425 = vmatprep.subr.mxu0 0.0
  %1426 = vmatpush1.msra.mxu0 0.0
  %1427 = vmatprep.subr.mxu0 0.0
  %1428 = vmatpush1.msra.mxu0 0.0
  %1429 = vmatprep.subr.mxu0 0.0
  %1430 = vmatpush1.msra.mxu0 0.0
  %1431 = vmatprep.subr.mxu0 0.0
  %1432 = vmatpush1.msra.mxu0 0.0
  %1433 = vmatprep.subr.mxu0 0.0
  %1434 = vmatpush1.msra.mxu0 0.0
  %1435 = vmatprep.subr.mxu0 0.0
  %1436 = vmatpush1.msra.mxu0 0.0
  %1437 = vmatprep.subr.mxu0 0.0
  %1438 = vmatpush1.msra.mxu0 %v875
  %1439 = vmatprep.subr.mxu0 0.0
  %1440 = vmatpush1.msra.mxu0 %v874
  %1441 = vmatprep.subr.mxu0 0.0
  %1442 = vmatpush1.msra.mxu0 %v873
  %1443 = vmatprep.subr.mxu0 0.0
  %1444 = vmatpush1.msra.mxu0 %v872
  %1445 = vmatprep.subr.mxu0 0.0
  %1446 = vmatpush2.msra.mxu0 0.0
  %1447 = vmatprep.subr.mxu0 0.0
  %1448 = vmatpush2.msra.mxu0 0.0
  %1449 = vmatprep.subr.mxu0 0.0
  %1450 = vmatpush2.msra.mxu0 0.0
  %1451 = vmatprep.subr.mxu0 0.0
  %1452 = vmatpush2.msra.mxu0 0.0
  %1453 = vmatprep.subr.mxu0 0.0
  %1454 = vmatpush2.msra.mxu0 0.0
  %1455 = vmatprep.subr.mxu0 0.0
  %1456 = vmatpush2.msra.mxu0 0.0
  %1457 = vmatprep.subr.mxu0 0.0
  %1458 = vmatpush2.msra.mxu0 0.0
  %1459 = vmatprep.subr.mxu0 0.0
  %1460 = vmatpush2.msra.mxu0 0.0
  %1461 = vmatprep.subr.mxu0 0.0
  %1462 = vmatpush2.msra.mxu0 0.0
  %1463 = vmatprep.subr.mxu0 0.0
  %1464 = vmatpush2.msra.mxu0 0.0
  %1465 = vmatprep.subr.mxu0 0.0
  %1466 = vmatpush2.msra.mxu0 0.0
  %1467 = vmatprep.subr.mxu0 0.0
  %1468 = vmatpush2.msra.mxu0 0.0
  %1469 = vmatprep.subr.mxu0 0.0
  %1470 = vmatpush2.msra.mxu0 0.0
  %1471 = vmatprep.subr.mxu0 0.0
  %1472 = vmatpush2.msra.mxu0 0.0
  %1473 = vmatprep.subr.mxu0 0.0
  %1474 = vmatpush2.msra.mxu0 0.0
  %1475 = vmatprep.subr.mxu0 0.0
  %1476 = vmatpush2.msra.mxu0 0.0
  %1477 = vmatprep.mubr.f32.mxu0 0.0
  %1478 = vmatmul.mubr.f32.gmra.mxu0 %v975
  %v1479 = vpop.f32.mrf.mxu0
  %v1480 = vadd.f32 %v1410, %v1479
  %v1481 = vpop.f32.mrf.mxu0
  %1482 = vdwg.mxu0
  %v1483 = vadd.f32 %v1480, %v854
  %v1484 = vxor.u32 %v1483, 2147483648
  %v1485 = vmul.f32 %v1484, 1.442695
  %v1486 = vpow.pop %v1485
  %v1487 = vadd.f32 %v1486, 1.0
  %v1488 = vrcp.pop %v1487
  %v1489 = vmul.f32 1.0, %v1488
  %v1490 = vmul.f32 %v1200, 0.0
  %v1491 = vmul.f32 %v1053, %v1342
  %v1492 = vadd.f32 %v1490, %v1491
  %v1493 = vtanh.pop %v1492
  %v1494 = vmul.f32 %v1489, %v1493
  %v1496 = vlaneseq
  %v1497 = vshrl.u32 %v1496, 7
  %v1498 = vsub.s32 0, %v1497
  %v1499 = vrot.slane %v899, %v1498
  %v1502 = vsel %vm67, %v1494, 0
  %1504 = vmatprep.subr.mxu0 0.0
  %1505 = vmatpush1.msra.mxu0 0.0
  %1506 = vmatprep.subr.mxu0 0.0
  %1507 = vmatpush1.msra.mxu0 0.0
  %1508 = vmatprep.subr.mxu0 0.0
  %1509 = vmatpush1.msra.mxu0 0.0
  %1510 = vmatprep.subr.mxu0 0.0
  %1511 = vmatpush1.msra.mxu0 0.0
  %1512 = vmatprep.subr.mxu0 0.0
  %1513 = vmatpush1.msra.mxu0 0.0
  %1514 = vmatprep.subr.mxu0 0.0
  %1515 = vmatpush1.msra.mxu0 0.0
  %1516 = vmatprep.subr.mxu0 0.0
  %1517 = vmatpush1.msra.mxu0 0.0
  %1518 = vmatprep.subr.mxu0 0.0
  %1519 = vmatpush1.msra.mxu0 0.0
  %1520 = vmatprep.subr.mxu0 0.0
  %1521 = vmatpush1.msra.mxu0 0.0
  %1522 = vmatprep.subr.mxu0 0.0
  %1523 = vmatpush1.msra.mxu0 0.0
  %1524 = vmatprep.subr.mxu0 0.0
  %1525 = vmatpush1.msra.mxu0 0.0
  %1526 = vmatprep.subr.mxu0 0.0
  %1527 = vmatpush1.msra.mxu0 0.0
  %1528 = vmatprep.subr.mxu0 0.0
  %1529 = vmatpush1.msra.mxu0 %v898
  %1530 = vmatprep.subr.mxu0 0.0
  %1531 = vmatpush1.msra.mxu0 %v897
  %1532 = vmatprep.subr.mxu0 0.0
  %1533 = vmatpush1.msra.mxu0 %v896
  %1534 = vmatprep.subr.mxu0 0.0
  %1535 = vmatpush1.msra.mxu0 %v895
  %1536 = vmatprep.subr.mxu0 0.0
  %1537 = vmatpush2.msra.mxu0 0.0
  %1538 = vmatprep.subr.mxu0 0.0
  %1539 = vmatpush2.msra.mxu0 0.0
  %1540 = vmatprep.subr.mxu0 0.0
  %1541 = vmatpush2.msra.mxu0 0.0
  %1542 = vmatprep.subr.mxu0 0.0
  %1543 = vmatpush2.msra.mxu0 0.0
  %1544 = vmatprep.subr.mxu0 0.0
  %1545 = vmatpush2.msra.mxu0 0.0
  %1546 = vmatprep.subr.mxu0 0.0
  %1547 = vmatpush2.msra.mxu0 0.0
  %1548 = vmatprep.subr.mxu0 0.0
  %1549 = vmatpush2.msra.mxu0 0.0
  %1550 = vmatprep.subr.mxu0 0.0
  %1551 = vmatpush2.msra.mxu0 0.0
  %1552 = vmatprep.subr.mxu0 0.0
  %1553 = vmatpush2.msra.mxu0 0.0
  %1554 = vmatprep.subr.mxu0 0.0
  %1555 = vmatpush2.msra.mxu0 0.0
  %1556 = vmatprep.subr.mxu0 0.0
  %1557 = vmatpush2.msra.mxu0 0.0
  %1558 = vmatprep.subr.mxu0 0.0
  %1559 = vmatpush2.msra.mxu0 0.0
  %1560 = vmatprep.subr.mxu0 0.0
  %1561 = vmatpush2.msra.mxu0 0.0
  %1562 = vmatprep.subr.mxu0 0.0
  %1563 = vmatpush2.msra.mxu0 0.0
  %1564 = vmatprep.subr.mxu0 0.0
  %1565 = vmatpush2.msra.mxu0 0.0
  %1566 = vmatprep.subr.mxu0 0.0
  %1567 = vmatpush2.msra.mxu0 0.0
  %1568 = vmatprep.mubr.f32.mxu0 0.0
  %1569 = vmatmul.mubr.f32.gmra.mxu0 %v1502
  %v1570 = vpop.f32.mrf.mxu0
  %v1571 = vadd.f32 %v1499, %v1570
  %v1572 = vpop.f32.mrf.mxu0
  %1573 = vdwg.mxu0
  %1574 = vst [vmem:[%s16] sm:$0x3] %v1571
  %s1575 = scalar_lea.vmem %s0, 2
  %v1576 = vld [vmem:[%s1575] sm:$0x3]
  %1577 = vmatprep.subr.mxu0 0.0
  %1578 = vmatpush1.msra.mxu0 0.0
  %1579 = vmatprep.subr.mxu0 0.0
  %1580 = vmatpush1.msra.mxu0 0.0
  %1581 = vmatprep.subr.mxu0 0.0
  %1582 = vmatpush1.msra.mxu0 0.0
  %1583 = vmatprep.subr.mxu0 0.0
  %1584 = vmatpush1.msra.mxu0 0.0
  %1585 = vmatprep.subr.mxu0 0.0
  %1586 = vmatpush1.msra.mxu0 0.0
  %1587 = vmatprep.subr.mxu0 0.0
  %1588 = vmatpush1.msra.mxu0 0.0
  %1589 = vmatprep.subr.mxu0 0.0
  %1590 = vmatpush1.msra.mxu0 0.0
  %1591 = vmatprep.subr.mxu0 0.0
  %1592 = vmatpush1.msra.mxu0 0.0
  %1593 = vmatprep.subr.mxu0 0.0
  %1594 = vmatpush1.msra.mxu0 0.0
  %1595 = vmatprep.subr.mxu0 0.0
  %1596 = vmatpush1.msra.mxu0 0.0
  %1597 = vmatprep.subr.mxu0 0.0
  %1598 = vmatpush1.msra.mxu0 0.0
  %1599 = vmatprep.subr.mxu0 0.0
  %1600 = vmatpush1.msra.mxu0 0.0
  %1601 = vmatprep.subr.mxu0 0.0
  %1602 = vmatpush1.msra.mxu0 %v879
  %1603 = vmatprep.subr.mxu0 0.0
  %1604 = vmatpush1.msra.mxu0 %v878
  %1605 = vmatprep.subr.mxu0 0.0
  %1606 = vmatpush1.msra.mxu0 %v877
  %1607 = vmatprep.subr.mxu0 0.0
  %1608 = vmatpush1.msra.mxu0 %v876
  %1609 = vmatprep.subr.mxu0 0.0
  %1610 = vmatpush2.msra.mxu0 0.0
  %1611 = vmatprep.subr.mxu0 0.0
  %1612 = vmatpush2.msra.mxu0 0.0
  %1613 = vmatprep.subr.mxu0 0.0
  %1614 = vmatpush2.msra.mxu0 0.0
  %1615 = vmatprep.subr.mxu0 0.0
  %1616 = vmatpush2.msra.mxu0 0.0
  %1617 = vmatprep.subr.mxu0 0.0
  %1618 = vmatpush2.msra.mxu0 0.0
  %1619 = vmatprep.subr.mxu0 0.0
  %1620 = vmatpush2.msra.mxu0 0.0
  %1621 = vmatprep.subr.mxu0 0.0
  %1622 = vmatpush2.msra.mxu0 0.0
  %1623 = vmatprep.subr.mxu0 0.0
  %1624 = vmatpush2.msra.mxu0 0.0
  %1625 = vmatprep.subr.mxu0 0.0
  %1626 = vmatpush2.msra.mxu0 0.0
  %1627 = vmatprep.subr.mxu0 0.0
  %1628 = vmatpush2.msra.mxu0 0.0
  %1629 = vmatprep.subr.mxu0 0.0
  %1630 = vmatpush2.msra.mxu0 0.0
  %1631 = vmatprep.subr.mxu0 0.0
  %1632 = vmatpush2.msra.mxu0 0.0
  %1633 = vmatprep.subr.mxu0 0.0
  %1634 = vmatpush2.msra.mxu0 0.0
  %1635 = vmatprep.subr.mxu0 0.0
  %1636 = vmatpush2.msra.mxu0 0.0
  %1637 = vmatprep.subr.mxu0 0.0
  %1638 = vmatpush2.msra.mxu0 0.0
  %1639 = vmatprep.subr.mxu0 0.0
  %1640 = vmatpush2.msra.mxu0 0.0
  %1641 = vmatprep.mubr.f32.mxu0 0.0
  %1642 = vmatmul.mubr.f32.gmra.mxu0 %v1502
  %v1643 = vpop.f32.mrf.mxu0
  %v1644 = vadd.f32 0.0, %v1643
  %v1645 = vpop.f32.mrf.mxu0
  %1646 = vdwg.mxu0
  %v1648 = vsel %vm67, %v1576, 0
  %1650 = vmatprep.subr.mxu0 0.0
  %1651 = vmatpush1.msra.mxu0 0.0
  %1652 = vmatprep.subr.mxu0 0.0
  %1653 = vmatpush1.msra.mxu0 0.0
  %1654 = vmatprep.subr.mxu0 0.0
  %1655 = vmatpush1.msra.mxu0 0.0
  %1656 = vmatprep.subr.mxu0 0.0
  %1657 = vmatpush1.msra.mxu0 0.0
  %1658 = vmatprep.subr.mxu0 0.0
  %1659 = vmatpush1.msra.mxu0 0.0
  %1660 = vmatprep.subr.mxu0 0.0
  %1661 = vmatpush1.msra.mxu0 0.0
  %1662 = vmatprep.subr.mxu0 0.0
  %1663 = vmatpush1.msra.mxu0 0.0
  %1664 = vmatprep.subr.mxu0 0.0
  %1665 = vmatpush1.msra.mxu0 0.0
  %1666 = vmatprep.subr.mxu0 0.0
  %1667 = vmatpush1.msra.mxu0 0.0
  %1668 = vmatprep.subr.mxu0 0.0
  %1669 = vmatpush1.msra.mxu0 0.0
  %1670 = vmatprep.subr.mxu0 0.0
  %1671 = vmatpush1.msra.mxu0 0.0
  %1672 = vmatprep.subr.mxu0 0.0
  %1673 = vmatpush1.msra.mxu0 0.0
  %1674 = vmatprep.subr.mxu0 0.0
  %1675 = vmatpush1.msra.mxu0 %v860
  %1676 = vmatprep.subr.mxu0 0.0
  %1677 = vmatpush1.msra.mxu0 %v859
  %1678 = vmatprep.subr.mxu0 0.0
  %1679 = vmatpush1.msra.mxu0 %v858
  %1680 = vmatprep.subr.mxu0 0.0
  %1681 = vmatpush1.msra.mxu0 %v857
  %1682 = vmatprep.subr.mxu0 0.0
  %1683 = vmatpush2.msra.mxu0 0.0
  %1684 = vmatprep.subr.mxu0 0.0
  %1685 = vmatpush2.msra.mxu0 0.0
  %1686 = vmatprep.subr.mxu0 0.0
  %1687 = vmatpush2.msra.mxu0 0.0
  %1688 = vmatprep.subr.mxu0 0.0
  %1689 = vmatpush2.msra.mxu0 0.0
  %1690 = vmatprep.subr.mxu0 0.0
  %1691 = vmatpush2.msra.mxu0 0.0
  %1692 = vmatprep.subr.mxu0 0.0
  %1693 = vmatpush2.msra.mxu0 0.0
  %1694 = vmatprep.subr.mxu0 0.0
  %1695 = vmatpush2.msra.mxu0 0.0
  %1696 = vmatprep.subr.mxu0 0.0
  %1697 = vmatpush2.msra.mxu0 0.0
  %1698 = vmatprep.subr.mxu0 0.0
  %1699 = vmatpush2.msra.mxu0 0.0
  %1700 = vmatprep.subr.mxu0 0.0
  %1701 = vmatpush2.msra.mxu0 0.0
  %1702 = vmatprep.subr.mxu0 0.0
  %1703 = vmatpush2.msra.mxu0 0.0
  %1704 = vmatprep.subr.mxu0 0.0
  %1705 = vmatpush2.msra.mxu0 0.0
  %1706 = vmatprep.subr.mxu0 0.0
  %1707 = vmatpush2.msra.mxu0 0.0
  %1708 = vmatprep.subr.mxu0 0.0
  %1709 = vmatpush2.msra.mxu0 0.0
  %1710 = vmatprep.subr.mxu0 0.0
  %1711 = vmatpush2.msra.mxu0 0.0
  %1712 = vmatprep.subr.mxu0 0.0
  %1713 = vmatpush2.msra.mxu0 0.0
  %1714 = vmatprep.mubr.f32.mxu0 0.0
  %1715 = vmatmul.mubr.f32.gmra.mxu0 %v1648
  %v1716 = vpop.f32.mrf.mxu0
  %v1717 = vadd.f32 %v1644, %v1716
  %v1718 = vpop.f32.mrf.mxu0
  %1719 = vdwg.mxu0
  %v1720 = vadd.f32 %v1717, %v605
  %v1721 = vxor.u32 %v1720, 2147483648
  %v1722 = vmul.f32 %v1721, 1.442695
  %v1723 = vpow.pop %v1722
  %v1724 = vadd.f32 %v1723, 1.0
  %v1725 = vrcp.pop %v1724
  %v1726 = vmul.f32 1.0, %v1725
  %1727 = vmatprep.subr.mxu0 0.0
  %1728 = vmatpush1.msra.mxu0 0.0
  %1729 = vmatprep.subr.mxu0 0.0
  %1730 = vmatpush1.msra.mxu0 0.0
  %1731 = vmatprep.subr.mxu0 0.0
  %1732 = vmatpush1.msra.mxu0 0.0
  %1733 = vmatprep.subr.mxu0 0.0
  %1734 = vmatpush1.msra.mxu0 0.0
  %1735 = vmatprep.subr.mxu0 0.0
  %1736 = vmatpush1.msra.mxu0 0.0
  %1737 = vmatprep.subr.mxu0 0.0
  %1738 = vmatpush1.msra.mxu0 0.0
  %1739 = vmatprep.subr.mxu0 0.0
  %1740 = vmatpush1.msra.mxu0 0.0
  %1741 = vmatprep.subr.mxu0 0.0
  %1742 = vmatpush1.msra.mxu0 0.0
  %1743 = vmatprep.subr.mxu0 0.0
  %1744 = vmatpush1.msra.mxu0 0.0
  %1745 = vmatprep.subr.mxu0 0.0
  %1746 = vmatpush1.msra.mxu0 0.0
  %1747 = vmatprep.subr.mxu0 0.0
  %1748 = vmatpush1.msra.mxu0 0.0
  %1749 = vmatprep.subr.mxu0 0.0
  %1750 = vmatpush1.msra.mxu0 0.0
  %1751 = vmatprep.subr.mxu0 0.0
  %1752 = vmatpush1.msra.mxu0 %v884
  %1753 = vmatprep.subr.mxu0 0.0
  %1754 = vmatpush1.msra.mxu0 %v883
  %1755 = vmatprep.subr.mxu0 0.0
  %1756 = vmatpush1.msra.mxu0 %v882
  %1757 = vmatprep.subr.mxu0 0.0
  %1758 = vmatpush1.msra.mxu0 %v881
  %1759 = vmatprep.subr.mxu0 0.0
  %1760 = vmatpush2.msra.mxu0 0.0
  %1761 = vmatprep.subr.mxu0 0.0
  %1762 = vmatpush2.msra.mxu0 0.0
  %1763 = vmatprep.subr.mxu0 0.0
  %1764 = vmatpush2.msra.mxu0 0.0
  %1765 = vmatprep.subr.mxu0 0.0
  %1766 = vmatpush2.msra.mxu0 0.0
  %1767 = vmatprep.subr.mxu0 0.0
  %1768 = vmatpush2.msra.mxu0 0.0
  %1769 = vmatprep.subr.mxu0 0.0
  %1770 = vmatpush2.msra.mxu0 0.0
  %1771 = vmatprep.subr.mxu0 0.0
  %1772 = vmatpush2.msra.mxu0 0.0
  %1773 = vmatprep.subr.mxu0 0.0
  %1774 = vmatpush2.msra.mxu0 0.0
  %1775 = vmatprep.subr.mxu0 0.0
  %1776 = vmatpush2.msra.mxu0 0.0
  %1777 = vmatprep.subr.mxu0 0.0
  %1778 = vmatpush2.msra.mxu0 0.0
  %1779 = vmatprep.subr.mxu0 0.0
  %1780 = vmatpush2.msra.mxu0 0.0
  %1781 = vmatprep.subr.mxu0 0.0
  %1782 = vmatpush2.msra.mxu0 0.0
  %1783 = vmatprep.subr.mxu0 0.0
  %1784 = vmatpush2.msra.mxu0 0.0
  %1785 = vmatprep.subr.mxu0 0.0
  %1786 = vmatpush2.msra.mxu0 0.0
  %1787 = vmatprep.subr.mxu0 0.0
  %1788 = vmatpush2.msra.mxu0 0.0
  %1789 = vmatprep.subr.mxu0 0.0
  %1790 = vmatpush2.msra.mxu0 0.0
  %1791 = vmatprep.mubr.f32.mxu0 0.0
  %1792 = vmatmul.mubr.f32.gmra.mxu0 %v1502
  %v1793 = vpop.f32.mrf.mxu0
  %v1794 = vadd.f32 0.0, %v1793
  %v1795 = vpop.f32.mrf.mxu0
  %1796 = vdwg.mxu0
  %1797 = vmatprep.subr.mxu0 0.0
  %1798 = vmatpush1.msra.mxu0 0.0
  %1799 = vmatprep.subr.mxu0 0.0
  %1800 = vmatpush1.msra.mxu0 0.0
  %1801 = vmatprep.subr.mxu0 0.0
  %1802 = vmatpush1.msra.mxu0 0.0
  %1803 = vmatprep.subr.mxu0 0.0
  %1804 = vmatpush1.msra.mxu0 0.0
  %1805 = vmatprep.subr.mxu0 0.0
  %1806 = vmatpush1.msra.mxu0 0.0
  %1807 = vmatprep.subr.mxu0 0.0
  %1808 = vmatpush1.msra.mxu0 0.0
  %1809 = vmatprep.subr.mxu0 0.0
  %1810 = vmatpush1.msra.mxu0 0.0
  %1811 = vmatprep.subr.mxu0 0.0
  %1812 = vmatpush1.msra.mxu0 0.0
  %1813 = vmatprep.subr.mxu0 0.0
  %1814 = vmatpush1.msra.mxu0 0.0
  %1815 = vmatprep.subr.mxu0 0.0
  %1816 = vmatpush1.msra.mxu0 0.0
  %1817 = vmatprep.subr.mxu0 0.0
  %1818 = vmatpush1.msra.mxu0 0.0
  %1819 = vmatprep.subr.mxu0 0.0
  %1820 = vmatpush1.msra.mxu0 0.0
  %1821 = vmatprep.subr.mxu0 0.0
  %1822 = vmatpush1.msra.mxu0 %v865
  %1823 = vmatprep.subr.mxu0 0.0
  %1824 = vmatpush1.msra.mxu0 %v864
  %1825 = vmatprep.subr.mxu0 0.0
  %1826 = vmatpush1.msra.mxu0 %v863
  %1827 = vmatprep.subr.mxu0 0.0
  %1828 = vmatpush1.msra.mxu0 %v862
  %1829 = vmatprep.subr.mxu0 0.0
  %1830 = vmatpush2.msra.mxu0 0.0
  %1831 = vmatprep.subr.mxu0 0.0
  %1832 = vmatpush2.msra.mxu0 0.0
  %1833 = vmatprep.subr.mxu0 0.0
  %1834 = vmatpush2.msra.mxu0 0.0
  %1835 = vmatprep.subr.mxu0 0.0
  %1836 = vmatpush2.msra.mxu0 0.0
  %1837 = vmatprep.subr.mxu0 0.0
  %1838 = vmatpush2.msra.mxu0 0.0
  %1839 = vmatprep.subr.mxu0 0.0
  %1840 = vmatpush2.msra.mxu0 0.0
  %1841 = vmatprep.subr.mxu0 0.0
  %1842 = vmatpush2.msra.mxu0 0.0
  %1843 = vmatprep.subr.mxu0 0.0
  %1844 = vmatpush2.msra.mxu0 0.0
  %1845 = vmatprep.subr.mxu0 0.0
  %1846 = vmatpush2.msra.mxu0 0.0
  %1847 = vmatprep.subr.mxu0 0.0
  %1848 = vmatpush2.msra.mxu0 0.0
  %1849 = vmatprep.subr.mxu0 0.0
  %1850 = vmatpush2.msra.mxu0 0.0
  %1851 = vmatprep.subr.mxu0 0.0
  %1852 = vmatpush2.msra.mxu0 0.0
  %1853 = vmatprep.subr.mxu0 0.0
  %1854 = vmatpush2.msra.mxu0 0.0
  %1855 = vmatprep.subr.mxu0 0.0
  %1856 = vmatpush2.msra.mxu0 0.0
  %1857 = vmatprep.subr.mxu0 0.0
  %1858 = vmatpush2.msra.mxu0 0.0
  %1859 = vmatprep.subr.mxu0 0.0
  %1860 = vmatpush2.msra.mxu0 0.0
  %1861 = vmatprep.mubr.f32.mxu0 0.0
  %1862 = vmatmul.mubr.f32.gmra.mxu0 %v1648
  %v1863 = vpop.f32.mrf.mxu0
  %v1864 = vadd.f32 %v1794, %v1863
  %v1865 = vpop.f32.mrf.mxu0
  %1866 = vdwg.mxu0
  %v1867 = vadd.f32 %v1864, %v688
  %v1868 = vxor.u32 %v1867, 2147483648
  %v1869 = vmul.f32 %v1868, 1.442695
  %v1870 = vpow.pop %v1869
  %v1871 = vadd.f32 %v1870, 1.0
  %v1872 = vrcp.pop %v1871
  %v1873 = vmul.f32 1.0, %v1872
  %1874 = vmatprep.subr.mxu0 0.0
  %1875 = vmatpush1.msra.mxu0 0.0
  %1876 = vmatprep.subr.mxu0 0.0
  %1877 = vmatpush1.msra.mxu0 0.0
  %1878 = vmatprep.subr.mxu0 0.0
  %1879 = vmatpush1.msra.mxu0 0.0
  %1880 = vmatprep.subr.mxu0 0.0
  %1881 = vmatpush1.msra.mxu0 0.0
  %1882 = vmatprep.subr.mxu0 0.0
  %1883 = vmatpush1.msra.mxu0 0.0
  %1884 = vmatprep.subr.mxu0 0.0
  %1885 = vmatpush1.msra.mxu0 0.0
  %1886 = vmatprep.subr.mxu0 0.0
  %1887 = vmatpush1.msra.mxu0 0.0
  %1888 = vmatprep.subr.mxu0 0.0
  %1889 = vmatpush1.msra.mxu0 0.0
  %1890 = vmatprep.subr.mxu0 0.0
  %1891 = vmatpush1.msra.mxu0 0.0
  %1892 = vmatprep.subr.mxu0 0.0
  %1893 = vmatpush1.msra.mxu0 0.0
  %1894 = vmatprep.subr.mxu0 0.0
  %1895 = vmatpush1.msra.mxu0 0.0
  %1896 = vmatprep.subr.mxu0 0.0
  %1897 = vmatpush1.msra.mxu0 0.0
  %1898 = vmatprep.subr.mxu0 0.0
  %1899 = vmatpush1.msra.mxu0 %v889
  %1900 = vmatprep.subr.mxu0 0.0
  %1901 = vmatpush1.msra.mxu0 %v888
  %1902 = vmatprep.subr.mxu0 0.0
  %1903 = vmatpush1.msra.mxu0 %v887
  %1904 = vmatprep.subr.mxu0 0.0
  %1905 = vmatpush1.msra.mxu0 %v886
  %1906 = vmatprep.subr.mxu0 0.0
  %1907 = vmatpush2.msra.mxu0 0.0
  %1908 = vmatprep.subr.mxu0 0.0
  %1909 = vmatpush2.msra.mxu0 0.0
  %1910 = vmatprep.subr.mxu0 0.0
  %1911 = vmatpush2.msra.mxu0 0.0
  %1912 = vmatprep.subr.mxu0 0.0
  %1913 = vmatpush2.msra.mxu0 0.0
  %1914 = vmatprep.subr.mxu0 0.0
  %1915 = vmatpush2.msra.mxu0 0.0
  %1916 = vmatprep.subr.mxu0 0.0
  %1917 = vmatpush2.msra.mxu0 0.0
  %1918 = vmatprep.subr.mxu0 0.0
  %1919 = vmatpush2.msra.mxu0 0.0
  %1920 = vmatprep.subr.mxu0 0.0
  %1921 = vmatpush2.msra.mxu0 0.0
  %1922 = vmatprep.subr.mxu0 0.0
  %1923 = vmatpush2.msra.mxu0 0.0
  %1924 = vmatprep.subr.mxu0 0.0
  %1925 = vmatpush2.msra.mxu0 0.0
  %1926 = vmatprep.subr.mxu0 0.0
  %1927 = vmatpush2.msra.mxu0 0.0
  %1928 = vmatprep.subr.mxu0 0.0
  %1929 = vmatpush2.msra.mxu0 0.0
  %1930 = vmatprep.subr.mxu0 0.0
  %1931 = vmatpush2.msra.mxu0 0.0
  %1932 = vmatprep.subr.mxu0 0.0
  %1933 = vmatpush2.msra.mxu0 0.0
  %1934 = vmatprep.subr.mxu0 0.0
  %1935 = vmatpush2.msra.mxu0 0.0
  %1936 = vmatprep.subr.mxu0 0.0
  %1937 = vmatpush2.msra.mxu0 0.0
  %1938 = vmatprep.mubr.f32.mxu0 0.0
  %1939 = vmatmul.mubr.f32.gmra.mxu0 %v1502
  %v1940 = vpop.f32.mrf.mxu0
  %v1941 = vadd.f32 0.0, %v1940
  %v1942 = vpop.f32.mrf.mxu0
  %1943 = vdwg.mxu0
  %1944 = vmatprep.subr.mxu0 0.0
  %1945 = vmatpush1.msra.mxu0 0.0
  %1946 = vmatprep.subr.mxu0 0.0
  %1947 = vmatpush1.msra.mxu0 0.0
  %1948 = vmatprep.subr.mxu0 0.0
  %1949 = vmatpush1.msra.mxu0 0.0
  %1950 = vmatprep.subr.mxu0 0.0
  %1951 = vmatpush1.msra.mxu0 0.0
  %1952 = vmatprep.subr.mxu0 0.0
  %1953 = vmatpush1.msra.mxu0 0.0
  %1954 = vmatprep.subr.mxu0 0.0
  %1955 = vmatpush1.msra.mxu0 0.0
  %1956 = vmatprep.subr.mxu0 0.0
  %1957 = vmatpush1.msra.mxu0 0.0
  %1958 = vmatprep.subr.mxu0 0.0
  %1959 = vmatpush1.msra.mxu0 0.0
  %1960 = vmatprep.subr.mxu0 0.0
  %1961 = vmatpush1.msra.mxu0 0.0
  %1962 = vmatprep.subr.mxu0 0.0
  %1963 = vmatpush1.msra.mxu0 0.0
  %1964 = vmatprep.subr.mxu0 0.0
  %1965 = vmatpush1.msra.mxu0 0.0
  %1966 = vmatprep.subr.mxu0 0.0
  %1967 = vmatpush1.msra.mxu0 0.0
  %1968 = vmatprep.subr.mxu0 0.0
  %1969 = vmatpush1.msra.mxu0 %v870
  %1970 = vmatprep.subr.mxu0 0.0
  %1971 = vmatpush1.msra.mxu0 %v869
  %1972 = vmatprep.subr.mxu0 0.0
  %1973 = vmatpush1.msra.mxu0 %v868
  %1974 = vmatprep.subr.mxu0 0.0
  %1975 = vmatpush1.msra.mxu0 %v867
  %1976 = vmatprep.subr.mxu0 0.0
  %1977 = vmatpush2.msra.mxu0 0.0
  %1978 = vmatprep.subr.mxu0 0.0
  %1979 = vmatpush2.msra.mxu0 0.0
  %1980 = vmatprep.subr.mxu0 0.0
  %1981 = vmatpush2.msra.mxu0 0.0
  %1982 = vmatprep.subr.mxu0 0.0
  %1983 = vmatpush2.msra.mxu0 0.0
  %1984 = vmatprep.subr.mxu0 0.0
  %1985 = vmatpush2.msra.mxu0 0.0
  %1986 = vmatprep.subr.mxu0 0.0
  %1987 = vmatpush2.msra.mxu0 0.0
  %1988 = vmatprep.subr.mxu0 0.0
  %1989 = vmatpush2.msra.mxu0 0.0
  %1990 = vmatprep.subr.mxu0 0.0
  %1991 = vmatpush2.msra.mxu0 0.0
  %1992 = vmatprep.subr.mxu0 0.0
  %1993 = vmatpush2.msra.mxu0 0.0
  %1994 = vmatprep.subr.mxu0 0.0
  %1995 = vmatpush2.msra.mxu0 0.0
  %1996 = vmatprep.subr.mxu0 0.0
  %1997 = vmatpush2.msra.mxu0 0.0
  %1998 = vmatprep.subr.mxu0 0.0
  %1999 = vmatpush2.msra.mxu0 0.0
  %2000 = vmatprep.subr.mxu0 0.0
  %2001 = vmatpush2.msra.mxu0 0.0
  %2002 = vmatprep.subr.mxu0 0.0
  %2003 = vmatpush2.msra.mxu0 0.0
  %2004 = vmatprep.subr.mxu0 0.0
  %2005 = vmatpush2.msra.mxu0 0.0
  %2006 = vmatprep.subr.mxu0 0.0
  %2007 = vmatpush2.msra.mxu0 0.0
  %2008 = vmatprep.mubr.f32.mxu0 0.0
  %2009 = vmatmul.mubr.f32.gmra.mxu0 %v1648
  %v2010 = vpop.f32.mrf.mxu0
  %v2011 = vadd.f32 %v1941, %v2010
  %v2012 = vpop.f32.mrf.mxu0
  %2013 = vdwg.mxu0
  %v2014 = vadd.f32 %v2011, %v771
  %v2015 = vtanh.pop %v2014
  %2016 = vmatprep.subr.mxu0 0.0
  %2017 = vmatpush1.msra.mxu0 0.0
  %2018 = vmatprep.subr.mxu0 0.0
  %2019 = vmatpush1.msra.mxu0 0.0
  %2020 = vmatprep.subr.mxu0 0.0
  %2021 = vmatpush1.msra.mxu0 0.0
  %2022 = vmatprep.subr.mxu0 0.0
  %2023 = vmatpush1.msra.mxu0 0.0
  %2024 = vmatprep.subr.mxu0 0.0
  %2025 = vmatpush1.msra.mxu0 0.0
  %2026 = vmatprep.subr.mxu0 0.0
  %2027 = vmatpush1.msra.mxu0 0.0
  %2028 = vmatprep.subr.mxu0 0.0
  %2029 = vmatpush1.msra.mxu0 0.0
  %2030 = vmatprep.subr.mxu0 0.0
  %2031 = vmatpush1.msra.mxu0 0.0
  %2032 = vmatprep.subr.mxu0 0.0
  %2033 = vmatpush1.msra.mxu0 0.0
  %2034 = vmatprep.subr.mxu0 0.0
  %2035 = vmatpush1.msra.mxu0 0.0
  %2036 = vmatprep.subr.mxu0 0.0
  %2037 = vmatpush1.msra.mxu0 0.0
  %2038 = vmatprep.subr.mxu0 0.0
  %2039 = vmatpush1.msra.mxu0 0.0
  %2040 = vmatprep.subr.mxu0 0.0
  %2041 = vmatpush1.msra.mxu0 %v894
  %2042 = vmatprep.subr.mxu0 0.0
  %2043 = vmatpush1.msra.mxu0 %v893
  %2044 = vmatprep.subr.mxu0 0.0
  %2045 = vmatpush1.msra.mxu0 %v892
  %2046 = vmatprep.subr.mxu0 0.0
  %2047 = vmatpush1.msra.mxu0 %v891
  %2048 = vmatprep.subr.mxu0 0.0
  %2049 = vmatpush2.msra.mxu0 0.0
  %2050 = vmatprep.subr.mxu0 0.0
  %2051 = vmatpush2.msra.mxu0 0.0
  %2052 = vmatprep.subr.mxu0 0.0
  %2053 = vmatpush2.msra.mxu0 0.0
  %2054 = vmatprep.subr.mxu0 0.0
  %2055 = vmatpush2.msra.mxu0 0.0
  %2056 = vmatprep.subr.mxu0 0.0
  %2057 = vmatpush2.msra.mxu0 0.0
  %2058 = vmatprep.subr.mxu0 0.0
  %2059 = vmatpush2.msra.mxu0 0.0
  %2060 = vmatprep.subr.mxu0 0.0
  %2061 = vmatpush2.msra.mxu0 0.0
  %2062 = vmatprep.subr.mxu0 0.0
  %2063 = vmatpush2.msra.mxu0 0.0
  %2064 = vmatprep.subr.mxu0 0.0
  %2065 = vmatpush2.msra.mxu0 0.0
  %2066 = vmatprep.subr.mxu0 0.0
  %2067 = vmatpush2.msra.mxu0 0.0
  %2068 = vmatprep.subr.mxu0 0.0
  %2069 = vmatpush2.msra.mxu0 0.0
  %2070 = vmatprep.subr.mxu0 0.0
  %2071 = vmatpush2.msra.mxu0 0.0
  %2072 = vmatprep.subr.mxu0 0.0
  %2073 = vmatpush2.msra.mxu0 0.0
  %2074 = vmatprep.subr.mxu0 0.0
  %2075 = vmatpush2.msra.mxu0 0.0
  %2076 = vmatprep.subr.mxu0 0.0
  %2077 = vmatpush2.msra.mxu0 0.0
  %2078 = vmatprep.subr.mxu0 0.0
  %2079 = vmatpush2.msra.mxu0 0.0
  %2080 = vmatprep.mubr.f32.mxu0 0.0
  %2081 = vmatmul.mubr.f32.gmra.mxu0 %v1502
  %v2082 = vpop.f32.mrf.mxu0
  %v2083 = vadd.f32 0.0, %v2082
  %v2084 = vpop.f32.mrf.mxu0
  %2085 = vdwg.mxu0
  %2086 = vmatprep.subr.mxu0 0.0
  %2087 = vmatpush1.msra.mxu0 0.0
  %2088 = vmatprep.subr.mxu0 0.0
  %2089 = vmatpush1.msra.mxu0 0.0
  %2090 = vmatprep.subr.mxu0 0.0
  %2091 = vmatpush1.msra.mxu0 0.0
  %2092 = vmatprep.subr.mxu0 0.0
  %2093 = vmatpush1.msra.mxu0 0.0
  %2094 = vmatprep.subr.mxu0 0.0
  %2095 = vmatpush1.msra.mxu0 0.0
  %2096 = vmatprep.subr.mxu0 0.0
  %2097 = vmatpush1.msra.mxu0 0.0
  %2098 = vmatprep.subr.mxu0 0.0
  %2099 = vmatpush1.msra.mxu0 0.0
  %2100 = vmatprep.subr.mxu0 0.0
  %2101 = vmatpush1.msra.mxu0 0.0
  %2102 = vmatprep.subr.mxu0 0.0
  %2103 = vmatpush1.msra.mxu0 0.0
  %2104 = vmatprep.subr.mxu0 0.0
  %2105 = vmatpush1.msra.mxu0 0.0
  %2106 = vmatprep.subr.mxu0 0.0
  %2107 = vmatpush1.msra.mxu0 0.0
  %2108 = vmatprep.subr.mxu0 0.0
  %2109 = vmatpush1.msra.mxu0 0.0
  %2110 = vmatprep.subr.mxu0 0.0
  %2111 = vmatpush1.msra.mxu0 %v875
  %2112 = vmatprep.subr.mxu0 0.0
  %2113 = vmatpush1.msra.mxu0 %v874
  %2114 = vmatprep.subr.mxu0 0.0
  %2115 = vmatpush1.msra.mxu0 %v873
  %2116 = vmatprep.subr.mxu0 0.0
  %2117 = vmatpush1.msra.mxu0 %v872
  %2118 = vmatprep.subr.mxu0 0.0
  %2119 = vmatpush2.msra.mxu0 0.0
  %2120 = vmatprep.subr.mxu0 0.0
  %2121 = vmatpush2.msra.mxu0 0.0
  %2122 = vmatprep.subr.mxu0 0.0
  %2123 = vmatpush2.msra.mxu0 0.0
  %2124 = vmatprep.subr.mxu0 0.0
  %2125 = vmatpush2.msra.mxu0 0.0
  %2126 = vmatprep.subr.mxu0 0.0
  %2127 = vmatpush2.msra.mxu0 0.0
  %2128 = vmatprep.subr.mxu0 0.0
  %2129 = vmatpush2.msra.mxu0 0.0
  %2130 = vmatprep.subr.mxu0 0.0
  %2131 = vmatpush2.msra.mxu0 0.0
  %2132 = vmatprep.subr.mxu0 0.0
  %2133 = vmatpush2.msra.mxu0 0.0
  %2134 = vmatprep.subr.mxu0 0.0
  %2135 = vmatpush2.msra.mxu0 0.0
  %2136 = vmatprep.subr.mxu0 0.0
  %2137 = vmatpush2.msra.mxu0 0.0
  %2138 = vmatprep.subr.mxu0 0.0
  %2139 = vmatpush2.msra.mxu0 0.0
  %2140 = vmatprep.subr.mxu0 0.0
  %2141 = vmatpush2.msra.mxu0 0.0
  %2142 = vmatprep.subr.mxu0 0.0
  %2143 = vmatpush2.msra.mxu0 0.0
  %2144 = vmatprep.subr.mxu0 0.0
  %2145 = vmatpush2.msra.mxu0 0.0
  %2146 = vmatprep.subr.mxu0 0.0
  %2147 = vmatpush2.msra.mxu0 0.0
  %2148 = vmatprep.subr.mxu0 0.0
  %2149 = vmatpush2.msra.mxu0 0.0
  %2150 = vmatprep.mubr.f32.mxu0 0.0
  %2151 = vmatmul.mubr.f32.gmra.mxu0 %v1648
  %v2152 = vpop.f32.mrf.mxu0
  %v2153 = vadd.f32 %v2083, %v2152
  %v2154 = vpop.f32.mrf.mxu0
  %2155 = vdwg.mxu0
  %v2156 = vadd.f32 %v2153, %v854
  %v2157 = vxor.u32 %v2156, 2147483648
  %v2158 = vmul.f32 %v2157, 1.442695
  %v2159 = vpow.pop %v2158
  %v2160 = vadd.f32 %v2159, 1.0
  %v2161 = vrcp.pop %v2160
  %v2162 = vmul.f32 1.0, %v2161
  %v2163 = vmul.f32 %v1873, %v1492
  %v2164 = vmul.f32 %v1726, %v2015
  %v2165 = vadd.f32 %v2163, %v2164
  %v2166 = vtanh.pop %v2165
  %v2167 = vmul.f32 %v2162, %v2166
  %v2169 = vsel %vm67, %v2167, 0
  %2171 = vmatprep.subr.mxu0 0.0
  %2172 = vmatpush1.msra.mxu0 0.0
  %2173 = vmatprep.subr.mxu0 0.0
  %2174 = vmatpush1.msra.mxu0 0.0
  %2175 = vmatprep.subr.mxu0 0.0
  %2176 = vmatpush1.msra.mxu0 0.0
  %2177 = vmatprep.subr.mxu0 0.0
  %2178 = vmatpush1.msra.mxu0 0.0
  %2179 = vmatprep.subr.mxu0 0.0
  %2180 = vmatpush1.msra.mxu0 0.0
  %2181 = vmatprep.subr.mxu0 0.0
  %2182 = vmatpush1.msra.mxu0 0.0
  %2183 = vmatprep.subr.mxu0 0.0
  %2184 = vmatpush1.msra.mxu0 0.0
  %2185 = vmatprep.subr.mxu0 0.0
  %2186 = vmatpush1.msra.mxu0 0.0
  %2187 = vmatprep.subr.mxu0 0.0
  %2188 = vmatpush1.msra.mxu0 0.0
  %2189 = vmatprep.subr.mxu0 0.0
  %2190 = vmatpush1.msra.mxu0 0.0
  %2191 = vmatprep.subr.mxu0 0.0
  %2192 = vmatpush1.msra.mxu0 0.0
  %2193 = vmatprep.subr.mxu0 0.0
  %2194 = vmatpush1.msra.mxu0 0.0
  %2195 = vmatprep.subr.mxu0 0.0
  %2196 = vmatpush1.msra.mxu0 %v898
  %2197 = vmatprep.subr.mxu0 0.0
  %2198 = vmatpush1.msra.mxu0 %v897
  %2199 = vmatprep.subr.mxu0 0.0
  %2200 = vmatpush1.msra.mxu0 %v896
  %2201 = vmatprep.subr.mxu0 0.0
  %2202 = vmatpush1.msra.mxu0 %v895
  %2203 = vmatprep.subr.mxu0 0.0
  %2204 = vmatpush2.msra.mxu0 0.0
  %2205 = vmatprep.subr.mxu0 0.0
  %2206 = vmatpush2.msra.mxu0 0.0
  %2207 = vmatprep.subr.mxu0 0.0
  %2208 = vmatpush2.msra.mxu0 0.0
  %2209 = vmatprep.subr.mxu0 0.0
  %2210 = vmatpush2.msra.mxu0 0.0
  %2211 = vmatprep.subr.mxu0 0.0
  %2212 = vmatpush2.msra.mxu0 0.0
  %2213 = vmatprep.subr.mxu0 0.0
  %2214 = vmatpush2.msra.mxu0 0.0
  %2215 = vmatprep.subr.mxu0 0.0
  %2216 = vmatpush2.msra.mxu0 0.0
  %2217 = vmatprep.subr.mxu0 0.0
  %2218 = vmatpush2.msra.mxu0 0.0
  %2219 = vmatprep.subr.mxu0 0.0
  %2220 = vmatpush2.msra.mxu0 0.0
  %2221 = vmatprep.subr.mxu0 0.0
  %2222 = vmatpush2.msra.mxu0 0.0
  %2223 = vmatprep.subr.mxu0 0.0
  %2224 = vmatpush2.msra.mxu0 0.0
  %2225 = vmatprep.subr.mxu0 0.0
  %2226 = vmatpush2.msra.mxu0 0.0
  %2227 = vmatprep.subr.mxu0 0.0
  %2228 = vmatpush2.msra.mxu0 0.0
  %2229 = vmatprep.subr.mxu0 0.0
  %2230 = vmatpush2.msra.mxu0 0.0
  %2231 = vmatprep.subr.mxu0 0.0
  %2232 = vmatpush2.msra.mxu0 0.0
  %2233 = vmatprep.subr.mxu0 0.0
  %2234 = vmatpush2.msra.mxu0 0.0
  %2235 = vmatprep.mubr.f32.mxu0 0.0
  %2236 = vmatmul.mubr.f32.gmra.mxu0 %v2169
  %v2237 = vpop.f32.mrf.mxu0
  %v2238 = vadd.f32 %v1499, %v2237
  %v2239 = vpop.f32.mrf.mxu0
  %2240 = vdwg.mxu0
  %s2241 = scalar_lea.vmem %s16, 2
  %2242 = vst [vmem:[%s2241] sm:$0x3] %v2238
  %s2243 = scalar_lea.vmem %s0, 4
  %v2244 = vld [vmem:[%s2243] sm:$0x3]
  %2245 = vmatprep.subr.mxu0 0.0
  %2246 = vmatpush1.msra.mxu0 0.0
  %2247 = vmatprep.subr.mxu0 0.0
  %2248 = vmatpush1.msra.mxu0 0.0
  %2249 = vmatprep.subr.mxu0 0.0
  %2250 = vmatpush1.msra.mxu0 0.0
  %2251 = vmatprep.subr.mxu0 0.0
  %2252 = vmatpush1.msra.mxu0 0.0
  %2253 = vmatprep.subr.mxu0 0.0
  %2254 = vmatpush1.msra.mxu0 0.0
  %2255 = vmatprep.subr.mxu0 0.0
  %2256 = vmatpush1.msra.mxu0 0.0
  %2257 = vmatprep.subr.mxu0 0.0
  %2258 = vmatpush1.msra.mxu0 0.0
  %2259 = vmatprep.subr.mxu0 0.0
  %2260 = vmatpush1.msra.mxu0 0.0
  %2261 = vmatprep.subr.mxu0 0.0
  %2262 = vmatpush1.msra.mxu0 0.0
  %2263 = vmatprep.subr.mxu0 0.0
  %2264 = vmatpush1.msra.mxu0 0.0
  %2265 = vmatprep.subr.mxu0 0.0
  %2266 = vmatpush1.msra.mxu0 0.0
  %2267 = vmatprep.subr.mxu0 0.0
  %2268 = vmatpush1.msra.mxu0 0.0
  %2269 = vmatprep.subr.mxu0 0.0
  %2270 = vmatpush1.msra.mxu0 %v879
  %2271 = vmatprep.subr.mxu0 0.0
  %2272 = vmatpush1.msra.mxu0 %v878
  %2273 = vmatprep.subr.mxu0 0.0
  %2274 = vmatpush1.msra.mxu0 %v877
  %2275 = vmatprep.subr.mxu0 0.0
  %2276 = vmatpush1.msra.mxu0 %v876
  %2277 = vmatprep.subr.mxu0 0.0
  %2278 = vmatpush2.msra.mxu0 0.0
  %2279 = vmatprep.subr.mxu0 0.0
  %2280 = vmatpush2.msra.mxu0 0.0
  %2281 = vmatprep.subr.mxu0 0.0
  %2282 = vmatpush2.msra.mxu0 0.0
  %2283 = vmatprep.subr.mxu0 0.0
  %2284 = vmatpush2.msra.mxu0 0.0
  %2285 = vmatprep.subr.mxu0 0.0
  %2286 = vmatpush2.msra.mxu0 0.0
  %2287 = vmatprep.subr.mxu0 0.0
  %2288 = vmatpush2.msra.mxu0 0.0
  %2289 = vmatprep.subr.mxu0 0.0
  %2290 = vmatpush2.msra.mxu0 0.0
  %2291 = vmatprep.subr.mxu0 0.0
  %2292 = vmatpush2.msra.mxu0 0.0
  %2293 = vmatprep.subr.mxu0 0.0
  %2294 = vmatpush2.msra.mxu0 0.0
  %2295 = vmatprep.subr.mxu0 0.0
  %2296 = vmatpush2.msra.mxu0 0.0
  %2297 = vmatprep.subr.mxu0 0.0
  %2298 = vmatpush2.msra.mxu0 0.0
  %2299 = vmatprep.subr.mxu0 0.0
  %2300 = vmatpush2.msra.mxu0 0.0
  %2301 = vmatprep.subr.mxu0 0.0
  %2302 = vmatpush2.msra.mxu0 0.0
  %2303 = vmatprep.subr.mxu0 0.0
  %2304 = vmatpush2.msra.mxu0 0.0
  %2305 = vmatprep.subr.mxu0 0.0
  %2306 = vmatpush2.msra.mxu0 0.0
  %2307 = vmatprep.subr.mxu0 0.0
  %2308 = vmatpush2.msra.mxu0 0.0
  %2309 = vmatprep.mubr.f32.mxu0 0.0
  %2310 = vmatmul.mubr.f32.gmra.mxu0 %v2169
  %v2311 = vpop.f32.mrf.mxu0
  %v2312 = vadd.f32 0.0, %v2311
  %v2313 = vpop.f32.mrf.mxu0
  %2314 = vdwg.mxu0
  %v2316 = vsel %vm67, %v2244, 0
  %2318 = vmatprep.subr.mxu0 0.0
  %2319 = vmatpush1.msra.mxu0 0.0
  %2320 = vmatprep.subr.mxu0 0.0
  %2321 = vmatpush1.msra.mxu0 0.0
  %2322 = vmatprep.subr.mxu0 0.0
  %2323 = vmatpush1.msra.mxu0 0.0
  %2324 = vmatprep.subr.mxu0 0.0
  %2325 = vmatpush1.msra.mxu0 0.0
  %2326 = vmatprep.subr.mxu0 0.0
  %2327 = vmatpush1.msra.mxu0 0.0
  %2328 = vmatprep.subr.mxu0 0.0
  %2329 = vmatpush1.msra.mxu0 0.0
  %2330 = vmatprep.subr.mxu0 0.0
  %2331 = vmatpush1.msra.mxu0 0.0
  %2332 = vmatprep.subr.mxu0 0.0
  %2333 = vmatpush1.msra.mxu0 0.0
  %2334 = vmatprep.subr.mxu0 0.0
  %2335 = vmatpush1.msra.mxu0 0.0
  %2336 = vmatprep.subr.mxu0 0.0
  %2337 = vmatpush1.msra.mxu0 0.0
  %2338 = vmatprep.subr.mxu0 0.0
  %2339 = vmatpush1.msra.mxu0 0.0
  %2340 = vmatprep.subr.mxu0 0.0
  %2341 = vmatpush1.msra.mxu0 0.0
  %2342 = vmatprep.subr.mxu0 0.0
  %2343 = vmatpush1.msra.mxu0 %v860
  %2344 = vmatprep.subr.mxu0 0.0
  %2345 = vmatpush1.msra.mxu0 %v859
  %2346 = vmatprep.subr.mxu0 0.0
  %2347 = vmatpush1.msra.mxu0 %v858
  %2348 = vmatprep.subr.mxu0 0.0
  %2349 = vmatpush1.msra.mxu0 %v857
  %2350 = vmatprep.subr.mxu0 0.0
  %2351 = vmatpush2.msra.mxu0 0.0
  %2352 = vmatprep.subr.mxu0 0.0
  %2353 = vmatpush2.msra.mxu0 0.0
  %2354 = vmatprep.subr.mxu0 0.0
  %2355 = vmatpush2.msra.mxu0 0.0
  %2356 = vmatprep.subr.mxu0 0.0
  %2357 = vmatpush2.msra.mxu0 0.0
  %2358 = vmatprep.subr.mxu0 0.0
  %2359 = vmatpush2.msra.mxu0 0.0
  %2360 = vmatprep.subr.mxu0 0.0
  %2361 = vmatpush2.msra.mxu0 0.0
  %2362 = vmatprep.subr.mxu0 0.0
  %2363 = vmatpush2.msra.mxu0 0.0
  %2364 = vmatprep.subr.mxu0 0.0
  %2365 = vmatpush2.msra.mxu0 0.0
  %2366 = vmatprep.subr.mxu0 0.0
  %2367 = vmatpush2.msra.mxu0 0.0
  %2368 = vmatprep.subr.mxu0 0.0
  %2369 = vmatpush2.msra.mxu0 0.0
  %2370 = vmatprep.subr.mxu0 0.0
  %2371 = vmatpush2.msra.mxu0 0.0
  %2372 = vmatprep.subr.mxu0 0.0
  %2373 = vmatpush2.msra.mxu0 0.0
  %2374 = vmatprep.subr.mxu0 0.0
  %2375 = vmatpush2.msra.mxu0 0.0
  %2376 = vmatprep.subr.mxu0 0.0
  %2377 = vmatpush2.msra.mxu0 0.0
  %2378 = vmatprep.subr.mxu0 0.0
  %2379 = vmatpush2.msra.mxu0 0.0
  %2380 = vmatprep.subr.mxu0 0.0
  %2381 = vmatpush2.msra.mxu0 0.0
  %2382 = vmatprep.mubr.f32.mxu0 0.0
  %2383 = vmatmul.mubr.f32.gmra.mxu0 %v2316
  %v2384 = vpop.f32.mrf.mxu0
  %v2385 = vadd.f32 %v2312, %v2384
  %v2386 = vpop.f32.mrf.mxu0
  %2387 = vdwg.mxu0
  %v2388 = vadd.f32 %v2385, %v605
  %v2389 = vxor.u32 %v2388, 2147483648
  %v2390 = vmul.f32 %v2389, 1.442695
  %v2391 = vpow.pop %v2390
  %v2392 = vadd.f32 %v2391, 1.0
  %v2393 = vrcp.pop %v2392
  %v2394 = vmul.f32 1.0, %v2393
  %2395 = vmatprep.subr.mxu0 0.0
  %2396 = vmatpush1.msra.mxu0 0.0
  %2397 = vmatprep.subr.mxu0 0.0
  %2398 = vmatpush1.msra.mxu0 0.0
  %2399 = vmatprep.subr.mxu0 0.0
  %2400 = vmatpush1.msra.mxu0 0.0
  %2401 = vmatprep.subr.mxu0 0.0
  %2402 = vmatpush1.msra.mxu0 0.0
  %2403 = vmatprep.subr.mxu0 0.0
  %2404 = vmatpush1.msra.mxu0 0.0
  %2405 = vmatprep.subr.mxu0 0.0
  %2406 = vmatpush1.msra.mxu0 0.0
  %2407 = vmatprep.subr.mxu0 0.0
  %2408 = vmatpush1.msra.mxu0 0.0
  %2409 = vmatprep.subr.mxu0 0.0
  %2410 = vmatpush1.msra.mxu0 0.0
  %2411 = vmatprep.subr.mxu0 0.0
  %2412 = vmatpush1.msra.mxu0 0.0
  %2413 = vmatprep.subr.mxu0 0.0
  %2414 = vmatpush1.msra.mxu0 0.0
  %2415 = vmatprep.subr.mxu0 0.0
  %2416 = vmatpush1.msra.mxu0 0.0
  %2417 = vmatprep.subr.mxu0 0.0
  %2418 = vmatpush1.msra.mxu0 0.0
  %2419 = vmatprep.subr.mxu0 0.0
  %2420 = vmatpush1.msra.mxu0 %v884
  %2421 = vmatprep.subr.mxu0 0.0
  %2422 = vmatpush1.msra.mxu0 %v883
  %2423 = vmatprep.subr.mxu0 0.0
  %2424 = vmatpush1.msra.mxu0 %v882
  %2425 = vmatprep.subr.mxu0 0.0
  %2426 = vmatpush1.msra.mxu0 %v881
  %2427 = vmatprep.subr.mxu0 0.0
  %2428 = vmatpush2.msra.mxu0 0.0
  %2429 = vmatprep.subr.mxu0 0.0
  %2430 = vmatpush2.msra.mxu0 0.0
  %2431 = vmatprep.subr.mxu0 0.0
  %2432 = vmatpush2.msra.mxu0 0.0
  %2433 = vmatprep.subr.mxu0 0.0
  %2434 = vmatpush2.msra.mxu0 0.0
  %2435 = vmatprep.subr.mxu0 0.0
  %2436 = vmatpush2.msra.mxu0 0.0
  %2437 = vmatprep.subr.mxu0 0.0
  %2438 = vmatpush2.msra.mxu0 0.0
  %2439 = vmatprep.subr.mxu0 0.0
  %2440 = vmatpush2.msra.mxu0 0.0
  %2441 = vmatprep.subr.mxu0 0.0
  %2442 = vmatpush2.msra.mxu0 0.0
  %2443 = vmatprep.subr.mxu0 0.0
  %2444 = vmatpush2.msra.mxu0 0.0
  %2445 = vmatprep.subr.mxu0 0.0
  %2446 = vmatpush2.msra.mxu0 0.0
  %2447 = vmatprep.subr.mxu0 0.0
  %2448 = vmatpush2.msra.mxu0 0.0
  %2449 = vmatprep.subr.mxu0 0.0
  %2450 = vmatpush2.msra.mxu0 0.0
  %2451 = vmatprep.subr.mxu0 0.0
  %2452 = vmatpush2.msra.mxu0 0.0
  %2453 = vmatprep.subr.mxu0 0.0
  %2454 = vmatpush2.msra.mxu0 0.0
  %2455 = vmatprep.subr.mxu0 0.0
  %2456 = vmatpush2.msra.mxu0 0.0
  %2457 = vmatprep.subr.mxu0 0.0
  %2458 = vmatpush2.msra.mxu0 0.0
  %2459 = vmatprep.mubr.f32.mxu0 0.0
  %2460 = vmatmul.mubr.f32.gmra.mxu0 %v2169
  %v2461 = vpop.f32.mrf.mxu0
  %v2462 = vadd.f32 0.0, %v2461
  %v2463 = vpop.f32.mrf.mxu0
  %2464 = vdwg.mxu0
  %2465 = vmatprep.subr.mxu0 0.0
  %2466 = vmatpush1.msra.mxu0 0.0
  %2467 = vmatprep.subr.mxu0 0.0
  %2468 = vmatpush1.msra.mxu0 0.0
  %2469 = vmatprep.subr.mxu0 0.0
  %2470 = vmatpush1.msra.mxu0 0.0
  %2471 = vmatprep.subr.mxu0 0.0
  %2472 = vmatpush1.msra.mxu0 0.0
  %2473 = vmatprep.subr.mxu0 0.0
  %2474 = vmatpush1.msra.mxu0 0.0
  %2475 = vmatprep.subr.mxu0 0.0
  %2476 = vmatpush1.msra.mxu0 0.0
  %2477 = vmatprep.subr.mxu0 0.0
  %2478 = vmatpush1.msra.mxu0 0.0
  %2479 = vmatprep.subr.mxu0 0.0
  %2480 = vmatpush1.msra.mxu0 0.0
  %2481 = vmatprep.subr.mxu0 0.0
  %2482 = vmatpush1.msra.mxu0 0.0
  %2483 = vmatprep.subr.mxu0 0.0
  %2484 = vmatpush1.msra.mxu0 0.0
  %2485 = vmatprep.subr.mxu0 0.0
  %2486 = vmatpush1.msra.mxu0 0.0
  %2487 = vmatprep.subr.mxu0 0.0
  %2488 = vmatpush1.msra.mxu0 0.0
  %2489 = vmatprep.subr.mxu0 0.0
  %2490 = vmatpush1.msra.mxu0 %v865
  %2491 = vmatprep.subr.mxu0 0.0
  %2492 = vmatpush1.msra.mxu0 %v864
  %2493 = vmatprep.subr.mxu0 0.0
  %2494 = vmatpush1.msra.mxu0 %v863
  %2495 = vmatprep.subr.mxu0 0.0
  %2496 = vmatpush1.msra.mxu0 %v862
  %2497 = vmatprep.subr.mxu0 0.0
  %2498 = vmatpush2.msra.mxu0 0.0
  %2499 = vmatprep.subr.mxu0 0.0
  %2500 = vmatpush2.msra.mxu0 0.0
  %2501 = vmatprep.subr.mxu0 0.0
  %2502 = vmatpush2.msra.mxu0 0.0
  %2503 = vmatprep.subr.mxu0 0.0
  %2504 = vmatpush2.msra.mxu0 0.0
  %2505 = vmatprep.subr.mxu0 0.0
  %2506 = vmatpush2.msra.mxu0 0.0
  %2507 = vmatprep.subr.mxu0 0.0
  %2508 = vmatpush2.msra.mxu0 0.0
  %2509 = vmatprep.subr.mxu0 0.0
  %2510 = vmatpush2.msra.mxu0 0.0
  %2511 = vmatprep.subr.mxu0 0.0
  %2512 = vmatpush2.msra.mxu0 0.0
  %2513 = vmatprep.subr.mxu0 0.0
  %2514 = vmatpush2.msra.mxu0 0.0
  %2515 = vmatprep.subr.mxu0 0.0
  %2516 = vmatpush2.msra.mxu0 0.0
  %2517 = vmatprep.subr.mxu0 0.0
  %2518 = vmatpush2.msra.mxu0 0.0
  %2519 = vmatprep.subr.mxu0 0.0
  %2520 = vmatpush2.msra.mxu0 0.0
  %2521 = vmatprep.subr.mxu0 0.0
  %2522 = vmatpush2.msra.mxu0 0.0
  %2523 = vmatprep.subr.mxu0 0.0
  %2524 = vmatpush2.msra.mxu0 0.0
  %2525 = vmatprep.subr.mxu0 0.0
  %2526 = vmatpush2.msra.mxu0 0.0
  %2527 = vmatprep.subr.mxu0 0.0
  %2528 = vmatpush2.msra.mxu0 0.0
  %2529 = vmatprep.mubr.f32.mxu0 0.0
  %2530 = vmatmul.mubr.f32.gmra.mxu0 %v2316
  %v2531 = vpop.f32.mrf.mxu0
  %v2532 = vadd.f32 %v2462, %v2531
  %v2533 = vpop.f32.mrf.mxu0
  %2534 = vdwg.mxu0
  %v2535 = vadd.f32 %v2532, %v688
  %v2536 = vxor.u32 %v2535, 2147483648
  %v2537 = vmul.f32 %v2536, 1.442695
  %v2538 = vpow.pop %v2537
  %v2539 = vadd.f32 %v2538, 1.0
  %v2540 = vrcp.pop %v2539
  %v2541 = vmul.f32 1.0, %v2540
  %2542 = vmatprep.subr.mxu0 0.0
  %2543 = vmatpush1.msra.mxu0 0.0
  %2544 = vmatprep.subr.mxu0 0.0
  %2545 = vmatpush1.msra.mxu0 0.0
  %2546 = vmatprep.subr.mxu0 0.0
  %2547 = vmatpush1.msra.mxu0 0.0
  %2548 = vmatprep.subr.mxu0 0.0
  %2549 = vmatpush1.msra.mxu0 0.0
  %2550 = vmatprep.subr.mxu0 0.0
  %2551 = vmatpush1.msra.mxu0 0.0
  %2552 = vmatprep.subr.mxu0 0.0
  %2553 = vmatpush1.msra.mxu0 0.0
  %2554 = vmatprep.subr.mxu0 0.0
  %2555 = vmatpush1.msra.mxu0 0.0
  %2556 = vmatprep.subr.mxu0 0.0
  %2557 = vmatpush1.msra.mxu0 0.0
  %2558 = vmatprep.subr.mxu0 0.0
  %2559 = vmatpush1.msra.mxu0 0.0
  %2560 = vmatprep.subr.mxu0 0.0
  %2561 = vmatpush1.msra.mxu0 0.0
  %2562 = vmatprep.subr.mxu0 0.0
  %2563 = vmatpush1.msra.mxu0 0.0
  %2564 = vmatprep.subr.mxu0 0.0
  %2565 = vmatpush1.msra.mxu0 0.0
  %2566 = vmatprep.subr.mxu0 0.0
  %2567 = vmatpush1.msra.mxu0 %v889
  %2568 = vmatprep.subr.mxu0 0.0
  %2569 = vmatpush1.msra.mxu0 %v888
  %2570 = vmatprep.subr.mxu0 0.0
  %2571 = vmatpush1.msra.mxu0 %v887
  %2572 = vmatprep.subr.mxu0 0.0
  %2573 = vmatpush1.msra.mxu0 %v886
  %2574 = vmatprep.subr.mxu0 0.0
  %2575 = vmatpush2.msra.mxu0 0.0
  %2576 = vmatprep.subr.mxu0 0.0
  %2577 = vmatpush2.msra.mxu0 0.0
  %2578 = vmatprep.subr.mxu0 0.0
  %2579 = vmatpush2.msra.mxu0 0.0
  %2580 = vmatprep.subr.mxu0 0.0
  %2581 = vmatpush2.msra.mxu0 0.0
  %2582 = vmatprep.subr.mxu0 0.0
  %2583 = vmatpush2.msra.mxu0 0.0
  %2584 = vmatprep.subr.mxu0 0.0
  %2585 = vmatpush2.msra.mxu0 0.0
  %2586 = vmatprep.subr.mxu0 0.0
  %2587 = vmatpush2.msra.mxu0 0.0
  %2588 = vmatprep.subr.mxu0 0.0
  %2589 = vmatpush2.msra.mxu0 0.0
  %2590 = vmatprep.subr.mxu0 0.0
  %2591 = vmatpush2.msra.mxu0 0.0
  %2592 = vmatprep.subr.mxu0 0.0
  %2593 = vmatpush2.msra.mxu0 0.0
  %2594 = vmatprep.subr.mxu0 0.0
  %2595 = vmatpush2.msra.mxu0 0.0
  %2596 = vmatprep.subr.mxu0 0.0
  %2597 = vmatpush2.msra.mxu0 0.0
  %2598 = vmatprep.subr.mxu0 0.0
  %2599 = vmatpush2.msra.mxu0 0.0
  %2600 = vmatprep.subr.mxu0 0.0
  %2601 = vmatpush2.msra.mxu0 0.0
  %2602 = vmatprep.subr.mxu0 0.0
  %2603 = vmatpush2.msra.mxu0 0.0
  %2604 = vmatprep.subr.mxu0 0.0
  %2605 = vmatpush2.msra.mxu0 0.0
  %2606 = vmatprep.mubr.f32.mxu0 0.0
  %2607 = vmatmul.mubr.f32.gmra.mxu0 %v2169
  %v2608 = vpop.f32.mrf.mxu0
  %v2609 = vadd.f32 0.0, %v2608
  %v2610 = vpop.f32.mrf.mxu0
  %2611 = vdwg.mxu0
  %2612 = vmatprep.subr.mxu0 0.0
  %2613 = vmatpush1.msra.mxu0 0.0
  %2614 = vmatprep.subr.mxu0 0.0
  %2615 = vmatpush1.msra.mxu0 0.0
  %2616 = vmatprep.subr.mxu0 0.0
  %2617 = vmatpush1.msra.mxu0 0.0
  %2618 = vmatprep.subr.mxu0 0.0
  %2619 = vmatpush1.msra.mxu0 0.0
  %2620 = vmatprep.subr.mxu0 0.0
  %2621 = vmatpush1.msra.mxu0 0.0
  %2622 = vmatprep.subr.mxu0 0.0
  %2623 = vmatpush1.msra.mxu0 0.0
  %2624 = vmatprep.subr.mxu0 0.0
  %2625 = vmatpush1.msra.mxu0 0.0
  %2626 = vmatprep.subr.mxu0 0.0
  %2627 = vmatpush1.msra.mxu0 0.0
  %2628 = vmatprep.subr.mxu0 0.0
  %2629 = vmatpush1.msra.mxu0 0.0
  %2630 = vmatprep.subr.mxu0 0.0
  %2631 = vmatpush1.msra.mxu0 0.0
  %2632 = vmatprep.subr.mxu0 0.0
  %2633 = vmatpush1.msra.mxu0 0.0
  %2634 = vmatprep.subr.mxu0 0.0
  %2635 = vmatpush1.msra.mxu0 0.0
  %2636 = vmatprep.subr.mxu0 0.0
  %2637 = vmatpush1.msra.mxu0 %v870
  %2638 = vmatprep.subr.mxu0 0.0
  %2639 = vmatpush1.msra.mxu0 %v869
  %2640 = vmatprep.subr.mxu0 0.0
  %2641 = vmatpush1.msra.mxu0 %v868
  %2642 = vmatprep.subr.mxu0 0.0
  %2643 = vmatpush1.msra.mxu0 %v867
  %2644 = vmatprep.subr.mxu0 0.0
  %2645 = vmatpush2.msra.mxu0 0.0
  %2646 = vmatprep.subr.mxu0 0.0
  %2647 = vmatpush2.msra.mxu0 0.0
  %2648 = vmatprep.subr.mxu0 0.0
  %2649 = vmatpush2.msra.mxu0 0.0
  %2650 = vmatprep.subr.mxu0 0.0
  %2651 = vmatpush2.msra.mxu0 0.0
  %2652 = vmatprep.subr.mxu0 0.0
  %2653 = vmatpush2.msra.mxu0 0.0
  %2654 = vmatprep.subr.mxu0 0.0
  %2655 = vmatpush2.msra.mxu0 0.0
  %2656 = vmatprep.subr.mxu0 0.0
  %2657 = vmatpush2.msra.mxu0 0.0
  %2658 = vmatprep.subr.mxu0 0.0
  %2659 = vmatpush2.msra.mxu0 0.0
  %2660 = vmatprep.subr.mxu0 0.0
  %2661 = vmatpush2.msra.mxu0 0.0
  %2662 = vmatprep.subr.mxu0 0.0
  %2663 = vmatpush2.msra.mxu0 0.0
  %2664 = vmatprep.subr.mxu0 0.0
  %2665 = vmatpush2.msra.mxu0 0.0
  %2666 = vmatprep.subr.mxu0 0.0
  %2667 = vmatpush2.msra.mxu0 0.0
  %2668 = vmatprep.subr.mxu0 0.0
  %2669 = vmatpush2.msra.mxu0 0.0
  %2670 = vmatprep.subr.mxu0 0.0
  %2671 = vmatpush2.msra.mxu0 0.0
  %2672 = vmatprep.subr.mxu0 0.0
  %2673 = vmatpush2.msra.mxu0 0.0
  %2674 = vmatprep.subr.mxu0 0.0
  %2675 = vmatpush2.msra.mxu0 0.0
  %2676 = vmatprep.mubr.f32.mxu0 0.0
  %2677 = vmatmul.mubr.f32.gmra.mxu0 %v2316
  %v2678 = vpop.f32.mrf.mxu0
  %v2679 = vadd.f32 %v2609, %v2678
  %v2680 = vpop.f32.mrf.mxu0
  %2681 = vdwg.mxu0
  %v2682 = vadd.f32 %v2679, %v771
  %v2683 = vtanh.pop %v2682
  %2684 = vmatprep.subr.mxu0 0.0
  %2685 = vmatpush1.msra.mxu0 0.0
  %2686 = vmatprep.subr.mxu0 0.0
  %2687 = vmatpush1.msra.mxu0 0.0
  %2688 = vmatprep.subr.mxu0 0.0
  %2689 = vmatpush1.msra.mxu0 0.0
  %2690 = vmatprep.subr.mxu0 0.0
  %2691 = vmatpush1.msra.mxu0 0.0
  %2692 = vmatprep.subr.mxu0 0.0
  %2693 = vmatpush1.msra.mxu0 0.0
  %2694 = vmatprep.subr.mxu0 0.0
  %2695 = vmatpush1.msra.mxu0 0.0
  %2696 = vmatprep.subr.mxu0 0.0
  %2697 = vmatpush1.msra.mxu0 0.0
  %2698 = vmatprep.subr.mxu0 0.0
  %2699 = vmatpush1.msra.mxu0 0.0
  %2700 = vmatprep.subr.mxu0 0.0
  %2701 = vmatpush1.msra.mxu0 0.0
  %2702 = vmatprep.subr.mxu0 0.0
  %2703 = vmatpush1.msra.mxu0 0.0
  %2704 = vmatprep.subr.mxu0 0.0
  %2705 = vmatpush1.msra.mxu0 0.0
  %2706 = vmatprep.subr.mxu0 0.0
  %2707 = vmatpush1.msra.mxu0 0.0
  %2708 = vmatprep.subr.mxu0 0.0
  %2709 = vmatpush1.msra.mxu0 %v894
  %2710 = vmatprep.subr.mxu0 0.0
  %2711 = vmatpush1.msra.mxu0 %v893
  %2712 = vmatprep.subr.mxu0 0.0
  %2713 = vmatpush1.msra.mxu0 %v892
  %2714 = vmatprep.subr.mxu0 0.0
  %2715 = vmatpush1.msra.mxu0 %v891
  %2716 = vmatprep.subr.mxu0 0.0
  %2717 = vmatpush2.msra.mxu0 0.0
  %2718 = vmatprep.subr.mxu0 0.0
  %2719 = vmatpush2.msra.mxu0 0.0
  %2720 = vmatprep.subr.mxu0 0.0
  %2721 = vmatpush2.msra.mxu0 0.0
  %2722 = vmatprep.subr.mxu0 0.0
  %2723 = vmatpush2.msra.mxu0 0.0
  %2724 = vmatprep.subr.mxu0 0.0
  %2725 = vmatpush2.msra.mxu0 0.0
  %2726 = vmatprep.subr.mxu0 0.0
  %2727 = vmatpush2.msra.mxu0 0.0
  %2728 = vmatprep.subr.mxu0 0.0
  %2729 = vmatpush2.msra.mxu0 0.0
  %2730 = vmatprep.subr.mxu0 0.0
  %2731 = vmatpush2.msra.mxu0 0.0
  %2732 = vmatprep.subr.mxu0 0.0
  %2733 = vmatpush2.msra.mxu0 0.0
  %2734 = vmatprep.subr.mxu0 0.0
  %2735 = vmatpush2.msra.mxu0 0.0
  %2736 = vmatprep.subr.mxu0 0.0
  %2737 = vmatpush2.msra.mxu0 0.0
  %2738 = vmatprep.subr.mxu0 0.0
  %2739 = vmatpush2.msra.mxu0 0.0
  %2740 = vmatprep.subr.mxu0 0.0
  %2741 = vmatpush2.msra.mxu0 0.0
  %2742 = vmatprep.subr.mxu0 0.0
  %2743 = vmatpush2.msra.mxu0 0.0
  %2744 = vmatprep.subr.mxu0 0.0
  %2745 = vmatpush2.msra.mxu0 0.0
  %2746 = vmatprep.subr.mxu0 0.0
  %2747 = vmatpush2.msra.mxu0 0.0
  %2748 = vmatprep.mubr.f32.mxu0 0.0
  %2749 = vmatmul.mubr.f32.gmra.mxu0 %v2169
  %v2750 = vpop.f32.mrf.mxu0
  %v2751 = vadd.f32 0.0, %v2750
  %v2752 = vpop.f32.mrf.mxu0
  %2753 = vdwg.mxu0
  %2754 = vmatprep.subr.mxu0 0.0
  %2755 = vmatpush1.msra.mxu0 0.0
  %2756 = vmatprep.subr.mxu0 0.0
  %2757 = vmatpush1.msra.mxu0 0.0
  %2758 = vmatprep.subr.mxu0 0.0
  %2759 = vmatpush1.msra.mxu0 0.0
  %2760 = vmatprep.subr.mxu0 0.0
  %2761 = vmatpush1.msra.mxu0 0.0
  %2762 = vmatprep.subr.mxu0 0.0
  %2763 = vmatpush1.msra.mxu0 0.0
  %2764 = vmatprep.subr.mxu0 0.0
  %2765 = vmatpush1.msra.mxu0 0.0
  %2766 = vmatprep.subr.mxu0 0.0
  %2767 = vmatpush1.msra.mxu0 0.0
  %2768 = vmatprep.subr.mxu0 0.0
  %2769 = vmatpush1.msra.mxu0 0.0
  %2770 = vmatprep.subr.mxu0 0.0
  %2771 = vmatpush1.msra.mxu0 0.0
  %2772 = vmatprep.subr.mxu0 0.0
  %2773 = vmatpush1.msra.mxu0 0.0
  %2774 = vmatprep.subr.mxu0 0.0
  %2775 = vmatpush1.msra.mxu0 0.0
  %2776 = vmatprep.subr.mxu0 0.0
  %2777 = vmatpush1.msra.mxu0 0.0
  %2778 = vmatprep.subr.mxu0 0.0
  %2779 = vmatpush1.msra.mxu0 %v875
  %2780 = vmatprep.subr.mxu0 0.0
  %2781 = vmatpush1.msra.mxu0 %v874
  %2782 = vmatprep.subr.mxu0 0.0
  %2783 = vmatpush1.msra.mxu0 %v873
  %2784 = vmatprep.subr.mxu0 0.0
  %2785 = vmatpush1.msra.mxu0 %v872
  %2786 = vmatprep.subr.mxu0 0.0
  %2787 = vmatpush2.msra.mxu0 0.0
  %2788 = vmatprep.subr.mxu0 0.0
  %2789 = vmatpush2.msra.mxu0 0.0
  %2790 = vmatprep.subr.mxu0 0.0
  %2791 = vmatpush2.msra.mxu0 0.0
  %2792 = vmatprep.subr.mxu0 0.0
  %2793 = vmatpush2.msra.mxu0 0.0
  %2794 = vmatprep.subr.mxu0 0.0
  %2795 = vmatpush2.msra.mxu0 0.0
  %2796 = vmatprep.subr.mxu0 0.0
  %2797 = vmatpush2.msra.mxu0 0.0
  %2798 = vmatprep.subr.mxu0 0.0
  %2799 = vmatpush2.msra.mxu0 0.0
  %2800 = vmatprep.subr.mxu0 0.0
  %2801 = vmatpush2.msra.mxu0 0.0
  %2802 = vmatprep.subr.mxu0 0.0
  %2803 = vmatpush2.msra.mxu0 0.0
  %2804 = vmatprep.subr.mxu0 0.0
  %2805 = vmatpush2.msra.mxu0 0.0
  %2806 = vmatprep.subr.mxu0 0.0
  %2807 = vmatpush2.msra.mxu0 0.0
  %2808 = vmatprep.subr.mxu0 0.0
  %2809 = vmatpush2.msra.mxu0 0.0
  %2810 = vmatprep.subr.mxu0 0.0
  %2811 = vmatpush2.msra.mxu0 0.0
  %2812 = vmatprep.subr.mxu0 0.0
  %2813 = vmatpush2.msra.mxu0 0.0
  %2814 = vmatprep.subr.mxu0 0.0
  %2815 = vmatpush2.msra.mxu0 0.0
  %2816 = vmatprep.subr.mxu0 0.0
  %2817 = vmatpush2.msra.mxu0 0.0
  %2818 = vmatprep.mubr.f32.mxu0 0.0
  %2819 = vmatmul.mubr.f32.gmra.mxu0 %v2316
  %v2820 = vpop.f32.mrf.mxu0
  %v2821 = vadd.f32 %v2751, %v2820
  %v2822 = vpop.f32.mrf.mxu0
  %2823 = vdwg.mxu0
  %v2824 = vadd.f32 %v2821, %v854
  %v2825 = vxor.u32 %v2824, 2147483648
  %v2826 = vmul.f32 %v2825, 1.442695
  %v2827 = vpow.pop %v2826
  %v2828 = vadd.f32 %v2827, 1.0
  %v2829 = vrcp.pop %v2828
  %v2830 = vmul.f32 1.0, %v2829
  %v2831 = vmul.f32 %v2541, %v2165
  %v2832 = vmul.f32 %v2394, %v2683
  %v2833 = vadd.f32 %v2831, %v2832
  %v2834 = vtanh.pop %v2833
  %v2835 = vmul.f32 %v2830, %v2834
  %v2837 = vsel %vm67, %v2835, 0
  %2839 = vmatprep.subr.mxu0 0.0
  %2840 = vmatpush1.msra.mxu0 0.0
  %2841 = vmatprep.subr.mxu0 0.0
  %2842 = vmatpush1.msra.mxu0 0.0
  %2843 = vmatprep.subr.mxu0 0.0
  %2844 = vmatpush1.msra.mxu0 0.0
  %2845 = vmatprep.subr.mxu0 0.0
  %2846 = vmatpush1.msra.mxu0 0.0
  %2847 = vmatprep.subr.mxu0 0.0
  %2848 = vmatpush1.msra.mxu0 0.0
  %2849 = vmatprep.subr.mxu0 0.0
  %2850 = vmatpush1.msra.mxu0 0.0
  %2851 = vmatprep.subr.mxu0 0.0
  %2852 = vmatpush1.msra.mxu0 0.0
  %2853 = vmatprep.subr.mxu0 0.0
  %2854 = vmatpush1.msra.mxu0 0.0
  %2855 = vmatprep.subr.mxu0 0.0
  %2856 = vmatpush1.msra.mxu0 0.0
  %2857 = vmatprep.subr.mxu0 0.0
  %2858 = vmatpush1.msra.mxu0 0.0
  %2859 = vmatprep.subr.mxu0 0.0
  %2860 = vmatpush1.msra.mxu0 0.0
  %2861 = vmatprep.subr.mxu0 0.0
  %2862 = vmatpush1.msra.mxu0 0.0
  %2863 = vmatprep.subr.mxu0 0.0
  %2864 = vmatpush1.msra.mxu0 %v898
  %2865 = vmatprep.subr.mxu0 0.0
  %2866 = vmatpush1.msra.mxu0 %v897
  %2867 = vmatprep.subr.mxu0 0.0
  %2868 = vmatpush1.msra.mxu0 %v896
  %2869 = vmatprep.subr.mxu0 0.0
  %2870 = vmatpush1.msra.mxu0 %v895
  %2871 = vmatprep.subr.mxu0 0.0
  %2872 = vmatpush2.msra.mxu0 0.0
  %2873 = vmatprep.subr.mxu0 0.0
  %2874 = vmatpush2.msra.mxu0 0.0
  %2875 = vmatprep.subr.mxu0 0.0
  %2876 = vmatpush2.msra.mxu0 0.0
  %2877 = vmatprep.subr.mxu0 0.0
  %2878 = vmatpush2.msra.mxu0 0.0
  %2879 = vmatprep.subr.mxu0 0.0
  %2880 = vmatpush2.msra.mxu0 0.0
  %2881 = vmatprep.subr.mxu0 0.0
  %2882 = vmatpush2.msra.mxu0 0.0
  %2883 = vmatprep.subr.mxu0 0.0
  %2884 = vmatpush2.msra.mxu0 0.0
  %2885 = vmatprep.subr.mxu0 0.0
  %2886 = vmatpush2.msra.mxu0 0.0
  %2887 = vmatprep.subr.mxu0 0.0
  %2888 = vmatpush2.msra.mxu0 0.0
  %2889 = vmatprep.subr.mxu0 0.0
  %2890 = vmatpush2.msra.mxu0 0.0
  %2891 = vmatprep.subr.mxu0 0.0
  %2892 = vmatpush2.msra.mxu0 0.0
  %2893 = vmatprep.subr.mxu0 0.0
  %2894 = vmatpush2.msra.mxu0 0.0
  %2895 = vmatprep.subr.mxu0 0.0
  %2896 = vmatpush2.msra.mxu0 0.0
  %2897 = vmatprep.subr.mxu0 0.0
  %2898 = vmatpush2.msra.mxu0 0.0
  %2899 = vmatprep.subr.mxu0 0.0
  %2900 = vmatpush2.msra.mxu0 0.0
  %2901 = vmatprep.subr.mxu0 0.0
  %2902 = vmatpush2.msra.mxu0 0.0
  %2903 = vmatprep.mubr.f32.mxu0 0.0
  %2904 = vmatmul.mubr.f32.gmra.mxu0 %v2837
  %v2905 = vpop.f32.mrf.mxu0
  %v2906 = vadd.f32 %v1499, %v2905
  %v2907 = vpop.f32.mrf.mxu0
  %2908 = vdwg.mxu0
  %s2909 = scalar_lea.vmem %s16, 4
  %2910 = vst [vmem:[%s2909] sm:$0x3] %v2906
  %s2911 = scalar_lea.vmem %s0, 6
  %v2912 = vld [vmem:[%s2911] sm:$0x3]
  %2913 = vmatprep.subr.mxu0 0.0
  %2914 = vmatpush1.msra.mxu0 0.0
  %2915 = vmatprep.subr.mxu0 0.0
  %2916 = vmatpush1.msra.mxu0 0.0
  %2917 = vmatprep.subr.mxu0 0.0
  %2918 = vmatpush1.msra.mxu0 0.0
  %2919 = vmatprep.subr.mxu0 0.0
  %2920 = vmatpush1.msra.mxu0 0.0
  %2921 = vmatprep.subr.mxu0 0.0
  %2922 = vmatpush1.msra.mxu0 0.0
  %2923 = vmatprep.subr.mxu0 0.0
  %2924 = vmatpush1.msra.mxu0 0.0
  %2925 = vmatprep.subr.mxu0 0.0
  %2926 = vmatpush1.msra.mxu0 0.0
  %2927 = vmatprep.subr.mxu0 0.0
  %2928 = vmatpush1.msra.mxu0 0.0
  %2929 = vmatprep.subr.mxu0 0.0
  %2930 = vmatpush1.msra.mxu0 0.0
  %2931 = vmatprep.subr.mxu0 0.0
  %2932 = vmatpush1.msra.mxu0 0.0
  %2933 = vmatprep.subr.mxu0 0.0
  %2934 = vmatpush1.msra.mxu0 0.0
  %2935 = vmatprep.subr.mxu0 0.0
  %2936 = vmatpush1.msra.mxu0 0.0
  %2937 = vmatprep.subr.mxu0 0.0
  %2938 = vmatpush1.msra.mxu0 %v879
  %2939 = vmatprep.subr.mxu0 0.0
  %2940 = vmatpush1.msra.mxu0 %v878
  %2941 = vmatprep.subr.mxu0 0.0
  %2942 = vmatpush1.msra.mxu0 %v877
  %2943 = vmatprep.subr.mxu0 0.0
  %2944 = vmatpush1.msra.mxu0 %v876
  %2945 = vmatprep.subr.mxu0 0.0
  %2946 = vmatpush2.msra.mxu0 0.0
  %2947 = vmatprep.subr.mxu0 0.0
  %2948 = vmatpush2.msra.mxu0 0.0
  %2949 = vmatprep.subr.mxu0 0.0
  %2950 = vmatpush2.msra.mxu0 0.0
  %2951 = vmatprep.subr.mxu0 0.0
  %2952 = vmatpush2.msra.mxu0 0.0
  %2953 = vmatprep.subr.mxu0 0.0
  %2954 = vmatpush2.msra.mxu0 0.0
  %2955 = vmatprep.subr.mxu0 0.0
  %2956 = vmatpush2.msra.mxu0 0.0
  %2957 = vmatprep.subr.mxu0 0.0
  %2958 = vmatpush2.msra.mxu0 0.0
  %2959 = vmatprep.subr.mxu0 0.0
  %2960 = vmatpush2.msra.mxu0 0.0
  %2961 = vmatprep.subr.mxu0 0.0
  %2962 = vmatpush2.msra.mxu0 0.0
  %2963 = vmatprep.subr.mxu0 0.0
  %2964 = vmatpush2.msra.mxu0 0.0
  %2965 = vmatprep.subr.mxu0 0.0
  %2966 = vmatpush2.msra.mxu0 0.0
  %2967 = vmatprep.subr.mxu0 0.0
  %2968 = vmatpush2.msra.mxu0 0.0
  %2969 = vmatprep.subr.mxu0 0.0
  %2970 = vmatpush2.msra.mxu0 0.0
  %2971 = vmatprep.subr.mxu0 0.0
  %2972 = vmatpush2.msra.mxu0 0.0
  %2973 = vmatprep.subr.mxu0 0.0
  %2974 = vmatpush2.msra.mxu0 0.0
  %2975 = vmatprep.subr.mxu0 0.0
  %2976 = vmatpush2.msra.mxu0 0.0
  %2977 = vmatprep.mubr.f32.mxu0 0.0
  %2978 = vmatmul.mubr.f32.gmra.mxu0 %v2837
  %v2979 = vpop.f32.mrf.mxu0
  %v2980 = vadd.f32 0.0, %v2979
  %v2981 = vpop.f32.mrf.mxu0
  %2982 = vdwg.mxu0
  %v2984 = vsel %vm67, %v2912, 0
  %2986 = vmatprep.subr.mxu0 0.0
  %2987 = vmatpush1.msra.mxu0 0.0
  %2988 = vmatprep.subr.mxu0 0.0
  %2989 = vmatpush1.msra.mxu0 0.0
  %2990 = vmatprep.subr.mxu0 0.0
  %2991 = vmatpush1.msra.mxu0 0.0
  %2992 = vmatprep.subr.mxu0 0.0
  %2993 = vmatpush1.msra.mxu0 0.0
  %2994 = vmatprep.subr.mxu0 0.0
  %2995 = vmatpush1.msra.mxu0 0.0
  %2996 = vmatprep.subr.mxu0 0.0
  %2997 = vmatpush1.msra.mxu0 0.0
  %2998 = vmatprep.subr.mxu0 0.0
  %2999 = vmatpush1.msra.mxu0 0.0
  %3000 = vmatprep.subr.mxu0 0.0
  %3001 = vmatpush1.msra.mxu0 0.0
  %3002 = vmatprep.subr.mxu0 0.0
  %3003 = vmatpush1.msra.mxu0 0.0
  %3004 = vmatprep.subr.mxu0 0.0
  %3005 = vmatpush1.msra.mxu0 0.0
  %3006 = vmatprep.subr.mxu0 0.0
  %3007 = vmatpush1.msra.mxu0 0.0
  %3008 = vmatprep.subr.mxu0 0.0
  %3009 = vmatpush1.msra.mxu0 0.0
  %3010 = vmatprep.subr.mxu0 0.0
  %3011 = vmatpush1.msra.mxu0 %v860
  %3012 = vmatprep.subr.mxu0 0.0
  %3013 = vmatpush1.msra.mxu0 %v859
  %3014 = vmatprep.subr.mxu0 0.0
  %3015 = vmatpush1.msra.mxu0 %v858
  %3016 = vmatprep.subr.mxu0 0.0
  %3017 = vmatpush1.msra.mxu0 %v857
  %3018 = vmatprep.subr.mxu0 0.0
  %3019 = vmatpush2.msra.mxu0 0.0
  %3020 = vmatprep.subr.mxu0 0.0
  %3021 = vmatpush2.msra.mxu0 0.0
  %3022 = vmatprep.subr.mxu0 0.0
  %3023 = vmatpush2.msra.mxu0 0.0
  %3024 = vmatprep.subr.mxu0 0.0
  %3025 = vmatpush2.msra.mxu0 0.0
  %3026 = vmatprep.subr.mxu0 0.0
  %3027 = vmatpush2.msra.mxu0 0.0
  %3028 = vmatprep.subr.mxu0 0.0
  %3029 = vmatpush2.msra.mxu0 0.0
  %3030 = vmatprep.subr.mxu0 0.0
  %3031 = vmatpush2.msra.mxu0 0.0
  %3032 = vmatprep.subr.mxu0 0.0
  %3033 = vmatpush2.msra.mxu0 0.0
  %3034 = vmatprep.subr.mxu0 0.0
  %3035 = vmatpush2.msra.mxu0 0.0
  %3036 = vmatprep.subr.mxu0 0.0
  %3037 = vmatpush2.msra.mxu0 0.0
  %3038 = vmatprep.subr.mxu0 0.0
  %3039 = vmatpush2.msra.mxu0 0.0
  %3040 = vmatprep.subr.mxu0 0.0
  %3041 = vmatpush2.msra.mxu0 0.0
  %3042 = vmatprep.subr.mxu0 0.0
  %3043 = vmatpush2.msra.mxu0 0.0
  %3044 = vmatprep.subr.mxu0 0.0
  %3045 = vmatpush2.msra.mxu0 0.0
  %3046 = vmatprep.subr.mxu0 0.0
  %3047 = vmatpush2.msra.mxu0 0.0
  %3048 = vmatprep.subr.mxu0 0.0
  %3049 = vmatpush2.msra.mxu0 0.0
  %3050 = vmatprep.mubr.f32.mxu0 0.0
  %3051 = vmatmul.mubr.f32.gmra.mxu0 %v2984
  %v3052 = vpop.f32.mrf.mxu0
  %v3053 = vadd.f32 %v2980, %v3052
  %v3054 = vpop.f32.mrf.mxu0
  %3055 = vdwg.mxu0
  %v3056 = vadd.f32 %v3053, %v605
  %v3057 = vxor.u32 %v3056, 2147483648
  %v3058 = vmul.f32 %v3057, 1.442695
  %v3059 = vpow.pop %v3058
  %v3060 = vadd.f32 %v3059, 1.0
  %v3061 = vrcp.pop %v3060
  %v3062 = vmul.f32 1.0, %v3061
  %3063 = vmatprep.subr.mxu0 0.0
  %3064 = vmatpush1.msra.mxu0 0.0
  %3065 = vmatprep.subr.mxu0 0.0
  %3066 = vmatpush1.msra.mxu0 0.0
  %3067 = vmatprep.subr.mxu0 0.0
  %3068 = vmatpush1.msra.mxu0 0.0
  %3069 = vmatprep.subr.mxu0 0.0
  %3070 = vmatpush1.msra.mxu0 0.0
  %3071 = vmatprep.subr.mxu0 0.0
  %3072 = vmatpush1.msra.mxu0 0.0
  %3073 = vmatprep.subr.mxu0 0.0
  %3074 = vmatpush1.msra.mxu0 0.0
  %3075 = vmatprep.subr.mxu0 0.0
  %3076 = vmatpush1.msra.mxu0 0.0
  %3077 = vmatprep.subr.mxu0 0.0
  %3078 = vmatpush1.msra.mxu0 0.0
  %3079 = vmatprep.subr.mxu0 0.0
  %3080 = vmatpush1.msra.mxu0 0.0
  %3081 = vmatprep.subr.mxu0 0.0
  %3082 = vmatpush1.msra.mxu0 0.0
  %3083 = vmatprep.subr.mxu0 0.0
  %3084 = vmatpush1.msra.mxu0 0.0
  %3085 = vmatprep.subr.mxu0 0.0
  %3086 = vmatpush1.msra.mxu0 0.0
  %3087 = vmatprep.subr.mxu0 0.0
  %3088 = vmatpush1.msra.mxu0 %v884
  %3089 = vmatprep.subr.mxu0 0.0
  %3090 = vmatpush1.msra.mxu0 %v883
  %3091 = vmatprep.subr.mxu0 0.0
  %3092 = vmatpush1.msra.mxu0 %v882
  %3093 = vmatprep.subr.mxu0 0.0
  %3094 = vmatpush1.msra.mxu0 %v881
  %3095 = vmatprep.subr.mxu0 0.0
  %3096 = vmatpush2.msra.mxu0 0.0
  %3097 = vmatprep.subr.mxu0 0.0
  %3098 = vmatpush2.msra.mxu0 0.0
  %3099 = vmatprep.subr.mxu0 0.0
  %3100 = vmatpush2.msra.mxu0 0.0
  %3101 = vmatprep.subr.mxu0 0.0
  %3102 = vmatpush2.msra.mxu0 0.0
  %3103 = vmatprep.subr.mxu0 0.0
  %3104 = vmatpush2.msra.mxu0 0.0
  %3105 = vmatprep.subr.mxu0 0.0
  %3106 = vmatpush2.msra.mxu0 0.0
  %3107 = vmatprep.subr.mxu0 0.0
  %3108 = vmatpush2.msra.mxu0 0.0
  %3109 = vmatprep.subr.mxu0 0.0
  %3110 = vmatpush2.msra.mxu0 0.0
  %3111 = vmatprep.subr.mxu0 0.0
  %3112 = vmatpush2.msra.mxu0 0.0
  %3113 = vmatprep.subr.mxu0 0.0
  %3114 = vmatpush2.msra.mxu0 0.0
  %3115 = vmatprep.subr.mxu0 0.0
  %3116 = vmatpush2.msra.mxu0 0.0
  %3117 = vmatprep.subr.mxu0 0.0
  %3118 = vmatpush2.msra.mxu0 0.0
  %3119 = vmatprep.subr.mxu0 0.0
  %3120 = vmatpush2.msra.mxu0 0.0
  %3121 = vmatprep.subr.mxu0 0.0
  %3122 = vmatpush2.msra.mxu0 0.0
  %3123 = vmatprep.subr.mxu0 0.0
  %3124 = vmatpush2.msra.mxu0 0.0
  %3125 = vmatprep.subr.mxu0 0.0
  %3126 = vmatpush2.msra.mxu0 0.0
  %3127 = vmatprep.mubr.f32.mxu0 0.0
  %3128 = vmatmul.mubr.f32.gmra.mxu0 %v2837
  %v3129 = vpop.f32.mrf.mxu0
  %v3130 = vadd.f32 0.0, %v3129
  %v3131 = vpop.f32.mrf.mxu0
  %3132 = vdwg.mxu0
  %3133 = vmatprep.subr.mxu0 0.0
  %3134 = vmatpush1.msra.mxu0 0.0
  %3135 = vmatprep.subr.mxu0 0.0
  %3136 = vmatpush1.msra.mxu0 0.0
  %3137 = vmatprep.subr.mxu0 0.0
  %3138 = vmatpush1.msra.mxu0 0.0
  %3139 = vmatprep.subr.mxu0 0.0
  %3140 = vmatpush1.msra.mxu0 0.0
  %3141 = vmatprep.subr.mxu0 0.0
  %3142 = vmatpush1.msra.mxu0 0.0
  %3143 = vmatprep.subr.mxu0 0.0
  %3144 = vmatpush1.msra.mxu0 0.0
  %3145 = vmatprep.subr.mxu0 0.0
  %3146 = vmatpush1.msra.mxu0 0.0
  %3147 = vmatprep.subr.mxu0 0.0
  %3148 = vmatpush1.msra.mxu0 0.0
  %3149 = vmatprep.subr.mxu0 0.0
  %3150 = vmatpush1.msra.mxu0 0.0
  %3151 = vmatprep.subr.mxu0 0.0
  %3152 = vmatpush1.msra.mxu0 0.0
  %3153 = vmatprep.subr.mxu0 0.0
  %3154 = vmatpush1.msra.mxu0 0.0
  %3155 = vmatprep.subr.mxu0 0.0
  %3156 = vmatpush1.msra.mxu0 0.0
  %3157 = vmatprep.subr.mxu0 0.0
  %3158 = vmatpush1.msra.mxu0 %v865
  %3159 = vmatprep.subr.mxu0 0.0
  %3160 = vmatpush1.msra.mxu0 %v864
  %3161 = vmatprep.subr.mxu0 0.0
  %3162 = vmatpush1.msra.mxu0 %v863
  %3163 = vmatprep.subr.mxu0 0.0
  %3164 = vmatpush1.msra.mxu0 %v862
  %3165 = vmatprep.subr.mxu0 0.0
  %3166 = vmatpush2.msra.mxu0 0.0
  %3167 = vmatprep.subr.mxu0 0.0
  %3168 = vmatpush2.msra.mxu0 0.0
  %3169 = vmatprep.subr.mxu0 0.0
  %3170 = vmatpush2.msra.mxu0 0.0
  %3171 = vmatprep.subr.mxu0 0.0
  %3172 = vmatpush2.msra.mxu0 0.0
  %3173 = vmatprep.subr.mxu0 0.0
  %3174 = vmatpush2.msra.mxu0 0.0
  %3175 = vmatprep.subr.mxu0 0.0
  %3176 = vmatpush2.msra.mxu0 0.0
  %3177 = vmatprep.subr.mxu0 0.0
  %3178 = vmatpush2.msra.mxu0 0.0
  %3179 = vmatprep.subr.mxu0 0.0
  %3180 = vmatpush2.msra.mxu0 0.0
  %3181 = vmatprep.subr.mxu0 0.0
  %3182 = vmatpush2.msra.mxu0 0.0
  %3183 = vmatprep.subr.mxu0 0.0
  %3184 = vmatpush2.msra.mxu0 0.0
  %3185 = vmatprep.subr.mxu0 0.0
  %3186 = vmatpush2.msra.mxu0 0.0
  %3187 = vmatprep.subr.mxu0 0.0
  %3188 = vmatpush2.msra.mxu0 0.0
  %3189 = vmatprep.subr.mxu0 0.0
  %3190 = vmatpush2.msra.mxu0 0.0
  %3191 = vmatprep.subr.mxu0 0.0
  %3192 = vmatpush2.msra.mxu0 0.0
  %3193 = vmatprep.subr.mxu0 0.0
  %3194 = vmatpush2.msra.mxu0 0.0
  %3195 = vmatprep.subr.mxu0 0.0
  %3196 = vmatpush2.msra.mxu0 0.0
  %3197 = vmatprep.mubr.f32.mxu0 0.0
  %3198 = vmatmul.mubr.f32.gmra.mxu0 %v2984
  %v3199 = vpop.f32.mrf.mxu0
  %v3200 = vadd.f32 %v3130, %v3199
  %v3201 = vpop.f32.mrf.mxu0
  %3202 = vdwg.mxu0
  %v3203 = vadd.f32 %v3200, %v688
  %v3204 = vxor.u32 %v3203, 2147483648
  %v3205 = vmul.f32 %v3204, 1.442695
  %v3206 = vpow.pop %v3205
  %v3207 = vadd.f32 %v3206, 1.0
  %v3208 = vrcp.pop %v3207
  %v3209 = vmul.f32 1.0, %v3208
  %3210 = vmatprep.subr.mxu0 0.0
  %3211 = vmatpush1.msra.mxu0 0.0
  %3212 = vmatprep.subr.mxu0 0.0
  %3213 = vmatpush1.msra.mxu0 0.0
  %3214 = vmatprep.subr.mxu0 0.0
  %3215 = vmatpush1.msra.mxu0 0.0
  %3216 = vmatprep.subr.mxu0 0.0
  %3217 = vmatpush1.msra.mxu0 0.0
  %3218 = vmatprep.subr.mxu0 0.0
  %3219 = vmatpush1.msra.mxu0 0.0
  %3220 = vmatprep.subr.mxu0 0.0
  %3221 = vmatpush1.msra.mxu0 0.0
  %3222 = vmatprep.subr.mxu0 0.0
  %3223 = vmatpush1.msra.mxu0 0.0
  %3224 = vmatprep.subr.mxu0 0.0
  %3225 = vmatpush1.msra.mxu0 0.0
  %3226 = vmatprep.subr.mxu0 0.0
  %3227 = vmatpush1.msra.mxu0 0.0
  %3228 = vmatprep.subr.mxu0 0.0
  %3229 = vmatpush1.msra.mxu0 0.0
  %3230 = vmatprep.subr.mxu0 0.0
  %3231 = vmatpush1.msra.mxu0 0.0
  %3232 = vmatprep.subr.mxu0 0.0
  %3233 = vmatpush1.msra.mxu0 0.0
  %3234 = vmatprep.subr.mxu0 0.0
  %3235 = vmatpush1.msra.mxu0 %v889
  %3236 = vmatprep.subr.mxu0 0.0
  %3237 = vmatpush1.msra.mxu0 %v888
  %3238 = vmatprep.subr.mxu0 0.0
  %3239 = vmatpush1.msra.mxu0 %v887
  %3240 = vmatprep.subr.mxu0 0.0
  %3241 = vmatpush1.msra.mxu0 %v886
  %3242 = vmatprep.subr.mxu0 0.0
  %3243 = vmatpush2.msra.mxu0 0.0
  %3244 = vmatprep.subr.mxu0 0.0
  %3245 = vmatpush2.msra.mxu0 0.0
  %3246 = vmatprep.subr.mxu0 0.0
  %3247 = vmatpush2.msra.mxu0 0.0
  %3248 = vmatprep.subr.mxu0 0.0
  %3249 = vmatpush2.msra.mxu0 0.0
  %3250 = vmatprep.subr.mxu0 0.0
  %3251 = vmatpush2.msra.mxu0 0.0
  %3252 = vmatprep.subr.mxu0 0.0
  %3253 = vmatpush2.msra.mxu0 0.0
  %3254 = vmatprep.subr.mxu0 0.0
  %3255 = vmatpush2.msra.mxu0 0.0
  %3256 = vmatprep.subr.mxu0 0.0
  %3257 = vmatpush2.msra.mxu0 0.0
  %3258 = vmatprep.subr.mxu0 0.0
  %3259 = vmatpush2.msra.mxu0 0.0
  %3260 = vmatprep.subr.mxu0 0.0
  %3261 = vmatpush2.msra.mxu0 0.0
  %3262 = vmatprep.subr.mxu0 0.0
  %3263 = vmatpush2.msra.mxu0 0.0
  %3264 = vmatprep.subr.mxu0 0.0
  %3265 = vmatpush2.msra.mxu0 0.0
  %3266 = vmatprep.subr.mxu0 0.0
  %3267 = vmatpush2.msra.mxu0 0.0
  %3268 = vmatprep.subr.mxu0 0.0
  %3269 = vmatpush2.msra.mxu0 0.0
  %3270 = vmatprep.subr.mxu0 0.0
  %3271 = vmatpush2.msra.mxu0 0.0
  %3272 = vmatprep.subr.mxu0 0.0
  %3273 = vmatpush2.msra.mxu0 0.0
  %3274 = vmatprep.mubr.f32.mxu0 0.0
  %3275 = vmatmul.mubr.f32.gmra.mxu0 %v2837
  %v3276 = vpop.f32.mrf.mxu0
  %v3277 = vadd.f32 0.0, %v3276
  %v3278 = vpop.f32.mrf.mxu0
  %3279 = vdwg.mxu0
  %3280 = vmatprep.subr.mxu0 0.0
  %3281 = vmatpush1.msra.mxu0 0.0
  %3282 = vmatprep.subr.mxu0 0.0
  %3283 = vmatpush1.msra.mxu0 0.0
  %3284 = vmatprep.subr.mxu0 0.0
  %3285 = vmatpush1.msra.mxu0 0.0
  %3286 = vmatprep.subr.mxu0 0.0
  %3287 = vmatpush1.msra.mxu0 0.0
  %3288 = vmatprep.subr.mxu0 0.0
  %3289 = vmatpush1.msra.mxu0 0.0
  %3290 = vmatprep.subr.mxu0 0.0
  %3291 = vmatpush1.msra.mxu0 0.0
  %3292 = vmatprep.subr.mxu0 0.0
  %3293 = vmatpush1.msra.mxu0 0.0
  %3294 = vmatprep.subr.mxu0 0.0
  %3295 = vmatpush1.msra.mxu0 0.0
  %3296 = vmatprep.subr.mxu0 0.0
  %3297 = vmatpush1.msra.mxu0 0.0
  %3298 = vmatprep.subr.mxu0 0.0
  %3299 = vmatpush1.msra.mxu0 0.0
  %3300 = vmatprep.subr.mxu0 0.0
  %3301 = vmatpush1.msra.mxu0 0.0
  %3302 = vmatprep.subr.mxu0 0.0
  %3303 = vmatpush1.msra.mxu0 0.0
  %3304 = vmatprep.subr.mxu0 0.0
  %3305 = vmatpush1.msra.mxu0 %v870
  %3306 = vmatprep.subr.mxu0 0.0
  %3307 = vmatpush1.msra.mxu0 %v869
  %3308 = vmatprep.subr.mxu0 0.0
  %3309 = vmatpush1.msra.mxu0 %v868
  %3310 = vmatprep.subr.mxu0 0.0
  %3311 = vmatpush1.msra.mxu0 %v867
  %3312 = vmatprep.subr.mxu0 0.0
  %3313 = vmatpush2.msra.mxu0 0.0
  %3314 = vmatprep.subr.mxu0 0.0
  %3315 = vmatpush2.msra.mxu0 0.0
  %3316 = vmatprep.subr.mxu0 0.0
  %3317 = vmatpush2.msra.mxu0 0.0
  %3318 = vmatprep.subr.mxu0 0.0
  %3319 = vmatpush2.msra.mxu0 0.0
  %3320 = vmatprep.subr.mxu0 0.0
  %3321 = vmatpush2.msra.mxu0 0.0
  %3322 = vmatprep.subr.mxu0 0.0
  %3323 = vmatpush2.msra.mxu0 0.0
  %3324 = vmatprep.subr.mxu0 0.0
  %3325 = vmatpush2.msra.mxu0 0.0
  %3326 = vmatprep.subr.mxu0 0.0
  %3327 = vmatpush2.msra.mxu0 0.0
  %3328 = vmatprep.subr.mxu0 0.0
  %3329 = vmatpush2.msra.mxu0 0.0
  %3330 = vmatprep.subr.mxu0 0.0
  %3331 = vmatpush2.msra.mxu0 0.0
  %3332 = vmatprep.subr.mxu0 0.0
  %3333 = vmatpush2.msra.mxu0 0.0
  %3334 = vmatprep.subr.mxu0 0.0
  %3335 = vmatpush2.msra.mxu0 0.0
  %3336 = vmatprep.subr.mxu0 0.0
  %3337 = vmatpush2.msra.mxu0 0.0
  %3338 = vmatprep.subr.mxu0 0.0
  %3339 = vmatpush2.msra.mxu0 0.0
  %3340 = vmatprep.subr.mxu0 0.0
  %3341 = vmatpush2.msra.mxu0 0.0
  %3342 = vmatprep.subr.mxu0 0.0
  %3343 = vmatpush2.msra.mxu0 0.0
  %3344 = vmatprep.mubr.f32.mxu0 0.0
  %3345 = vmatmul.mubr.f32.gmra.mxu0 %v2984
  %v3346 = vpop.f32.mrf.mxu0
  %v3347 = vadd.f32 %v3277, %v3346
  %v3348 = vpop.f32.mrf.mxu0
  %3349 = vdwg.mxu0
  %v3350 = vadd.f32 %v3347, %v771
  %v3351 = vtanh.pop %v3350
  %3352 = vmatprep.subr.mxu0 0.0
  %3353 = vmatpush1.msra.mxu0 0.0
  %3354 = vmatprep.subr.mxu0 0.0
  %3355 = vmatpush1.msra.mxu0 0.0
  %3356 = vmatprep.subr.mxu0 0.0
  %3357 = vmatpush1.msra.mxu0 0.0
  %3358 = vmatprep.subr.mxu0 0.0
  %3359 = vmatpush1.msra.mxu0 0.0
  %3360 = vmatprep.subr.mxu0 0.0
  %3361 = vmatpush1.msra.mxu0 0.0
  %3362 = vmatprep.subr.mxu0 0.0
  %3363 = vmatpush1.msra.mxu0 0.0
  %3364 = vmatprep.subr.mxu0 0.0
  %3365 = vmatpush1.msra.mxu0 0.0
  %3366 = vmatprep.subr.mxu0 0.0
  %3367 = vmatpush1.msra.mxu0 0.0
  %3368 = vmatprep.subr.mxu0 0.0
  %3369 = vmatpush1.msra.mxu0 0.0
  %3370 = vmatprep.subr.mxu0 0.0
  %3371 = vmatpush1.msra.mxu0 0.0
  %3372 = vmatprep.subr.mxu0 0.0
  %3373 = vmatpush1.msra.mxu0 0.0
  %3374 = vmatprep.subr.mxu0 0.0
  %3375 = vmatpush1.msra.mxu0 0.0
  %3376 = vmatprep.subr.mxu0 0.0
  %3377 = vmatpush1.msra.mxu0 %v894
  %3378 = vmatprep.subr.mxu0 0.0
  %3379 = vmatpush1.msra.mxu0 %v893
  %3380 = vmatprep.subr.mxu0 0.0
  %3381 = vmatpush1.msra.mxu0 %v892
  %3382 = vmatprep.subr.mxu0 0.0
  %3383 = vmatpush1.msra.mxu0 %v891
  %3384 = vmatprep.subr.mxu0 0.0
  %3385 = vmatpush2.msra.mxu0 0.0
  %3386 = vmatprep.subr.mxu0 0.0
  %3387 = vmatpush2.msra.mxu0 0.0
  %3388 = vmatprep.subr.mxu0 0.0
  %3389 = vmatpush2.msra.mxu0 0.0
  %3390 = vmatprep.subr.mxu0 0.0
  %3391 = vmatpush2.msra.mxu0 0.0
  %3392 = vmatprep.subr.mxu0 0.0
  %3393 = vmatpush2.msra.mxu0 0.0
  %3394 = vmatprep.subr.mxu0 0.0
  %3395 = vmatpush2.msra.mxu0 0.0
  %3396 = vmatprep.subr.mxu0 0.0
  %3397 = vmatpush2.msra.mxu0 0.0
  %3398 = vmatprep.subr.mxu0 0.0
  %3399 = vmatpush2.msra.mxu0 0.0
  %3400 = vmatprep.subr.mxu0 0.0
  %3401 = vmatpush2.msra.mxu0 0.0
  %3402 = vmatprep.subr.mxu0 0.0
  %3403 = vmatpush2.msra.mxu0 0.0
  %3404 = vmatprep.subr.mxu0 0.0
  %3405 = vmatpush2.msra.mxu0 0.0
  %3406 = vmatprep.subr.mxu0 0.0
  %3407 = vmatpush2.msra.mxu0 0.0
  %3408 = vmatprep.subr.mxu0 0.0
  %3409 = vmatpush2.msra.mxu0 0.0
  %3410 = vmatprep.subr.mxu0 0.0
  %3411 = vmatpush2.msra.mxu0 0.0
  %3412 = vmatprep.subr.mxu0 0.0
  %3413 = vmatpush2.msra.mxu0 0.0
  %3414 = vmatprep.subr.mxu0 0.0
  %3415 = vmatpush2.msra.mxu0 0.0
  %3416 = vmatprep.mubr.f32.mxu0 0.0
  %3417 = vmatmul.mubr.f32.gmra.mxu0 %v2837
  %v3418 = vpop.f32.mrf.mxu0
  %v3419 = vadd.f32 0.0, %v3418
  %v3420 = vpop.f32.mrf.mxu0
  %3421 = vdwg.mxu0
  %3422 = vmatprep.subr.mxu0 0.0
  %3423 = vmatpush1.msra.mxu0 0.0
  %3424 = vmatprep.subr.mxu0 0.0
  %3425 = vmatpush1.msra.mxu0 0.0
  %3426 = vmatprep.subr.mxu0 0.0
  %3427 = vmatpush1.msra.mxu0 0.0
  %3428 = vmatprep.subr.mxu0 0.0
  %3429 = vmatpush1.msra.mxu0 0.0
  %3430 = vmatprep.subr.mxu0 0.0
  %3431 = vmatpush1.msra.mxu0 0.0
  %3432 = vmatprep.subr.mxu0 0.0
  %3433 = vmatpush1.msra.mxu0 0.0
  %3434 = vmatprep.subr.mxu0 0.0
  %3435 = vmatpush1.msra.mxu0 0.0
  %3436 = vmatprep.subr.mxu0 0.0
  %3437 = vmatpush1.msra.mxu0 0.0
  %3438 = vmatprep.subr.mxu0 0.0
  %3439 = vmatpush1.msra.mxu0 0.0
  %3440 = vmatprep.subr.mxu0 0.0
  %3441 = vmatpush1.msra.mxu0 0.0
  %3442 = vmatprep.subr.mxu0 0.0
  %3443 = vmatpush1.msra.mxu0 0.0
  %3444 = vmatprep.subr.mxu0 0.0
  %3445 = vmatpush1.msra.mxu0 0.0
  %3446 = vmatprep.subr.mxu0 0.0
  %3447 = vmatpush1.msra.mxu0 %v875
  %3448 = vmatprep.subr.mxu0 0.0
  %3449 = vmatpush1.msra.mxu0 %v874
  %3450 = vmatprep.subr.mxu0 0.0
  %3451 = vmatpush1.msra.mxu0 %v873
  %3452 = vmatprep.subr.mxu0 0.0
  %3453 = vmatpush1.msra.mxu0 %v872
  %3454 = vmatprep.subr.mxu0 0.0
  %3455 = vmatpush2.msra.mxu0 0.0
  %3456 = vmatprep.subr.mxu0 0.0
  %3457 = vmatpush2.msra.mxu0 0.0
  %3458 = vmatprep.subr.mxu0 0.0
  %3459 = vmatpush2.msra.mxu0 0.0
  %3460 = vmatprep.subr.mxu0 0.0
  %3461 = vmatpush2.msra.mxu0 0.0
  %3462 = vmatprep.subr.mxu0 0.0
  %3463 = vmatpush2.msra.mxu0 0.0
  %3464 = vmatprep.subr.mxu0 0.0
  %3465 = vmatpush2.msra.mxu0 0.0
  %3466 = vmatprep.subr.mxu0 0.0
  %3467 = vmatpush2.msra.mxu0 0.0
  %3468 = vmatprep.subr.mxu0 0.0
  %3469 = vmatpush2.msra.mxu0 0.0
  %3470 = vmatprep.subr.mxu0 0.0
  %3471 = vmatpush2.msra.mxu0 0.0
  %3472 = vmatprep.subr.mxu0 0.0
  %3473 = vmatpush2.msra.mxu0 0.0
  %3474 = vmatprep.subr.mxu0 0.0
  %3475 = vmatpush2.msra.mxu0 0.0
  %3476 = vmatprep.subr.mxu0 0.0
  %3477 = vmatpush2.msra.mxu0 0.0
  %3478 = vmatprep.subr.mxu0 0.0
  %3479 = vmatpush2.msra.mxu0 0.0
  %3480 = vmatprep.subr.mxu0 0.0
  %3481 = vmatpush2.msra.mxu0 0.0
  %3482 = vmatprep.subr.mxu0 0.0
  %3483 = vmatpush2.msra.mxu0 0.0
  %3484 = vmatprep.subr.mxu0 0.0
  %3485 = vmatpush2.msra.mxu0 0.0
  %3486 = vmatprep.mubr.f32.mxu0 0.0
  %3487 = vmatmul.mubr.f32.gmra.mxu0 %v2984
  %v3488 = vpop.f32.mrf.mxu0
  %v3489 = vadd.f32 %v3419, %v3488
  %v3490 = vpop.f32.mrf.mxu0
  %3491 = vdwg.mxu0
  %v3492 = vadd.f32 %v3489, %v854
  %v3493 = vxor.u32 %v3492, 2147483648
  %v3494 = vmul.f32 %v3493, 1.442695
  %v3495 = vpow.pop %v3494
  %v3496 = vadd.f32 %v3495, 1.0
  %v3497 = vrcp.pop %v3496
  %v3498 = vmul.f32 1.0, %v3497
  %v3499 = vmul.f32 %v3209, %v2833
  %v3500 = vmul.f32 %v3062, %v3351
  %v3501 = vadd.f32 %v3499, %v3500
  %v3502 = vtanh.pop %v3501
  %v3503 = vmul.f32 %v3498, %v3502
  %v3505 = vsel %vm67, %v3503, 0
  %3507 = vmatprep.subr.mxu0 0.0
  %3508 = vmatpush1.msra.mxu0 0.0
  %3509 = vmatprep.subr.mxu0 0.0
  %3510 = vmatpush1.msra.mxu0 0.0
  %3511 = vmatprep.subr.mxu0 0.0
  %3512 = vmatpush1.msra.mxu0 0.0
  %3513 = vmatprep.subr.mxu0 0.0
  %3514 = vmatpush1.msra.mxu0 0.0
  %3515 = vmatprep.subr.mxu0 0.0
  %3516 = vmatpush1.msra.mxu0 0.0
  %3517 = vmatprep.subr.mxu0 0.0
  %3518 = vmatpush1.msra.mxu0 0.0
  %3519 = vmatprep.subr.mxu0 0.0
  %3520 = vmatpush1.msra.mxu0 0.0
  %3521 = vmatprep.subr.mxu0 0.0
  %3522 = vmatpush1.msra.mxu0 0.0
  %3523 = vmatprep.subr.mxu0 0.0
  %3524 = vmatpush1.msra.mxu0 0.0
  %3525 = vmatprep.subr.mxu0 0.0
  %3526 = vmatpush1.msra.mxu0 0.0
  %3527 = vmatprep.subr.mxu0 0.0
  %3528 = vmatpush1.msra.mxu0 0.0
  %3529 = vmatprep.subr.mxu0 0.0
  %3530 = vmatpush1.msra.mxu0 0.0
  %3531 = vmatprep.subr.mxu0 0.0
  %3532 = vmatpush1.msra.mxu0 %v898
  %3533 = vmatprep.subr.mxu0 0.0
  %3534 = vmatpush1.msra.mxu0 %v897
  %3535 = vmatprep.subr.mxu0 0.0
  %3536 = vmatpush1.msra.mxu0 %v896
  %3537 = vmatprep.subr.mxu0 0.0
  %3538 = vmatpush1.msra.mxu0 %v895
  %3539 = vmatprep.subr.mxu0 0.0
  %3540 = vmatpush2.msra.mxu0 0.0
  %3541 = vmatprep.subr.mxu0 0.0
  %3542 = vmatpush2.msra.mxu0 0.0
  %3543 = vmatprep.subr.mxu0 0.0
  %3544 = vmatpush2.msra.mxu0 0.0
  %3545 = vmatprep.subr.mxu0 0.0
  %3546 = vmatpush2.msra.mxu0 0.0
  %3547 = vmatprep.subr.mxu0 0.0
  %3548 = vmatpush2.msra.mxu0 0.0
  %3549 = vmatprep.subr.mxu0 0.0
  %3550 = vmatpush2.msra.mxu0 0.0
  %3551 = vmatprep.subr.mxu0 0.0
  %3552 = vmatpush2.msra.mxu0 0.0
  %3553 = vmatprep.subr.mxu0 0.0
  %3554 = vmatpush2.msra.mxu0 0.0
  %3555 = vmatprep.subr.mxu0 0.0
  %3556 = vmatpush2.msra.mxu0 0.0
  %3557 = vmatprep.subr.mxu0 0.0
  %3558 = vmatpush2.msra.mxu0 0.0
  %3559 = vmatprep.subr.mxu0 0.0
  %3560 = vmatpush2.msra.mxu0 0.0
  %3561 = vmatprep.subr.mxu0 0.0
  %3562 = vmatpush2.msra.mxu0 0.0
  %3563 = vmatprep.subr.mxu0 0.0
  %3564 = vmatpush2.msra.mxu0 0.0
  %3565 = vmatprep.subr.mxu0 0.0
  %3566 = vmatpush2.msra.mxu0 0.0
  %3567 = vmatprep.subr.mxu0 0.0
  %3568 = vmatpush2.msra.mxu0 0.0
  %3569 = vmatprep.subr.mxu0 0.0
  %3570 = vmatpush2.msra.mxu0 0.0
  %3571 = vmatprep.mubr.f32.mxu0 0.0
  %3572 = vmatmul.mubr.f32.gmra.mxu0 %v3505
  %v3573 = vpop.f32.mrf.mxu0
  %v3574 = vadd.f32 %v1499, %v3573
  %v3575 = vpop.f32.mrf.mxu0
  %3576 = vdwg.mxu0
  %s3577 = scalar_lea.vmem %s16, 6
  %3578 = vst [vmem:[%s3577] sm:$0x3] %v3574
  %s3579 = scalar_lea.vmem %s0, 8
  %v3580 = vld [vmem:[%s3579] sm:$0x3]
  %3581 = vmatprep.subr.mxu0 0.0
  %3582 = vmatpush1.msra.mxu0 0.0
  %3583 = vmatprep.subr.mxu0 0.0
  %3584 = vmatpush1.msra.mxu0 0.0
  %3585 = vmatprep.subr.mxu0 0.0
  %3586 = vmatpush1.msra.mxu0 0.0
  %3587 = vmatprep.subr.mxu0 0.0
  %3588 = vmatpush1.msra.mxu0 0.0
  %3589 = vmatprep.subr.mxu0 0.0
  %3590 = vmatpush1.msra.mxu0 0.0
  %3591 = vmatprep.subr.mxu0 0.0
  %3592 = vmatpush1.msra.mxu0 0.0
  %3593 = vmatprep.subr.mxu0 0.0
  %3594 = vmatpush1.msra.mxu0 0.0
  %3595 = vmatprep.subr.mxu0 0.0
  %3596 = vmatpush1.msra.mxu0 0.0
  %3597 = vmatprep.subr.mxu0 0.0
  %3598 = vmatpush1.msra.mxu0 0.0
  %3599 = vmatprep.subr.mxu0 0.0
  %3600 = vmatpush1.msra.mxu0 0.0
  %3601 = vmatprep.subr.mxu0 0.0
  %3602 = vmatpush1.msra.mxu0 0.0
  %3603 = vmatprep.subr.mxu0 0.0
  %3604 = vmatpush1.msra.mxu0 0.0
  %3605 = vmatprep.subr.mxu0 0.0
  %3606 = vmatpush1.msra.mxu0 %v879
  %3607 = vmatprep.subr.mxu0 0.0
  %3608 = vmatpush1.msra.mxu0 %v878
  %3609 = vmatprep.subr.mxu0 0.0
  %3610 = vmatpush1.msra.mxu0 %v877
  %3611 = vmatprep.subr.mxu0 0.0
  %3612 = vmatpush1.msra.mxu0 %v876
  %3613 = vmatprep.subr.mxu0 0.0
  %3614 = vmatpush2.msra.mxu0 0.0
  %3615 = vmatprep.subr.mxu0 0.0
  %3616 = vmatpush2.msra.mxu0 0.0
  %3617 = vmatprep.subr.mxu0 0.0
  %3618 = vmatpush2.msra.mxu0 0.0
  %3619 = vmatprep.subr.mxu0 0.0
  %3620 = vmatpush2.msra.mxu0 0.0
  %3621 = vmatprep.subr.mxu0 0.0
  %3622 = vmatpush2.msra.mxu0 0.0
  %3623 = vmatprep.subr.mxu0 0.0
  %3624 = vmatpush2.msra.mxu0 0.0
  %3625 = vmatprep.subr.mxu0 0.0
  %3626 = vmatpush2.msra.mxu0 0.0
  %3627 = vmatprep.subr.mxu0 0.0
  %3628 = vmatpush2.msra.mxu0 0.0
  %3629 = vmatprep.subr.mxu0 0.0
  %3630 = vmatpush2.msra.mxu0 0.0
  %3631 = vmatprep.subr.mxu0 0.0
  %3632 = vmatpush2.msra.mxu0 0.0
  %3633 = vmatprep.subr.mxu0 0.0
  %3634 = vmatpush2.msra.mxu0 0.0
  %3635 = vmatprep.subr.mxu0 0.0
  %3636 = vmatpush2.msra.mxu0 0.0
  %3637 = vmatprep.subr.mxu0 0.0
  %3638 = vmatpush2.msra.mxu0 0.0
  %3639 = vmatprep.subr.mxu0 0.0
  %3640 = vmatpush2.msra.mxu0 0.0
  %3641 = vmatprep.subr.mxu0 0.0
  %3642 = vmatpush2.msra.mxu0 0.0
  %3643 = vmatprep.subr.mxu0 0.0
  %3644 = vmatpush2.msra.mxu0 0.0
  %3645 = vmatprep.mubr.f32.mxu0 0.0
  %3646 = vmatmul.mubr.f32.gmra.mxu0 %v3505
  %v3647 = vpop.f32.mrf.mxu0
  %v3648 = vadd.f32 0.0, %v3647
  %v3649 = vpop.f32.mrf.mxu0
  %3650 = vdwg.mxu0
  %v3652 = vsel %vm67, %v3580, 0
  %3654 = vmatprep.subr.mxu0 0.0
  %3655 = vmatpush1.msra.mxu0 0.0
  %3656 = vmatprep.subr.mxu0 0.0
  %3657 = vmatpush1.msra.mxu0 0.0
  %3658 = vmatprep.subr.mxu0 0.0
  %3659 = vmatpush1.msra.mxu0 0.0
  %3660 = vmatprep.subr.mxu0 0.0
  %3661 = vmatpush1.msra.mxu0 0.0
  %3662 = vmatprep.subr.mxu0 0.0
  %3663 = vmatpush1.msra.mxu0 0.0
  %3664 = vmatprep.subr.mxu0 0.0
  %3665 = vmatpush1.msra.mxu0 0.0
  %3666 = vmatprep.subr.mxu0 0.0
  %3667 = vmatpush1.msra.mxu0 0.0
  %3668 = vmatprep.subr.mxu0 0.0
  %3669 = vmatpush1.msra.mxu0 0.0
  %3670 = vmatprep.subr.mxu0 0.0
  %3671 = vmatpush1.msra.mxu0 0.0
  %3672 = vmatprep.subr.mxu0 0.0
  %3673 = vmatpush1.msra.mxu0 0.0
  %3674 = vmatprep.subr.mxu0 0.0
  %3675 = vmatpush1.msra.mxu0 0.0
  %3676 = vmatprep.subr.mxu0 0.0
  %3677 = vmatpush1.msra.mxu0 0.0
  %3678 = vmatprep.subr.mxu0 0.0
  %3679 = vmatpush1.msra.mxu0 %v860
  %3680 = vmatprep.subr.mxu0 0.0
  %3681 = vmatpush1.msra.mxu0 %v859
  %3682 = vmatprep.subr.mxu0 0.0
  %3683 = vmatpush1.msra.mxu0 %v858
  %3684 = vmatprep.subr.mxu0 0.0
  %3685 = vmatpush1.msra.mxu0 %v857
  %3686 = vmatprep.subr.mxu0 0.0
  %3687 = vmatpush2.msra.mxu0 0.0
  %3688 = vmatprep.subr.mxu0 0.0
  %3689 = vmatpush2.msra.mxu0 0.0
  %3690 = vmatprep.subr.mxu0 0.0
  %3691 = vmatpush2.msra.mxu0 0.0
  %3692 = vmatprep.subr.mxu0 0.0
  %3693 = vmatpush2.msra.mxu0 0.0
  %3694 = vmatprep.subr.mxu0 0.0
  %3695 = vmatpush2.msra.mxu0 0.0
  %3696 = vmatprep.subr.mxu0 0.0
  %3697 = vmatpush2.msra.mxu0 0.0
  %3698 = vmatprep.subr.mxu0 0.0
  %3699 = vmatpush2.msra.mxu0 0.0
  %3700 = vmatprep.subr.mxu0 0.0
  %3701 = vmatpush2.msra.mxu0 0.0
  %3702 = vmatprep.subr.mxu0 0.0
  %3703 = vmatpush2.msra.mxu0 0.0
  %3704 = vmatprep.subr.mxu0 0.0
  %3705 = vmatpush2.msra.mxu0 0.0
  %3706 = vmatprep.subr.mxu0 0.0
  %3707 = vmatpush2.msra.mxu0 0.0
  %3708 = vmatprep.subr.mxu0 0.0
  %3709 = vmatpush2.msra.mxu0 0.0
  %3710 = vmatprep.subr.mxu0 0.0
  %3711 = vmatpush2.msra.mxu0 0.0
  %3712 = vmatprep.subr.mxu0 0.0
  %3713 = vmatpush2.msra.mxu0 0.0
  %3714 = vmatprep.subr.mxu0 0.0
  %3715 = vmatpush2.msra.mxu0 0.0
  %3716 = vmatprep.subr.mxu0 0.0
  %3717 = vmatpush2.msra.mxu0 0.0
  %3718 = vmatprep.mubr.f32.mxu0 0.0
  %3719 = vmatmul.mubr.f32.gmra.mxu0 %v3652
  %v3720 = vpop.f32.mrf.mxu0
  %v3721 = vadd.f32 %v3648, %v3720
  %v3722 = vpop.f32.mrf.mxu0
  %3723 = vdwg.mxu0
  %v3724 = vadd.f32 %v3721, %v605
  %v3725 = vxor.u32 %v3724, 2147483648
  %v3726 = vmul.f32 %v3725, 1.442695
  %v3727 = vpow.pop %v3726
  %v3728 = vadd.f32 %v3727, 1.0
  %v3729 = vrcp.pop %v3728
  %v3730 = vmul.f32 1.0, %v3729
  %3731 = vmatprep.subr.mxu0 0.0
  %3732 = vmatpush1.msra.mxu0 0.0
  %3733 = vmatprep.subr.mxu0 0.0
  %3734 = vmatpush1.msra.mxu0 0.0
  %3735 = vmatprep.subr.mxu0 0.0
  %3736 = vmatpush1.msra.mxu0 0.0
  %3737 = vmatprep.subr.mxu0 0.0
  %3738 = vmatpush1.msra.mxu0 0.0
  %3739 = vmatprep.subr.mxu0 0.0
  %3740 = vmatpush1.msra.mxu0 0.0
  %3741 = vmatprep.subr.mxu0 0.0
  %3742 = vmatpush1.msra.mxu0 0.0
  %3743 = vmatprep.subr.mxu0 0.0
  %3744 = vmatpush1.msra.mxu0 0.0
  %3745 = vmatprep.subr.mxu0 0.0
  %3746 = vmatpush1.msra.mxu0 0.0
  %3747 = vmatprep.subr.mxu0 0.0
  %3748 = vmatpush1.msra.mxu0 0.0
  %3749 = vmatprep.subr.mxu0 0.0
  %3750 = vmatpush1.msra.mxu0 0.0
  %3751 = vmatprep.subr.mxu0 0.0
  %3752 = vmatpush1.msra.mxu0 0.0
  %3753 = vmatprep.subr.mxu0 0.0
  %3754 = vmatpush1.msra.mxu0 0.0
  %3755 = vmatprep.subr.mxu0 0.0
  %3756 = vmatpush1.msra.mxu0 %v884
  %3757 = vmatprep.subr.mxu0 0.0
  %3758 = vmatpush1.msra.mxu0 %v883
  %3759 = vmatprep.subr.mxu0 0.0
  %3760 = vmatpush1.msra.mxu0 %v882
  %3761 = vmatprep.subr.mxu0 0.0
  %3762 = vmatpush1.msra.mxu0 %v881
  %3763 = vmatprep.subr.mxu0 0.0
  %3764 = vmatpush2.msra.mxu0 0.0
  %3765 = vmatprep.subr.mxu0 0.0
  %3766 = vmatpush2.msra.mxu0 0.0
  %3767 = vmatprep.subr.mxu0 0.0
  %3768 = vmatpush2.msra.mxu0 0.0
  %3769 = vmatprep.subr.mxu0 0.0
  %3770 = vmatpush2.msra.mxu0 0.0
  %3771 = vmatprep.subr.mxu0 0.0
  %3772 = vmatpush2.msra.mxu0 0.0
  %3773 = vmatprep.subr.mxu0 0.0
  %3774 = vmatpush2.msra.mxu0 0.0
  %3775 = vmatprep.subr.mxu0 0.0
  %3776 = vmatpush2.msra.mxu0 0.0
  %3777 = vmatprep.subr.mxu0 0.0
  %3778 = vmatpush2.msra.mxu0 0.0
  %3779 = vmatprep.subr.mxu0 0.0
  %3780 = vmatpush2.msra.mxu0 0.0
  %3781 = vmatprep.subr.mxu0 0.0
  %3782 = vmatpush2.msra.mxu0 0.0
  %3783 = vmatprep.subr.mxu0 0.0
  %3784 = vmatpush2.msra.mxu0 0.0
  %3785 = vmatprep.subr.mxu0 0.0
  %3786 = vmatpush2.msra.mxu0 0.0
  %3787 = vmatprep.subr.mxu0 0.0
  %3788 = vmatpush2.msra.mxu0 0.0
  %3789 = vmatprep.subr.mxu0 0.0
  %3790 = vmatpush2.msra.mxu0 0.0
  %3791 = vmatprep.subr.mxu0 0.0
  %3792 = vmatpush2.msra.mxu0 0.0
  %3793 = vmatprep.subr.mxu0 0.0
  %3794 = vmatpush2.msra.mxu0 0.0
  %3795 = vmatprep.mubr.f32.mxu0 0.0
  %3796 = vmatmul.mubr.f32.gmra.mxu0 %v3505
  %v3797 = vpop.f32.mrf.mxu0
  %v3798 = vadd.f32 0.0, %v3797
  %v3799 = vpop.f32.mrf.mxu0
  %3800 = vdwg.mxu0
  %3801 = vmatprep.subr.mxu0 0.0
  %3802 = vmatpush1.msra.mxu0 0.0
  %3803 = vmatprep.subr.mxu0 0.0
  %3804 = vmatpush1.msra.mxu0 0.0
  %3805 = vmatprep.subr.mxu0 0.0
  %3806 = vmatpush1.msra.mxu0 0.0
  %3807 = vmatprep.subr.mxu0 0.0
  %3808 = vmatpush1.msra.mxu0 0.0
  %3809 = vmatprep.subr.mxu0 0.0
  %3810 = vmatpush1.msra.mxu0 0.0
  %3811 = vmatprep.subr.mxu0 0.0
  %3812 = vmatpush1.msra.mxu0 0.0
  %3813 = vmatprep.subr.mxu0 0.0
  %3814 = vmatpush1.msra.mxu0 0.0
  %3815 = vmatprep.subr.mxu0 0.0
  %3816 = vmatpush1.msra.mxu0 0.0
  %3817 = vmatprep.subr.mxu0 0.0
  %3818 = vmatpush1.msra.mxu0 0.0
  %3819 = vmatprep.subr.mxu0 0.0
  %3820 = vmatpush1.msra.mxu0 0.0
  %3821 = vmatprep.subr.mxu0 0.0
  %3822 = vmatpush1.msra.mxu0 0.0
  %3823 = vmatprep.subr.mxu0 0.0
  %3824 = vmatpush1.msra.mxu0 0.0
  %3825 = vmatprep.subr.mxu0 0.0
  %3826 = vmatpush1.msra.mxu0 %v865
  %3827 = vmatprep.subr.mxu0 0.0
  %3828 = vmatpush1.msra.mxu0 %v864
  %3829 = vmatprep.subr.mxu0 0.0
  %3830 = vmatpush1.msra.mxu0 %v863
  %3831 = vmatprep.subr.mxu0 0.0
  %3832 = vmatpush1.msra.mxu0 %v862
  %3833 = vmatprep.subr.mxu0 0.0
  %3834 = vmatpush2.msra.mxu0 0.0
  %3835 = vmatprep.subr.mxu0 0.0
  %3836 = vmatpush2.msra.mxu0 0.0
  %3837 = vmatprep.subr.mxu0 0.0
  %3838 = vmatpush2.msra.mxu0 0.0
  %3839 = vmatprep.subr.mxu0 0.0
  %3840 = vmatpush2.msra.mxu0 0.0
  %3841 = vmatprep.subr.mxu0 0.0
  %3842 = vmatpush2.msra.mxu0 0.0
  %3843 = vmatprep.subr.mxu0 0.0
  %3844 = vmatpush2.msra.mxu0 0.0
  %3845 = vmatprep.subr.mxu0 0.0
  %3846 = vmatpush2.msra.mxu0 0.0
  %3847 = vmatprep.subr.mxu0 0.0
  %3848 = vmatpush2.msra.mxu0 0.0
  %3849 = vmatprep.subr.mxu0 0.0
  %3850 = vmatpush2.msra.mxu0 0.0
  %3851 = vmatprep.subr.mxu0 0.0
  %3852 = vmatpush2.msra.mxu0 0.0
  %3853 = vmatprep.subr.mxu0 0.0
  %3854 = vmatpush2.msra.mxu0 0.0
  %3855 = vmatprep.subr.mxu0 0.0
  %3856 = vmatpush2.msra.mxu0 0.0
  %3857 = vmatprep.subr.mxu0 0.0
  %3858 = vmatpush2.msra.mxu0 0.0
  %3859 = vmatprep.subr.mxu0 0.0
  %3860 = vmatpush2.msra.mxu0 0.0
  %3861 = vmatprep.subr.mxu0 0.0
  %3862 = vmatpush2.msra.mxu0 0.0
  %3863 = vmatprep.subr.mxu0 0.0
  %3864 = vmatpush2.msra.mxu0 0.0
  %3865 = vmatprep.mubr.f32.mxu0 0.0
  %3866 = vmatmul.mubr.f32.gmra.mxu0 %v3652
  %v3867 = vpop.f32.mrf.mxu0
  %v3868 = vadd.f32 %v3798, %v3867
  %v3869 = vpop.f32.mrf.mxu0
  %3870 = vdwg.mxu0
  %v3871 = vadd.f32 %v3868, %v688
  %v3872 = vxor.u32 %v3871, 2147483648
  %v3873 = vmul.f32 %v3872, 1.442695
  %v3874 = vpow.pop %v3873
  %v3875 = vadd.f32 %v3874, 1.0
  %v3876 = vrcp.pop %v3875
  %v3877 = vmul.f32 1.0, %v3876
  %3878 = vmatprep.subr.mxu0 0.0
  %3879 = vmatpush1.msra.mxu0 0.0
  %3880 = vmatprep.subr.mxu0 0.0
  %3881 = vmatpush1.msra.mxu0 0.0
  %3882 = vmatprep.subr.mxu0 0.0
  %3883 = vmatpush1.msra.mxu0 0.0
  %3884 = vmatprep.subr.mxu0 0.0
  %3885 = vmatpush1.msra.mxu0 0.0
  %3886 = vmatprep.subr.mxu0 0.0
  %3887 = vmatpush1.msra.mxu0 0.0
  %3888 = vmatprep.subr.mxu0 0.0
  %3889 = vmatpush1.msra.mxu0 0.0
  %3890 = vmatprep.subr.mxu0 0.0
  %3891 = vmatpush1.msra.mxu0 0.0
  %3892 = vmatprep.subr.mxu0 0.0
  %3893 = vmatpush1.msra.mxu0 0.0
  %3894 = vmatprep.subr.mxu0 0.0
  %3895 = vmatpush1.msra.mxu0 0.0
  %3896 = vmatprep.subr.mxu0 0.0
  %3897 = vmatpush1.msra.mxu0 0.0
  %3898 = vmatprep.subr.mxu0 0.0
  %3899 = vmatpush1.msra.mxu0 0.0
  %3900 = vmatprep.subr.mxu0 0.0
  %3901 = vmatpush1.msra.mxu0 0.0
  %3902 = vmatprep.subr.mxu0 0.0
  %3903 = vmatpush1.msra.mxu0 %v889
  %3904 = vmatprep.subr.mxu0 0.0
  %3905 = vmatpush1.msra.mxu0 %v888
  %3906 = vmatprep.subr.mxu0 0.0
  %3907 = vmatpush1.msra.mxu0 %v887
  %3908 = vmatprep.subr.mxu0 0.0
  %3909 = vmatpush1.msra.mxu0 %v886
  %3910 = vmatprep.subr.mxu0 0.0
  %3911 = vmatpush2.msra.mxu0 0.0
  %3912 = vmatprep.subr.mxu0 0.0
  %3913 = vmatpush2.msra.mxu0 0.0
  %3914 = vmatprep.subr.mxu0 0.0
  %3915 = vmatpush2.msra.mxu0 0.0
  %3916 = vmatprep.subr.mxu0 0.0
  %3917 = vmatpush2.msra.mxu0 0.0
  %3918 = vmatprep.subr.mxu0 0.0
  %3919 = vmatpush2.msra.mxu0 0.0
  %3920 = vmatprep.subr.mxu0 0.0
  %3921 = vmatpush2.msra.mxu0 0.0
  %3922 = vmatprep.subr.mxu0 0.0
  %3923 = vmatpush2.msra.mxu0 0.0
  %3924 = vmatprep.subr.mxu0 0.0
  %3925 = vmatpush2.msra.mxu0 0.0
  %3926 = vmatprep.subr.mxu0 0.0
  %3927 = vmatpush2.msra.mxu0 0.0
  %3928 = vmatprep.subr.mxu0 0.0
  %3929 = vmatpush2.msra.mxu0 0.0
  %3930 = vmatprep.subr.mxu0 0.0
  %3931 = vmatpush2.msra.mxu0 0.0
  %3932 = vmatprep.subr.mxu0 0.0
  %3933 = vmatpush2.msra.mxu0 0.0
  %3934 = vmatprep.subr.mxu0 0.0
  %3935 = vmatpush2.msra.mxu0 0.0
  %3936 = vmatprep.subr.mxu0 0.0
  %3937 = vmatpush2.msra.mxu0 0.0
  %3938 = vmatprep.subr.mxu0 0.0
  %3939 = vmatpush2.msra.mxu0 0.0
  %3940 = vmatprep.subr.mxu0 0.0
  %3941 = vmatpush2.msra.mxu0 0.0
  %3942 = vmatprep.mubr.f32.mxu0 0.0
  %3943 = vmatmul.mubr.f32.gmra.mxu0 %v3505
  %v3944 = vpop.f32.mrf.mxu0
  %v3945 = vadd.f32 0.0, %v3944
  %v3946 = vpop.f32.mrf.mxu0
  %3947 = vdwg.mxu0
  %3948 = vmatprep.subr.mxu0 0.0
  %3949 = vmatpush1.msra.mxu0 0.0
  %3950 = vmatprep.subr.mxu0 0.0
  %3951 = vmatpush1.msra.mxu0 0.0
  %3952 = vmatprep.subr.mxu0 0.0
  %3953 = vmatpush1.msra.mxu0 0.0
  %3954 = vmatprep.subr.mxu0 0.0
  %3955 = vmatpush1.msra.mxu0 0.0
  %3956 = vmatprep.subr.mxu0 0.0
  %3957 = vmatpush1.msra.mxu0 0.0
  %3958 = vmatprep.subr.mxu0 0.0
  %3959 = vmatpush1.msra.mxu0 0.0
  %3960 = vmatprep.subr.mxu0 0.0
  %3961 = vmatpush1.msra.mxu0 0.0
  %3962 = vmatprep.subr.mxu0 0.0
  %3963 = vmatpush1.msra.mxu0 0.0
  %3964 = vmatprep.subr.mxu0 0.0
  %3965 = vmatpush1.msra.mxu0 0.0
  %3966 = vmatprep.subr.mxu0 0.0
  %3967 = vmatpush1.msra.mxu0 0.0
  %3968 = vmatprep.subr.mxu0 0.0
  %3969 = vmatpush1.msra.mxu0 0.0
  %3970 = vmatprep.subr.mxu0 0.0
  %3971 = vmatpush1.msra.mxu0 0.0
  %3972 = vmatprep.subr.mxu0 0.0
  %3973 = vmatpush1.msra.mxu0 %v870
  %3974 = vmatprep.subr.mxu0 0.0
  %3975 = vmatpush1.msra.mxu0 %v869
  %3976 = vmatprep.subr.mxu0 0.0
  %3977 = vmatpush1.msra.mxu0 %v868
  %3978 = vmatprep.subr.mxu0 0.0
  %3979 = vmatpush1.msra.mxu0 %v867
  %3980 = vmatprep.subr.mxu0 0.0
  %3981 = vmatpush2.msra.mxu0 0.0
  %3982 = vmatprep.subr.mxu0 0.0
  %3983 = vmatpush2.msra.mxu0 0.0
  %3984 = vmatprep.subr.mxu0 0.0
  %3985 = vmatpush2.msra.mxu0 0.0
  %3986 = vmatprep.subr.mxu0 0.0
  %3987 = vmatpush2.msra.mxu0 0.0
  %3988 = vmatprep.subr.mxu0 0.0
  %3989 = vmatpush2.msra.mxu0 0.0
  %3990 = vmatprep.subr.mxu0 0.0
  %3991 = vmatpush2.msra.mxu0 0.0
  %3992 = vmatprep.subr.mxu0 0.0
  %3993 = vmatpush2.msra.mxu0 0.0
  %3994 = vmatprep.subr.mxu0 0.0
  %3995 = vmatpush2.msra.mxu0 0.0
  %3996 = vmatprep.subr.mxu0 0.0
  %3997 = vmatpush2.msra.mxu0 0.0
  %3998 = vmatprep.subr.mxu0 0.0
  %3999 = vmatpush2.msra.mxu0 0.0
  %4000 = vmatprep.subr.mxu0 0.0
  %4001 = vmatpush2.msra.mxu0 0.0
  %4002 = vmatprep.subr.mxu0 0.0
  %4003 = vmatpush2.msra.mxu0 0.0
  %4004 = vmatprep.subr.mxu0 0.0
  %4005 = vmatpush2.msra.mxu0 0.0
  %4006 = vmatprep.subr.mxu0 0.0
  %4007 = vmatpush2.msra.mxu0 0.0
  %4008 = vmatprep.subr.mxu0 0.0
  %4009 = vmatpush2.msra.mxu0 0.0
  %4010 = vmatprep.subr.mxu0 0.0
  %4011 = vmatpush2.msra.mxu0 0.0
  %4012 = vmatprep.mubr.f32.mxu0 0.0
  %4013 = vmatmul.mubr.f32.gmra.mxu0 %v3652
  %v4014 = vpop.f32.mrf.mxu0
  %v4015 = vadd.f32 %v3945, %v4014
  %v4016 = vpop.f32.mrf.mxu0
  %4017 = vdwg.mxu0
  %v4018 = vadd.f32 %v4015, %v771
  %v4019 = vtanh.pop %v4018
  %4020 = vmatprep.subr.mxu0 0.0
  %4021 = vmatpush1.msra.mxu0 0.0
  %4022 = vmatprep.subr.mxu0 0.0
  %4023 = vmatpush1.msra.mxu0 0.0
  %4024 = vmatprep.subr.mxu0 0.0
  %4025 = vmatpush1.msra.mxu0 0.0
  %4026 = vmatprep.subr.mxu0 0.0
  %4027 = vmatpush1.msra.mxu0 0.0
  %4028 = vmatprep.subr.mxu0 0.0
  %4029 = vmatpush1.msra.mxu0 0.0
  %4030 = vmatprep.subr.mxu0 0.0
  %4031 = vmatpush1.msra.mxu0 0.0
  %4032 = vmatprep.subr.mxu0 0.0
  %4033 = vmatpush1.msra.mxu0 0.0
  %4034 = vmatprep.subr.mxu0 0.0
  %4035 = vmatpush1.msra.mxu0 0.0
  %4036 = vmatprep.subr.mxu0 0.0
  %4037 = vmatpush1.msra.mxu0 0.0
  %4038 = vmatprep.subr.mxu0 0.0
  %4039 = vmatpush1.msra.mxu0 0.0
  %4040 = vmatprep.subr.mxu0 0.0
  %4041 = vmatpush1.msra.mxu0 0.0
  %4042 = vmatprep.subr.mxu0 0.0
  %4043 = vmatpush1.msra.mxu0 0.0
  %4044 = vmatprep.subr.mxu0 0.0
  %4045 = vmatpush1.msra.mxu0 %v894
  %4046 = vmatprep.subr.mxu0 0.0
  %4047 = vmatpush1.msra.mxu0 %v893
  %4048 = vmatprep.subr.mxu0 0.0
  %4049 = vmatpush1.msra.mxu0 %v892
  %4050 = vmatprep.subr.mxu0 0.0
  %4051 = vmatpush1.msra.mxu0 %v891
  %4052 = vmatprep.subr.mxu0 0.0
  %4053 = vmatpush2.msra.mxu0 0.0
  %4054 = vmatprep.subr.mxu0 0.0
  %4055 = vmatpush2.msra.mxu0 0.0
  %4056 = vmatprep.subr.mxu0 0.0
  %4057 = vmatpush2.msra.mxu0 0.0
  %4058 = vmatprep.subr.mxu0 0.0
  %4059 = vmatpush2.msra.mxu0 0.0
  %4060 = vmatprep.subr.mxu0 0.0
  %4061 = vmatpush2.msra.mxu0 0.0
  %4062 = vmatprep.subr.mxu0 0.0
  %4063 = vmatpush2.msra.mxu0 0.0
  %4064 = vmatprep.subr.mxu0 0.0
  %4065 = vmatpush2.msra.mxu0 0.0
  %4066 = vmatprep.subr.mxu0 0.0
  %4067 = vmatpush2.msra.mxu0 0.0
  %4068 = vmatprep.subr.mxu0 0.0
  %4069 = vmatpush2.msra.mxu0 0.0
  %4070 = vmatprep.subr.mxu0 0.0
  %4071 = vmatpush2.msra.mxu0 0.0
  %4072 = vmatprep.subr.mxu0 0.0
  %4073 = vmatpush2.msra.mxu0 0.0
  %4074 = vmatprep.subr.mxu0 0.0
  %4075 = vmatpush2.msra.mxu0 0.0
  %4076 = vmatprep.subr.mxu0 0.0
  %4077 = vmatpush2.msra.mxu0 0.0
  %4078 = vmatprep.subr.mxu0 0.0
  %4079 = vmatpush2.msra.mxu0 0.0
  %4080 = vmatprep.subr.mxu0 0.0
  %4081 = vmatpush2.msra.mxu0 0.0
  %4082 = vmatprep.subr.mxu0 0.0
  %4083 = vmatpush2.msra.mxu0 0.0
  %4084 = vmatprep.mubr.f32.mxu0 0.0
  %4085 = vmatmul.mubr.f32.gmra.mxu0 %v3505
  %v4086 = vpop.f32.mrf.mxu0
  %v4087 = vadd.f32 0.0, %v4086
  %v4088 = vpop.f32.mrf.mxu0
  %4089 = vdwg.mxu0
  %4090 = vmatprep.subr.mxu0 0.0
  %4091 = vmatpush1.msra.mxu0 0.0
  %4092 = vmatprep.subr.mxu0 0.0
  %4093 = vmatpush1.msra.mxu0 0.0
  %4094 = vmatprep.subr.mxu0 0.0
  %4095 = vmatpush1.msra.mxu0 0.0
  %4096 = vmatprep.subr.mxu0 0.0
  %4097 = vmatpush1.msra.mxu0 0.0
  %4098 = vmatprep.subr.mxu0 0.0
  %4099 = vmatpush1.msra.mxu0 0.0
  %4100 = vmatprep.subr.mxu0 0.0
  %4101 = vmatpush1.msra.mxu0 0.0
  %4102 = vmatprep.subr.mxu0 0.0
  %4103 = vmatpush1.msra.mxu0 0.0
  %4104 = vmatprep.subr.mxu0 0.0
  %4105 = vmatpush1.msra.mxu0 0.0
  %4106 = vmatprep.subr.mxu0 0.0
  %4107 = vmatpush1.msra.mxu0 0.0
  %4108 = vmatprep.subr.mxu0 0.0
  %4109 = vmatpush1.msra.mxu0 0.0
  %4110 = vmatprep.subr.mxu0 0.0
  %4111 = vmatpush1.msra.mxu0 0.0
  %4112 = vmatprep.subr.mxu0 0.0
  %4113 = vmatpush1.msra.mxu0 0.0
  %4114 = vmatprep.subr.mxu0 0.0
  %4115 = vmatpush1.msra.mxu0 %v875
  %4116 = vmatprep.subr.mxu0 0.0
  %4117 = vmatpush1.msra.mxu0 %v874
  %4118 = vmatprep.subr.mxu0 0.0
  %4119 = vmatpush1.msra.mxu0 %v873
  %4120 = vmatprep.subr.mxu0 0.0
  %4121 = vmatpush1.msra.mxu0 %v872
  %4122 = vmatprep.subr.mxu0 0.0
  %4123 = vmatpush2.msra.mxu0 0.0
  %4124 = vmatprep.subr.mxu0 0.0
  %4125 = vmatpush2.msra.mxu0 0.0
  %4126 = vmatprep.subr.mxu0 0.0
  %4127 = vmatpush2.msra.mxu0 0.0
  %4128 = vmatprep.subr.mxu0 0.0
  %4129 = vmatpush2.msra.mxu0 0.0
  %4130 = vmatprep.subr.mxu0 0.0
  %4131 = vmatpush2.msra.mxu0 0.0
  %4132 = vmatprep.subr.mxu0 0.0
  %4133 = vmatpush2.msra.mxu0 0.0
  %4134 = vmatprep.subr.mxu0 0.0
  %4135 = vmatpush2.msra.mxu0 0.0
  %4136 = vmatprep.subr.mxu0 0.0
  %4137 = vmatpush2.msra.mxu0 0.0
  %4138 = vmatprep.subr.mxu0 0.0
  %4139 = vmatpush2.msra.mxu0 0.0
  %4140 = vmatprep.subr.mxu0 0.0
  %4141 = vmatpush2.msra.mxu0 0.0
  %4142 = vmatprep.subr.mxu0 0.0
  %4143 = vmatpush2.msra.mxu0 0.0
  %4144 = vmatprep.subr.mxu0 0.0
  %4145 = vmatpush2.msra.mxu0 0.0
  %4146 = vmatprep.subr.mxu0 0.0
  %4147 = vmatpush2.msra.mxu0 0.0
  %4148 = vmatprep.subr.mxu0 0.0
  %4149 = vmatpush2.msra.mxu0 0.0
  %4150 = vmatprep.subr.mxu0 0.0
  %4151 = vmatpush2.msra.mxu0 0.0
  %4152 = vmatprep.subr.mxu0 0.0
  %4153 = vmatpush2.msra.mxu0 0.0
  %4154 = vmatprep.mubr.f32.mxu0 0.0
  %4155 = vmatmul.mubr.f32.gmra.mxu0 %v3652
  %v4156 = vpop.f32.mrf.mxu0
  %v4157 = vadd.f32 %v4087, %v4156
  %v4158 = vpop.f32.mrf.mxu0
  %4159 = vdwg.mxu0
  %v4160 = vadd.f32 %v4157, %v854
  %v4161 = vxor.u32 %v4160, 2147483648
  %v4162 = vmul.f32 %v4161, 1.442695
  %v4163 = vpow.pop %v4162
  %v4164 = vadd.f32 %v4163, 1.0
  %v4165 = vrcp.pop %v4164
  %v4166 = vmul.f32 1.0, %v4165
  %v4167 = vmul.f32 %v3877, %v3501
  %v4168 = vmul.f32 %v3730, %v4019
  %v4169 = vadd.f32 %v4167, %v4168
  %v4170 = vtanh.pop %v4169
  %v4171 = vmul.f32 %v4166, %v4170
  %v4173 = vsel %vm67, %v4171, 0
  %4175 = vmatprep.subr.mxu0 0.0
  %4176 = vmatpush1.msra.mxu0 0.0
  %4177 = vmatprep.subr.mxu0 0.0
  %4178 = vmatpush1.msra.mxu0 0.0
  %4179 = vmatprep.subr.mxu0 0.0
  %4180 = vmatpush1.msra.mxu0 0.0
  %4181 = vmatprep.subr.mxu0 0.0
  %4182 = vmatpush1.msra.mxu0 0.0
  %4183 = vmatprep.subr.mxu0 0.0
  %4184 = vmatpush1.msra.mxu0 0.0
  %4185 = vmatprep.subr.mxu0 0.0
  %4186 = vmatpush1.msra.mxu0 0.0
  %4187 = vmatprep.subr.mxu0 0.0
  %4188 = vmatpush1.msra.mxu0 0.0
  %4189 = vmatprep.subr.mxu0 0.0
  %4190 = vmatpush1.msra.mxu0 0.0
  %4191 = vmatprep.subr.mxu0 0.0
  %4192 = vmatpush1.msra.mxu0 0.0
  %4193 = vmatprep.subr.mxu0 0.0
  %4194 = vmatpush1.msra.mxu0 0.0
  %4195 = vmatprep.subr.mxu0 0.0
  %4196 = vmatpush1.msra.mxu0 0.0
  %4197 = vmatprep.subr.mxu0 0.0
  %4198 = vmatpush1.msra.mxu0 0.0
  %4199 = vmatprep.subr.mxu0 0.0
  %4200 = vmatpush1.msra.mxu0 %v898
  %4201 = vmatprep.subr.mxu0 0.0
  %4202 = vmatpush1.msra.mxu0 %v897
  %4203 = vmatprep.subr.mxu0 0.0
  %4204 = vmatpush1.msra.mxu0 %v896
  %4205 = vmatprep.subr.mxu0 0.0
  %4206 = vmatpush1.msra.mxu0 %v895
  %4207 = vmatprep.subr.mxu0 0.0
  %4208 = vmatpush2.msra.mxu0 0.0
  %4209 = vmatprep.subr.mxu0 0.0
  %4210 = vmatpush2.msra.mxu0 0.0
  %4211 = vmatprep.subr.mxu0 0.0
  %4212 = vmatpush2.msra.mxu0 0.0
  %4213 = vmatprep.subr.mxu0 0.0
  %4214 = vmatpush2.msra.mxu0 0.0
  %4215 = vmatprep.subr.mxu0 0.0
  %4216 = vmatpush2.msra.mxu0 0.0
  %4217 = vmatprep.subr.mxu0 0.0
  %4218 = vmatpush2.msra.mxu0 0.0
  %4219 = vmatprep.subr.mxu0 0.0
  %4220 = vmatpush2.msra.mxu0 0.0
  %4221 = vmatprep.subr.mxu0 0.0
  %4222 = vmatpush2.msra.mxu0 0.0
  %4223 = vmatprep.subr.mxu0 0.0
  %4224 = vmatpush2.msra.mxu0 0.0
  %4225 = vmatprep.subr.mxu0 0.0
  %4226 = vmatpush2.msra.mxu0 0.0
  %4227 = vmatprep.subr.mxu0 0.0
  %4228 = vmatpush2.msra.mxu0 0.0
  %4229 = vmatprep.subr.mxu0 0.0
  %4230 = vmatpush2.msra.mxu0 0.0
  %4231 = vmatprep.subr.mxu0 0.0
  %4232 = vmatpush2.msra.mxu0 0.0
  %4233 = vmatprep.subr.mxu0 0.0
  %4234 = vmatpush2.msra.mxu0 0.0
  %4235 = vmatprep.subr.mxu0 0.0
  %4236 = vmatpush2.msra.mxu0 0.0
  %4237 = vmatprep.subr.mxu0 0.0
  %4238 = vmatpush2.msra.mxu0 0.0
  %4239 = vmatprep.mubr.f32.mxu0 0.0
  %4240 = vmatmul.mubr.f32.gmra.mxu0 %v4173
  %v4241 = vpop.f32.mrf.mxu0
  %v4242 = vadd.f32 %v1499, %v4241
  %v4243 = vpop.f32.mrf.mxu0
  %4244 = vdwg.mxu0
  %s4245 = scalar_lea.vmem %s16, 8
  %4246 = vst [vmem:[%s4245] sm:$0x3] %v4242
  %s4247 = scalar_lea.vmem %s0, 10
  %v4248 = vld [vmem:[%s4247] sm:$0x3]
  %4249 = vmatprep.subr.mxu0 0.0
  %4250 = vmatpush1.msra.mxu0 0.0
  %4251 = vmatprep.subr.mxu0 0.0
  %4252 = vmatpush1.msra.mxu0 0.0
  %4253 = vmatprep.subr.mxu0 0.0
  %4254 = vmatpush1.msra.mxu0 0.0
  %4255 = vmatprep.subr.mxu0 0.0
  %4256 = vmatpush1.msra.mxu0 0.0
  %4257 = vmatprep.subr.mxu0 0.0
  %4258 = vmatpush1.msra.mxu0 0.0
  %4259 = vmatprep.subr.mxu0 0.0
  %4260 = vmatpush1.msra.mxu0 0.0
  %4261 = vmatprep.subr.mxu0 0.0
  %4262 = vmatpush1.msra.mxu0 0.0
  %4263 = vmatprep.subr.mxu0 0.0
  %4264 = vmatpush1.msra.mxu0 0.0
  %4265 = vmatprep.subr.mxu0 0.0
  %4266 = vmatpush1.msra.mxu0 0.0
  %4267 = vmatprep.subr.mxu0 0.0
  %4268 = vmatpush1.msra.mxu0 0.0
  %4269 = vmatprep.subr.mxu0 0.0
  %4270 = vmatpush1.msra.mxu0 0.0
  %4271 = vmatprep.subr.mxu0 0.0
  %4272 = vmatpush1.msra.mxu0 0.0
  %4273 = vmatprep.subr.mxu0 0.0
  %4274 = vmatpush1.msra.mxu0 %v879
  %4275 = vmatprep.subr.mxu0 0.0
  %4276 = vmatpush1.msra.mxu0 %v878
  %4277 = vmatprep.subr.mxu0 0.0
  %4278 = vmatpush1.msra.mxu0 %v877
  %4279 = vmatprep.subr.mxu0 0.0
  %4280 = vmatpush1.msra.mxu0 %v876
  %4281 = vmatprep.subr.mxu0 0.0
  %4282 = vmatpush2.msra.mxu0 0.0
  %4283 = vmatprep.subr.mxu0 0.0
  %4284 = vmatpush2.msra.mxu0 0.0
  %4285 = vmatprep.subr.mxu0 0.0
  %4286 = vmatpush2.msra.mxu0 0.0
  %4287 = vmatprep.subr.mxu0 0.0
  %4288 = vmatpush2.msra.mxu0 0.0
  %4289 = vmatprep.subr.mxu0 0.0
  %4290 = vmatpush2.msra.mxu0 0.0
  %4291 = vmatprep.subr.mxu0 0.0
  %4292 = vmatpush2.msra.mxu0 0.0
  %4293 = vmatprep.subr.mxu0 0.0
  %4294 = vmatpush2.msra.mxu0 0.0
  %4295 = vmatprep.subr.mxu0 0.0
  %4296 = vmatpush2.msra.mxu0 0.0
  %4297 = vmatprep.subr.mxu0 0.0
  %4298 = vmatpush2.msra.mxu0 0.0
  %4299 = vmatprep.subr.mxu0 0.0
  %4300 = vmatpush2.msra.mxu0 0.0
  %4301 = vmatprep.subr.mxu0 0.0
  %4302 = vmatpush2.msra.mxu0 0.0
  %4303 = vmatprep.subr.mxu0 0.0
  %4304 = vmatpush2.msra.mxu0 0.0
  %4305 = vmatprep.subr.mxu0 0.0
  %4306 = vmatpush2.msra.mxu0 0.0
  %4307 = vmatprep.subr.mxu0 0.0
  %4308 = vmatpush2.msra.mxu0 0.0
  %4309 = vmatprep.subr.mxu0 0.0
  %4310 = vmatpush2.msra.mxu0 0.0
  %4311 = vmatprep.subr.mxu0 0.0
  %4312 = vmatpush2.msra.mxu0 0.0
  %4313 = vmatprep.mubr.f32.mxu0 0.0
  %4314 = vmatmul.mubr.f32.gmra.mxu0 %v4173
  %v4315 = vpop.f32.mrf.mxu0
  %v4316 = vadd.f32 0.0, %v4315
  %v4317 = vpop.f32.mrf.mxu0
  %4318 = vdwg.mxu0
  %v4320 = vsel %vm67, %v4248, 0
  %4322 = vmatprep.subr.mxu0 0.0
  %4323 = vmatpush1.msra.mxu0 0.0
  %4324 = vmatprep.subr.mxu0 0.0
  %4325 = vmatpush1.msra.mxu0 0.0
  %4326 = vmatprep.subr.mxu0 0.0
  %4327 = vmatpush1.msra.mxu0 0.0
  %4328 = vmatprep.subr.mxu0 0.0
  %4329 = vmatpush1.msra.mxu0 0.0
  %4330 = vmatprep.subr.mxu0 0.0
  %4331 = vmatpush1.msra.mxu0 0.0
  %4332 = vmatprep.subr.mxu0 0.0
  %4333 = vmatpush1.msra.mxu0 0.0
  %4334 = vmatprep.subr.mxu0 0.0
  %4335 = vmatpush1.msra.mxu0 0.0
  %4336 = vmatprep.subr.mxu0 0.0
  %4337 = vmatpush1.msra.mxu0 0.0
  %4338 = vmatprep.subr.mxu0 0.0
  %4339 = vmatpush1.msra.mxu0 0.0
  %4340 = vmatprep.subr.mxu0 0.0
  %4341 = vmatpush1.msra.mxu0 0.0
  %4342 = vmatprep.subr.mxu0 0.0
  %4343 = vmatpush1.msra.mxu0 0.0
  %4344 = vmatprep.subr.mxu0 0.0
  %4345 = vmatpush1.msra.mxu0 0.0
  %4346 = vmatprep.subr.mxu0 0.0
  %4347 = vmatpush1.msra.mxu0 %v860
  %4348 = vmatprep.subr.mxu0 0.0
  %4349 = vmatpush1.msra.mxu0 %v859
  %4350 = vmatprep.subr.mxu0 0.0
  %4351 = vmatpush1.msra.mxu0 %v858
  %4352 = vmatprep.subr.mxu0 0.0
  %4353 = vmatpush1.msra.mxu0 %v857
  %4354 = vmatprep.subr.mxu0 0.0
  %4355 = vmatpush2.msra.mxu0 0.0
  %4356 = vmatprep.subr.mxu0 0.0
  %4357 = vmatpush2.msra.mxu0 0.0
  %4358 = vmatprep.subr.mxu0 0.0
  %4359 = vmatpush2.msra.mxu0 0.0
  %4360 = vmatprep.subr.mxu0 0.0
  %4361 = vmatpush2.msra.mxu0 0.0
  %4362 = vmatprep.subr.mxu0 0.0
  %4363 = vmatpush2.msra.mxu0 0.0
  %4364 = vmatprep.subr.mxu0 0.0
  %4365 = vmatpush2.msra.mxu0 0.0
  %4366 = vmatprep.subr.mxu0 0.0
  %4367 = vmatpush2.msra.mxu0 0.0
  %4368 = vmatprep.subr.mxu0 0.0
  %4369 = vmatpush2.msra.mxu0 0.0
  %4370 = vmatprep.subr.mxu0 0.0
  %4371 = vmatpush2.msra.mxu0 0.0
  %4372 = vmatprep.subr.mxu0 0.0
  %4373 = vmatpush2.msra.mxu0 0.0
  %4374 = vmatprep.subr.mxu0 0.0
  %4375 = vmatpush2.msra.mxu0 0.0
  %4376 = vmatprep.subr.mxu0 0.0
  %4377 = vmatpush2.msra.mxu0 0.0
  %4378 = vmatprep.subr.mxu0 0.0
  %4379 = vmatpush2.msra.mxu0 0.0
  %4380 = vmatprep.subr.mxu0 0.0
  %4381 = vmatpush2.msra.mxu0 0.0
  %4382 = vmatprep.subr.mxu0 0.0
  %4383 = vmatpush2.msra.mxu0 0.0
  %4384 = vmatprep.subr.mxu0 0.0
  %4385 = vmatpush2.msra.mxu0 0.0
  %4386 = vmatprep.mubr.f32.mxu0 0.0
  %4387 = vmatmul.mubr.f32.gmra.mxu0 %v4320
  %v4388 = vpop.f32.mrf.mxu0
  %v4389 = vadd.f32 %v4316, %v4388
  %v4390 = vpop.f32.mrf.mxu0
  %4391 = vdwg.mxu0
  %v4392 = vadd.f32 %v4389, %v605
  %v4393 = vxor.u32 %v4392, 2147483648
  %v4394 = vmul.f32 %v4393, 1.442695
  %v4395 = vpow.pop %v4394
  %v4396 = vadd.f32 %v4395, 1.0
  %v4397 = vrcp.pop %v4396
  %v4398 = vmul.f32 1.0, %v4397
  %4399 = vmatprep.subr.mxu0 0.0
  %4400 = vmatpush1.msra.mxu0 0.0
  %4401 = vmatprep.subr.mxu0 0.0
  %4402 = vmatpush1.msra.mxu0 0.0
  %4403 = vmatprep.subr.mxu0 0.0
  %4404 = vmatpush1.msra.mxu0 0.0
  %4405 = vmatprep.subr.mxu0 0.0
  %4406 = vmatpush1.msra.mxu0 0.0
  %4407 = vmatprep.subr.mxu0 0.0
  %4408 = vmatpush1.msra.mxu0 0.0
  %4409 = vmatprep.subr.mxu0 0.0
  %4410 = vmatpush1.msra.mxu0 0.0
  %4411 = vmatprep.subr.mxu0 0.0
  %4412 = vmatpush1.msra.mxu0 0.0
  %4413 = vmatprep.subr.mxu0 0.0
  %4414 = vmatpush1.msra.mxu0 0.0
  %4415 = vmatprep.subr.mxu0 0.0
  %4416 = vmatpush1.msra.mxu0 0.0
  %4417 = vmatprep.subr.mxu0 0.0
  %4418 = vmatpush1.msra.mxu0 0.0
  %4419 = vmatprep.subr.mxu0 0.0
  %4420 = vmatpush1.msra.mxu0 0.0
  %4421 = vmatprep.subr.mxu0 0.0
  %4422 = vmatpush1.msra.mxu0 0.0
  %4423 = vmatprep.subr.mxu0 0.0
  %4424 = vmatpush1.msra.mxu0 %v884
  %4425 = vmatprep.subr.mxu0 0.0
  %4426 = vmatpush1.msra.mxu0 %v883
  %4427 = vmatprep.subr.mxu0 0.0
  %4428 = vmatpush1.msra.mxu0 %v882
  %4429 = vmatprep.subr.mxu0 0.0
  %4430 = vmatpush1.msra.mxu0 %v881
  %4431 = vmatprep.subr.mxu0 0.0
  %4432 = vmatpush2.msra.mxu0 0.0
  %4433 = vmatprep.subr.mxu0 0.0
  %4434 = vmatpush2.msra.mxu0 0.0
  %4435 = vmatprep.subr.mxu0 0.0
  %4436 = vmatpush2.msra.mxu0 0.0
  %4437 = vmatprep.subr.mxu0 0.0
  %4438 = vmatpush2.msra.mxu0 0.0
  %4439 = vmatprep.subr.mxu0 0.0
  %4440 = vmatpush2.msra.mxu0 0.0
  %4441 = vmatprep.subr.mxu0 0.0
  %4442 = vmatpush2.msra.mxu0 0.0
  %4443 = vmatprep.subr.mxu0 0.0
  %4444 = vmatpush2.msra.mxu0 0.0
  %4445 = vmatprep.subr.mxu0 0.0
  %4446 = vmatpush2.msra.mxu0 0.0
  %4447 = vmatprep.subr.mxu0 0.0
  %4448 = vmatpush2.msra.mxu0 0.0
  %4449 = vmatprep.subr.mxu0 0.0
  %4450 = vmatpush2.msra.mxu0 0.0
  %4451 = vmatprep.subr.mxu0 0.0
  %4452 = vmatpush2.msra.mxu0 0.0
  %4453 = vmatprep.subr.mxu0 0.0
  %4454 = vmatpush2.msra.mxu0 0.0
  %4455 = vmatprep.subr.mxu0 0.0
  %4456 = vmatpush2.msra.mxu0 0.0
  %4457 = vmatprep.subr.mxu0 0.0
  %4458 = vmatpush2.msra.mxu0 0.0
  %4459 = vmatprep.subr.mxu0 0.0
  %4460 = vmatpush2.msra.mxu0 0.0
  %4461 = vmatprep.subr.mxu0 0.0
  %4462 = vmatpush2.msra.mxu0 0.0
  %4463 = vmatprep.mubr.f32.mxu0 0.0
  %4464 = vmatmul.mubr.f32.gmra.mxu0 %v4173
  %v4465 = vpop.f32.mrf.mxu0
  %v4466 = vadd.f32 0.0, %v4465
  %v4467 = vpop.f32.mrf.mxu0
  %4468 = vdwg.mxu0
  %4469 = vmatprep.subr.mxu0 0.0
  %4470 = vmatpush1.msra.mxu0 0.0
  %4471 = vmatprep.subr.mxu0 0.0
  %4472 = vmatpush1.msra.mxu0 0.0
  %4473 = vmatprep.subr.mxu0 0.0
  %4474 = vmatpush1.msra.mxu0 0.0
  %4475 = vmatprep.subr.mxu0 0.0
  %4476 = vmatpush1.msra.mxu0 0.0
  %4477 = vmatprep.subr.mxu0 0.0
  %4478 = vmatpush1.msra.mxu0 0.0
  %4479 = vmatprep.subr.mxu0 0.0
  %4480 = vmatpush1.msra.mxu0 0.0
  %4481 = vmatprep.subr.mxu0 0.0
  %4482 = vmatpush1.msra.mxu0 0.0
  %4483 = vmatprep.subr.mxu0 0.0
  %4484 = vmatpush1.msra.mxu0 0.0
  %4485 = vmatprep.subr.mxu0 0.0
  %4486 = vmatpush1.msra.mxu0 0.0
  %4487 = vmatprep.subr.mxu0 0.0
  %4488 = vmatpush1.msra.mxu0 0.0
  %4489 = vmatprep.subr.mxu0 0.0
  %4490 = vmatpush1.msra.mxu0 0.0
  %4491 = vmatprep.subr.mxu0 0.0
  %4492 = vmatpush1.msra.mxu0 0.0
  %4493 = vmatprep.subr.mxu0 0.0
  %4494 = vmatpush1.msra.mxu0 %v865
  %4495 = vmatprep.subr.mxu0 0.0
  %4496 = vmatpush1.msra.mxu0 %v864
  %4497 = vmatprep.subr.mxu0 0.0
  %4498 = vmatpush1.msra.mxu0 %v863
  %4499 = vmatprep.subr.mxu0 0.0
  %4500 = vmatpush1.msra.mxu0 %v862
  %4501 = vmatprep.subr.mxu0 0.0
  %4502 = vmatpush2.msra.mxu0 0.0
  %4503 = vmatprep.subr.mxu0 0.0
  %4504 = vmatpush2.msra.mxu0 0.0
  %4505 = vmatprep.subr.mxu0 0.0
  %4506 = vmatpush2.msra.mxu0 0.0
  %4507 = vmatprep.subr.mxu0 0.0
  %4508 = vmatpush2.msra.mxu0 0.0
  %4509 = vmatprep.subr.mxu0 0.0
  %4510 = vmatpush2.msra.mxu0 0.0
  %4511 = vmatprep.subr.mxu0 0.0
  %4512 = vmatpush2.msra.mxu0 0.0
  %4513 = vmatprep.subr.mxu0 0.0
  %4514 = vmatpush2.msra.mxu0 0.0
  %4515 = vmatprep.subr.mxu0 0.0
  %4516 = vmatpush2.msra.mxu0 0.0
  %4517 = vmatprep.subr.mxu0 0.0
  %4518 = vmatpush2.msra.mxu0 0.0
  %4519 = vmatprep.subr.mxu0 0.0
  %4520 = vmatpush2.msra.mxu0 0.0
  %4521 = vmatprep.subr.mxu0 0.0
  %4522 = vmatpush2.msra.mxu0 0.0
  %4523 = vmatprep.subr.mxu0 0.0
  %4524 = vmatpush2.msra.mxu0 0.0
  %4525 = vmatprep.subr.mxu0 0.0
  %4526 = vmatpush2.msra.mxu0 0.0
  %4527 = vmatprep.subr.mxu0 0.0
  %4528 = vmatpush2.msra.mxu0 0.0
  %4529 = vmatprep.subr.mxu0 0.0
  %4530 = vmatpush2.msra.mxu0 0.0
  %4531 = vmatprep.subr.mxu0 0.0
  %4532 = vmatpush2.msra.mxu0 0.0
  %4533 = vmatprep.mubr.f32.mxu0 0.0
  %4534 = vmatmul.mubr.f32.gmra.mxu0 %v4320
  %v4535 = vpop.f32.mrf.mxu0
  %v4536 = vadd.f32 %v4466, %v4535
  %v4537 = vpop.f32.mrf.mxu0
  %4538 = vdwg.mxu0
  %v4539 = vadd.f32 %v4536, %v688
  %v4540 = vxor.u32 %v4539, 2147483648
  %v4541 = vmul.f32 %v4540, 1.442695
  %v4542 = vpow.pop %v4541
  %v4543 = vadd.f32 %v4542, 1.0
  %v4544 = vrcp.pop %v4543
  %v4545 = vmul.f32 1.0, %v4544
  %4546 = vmatprep.subr.mxu0 0.0
  %4547 = vmatpush1.msra.mxu0 0.0
  %4548 = vmatprep.subr.mxu0 0.0
  %4549 = vmatpush1.msra.mxu0 0.0
  %4550 = vmatprep.subr.mxu0 0.0
  %4551 = vmatpush1.msra.mxu0 0.0
  %4552 = vmatprep.subr.mxu0 0.0
  %4553 = vmatpush1.msra.mxu0 0.0
  %4554 = vmatprep.subr.mxu0 0.0
  %4555 = vmatpush1.msra.mxu0 0.0
  %4556 = vmatprep.subr.mxu0 0.0
  %4557 = vmatpush1.msra.mxu0 0.0
  %4558 = vmatprep.subr.mxu0 0.0
  %4559 = vmatpush1.msra.mxu0 0.0
  %4560 = vmatprep.subr.mxu0 0.0
  %4561 = vmatpush1.msra.mxu0 0.0
  %4562 = vmatprep.subr.mxu0 0.0
  %4563 = vmatpush1.msra.mxu0 0.0
  %4564 = vmatprep.subr.mxu0 0.0
  %4565 = vmatpush1.msra.mxu0 0.0
  %4566 = vmatprep.subr.mxu0 0.0
  %4567 = vmatpush1.msra.mxu0 0.0
  %4568 = vmatprep.subr.mxu0 0.0
  %4569 = vmatpush1.msra.mxu0 0.0
  %4570 = vmatprep.subr.mxu0 0.0
  %4571 = vmatpush1.msra.mxu0 %v889
  %4572 = vmatprep.subr.mxu0 0.0
  %4573 = vmatpush1.msra.mxu0 %v888
  %4574 = vmatprep.subr.mxu0 0.0
  %4575 = vmatpush1.msra.mxu0 %v887
  %4576 = vmatprep.subr.mxu0 0.0
  %4577 = vmatpush1.msra.mxu0 %v886
  %4578 = vmatprep.subr.mxu0 0.0
  %4579 = vmatpush2.msra.mxu0 0.0
  %4580 = vmatprep.subr.mxu0 0.0
  %4581 = vmatpush2.msra.mxu0 0.0
  %4582 = vmatprep.subr.mxu0 0.0
  %4583 = vmatpush2.msra.mxu0 0.0
  %4584 = vmatprep.subr.mxu0 0.0
  %4585 = vmatpush2.msra.mxu0 0.0
  %4586 = vmatprep.subr.mxu0 0.0
  %4587 = vmatpush2.msra.mxu0 0.0
  %4588 = vmatprep.subr.mxu0 0.0
  %4589 = vmatpush2.msra.mxu0 0.0
  %4590 = vmatprep.subr.mxu0 0.0
  %4591 = vmatpush2.msra.mxu0 0.0
  %4592 = vmatprep.subr.mxu0 0.0
  %4593 = vmatpush2.msra.mxu0 0.0
  %4594 = vmatprep.subr.mxu0 0.0
  %4595 = vmatpush2.msra.mxu0 0.0
  %4596 = vmatprep.subr.mxu0 0.0
  %4597 = vmatpush2.msra.mxu0 0.0
  %4598 = vmatprep.subr.mxu0 0.0
  %4599 = vmatpush2.msra.mxu0 0.0
  %4600 = vmatprep.subr.mxu0 0.0
  %4601 = vmatpush2.msra.mxu0 0.0
  %4602 = vmatprep.subr.mxu0 0.0
  %4603 = vmatpush2.msra.mxu0 0.0
  %4604 = vmatprep.subr.mxu0 0.0
  %4605 = vmatpush2.msra.mxu0 0.0
  %4606 = vmatprep.subr.mxu0 0.0
  %4607 = vmatpush2.msra.mxu0 0.0
  %4608 = vmatprep.subr.mxu0 0.0
  %4609 = vmatpush2.msra.mxu0 0.0
  %4610 = vmatprep.mubr.f32.mxu0 0.0
  %4611 = vmatmul.mubr.f32.gmra.mxu0 %v4173
  %v4612 = vpop.f32.mrf.mxu0
  %v4613 = vadd.f32 0.0, %v4612
  %v4614 = vpop.f32.mrf.mxu0
  %4615 = vdwg.mxu0
  %4616 = vmatprep.subr.mxu0 0.0
  %4617 = vmatpush1.msra.mxu0 0.0
  %4618 = vmatprep.subr.mxu0 0.0
  %4619 = vmatpush1.msra.mxu0 0.0
  %4620 = vmatprep.subr.mxu0 0.0
  %4621 = vmatpush1.msra.mxu0 0.0
  %4622 = vmatprep.subr.mxu0 0.0
  %4623 = vmatpush1.msra.mxu0 0.0
  %4624 = vmatprep.subr.mxu0 0.0
  %4625 = vmatpush1.msra.mxu0 0.0
  %4626 = vmatprep.subr.mxu0 0.0
  %4627 = vmatpush1.msra.mxu0 0.0
  %4628 = vmatprep.subr.mxu0 0.0
  %4629 = vmatpush1.msra.mxu0 0.0
  %4630 = vmatprep.subr.mxu0 0.0
  %4631 = vmatpush1.msra.mxu0 0.0
  %4632 = vmatprep.subr.mxu0 0.0
  %4633 = vmatpush1.msra.mxu0 0.0
  %4634 = vmatprep.subr.mxu0 0.0
  %4635 = vmatpush1.msra.mxu0 0.0
  %4636 = vmatprep.subr.mxu0 0.0
  %4637 = vmatpush1.msra.mxu0 0.0
  %4638 = vmatprep.subr.mxu0 0.0
  %4639 = vmatpush1.msra.mxu0 0.0
  %4640 = vmatprep.subr.mxu0 0.0
  %4641 = vmatpush1.msra.mxu0 %v870
  %4642 = vmatprep.subr.mxu0 0.0
  %4643 = vmatpush1.msra.mxu0 %v869
  %4644 = vmatprep.subr.mxu0 0.0
  %4645 = vmatpush1.msra.mxu0 %v868
  %4646 = vmatprep.subr.mxu0 0.0
  %4647 = vmatpush1.msra.mxu0 %v867
  %4648 = vmatprep.subr.mxu0 0.0
  %4649 = vmatpush2.msra.mxu0 0.0
  %4650 = vmatprep.subr.mxu0 0.0
  %4651 = vmatpush2.msra.mxu0 0.0
  %4652 = vmatprep.subr.mxu0 0.0
  %4653 = vmatpush2.msra.mxu0 0.0
  %4654 = vmatprep.subr.mxu0 0.0
  %4655 = vmatpush2.msra.mxu0 0.0
  %4656 = vmatprep.subr.mxu0 0.0
  %4657 = vmatpush2.msra.mxu0 0.0
  %4658 = vmatprep.subr.mxu0 0.0
  %4659 = vmatpush2.msra.mxu0 0.0
  %4660 = vmatprep.subr.mxu0 0.0
  %4661 = vmatpush2.msra.mxu0 0.0
  %4662 = vmatprep.subr.mxu0 0.0
  %4663 = vmatpush2.msra.mxu0 0.0
  %4664 = vmatprep.subr.mxu0 0.0
  %4665 = vmatpush2.msra.mxu0 0.0
  %4666 = vmatprep.subr.mxu0 0.0
  %4667 = vmatpush2.msra.mxu0 0.0
  %4668 = vmatprep.subr.mxu0 0.0
  %4669 = vmatpush2.msra.mxu0 0.0
  %4670 = vmatprep.subr.mxu0 0.0
  %4671 = vmatpush2.msra.mxu0 0.0
  %4672 = vmatprep.subr.mxu0 0.0
  %4673 = vmatpush2.msra.mxu0 0.0
  %4674 = vmatprep.subr.mxu0 0.0
  %4675 = vmatpush2.msra.mxu0 0.0
  %4676 = vmatprep.subr.mxu0 0.0
  %4677 = vmatpush2.msra.mxu0 0.0
  %4678 = vmatprep.subr.mxu0 0.0
  %4679 = vmatpush2.msra.mxu0 0.0
  %4680 = vmatprep.mubr.f32.mxu0 0.0
  %4681 = vmatmul.mubr.f32.gmra.mxu0 %v4320
  %v4682 = vpop.f32.mrf.mxu0
  %v4683 = vadd.f32 %v4613, %v4682
  %v4684 = vpop.f32.mrf.mxu0
  %4685 = vdwg.mxu0
  %v4686 = vadd.f32 %v4683, %v771
  %v4687 = vtanh.pop %v4686
  %4688 = vmatprep.subr.mxu0 0.0
  %4689 = vmatpush1.msra.mxu0 0.0
  %4690 = vmatprep.subr.mxu0 0.0
  %4691 = vmatpush1.msra.mxu0 0.0
  %4692 = vmatprep.subr.mxu0 0.0
  %4693 = vmatpush1.msra.mxu0 0.0
  %4694 = vmatprep.subr.mxu0 0.0
  %4695 = vmatpush1.msra.mxu0 0.0
  %4696 = vmatprep.subr.mxu0 0.0
  %4697 = vmatpush1.msra.mxu0 0.0
  %4698 = vmatprep.subr.mxu0 0.0
  %4699 = vmatpush1.msra.mxu0 0.0
  %4700 = vmatprep.subr.mxu0 0.0
  %4701 = vmatpush1.msra.mxu0 0.0
  %4702 = vmatprep.subr.mxu0 0.0
  %4703 = vmatpush1.msra.mxu0 0.0
  %4704 = vmatprep.subr.mxu0 0.0
  %4705 = vmatpush1.msra.mxu0 0.0
  %4706 = vmatprep.subr.mxu0 0.0
  %4707 = vmatpush1.msra.mxu0 0.0
  %4708 = vmatprep.subr.mxu0 0.0
  %4709 = vmatpush1.msra.mxu0 0.0
  %4710 = vmatprep.subr.mxu0 0.0
  %4711 = vmatpush1.msra.mxu0 0.0
  %4712 = vmatprep.subr.mxu0 0.0
  %4713 = vmatpush1.msra.mxu0 %v894
  %4714 = vmatprep.subr.mxu0 0.0
  %4715 = vmatpush1.msra.mxu0 %v893
  %4716 = vmatprep.subr.mxu0 0.0
  %4717 = vmatpush1.msra.mxu0 %v892
  %4718 = vmatprep.subr.mxu0 0.0
  %4719 = vmatpush1.msra.mxu0 %v891
  %4720 = vmatprep.subr.mxu0 0.0
  %4721 = vmatpush2.msra.mxu0 0.0
  %4722 = vmatprep.subr.mxu0 0.0
  %4723 = vmatpush2.msra.mxu0 0.0
  %4724 = vmatprep.subr.mxu0 0.0
  %4725 = vmatpush2.msra.mxu0 0.0
  %4726 = vmatprep.subr.mxu0 0.0
  %4727 = vmatpush2.msra.mxu0 0.0
  %4728 = vmatprep.subr.mxu0 0.0
  %4729 = vmatpush2.msra.mxu0 0.0
  %4730 = vmatprep.subr.mxu0 0.0
  %4731 = vmatpush2.msra.mxu0 0.0
  %4732 = vmatprep.subr.mxu0 0.0
  %4733 = vmatpush2.msra.mxu0 0.0
  %4734 = vmatprep.subr.mxu0 0.0
  %4735 = vmatpush2.msra.mxu0 0.0
  %4736 = vmatprep.subr.mxu0 0.0
  %4737 = vmatpush2.msra.mxu0 0.0
  %4738 = vmatprep.subr.mxu0 0.0
  %4739 = vmatpush2.msra.mxu0 0.0
  %4740 = vmatprep.subr.mxu0 0.0
  %4741 = vmatpush2.msra.mxu0 0.0
  %4742 = vmatprep.subr.mxu0 0.0
  %4743 = vmatpush2.msra.mxu0 0.0
  %4744 = vmatprep.subr.mxu0 0.0
  %4745 = vmatpush2.msra.mxu0 0.0
  %4746 = vmatprep.subr.mxu0 0.0
  %4747 = vmatpush2.msra.mxu0 0.0
  %4748 = vmatprep.subr.mxu0 0.0
  %4749 = vmatpush2.msra.mxu0 0.0
  %4750 = vmatprep.subr.mxu0 0.0
  %4751 = vmatpush2.msra.mxu0 0.0
  %4752 = vmatprep.mubr.f32.mxu0 0.0
  %4753 = vmatmul.mubr.f32.gmra.mxu0 %v4173
  %v4754 = vpop.f32.mrf.mxu0
  %v4755 = vadd.f32 0.0, %v4754
  %v4756 = vpop.f32.mrf.mxu0
  %4757 = vdwg.mxu0
  %4758 = vmatprep.subr.mxu0 0.0
  %4759 = vmatpush1.msra.mxu0 0.0
  %4760 = vmatprep.subr.mxu0 0.0
  %4761 = vmatpush1.msra.mxu0 0.0
  %4762 = vmatprep.subr.mxu0 0.0
  %4763 = vmatpush1.msra.mxu0 0.0
  %4764 = vmatprep.subr.mxu0 0.0
  %4765 = vmatpush1.msra.mxu0 0.0
  %4766 = vmatprep.subr.mxu0 0.0
  %4767 = vmatpush1.msra.mxu0 0.0
  %4768 = vmatprep.subr.mxu0 0.0
  %4769 = vmatpush1.msra.mxu0 0.0
  %4770 = vmatprep.subr.mxu0 0.0
  %4771 = vmatpush1.msra.mxu0 0.0
  %4772 = vmatprep.subr.mxu0 0.0
  %4773 = vmatpush1.msra.mxu0 0.0
  %4774 = vmatprep.subr.mxu0 0.0
  %4775 = vmatpush1.msra.mxu0 0.0
  %4776 = vmatprep.subr.mxu0 0.0
  %4777 = vmatpush1.msra.mxu0 0.0
  %4778 = vmatprep.subr.mxu0 0.0
  %4779 = vmatpush1.msra.mxu0 0.0
  %4780 = vmatprep.subr.mxu0 0.0
  %4781 = vmatpush1.msra.mxu0 0.0
  %4782 = vmatprep.subr.mxu0 0.0
  %4783 = vmatpush1.msra.mxu0 %v875
  %4784 = vmatprep.subr.mxu0 0.0
  %4785 = vmatpush1.msra.mxu0 %v874
  %4786 = vmatprep.subr.mxu0 0.0
  %4787 = vmatpush1.msra.mxu0 %v873
  %4788 = vmatprep.subr.mxu0 0.0
  %4789 = vmatpush1.msra.mxu0 %v872
  %4790 = vmatprep.subr.mxu0 0.0
  %4791 = vmatpush2.msra.mxu0 0.0
  %4792 = vmatprep.subr.mxu0 0.0
  %4793 = vmatpush2.msra.mxu0 0.0
  %4794 = vmatprep.subr.mxu0 0.0
  %4795 = vmatpush2.msra.mxu0 0.0
  %4796 = vmatprep.subr.mxu0 0.0
  %4797 = vmatpush2.msra.mxu0 0.0
  %4798 = vmatprep.subr.mxu0 0.0
  %4799 = vmatpush2.msra.mxu0 0.0
  %4800 = vmatprep.subr.mxu0 0.0
  %4801 = vmatpush2.msra.mxu0 0.0
  %4802 = vmatprep.subr.mxu0 0.0
  %4803 = vmatpush2.msra.mxu0 0.0
  %4804 = vmatprep.subr.mxu0 0.0
  %4805 = vmatpush2.msra.mxu0 0.0
  %4806 = vmatprep.subr.mxu0 0.0
  %4807 = vmatpush2.msra.mxu0 0.0
  %4808 = vmatprep.subr.mxu0 0.0
  %4809 = vmatpush2.msra.mxu0 0.0
  %4810 = vmatprep.subr.mxu0 0.0
  %4811 = vmatpush2.msra.mxu0 0.0
  %4812 = vmatprep.subr.mxu0 0.0
  %4813 = vmatpush2.msra.mxu0 0.0
  %4814 = vmatprep.subr.mxu0 0.0
  %4815 = vmatpush2.msra.mxu0 0.0
  %4816 = vmatprep.subr.mxu0 0.0
  %4817 = vmatpush2.msra.mxu0 0.0
  %4818 = vmatprep.subr.mxu0 0.0
  %4819 = vmatpush2.msra.mxu0 0.0
  %4820 = vmatprep.subr.mxu0 0.0
  %4821 = vmatpush2.msra.mxu0 0.0
  %4822 = vmatprep.mubr.f32.mxu0 0.0
  %4823 = vmatmul.mubr.f32.gmra.mxu0 %v4320
  %v4824 = vpop.f32.mrf.mxu0
  %v4825 = vadd.f32 %v4755, %v4824
  %v4826 = vpop.f32.mrf.mxu0
  %4827 = vdwg.mxu0
  %v4828 = vadd.f32 %v4825, %v854
  %v4829 = vxor.u32 %v4828, 2147483648
  %v4830 = vmul.f32 %v4829, 1.442695
  %v4831 = vpow.pop %v4830
  %v4832 = vadd.f32 %v4831, 1.0
  %v4833 = vrcp.pop %v4832
  %v4834 = vmul.f32 1.0, %v4833
  %v4835 = vmul.f32 %v4545, %v4169
  %v4836 = vmul.f32 %v4398, %v4687
  %v4837 = vadd.f32 %v4835, %v4836
  %v4838 = vtanh.pop %v4837
  %v4839 = vmul.f32 %v4834, %v4838
  %v4841 = vsel %vm67, %v4839, 0
  %4843 = vmatprep.subr.mxu0 0.0
  %4844 = vmatpush1.msra.mxu0 0.0
  %4845 = vmatprep.subr.mxu0 0.0
  %4846 = vmatpush1.msra.mxu0 0.0
  %4847 = vmatprep.subr.mxu0 0.0
  %4848 = vmatpush1.msra.mxu0 0.0
  %4849 = vmatprep.subr.mxu0 0.0
  %4850 = vmatpush1.msra.mxu0 0.0
  %4851 = vmatprep.subr.mxu0 0.0
  %4852 = vmatpush1.msra.mxu0 0.0
  %4853 = vmatprep.subr.mxu0 0.0
  %4854 = vmatpush1.msra.mxu0 0.0
  %4855 = vmatprep.subr.mxu0 0.0
  %4856 = vmatpush1.msra.mxu0 0.0
  %4857 = vmatprep.subr.mxu0 0.0
  %4858 = vmatpush1.msra.mxu0 0.0
  %4859 = vmatprep.subr.mxu0 0.0
  %4860 = vmatpush1.msra.mxu0 0.0
  %4861 = vmatprep.subr.mxu0 0.0
  %4862 = vmatpush1.msra.mxu0 0.0
  %4863 = vmatprep.subr.mxu0 0.0
  %4864 = vmatpush1.msra.mxu0 0.0
  %4865 = vmatprep.subr.mxu0 0.0
  %4866 = vmatpush1.msra.mxu0 0.0
  %4867 = vmatprep.subr.mxu0 0.0
  %4868 = vmatpush1.msra.mxu0 %v898
  %4869 = vmatprep.subr.mxu0 0.0
  %4870 = vmatpush1.msra.mxu0 %v897
  %4871 = vmatprep.subr.mxu0 0.0
  %4872 = vmatpush1.msra.mxu0 %v896
  %4873 = vmatprep.subr.mxu0 0.0
  %4874 = vmatpush1.msra.mxu0 %v895
  %4875 = vmatprep.subr.mxu0 0.0
  %4876 = vmatpush2.msra.mxu0 0.0
  %4877 = vmatprep.subr.mxu0 0.0
  %4878 = vmatpush2.msra.mxu0 0.0
  %4879 = vmatprep.subr.mxu0 0.0
  %4880 = vmatpush2.msra.mxu0 0.0
  %4881 = vmatprep.subr.mxu0 0.0
  %4882 = vmatpush2.msra.mxu0 0.0
  %4883 = vmatprep.subr.mxu0 0.0
  %4884 = vmatpush2.msra.mxu0 0.0
  %4885 = vmatprep.subr.mxu0 0.0
  %4886 = vmatpush2.msra.mxu0 0.0
  %4887 = vmatprep.subr.mxu0 0.0
  %4888 = vmatpush2.msra.mxu0 0.0
  %4889 = vmatprep.subr.mxu0 0.0
  %4890 = vmatpush2.msra.mxu0 0.0
  %4891 = vmatprep.subr.mxu0 0.0
  %4892 = vmatpush2.msra.mxu0 0.0
  %4893 = vmatprep.subr.mxu0 0.0
  %4894 = vmatpush2.msra.mxu0 0.0
  %4895 = vmatprep.subr.mxu0 0.0
  %4896 = vmatpush2.msra.mxu0 0.0
  %4897 = vmatprep.subr.mxu0 0.0
  %4898 = vmatpush2.msra.mxu0 0.0
  %4899 = vmatprep.subr.mxu0 0.0
  %4900 = vmatpush2.msra.mxu0 0.0
  %4901 = vmatprep.subr.mxu0 0.0
  %4902 = vmatpush2.msra.mxu0 0.0
  %4903 = vmatprep.subr.mxu0 0.0
  %4904 = vmatpush2.msra.mxu0 0.0
  %4905 = vmatprep.subr.mxu0 0.0
  %4906 = vmatpush2.msra.mxu0 0.0
  %4907 = vmatprep.mubr.f32.mxu0 0.0
  %4908 = vmatmul.mubr.f32.gmra.mxu0 %v4841
  %v4909 = vpop.f32.mrf.mxu0
  %v4910 = vadd.f32 %v1499, %v4909
  %v4911 = vpop.f32.mrf.mxu0
  %4912 = vdwg.mxu0
  %s4913 = scalar_lea.vmem %s16, 10
  %4914 = vst [vmem:[%s4913] sm:$0x3] %v4910
  %s4915 = scalar_lea.vmem %s0, 12
  %v4916 = vld [vmem:[%s4915] sm:$0x3]
  %4917 = vmatprep.subr.mxu0 0.0
  %4918 = vmatpush1.msra.mxu0 0.0
  %4919 = vmatprep.subr.mxu0 0.0
  %4920 = vmatpush1.msra.mxu0 0.0
  %4921 = vmatprep.subr.mxu0 0.0
  %4922 = vmatpush1.msra.mxu0 0.0
  %4923 = vmatprep.subr.mxu0 0.0
  %4924 = vmatpush1.msra.mxu0 0.0
  %4925 = vmatprep.subr.mxu0 0.0
  %4926 = vmatpush1.msra.mxu0 0.0
  %4927 = vmatprep.subr.mxu0 0.0
  %4928 = vmatpush1.msra.mxu0 0.0
  %4929 = vmatprep.subr.mxu0 0.0
  %4930 = vmatpush1.msra.mxu0 0.0
  %4931 = vmatprep.subr.mxu0 0.0
  %4932 = vmatpush1.msra.mxu0 0.0
  %4933 = vmatprep.subr.mxu0 0.0
  %4934 = vmatpush1.msra.mxu0 0.0
  %4935 = vmatprep.subr.mxu0 0.0
  %4936 = vmatpush1.msra.mxu0 0.0
  %4937 = vmatprep.subr.mxu0 0.0
  %4938 = vmatpush1.msra.mxu0 0.0
  %4939 = vmatprep.subr.mxu0 0.0
  %4940 = vmatpush1.msra.mxu0 0.0
  %4941 = vmatprep.subr.mxu0 0.0
  %4942 = vmatpush1.msra.mxu0 %v879
  %4943 = vmatprep.subr.mxu0 0.0
  %4944 = vmatpush1.msra.mxu0 %v878
  %4945 = vmatprep.subr.mxu0 0.0
  %4946 = vmatpush1.msra.mxu0 %v877
  %4947 = vmatprep.subr.mxu0 0.0
  %4948 = vmatpush1.msra.mxu0 %v876
  %4949 = vmatprep.subr.mxu0 0.0
  %4950 = vmatpush2.msra.mxu0 0.0
  %4951 = vmatprep.subr.mxu0 0.0
  %4952 = vmatpush2.msra.mxu0 0.0
  %4953 = vmatprep.subr.mxu0 0.0
  %4954 = vmatpush2.msra.mxu0 0.0
  %4955 = vmatprep.subr.mxu0 0.0
  %4956 = vmatpush2.msra.mxu0 0.0
  %4957 = vmatprep.subr.mxu0 0.0
  %4958 = vmatpush2.msra.mxu0 0.0
  %4959 = vmatprep.subr.mxu0 0.0
  %4960 = vmatpush2.msra.mxu0 0.0
  %4961 = vmatprep.subr.mxu0 0.0
  %4962 = vmatpush2.msra.mxu0 0.0
  %4963 = vmatprep.subr.mxu0 0.0
  %4964 = vmatpush2.msra.mxu0 0.0
  %4965 = vmatprep.subr.mxu0 0.0
  %4966 = vmatpush2.msra.mxu0 0.0
  %4967 = vmatprep.subr.mxu0 0.0
  %4968 = vmatpush2.msra.mxu0 0.0
  %4969 = vmatprep.subr.mxu0 0.0
  %4970 = vmatpush2.msra.mxu0 0.0
  %4971 = vmatprep.subr.mxu0 0.0
  %4972 = vmatpush2.msra.mxu0 0.0
  %4973 = vmatprep.subr.mxu0 0.0
  %4974 = vmatpush2.msra.mxu0 0.0
  %4975 = vmatprep.subr.mxu0 0.0
  %4976 = vmatpush2.msra.mxu0 0.0
  %4977 = vmatprep.subr.mxu0 0.0
  %4978 = vmatpush2.msra.mxu0 0.0
  %4979 = vmatprep.subr.mxu0 0.0
  %4980 = vmatpush2.msra.mxu0 0.0
  %4981 = vmatprep.mubr.f32.mxu0 0.0
  %4982 = vmatmul.mubr.f32.gmra.mxu0 %v4841
  %v4983 = vpop.f32.mrf.mxu0
  %v4984 = vadd.f32 0.0, %v4983
  %v4985 = vpop.f32.mrf.mxu0
  %4986 = vdwg.mxu0
  %v4988 = vsel %vm67, %v4916, 0
  %4990 = vmatprep.subr.mxu0 0.0
  %4991 = vmatpush1.msra.mxu0 0.0
  %4992 = vmatprep.subr.mxu0 0.0
  %4993 = vmatpush1.msra.mxu0 0.0
  %4994 = vmatprep.subr.mxu0 0.0
  %4995 = vmatpush1.msra.mxu0 0.0
  %4996 = vmatprep.subr.mxu0 0.0
  %4997 = vmatpush1.msra.mxu0 0.0
  %4998 = vmatprep.subr.mxu0 0.0
  %4999 = vmatpush1.msra.mxu0 0.0
  %5000 = vmatprep.subr.mxu0 0.0
  %5001 = vmatpush1.msra.mxu0 0.0
  %5002 = vmatprep.subr.mxu0 0.0
  %5003 = vmatpush1.msra.mxu0 0.0
  %5004 = vmatprep.subr.mxu0 0.0
  %5005 = vmatpush1.msra.mxu0 0.0
  %5006 = vmatprep.subr.mxu0 0.0
  %5007 = vmatpush1.msra.mxu0 0.0
  %5008 = vmatprep.subr.mxu0 0.0
  %5009 = vmatpush1.msra.mxu0 0.0
  %5010 = vmatprep.subr.mxu0 0.0
  %5011 = vmatpush1.msra.mxu0 0.0
  %5012 = vmatprep.subr.mxu0 0.0
  %5013 = vmatpush1.msra.mxu0 0.0
  %5014 = vmatprep.subr.mxu0 0.0
  %5015 = vmatpush1.msra.mxu0 %v860
  %5016 = vmatprep.subr.mxu0 0.0
  %5017 = vmatpush1.msra.mxu0 %v859
  %5018 = vmatprep.subr.mxu0 0.0
  %5019 = vmatpush1.msra.mxu0 %v858
  %5020 = vmatprep.subr.mxu0 0.0
  %5021 = vmatpush1.msra.mxu0 %v857
  %5022 = vmatprep.subr.mxu0 0.0
  %5023 = vmatpush2.msra.mxu0 0.0
  %5024 = vmatprep.subr.mxu0 0.0
  %5025 = vmatpush2.msra.mxu0 0.0
  %5026 = vmatprep.subr.mxu0 0.0
  %5027 = vmatpush2.msra.mxu0 0.0
  %5028 = vmatprep.subr.mxu0 0.0
  %5029 = vmatpush2.msra.mxu0 0.0
  %5030 = vmatprep.subr.mxu0 0.0
  %5031 = vmatpush2.msra.mxu0 0.0
  %5032 = vmatprep.subr.mxu0 0.0
  %5033 = vmatpush2.msra.mxu0 0.0
  %5034 = vmatprep.subr.mxu0 0.0
  %5035 = vmatpush2.msra.mxu0 0.0
  %5036 = vmatprep.subr.mxu0 0.0
  %5037 = vmatpush2.msra.mxu0 0.0
  %5038 = vmatprep.subr.mxu0 0.0
  %5039 = vmatpush2.msra.mxu0 0.0
  %5040 = vmatprep.subr.mxu0 0.0
  %5041 = vmatpush2.msra.mxu0 0.0
  %5042 = vmatprep.subr.mxu0 0.0
  %5043 = vmatpush2.msra.mxu0 0.0
  %5044 = vmatprep.subr.mxu0 0.0
  %5045 = vmatpush2.msra.mxu0 0.0
  %5046 = vmatprep.subr.mxu0 0.0
  %5047 = vmatpush2.msra.mxu0 0.0
  %5048 = vmatprep.subr.mxu0 0.0
  %5049 = vmatpush2.msra.mxu0 0.0
  %5050 = vmatprep.subr.mxu0 0.0
  %5051 = vmatpush2.msra.mxu0 0.0
  %5052 = vmatprep.subr.mxu0 0.0
  %5053 = vmatpush2.msra.mxu0 0.0
  %5054 = vmatprep.mubr.f32.mxu0 0.0
  %5055 = vmatmul.mubr.f32.gmra.mxu0 %v4988
  %v5056 = vpop.f32.mrf.mxu0
  %v5057 = vadd.f32 %v4984, %v5056
  %v5058 = vpop.f32.mrf.mxu0
  %5059 = vdwg.mxu0
  %v5060 = vadd.f32 %v5057, %v605
  %v5061 = vxor.u32 %v5060, 2147483648
  %v5062 = vmul.f32 %v5061, 1.442695
  %v5063 = vpow.pop %v5062
  %v5064 = vadd.f32 %v5063, 1.0
  %v5065 = vrcp.pop %v5064
  %v5066 = vmul.f32 1.0, %v5065
  %5067 = vmatprep.subr.mxu0 0.0
  %5068 = vmatpush1.msra.mxu0 0.0
  %5069 = vmatprep.subr.mxu0 0.0
  %5070 = vmatpush1.msra.mxu0 0.0
  %5071 = vmatprep.subr.mxu0 0.0
  %5072 = vmatpush1.msra.mxu0 0.0
  %5073 = vmatprep.subr.mxu0 0.0
  %5074 = vmatpush1.msra.mxu0 0.0
  %5075 = vmatprep.subr.mxu0 0.0
  %5076 = vmatpush1.msra.mxu0 0.0
  %5077 = vmatprep.subr.mxu0 0.0
  %5078 = vmatpush1.msra.mxu0 0.0
  %5079 = vmatprep.subr.mxu0 0.0
  %5080 = vmatpush1.msra.mxu0 0.0
  %5081 = vmatprep.subr.mxu0 0.0
  %5082 = vmatpush1.msra.mxu0 0.0
  %5083 = vmatprep.subr.mxu0 0.0
  %5084 = vmatpush1.msra.mxu0 0.0
  %5085 = vmatprep.subr.mxu0 0.0
  %5086 = vmatpush1.msra.mxu0 0.0
  %5087 = vmatprep.subr.mxu0 0.0
  %5088 = vmatpush1.msra.mxu0 0.0
  %5089 = vmatprep.subr.mxu0 0.0
  %5090 = vmatpush1.msra.mxu0 0.0
  %5091 = vmatprep.subr.mxu0 0.0
  %5092 = vmatpush1.msra.mxu0 %v884
  %5093 = vmatprep.subr.mxu0 0.0
  %5094 = vmatpush1.msra.mxu0 %v883
  %5095 = vmatprep.subr.mxu0 0.0
  %5096 = vmatpush1.msra.mxu0 %v882
  %5097 = vmatprep.subr.mxu0 0.0
  %5098 = vmatpush1.msra.mxu0 %v881
  %5099 = vmatprep.subr.mxu0 0.0
  %5100 = vmatpush2.msra.mxu0 0.0
  %5101 = vmatprep.subr.mxu0 0.0
  %5102 = vmatpush2.msra.mxu0 0.0
  %5103 = vmatprep.subr.mxu0 0.0
  %5104 = vmatpush2.msra.mxu0 0.0
  %5105 = vmatprep.subr.mxu0 0.0
  %5106 = vmatpush2.msra.mxu0 0.0
  %5107 = vmatprep.subr.mxu0 0.0
  %5108 = vmatpush2.msra.mxu0 0.0
  %5109 = vmatprep.subr.mxu0 0.0
  %5110 = vmatpush2.msra.mxu0 0.0
  %5111 = vmatprep.subr.mxu0 0.0
  %5112 = vmatpush2.msra.mxu0 0.0
  %5113 = vmatprep.subr.mxu0 0.0
  %5114 = vmatpush2.msra.mxu0 0.0
  %5115 = vmatprep.subr.mxu0 0.0
  %5116 = vmatpush2.msra.mxu0 0.0
  %5117 = vmatprep.subr.mxu0 0.0
  %5118 = vmatpush2.msra.mxu0 0.0
  %5119 = vmatprep.subr.mxu0 0.0
  %5120 = vmatpush2.msra.mxu0 0.0
  %5121 = vmatprep.subr.mxu0 0.0
  %5122 = vmatpush2.msra.mxu0 0.0
  %5123 = vmatprep.subr.mxu0 0.0
  %5124 = vmatpush2.msra.mxu0 0.0
  %5125 = vmatprep.subr.mxu0 0.0
  %5126 = vmatpush2.msra.mxu0 0.0
  %5127 = vmatprep.subr.mxu0 0.0
  %5128 = vmatpush2.msra.mxu0 0.0
  %5129 = vmatprep.subr.mxu0 0.0
  %5130 = vmatpush2.msra.mxu0 0.0
  %5131 = vmatprep.mubr.f32.mxu0 0.0
  %5132 = vmatmul.mubr.f32.gmra.mxu0 %v4841
  %v5133 = vpop.f32.mrf.mxu0
  %v5134 = vadd.f32 0.0, %v5133
  %v5135 = vpop.f32.mrf.mxu0
  %5136 = vdwg.mxu0
  %5137 = vmatprep.subr.mxu0 0.0
  %5138 = vmatpush1.msra.mxu0 0.0
  %5139 = vmatprep.subr.mxu0 0.0
  %5140 = vmatpush1.msra.mxu0 0.0
  %5141 = vmatprep.subr.mxu0 0.0
  %5142 = vmatpush1.msra.mxu0 0.0
  %5143 = vmatprep.subr.mxu0 0.0
  %5144 = vmatpush1.msra.mxu0 0.0
  %5145 = vmatprep.subr.mxu0 0.0
  %5146 = vmatpush1.msra.mxu0 0.0
  %5147 = vmatprep.subr.mxu0 0.0
  %5148 = vmatpush1.msra.mxu0 0.0
  %5149 = vmatprep.subr.mxu0 0.0
  %5150 = vmatpush1.msra.mxu0 0.0
  %5151 = vmatprep.subr.mxu0 0.0
  %5152 = vmatpush1.msra.mxu0 0.0
  %5153 = vmatprep.subr.mxu0 0.0
  %5154 = vmatpush1.msra.mxu0 0.0
  %5155 = vmatprep.subr.mxu0 0.0
  %5156 = vmatpush1.msra.mxu0 0.0
  %5157 = vmatprep.subr.mxu0 0.0
  %5158 = vmatpush1.msra.mxu0 0.0
  %5159 = vmatprep.subr.mxu0 0.0
  %5160 = vmatpush1.msra.mxu0 0.0
  %5161 = vmatprep.subr.mxu0 0.0
  %5162 = vmatpush1.msra.mxu0 %v865
  %5163 = vmatprep.subr.mxu0 0.0
  %5164 = vmatpush1.msra.mxu0 %v864
  %5165 = vmatprep.subr.mxu0 0.0
  %5166 = vmatpush1.msra.mxu0 %v863
  %5167 = vmatprep.subr.mxu0 0.0
  %5168 = vmatpush1.msra.mxu0 %v862
  %5169 = vmatprep.subr.mxu0 0.0
  %5170 = vmatpush2.msra.mxu0 0.0
  %5171 = vmatprep.subr.mxu0 0.0
  %5172 = vmatpush2.msra.mxu0 0.0
  %5173 = vmatprep.subr.mxu0 0.0
  %5174 = vmatpush2.msra.mxu0 0.0
  %5175 = vmatprep.subr.mxu0 0.0
  %5176 = vmatpush2.msra.mxu0 0.0
  %5177 = vmatprep.subr.mxu0 0.0
  %5178 = vmatpush2.msra.mxu0 0.0
  %5179 = vmatprep.subr.mxu0 0.0
  %5180 = vmatpush2.msra.mxu0 0.0
  %5181 = vmatprep.subr.mxu0 0.0
  %5182 = vmatpush2.msra.mxu0 0.0
  %5183 = vmatprep.subr.mxu0 0.0
  %5184 = vmatpush2.msra.mxu0 0.0
  %5185 = vmatprep.subr.mxu0 0.0
  %5186 = vmatpush2.msra.mxu0 0.0
  %5187 = vmatprep.subr.mxu0 0.0
  %5188 = vmatpush2.msra.mxu0 0.0
  %5189 = vmatprep.subr.mxu0 0.0
  %5190 = vmatpush2.msra.mxu0 0.0
  %5191 = vmatprep.subr.mxu0 0.0
  %5192 = vmatpush2.msra.mxu0 0.0
  %5193 = vmatprep.subr.mxu0 0.0
  %5194 = vmatpush2.msra.mxu0 0.0
  %5195 = vmatprep.subr.mxu0 0.0
  %5196 = vmatpush2.msra.mxu0 0.0
  %5197 = vmatprep.subr.mxu0 0.0
  %5198 = vmatpush2.msra.mxu0 0.0
  %5199 = vmatprep.subr.mxu0 0.0
  %5200 = vmatpush2.msra.mxu0 0.0
  %5201 = vmatprep.mubr.f32.mxu0 0.0
  %5202 = vmatmul.mubr.f32.gmra.mxu0 %v4988
  %v5203 = vpop.f32.mrf.mxu0
  %v5204 = vadd.f32 %v5134, %v5203
  %v5205 = vpop.f32.mrf.mxu0
  %5206 = vdwg.mxu0
  %v5207 = vadd.f32 %v5204, %v688
  %v5208 = vxor.u32 %v5207, 2147483648
  %v5209 = vmul.f32 %v5208, 1.442695
  %v5210 = vpow.pop %v5209
  %v5211 = vadd.f32 %v5210, 1.0
  %v5212 = vrcp.pop %v5211
  %v5213 = vmul.f32 1.0, %v5212
  %5214 = vmatprep.subr.mxu0 0.0
  %5215 = vmatpush1.msra.mxu0 0.0
  %5216 = vmatprep.subr.mxu0 0.0
  %5217 = vmatpush1.msra.mxu0 0.0
  %5218 = vmatprep.subr.mxu0 0.0
  %5219 = vmatpush1.msra.mxu0 0.0
  %5220 = vmatprep.subr.mxu0 0.0
  %5221 = vmatpush1.msra.mxu0 0.0
  %5222 = vmatprep.subr.mxu0 0.0
  %5223 = vmatpush1.msra.mxu0 0.0
  %5224 = vmatprep.subr.mxu0 0.0
  %5225 = vmatpush1.msra.mxu0 0.0
  %5226 = vmatprep.subr.mxu0 0.0
  %5227 = vmatpush1.msra.mxu0 0.0
  %5228 = vmatprep.subr.mxu0 0.0
  %5229 = vmatpush1.msra.mxu0 0.0
  %5230 = vmatprep.subr.mxu0 0.0
  %5231 = vmatpush1.msra.mxu0 0.0
  %5232 = vmatprep.subr.mxu0 0.0
  %5233 = vmatpush1.msra.mxu0 0.0
  %5234 = vmatprep.subr.mxu0 0.0
  %5235 = vmatpush1.msra.mxu0 0.0
  %5236 = vmatprep.subr.mxu0 0.0
  %5237 = vmatpush1.msra.mxu0 0.0
  %5238 = vmatprep.subr.mxu0 0.0
  %5239 = vmatpush1.msra.mxu0 %v889
  %5240 = vmatprep.subr.mxu0 0.0
  %5241 = vmatpush1.msra.mxu0 %v888
  %5242 = vmatprep.subr.mxu0 0.0
  %5243 = vmatpush1.msra.mxu0 %v887
  %5244 = vmatprep.subr.mxu0 0.0
  %5245 = vmatpush1.msra.mxu0 %v886
  %5246 = vmatprep.subr.mxu0 0.0
  %5247 = vmatpush2.msra.mxu0 0.0
  %5248 = vmatprep.subr.mxu0 0.0
  %5249 = vmatpush2.msra.mxu0 0.0
  %5250 = vmatprep.subr.mxu0 0.0
  %5251 = vmatpush2.msra.mxu0 0.0
  %5252 = vmatprep.subr.mxu0 0.0
  %5253 = vmatpush2.msra.mxu0 0.0
  %5254 = vmatprep.subr.mxu0 0.0
  %5255 = vmatpush2.msra.mxu0 0.0
  %5256 = vmatprep.subr.mxu0 0.0
  %5257 = vmatpush2.msra.mxu0 0.0
  %5258 = vmatprep.subr.mxu0 0.0
  %5259 = vmatpush2.msra.mxu0 0.0
  %5260 = vmatprep.subr.mxu0 0.0
  %5261 = vmatpush2.msra.mxu0 0.0
  %5262 = vmatprep.subr.mxu0 0.0
  %5263 = vmatpush2.msra.mxu0 0.0
  %5264 = vmatprep.subr.mxu0 0.0
  %5265 = vmatpush2.msra.mxu0 0.0
  %5266 = vmatprep.subr.mxu0 0.0
  %5267 = vmatpush2.msra.mxu0 0.0
  %5268 = vmatprep.subr.mxu0 0.0
  %5269 = vmatpush2.msra.mxu0 0.0
  %5270 = vmatprep.subr.mxu0 0.0
  %5271 = vmatpush2.msra.mxu0 0.0
  %5272 = vmatprep.subr.mxu0 0.0
  %5273 = vmatpush2.msra.mxu0 0.0
  %5274 = vmatprep.subr.mxu0 0.0
  %5275 = vmatpush2.msra.mxu0 0.0
  %5276 = vmatprep.subr.mxu0 0.0
  %5277 = vmatpush2.msra.mxu0 0.0
  %5278 = vmatprep.mubr.f32.mxu0 0.0
  %5279 = vmatmul.mubr.f32.gmra.mxu0 %v4841
  %v5280 = vpop.f32.mrf.mxu0
  %v5281 = vadd.f32 0.0, %v5280
  %v5282 = vpop.f32.mrf.mxu0
  %5283 = vdwg.mxu0
  %5284 = vmatprep.subr.mxu0 0.0
  %5285 = vmatpush1.msra.mxu0 0.0
  %5286 = vmatprep.subr.mxu0 0.0
  %5287 = vmatpush1.msra.mxu0 0.0
  %5288 = vmatprep.subr.mxu0 0.0
  %5289 = vmatpush1.msra.mxu0 0.0
  %5290 = vmatprep.subr.mxu0 0.0
  %5291 = vmatpush1.msra.mxu0 0.0
  %5292 = vmatprep.subr.mxu0 0.0
  %5293 = vmatpush1.msra.mxu0 0.0
  %5294 = vmatprep.subr.mxu0 0.0
  %5295 = vmatpush1.msra.mxu0 0.0
  %5296 = vmatprep.subr.mxu0 0.0
  %5297 = vmatpush1.msra.mxu0 0.0
  %5298 = vmatprep.subr.mxu0 0.0
  %5299 = vmatpush1.msra.mxu0 0.0
  %5300 = vmatprep.subr.mxu0 0.0
  %5301 = vmatpush1.msra.mxu0 0.0
  %5302 = vmatprep.subr.mxu0 0.0
  %5303 = vmatpush1.msra.mxu0 0.0
  %5304 = vmatprep.subr.mxu0 0.0
  %5305 = vmatpush1.msra.mxu0 0.0
  %5306 = vmatprep.subr.mxu0 0.0
  %5307 = vmatpush1.msra.mxu0 0.0
  %5308 = vmatprep.subr.mxu0 0.0
  %5309 = vmatpush1.msra.mxu0 %v870
  %5310 = vmatprep.subr.mxu0 0.0
  %5311 = vmatpush1.msra.mxu0 %v869
  %5312 = vmatprep.subr.mxu0 0.0
  %5313 = vmatpush1.msra.mxu0 %v868
  %5314 = vmatprep.subr.mxu0 0.0
  %5315 = vmatpush1.msra.mxu0 %v867
  %5316 = vmatprep.subr.mxu0 0.0
  %5317 = vmatpush2.msra.mxu0 0.0
  %5318 = vmatprep.subr.mxu0 0.0
  %5319 = vmatpush2.msra.mxu0 0.0
  %5320 = vmatprep.subr.mxu0 0.0
  %5321 = vmatpush2.msra.mxu0 0.0
  %5322 = vmatprep.subr.mxu0 0.0
  %5323 = vmatpush2.msra.mxu0 0.0
  %5324 = vmatprep.subr.mxu0 0.0
  %5325 = vmatpush2.msra.mxu0 0.0
  %5326 = vmatprep.subr.mxu0 0.0
  %5327 = vmatpush2.msra.mxu0 0.0
  %5328 = vmatprep.subr.mxu0 0.0
  %5329 = vmatpush2.msra.mxu0 0.0
  %5330 = vmatprep.subr.mxu0 0.0
  %5331 = vmatpush2.msra.mxu0 0.0
  %5332 = vmatprep.subr.mxu0 0.0
  %5333 = vmatpush2.msra.mxu0 0.0
  %5334 = vmatprep.subr.mxu0 0.0
  %5335 = vmatpush2.msra.mxu0 0.0
  %5336 = vmatprep.subr.mxu0 0.0
  %5337 = vmatpush2.msra.mxu0 0.0
  %5338 = vmatprep.subr.mxu0 0.0
  %5339 = vmatpush2.msra.mxu0 0.0
  %5340 = vmatprep.subr.mxu0 0.0
  %5341 = vmatpush2.msra.mxu0 0.0
  %5342 = vmatprep.subr.mxu0 0.0
  %5343 = vmatpush2.msra.mxu0 0.0
  %5344 = vmatprep.subr.mxu0 0.0
  %5345 = vmatpush2.msra.mxu0 0.0
  %5346 = vmatprep.subr.mxu0 0.0
  %5347 = vmatpush2.msra.mxu0 0.0
  %5348 = vmatprep.mubr.f32.mxu0 0.0
  %5349 = vmatmul.mubr.f32.gmra.mxu0 %v4988
  %v5350 = vpop.f32.mrf.mxu0
  %v5351 = vadd.f32 %v5281, %v5350
  %v5352 = vpop.f32.mrf.mxu0
  %5353 = vdwg.mxu0
  %v5354 = vadd.f32 %v5351, %v771
  %v5355 = vtanh.pop %v5354
  %5356 = vmatprep.subr.mxu0 0.0
  %5357 = vmatpush1.msra.mxu0 0.0
  %5358 = vmatprep.subr.mxu0 0.0
  %5359 = vmatpush1.msra.mxu0 0.0
  %5360 = vmatprep.subr.mxu0 0.0
  %5361 = vmatpush1.msra.mxu0 0.0
  %5362 = vmatprep.subr.mxu0 0.0
  %5363 = vmatpush1.msra.mxu0 0.0
  %5364 = vmatprep.subr.mxu0 0.0
  %5365 = vmatpush1.msra.mxu0 0.0
  %5366 = vmatprep.subr.mxu0 0.0
  %5367 = vmatpush1.msra.mxu0 0.0
  %5368 = vmatprep.subr.mxu0 0.0
  %5369 = vmatpush1.msra.mxu0 0.0
  %5370 = vmatprep.subr.mxu0 0.0
  %5371 = vmatpush1.msra.mxu0 0.0
  %5372 = vmatprep.subr.mxu0 0.0
  %5373 = vmatpush1.msra.mxu0 0.0
  %5374 = vmatprep.subr.mxu0 0.0
  %5375 = vmatpush1.msra.mxu0 0.0
  %5376 = vmatprep.subr.mxu0 0.0
  %5377 = vmatpush1.msra.mxu0 0.0
  %5378 = vmatprep.subr.mxu0 0.0
  %5379 = vmatpush1.msra.mxu0 0.0
  %5380 = vmatprep.subr.mxu0 0.0
  %5381 = vmatpush1.msra.mxu0 %v894
  %5382 = vmatprep.subr.mxu0 0.0
  %5383 = vmatpush1.msra.mxu0 %v893
  %5384 = vmatprep.subr.mxu0 0.0
  %5385 = vmatpush1.msra.mxu0 %v892
  %5386 = vmatprep.subr.mxu0 0.0
  %5387 = vmatpush1.msra.mxu0 %v891
  %5388 = vmatprep.subr.mxu0 0.0
  %5389 = vmatpush2.msra.mxu0 0.0
  %5390 = vmatprep.subr.mxu0 0.0
  %5391 = vmatpush2.msra.mxu0 0.0
  %5392 = vmatprep.subr.mxu0 0.0
  %5393 = vmatpush2.msra.mxu0 0.0
  %5394 = vmatprep.subr.mxu0 0.0
  %5395 = vmatpush2.msra.mxu0 0.0
  %5396 = vmatprep.subr.mxu0 0.0
  %5397 = vmatpush2.msra.mxu0 0.0
  %5398 = vmatprep.subr.mxu0 0.0
  %5399 = vmatpush2.msra.mxu0 0.0
  %5400 = vmatprep.subr.mxu0 0.0
  %5401 = vmatpush2.msra.mxu0 0.0
  %5402 = vmatprep.subr.mxu0 0.0
  %5403 = vmatpush2.msra.mxu0 0.0
  %5404 = vmatprep.subr.mxu0 0.0
  %5405 = vmatpush2.msra.mxu0 0.0
  %5406 = vmatprep.subr.mxu0 0.0
  %5407 = vmatpush2.msra.mxu0 0.0
  %5408 = vmatprep.subr.mxu0 0.0
  %5409 = vmatpush2.msra.mxu0 0.0
  %5410 = vmatprep.subr.mxu0 0.0
  %5411 = vmatpush2.msra.mxu0 0.0
  %5412 = vmatprep.subr.mxu0 0.0
  %5413 = vmatpush2.msra.mxu0 0.0
  %5414 = vmatprep.subr.mxu0 0.0
  %5415 = vmatpush2.msra.mxu0 0.0
  %5416 = vmatprep.subr.mxu0 0.0
  %5417 = vmatpush2.msra.mxu0 0.0
  %5418 = vmatprep.subr.mxu0 0.0
  %5419 = vmatpush2.msra.mxu0 0.0
  %5420 = vmatprep.mubr.f32.mxu0 0.0
  %5421 = vmatmul.mubr.f32.gmra.mxu0 %v4841
  %v5422 = vpop.f32.mrf.mxu0
  %v5423 = vadd.f32 0.0, %v5422
  %v5424 = vpop.f32.mrf.mxu0
  %5425 = vdwg.mxu0
  %5426 = vmatprep.subr.mxu0 0.0
  %5427 = vmatpush1.msra.mxu0 0.0
  %5428 = vmatprep.subr.mxu0 0.0
  %5429 = vmatpush1.msra.mxu0 0.0
  %5430 = vmatprep.subr.mxu0 0.0
  %5431 = vmatpush1.msra.mxu0 0.0
  %5432 = vmatprep.subr.mxu0 0.0
  %5433 = vmatpush1.msra.mxu0 0.0
  %5434 = vmatprep.subr.mxu0 0.0
  %5435 = vmatpush1.msra.mxu0 0.0
  %5436 = vmatprep.subr.mxu0 0.0
  %5437 = vmatpush1.msra.mxu0 0.0
  %5438 = vmatprep.subr.mxu0 0.0
  %5439 = vmatpush1.msra.mxu0 0.0
  %5440 = vmatprep.subr.mxu0 0.0
  %5441 = vmatpush1.msra.mxu0 0.0
  %5442 = vmatprep.subr.mxu0 0.0
  %5443 = vmatpush1.msra.mxu0 0.0
  %5444 = vmatprep.subr.mxu0 0.0
  %5445 = vmatpush1.msra.mxu0 0.0
  %5446 = vmatprep.subr.mxu0 0.0
  %5447 = vmatpush1.msra.mxu0 0.0
  %5448 = vmatprep.subr.mxu0 0.0
  %5449 = vmatpush1.msra.mxu0 0.0
  %5450 = vmatprep.subr.mxu0 0.0
  %5451 = vmatpush1.msra.mxu0 %v875
  %5452 = vmatprep.subr.mxu0 0.0
  %5453 = vmatpush1.msra.mxu0 %v874
  %5454 = vmatprep.subr.mxu0 0.0
  %5455 = vmatpush1.msra.mxu0 %v873
  %5456 = vmatprep.subr.mxu0 0.0
  %5457 = vmatpush1.msra.mxu0 %v872
  %5458 = vmatprep.subr.mxu0 0.0
  %5459 = vmatpush2.msra.mxu0 0.0
  %5460 = vmatprep.subr.mxu0 0.0
  %5461 = vmatpush2.msra.mxu0 0.0
  %5462 = vmatprep.subr.mxu0 0.0
  %5463 = vmatpush2.msra.mxu0 0.0
  %5464 = vmatprep.subr.mxu0 0.0
  %5465 = vmatpush2.msra.mxu0 0.0
  %5466 = vmatprep.subr.mxu0 0.0
  %5467 = vmatpush2.msra.mxu0 0.0
  %5468 = vmatprep.subr.mxu0 0.0
  %5469 = vmatpush2.msra.mxu0 0.0
  %5470 = vmatprep.subr.mxu0 0.0
  %5471 = vmatpush2.msra.mxu0 0.0
  %5472 = vmatprep.subr.mxu0 0.0
  %5473 = vmatpush2.msra.mxu0 0.0
  %5474 = vmatprep.subr.mxu0 0.0
  %5475 = vmatpush2.msra.mxu0 0.0
  %5476 = vmatprep.subr.mxu0 0.0
  %5477 = vmatpush2.msra.mxu0 0.0
  %5478 = vmatprep.subr.mxu0 0.0
  %5479 = vmatpush2.msra.mxu0 0.0
  %5480 = vmatprep.subr.mxu0 0.0
  %5481 = vmatpush2.msra.mxu0 0.0
  %5482 = vmatprep.subr.mxu0 0.0
  %5483 = vmatpush2.msra.mxu0 0.0
  %5484 = vmatprep.subr.mxu0 0.0
  %5485 = vmatpush2.msra.mxu0 0.0
  %5486 = vmatprep.subr.mxu0 0.0
  %5487 = vmatpush2.msra.mxu0 0.0
  %5488 = vmatprep.subr.mxu0 0.0
  %5489 = vmatpush2.msra.mxu0 0.0
  %5490 = vmatprep.mubr.f32.mxu0 0.0
  %5491 = vmatmul.mubr.f32.gmra.mxu0 %v4988
  %v5492 = vpop.f32.mrf.mxu0
  %v5493 = vadd.f32 %v5423, %v5492
  %v5494 = vpop.f32.mrf.mxu0
  %5495 = vdwg.mxu0
  %v5496 = vadd.f32 %v5493, %v854
  %v5497 = vxor.u32 %v5496, 2147483648
  %v5498 = vmul.f32 %v5497, 1.442695
  %v5499 = vpow.pop %v5498
  %v5500 = vadd.f32 %v5499, 1.0
  %v5501 = vrcp.pop %v5500
  %v5502 = vmul.f32 1.0, %v5501
  %v5503 = vmul.f32 %v5213, %v4837
  %v5504 = vmul.f32 %v5066, %v5355
  %v5505 = vadd.f32 %v5503, %v5504
  %v5506 = vtanh.pop %v5505
  %v5507 = vmul.f32 %v5502, %v5506
  %v5509 = vsel %vm67, %v5507, 0
  %5511 = vmatprep.subr.mxu0 0.0
  %5512 = vmatpush1.msra.mxu0 0.0
  %5513 = vmatprep.subr.mxu0 0.0
  %5514 = vmatpush1.msra.mxu0 0.0
  %5515 = vmatprep.subr.mxu0 0.0
  %5516 = vmatpush1.msra.mxu0 0.0
  %5517 = vmatprep.subr.mxu0 0.0
  %5518 = vmatpush1.msra.mxu0 0.0
  %5519 = vmatprep.subr.mxu0 0.0
  %5520 = vmatpush1.msra.mxu0 0.0
  %5521 = vmatprep.subr.mxu0 0.0
  %5522 = vmatpush1.msra.mxu0 0.0
  %5523 = vmatprep.subr.mxu0 0.0
  %5524 = vmatpush1.msra.mxu0 0.0
  %5525 = vmatprep.subr.mxu0 0.0
  %5526 = vmatpush1.msra.mxu0 0.0
  %5527 = vmatprep.subr.mxu0 0.0
  %5528 = vmatpush1.msra.mxu0 0.0
  %5529 = vmatprep.subr.mxu0 0.0
  %5530 = vmatpush1.msra.mxu0 0.0
  %5531 = vmatprep.subr.mxu0 0.0
  %5532 = vmatpush1.msra.mxu0 0.0
  %5533 = vmatprep.subr.mxu0 0.0
  %5534 = vmatpush1.msra.mxu0 0.0
  %5535 = vmatprep.subr.mxu0 0.0
  %5536 = vmatpush1.msra.mxu0 %v898
  %5537 = vmatprep.subr.mxu0 0.0
  %5538 = vmatpush1.msra.mxu0 %v897
  %5539 = vmatprep.subr.mxu0 0.0
  %5540 = vmatpush1.msra.mxu0 %v896
  %5541 = vmatprep.subr.mxu0 0.0
  %5542 = vmatpush1.msra.mxu0 %v895
  %5543 = vmatprep.subr.mxu0 0.0
  %5544 = vmatpush2.msra.mxu0 0.0
  %5545 = vmatprep.subr.mxu0 0.0
  %5546 = vmatpush2.msra.mxu0 0.0
  %5547 = vmatprep.subr.mxu0 0.0
  %5548 = vmatpush2.msra.mxu0 0.0
  %5549 = vmatprep.subr.mxu0 0.0
  %5550 = vmatpush2.msra.mxu0 0.0
  %5551 = vmatprep.subr.mxu0 0.0
  %5552 = vmatpush2.msra.mxu0 0.0
  %5553 = vmatprep.subr.mxu0 0.0
  %5554 = vmatpush2.msra.mxu0 0.0
  %5555 = vmatprep.subr.mxu0 0.0
  %5556 = vmatpush2.msra.mxu0 0.0
  %5557 = vmatprep.subr.mxu0 0.0
  %5558 = vmatpush2.msra.mxu0 0.0
  %5559 = vmatprep.subr.mxu0 0.0
  %5560 = vmatpush2.msra.mxu0 0.0
  %5561 = vmatprep.subr.mxu0 0.0
  %5562 = vmatpush2.msra.mxu0 0.0
  %5563 = vmatprep.subr.mxu0 0.0
  %5564 = vmatpush2.msra.mxu0 0.0
  %5565 = vmatprep.subr.mxu0 0.0
  %5566 = vmatpush2.msra.mxu0 0.0
  %5567 = vmatprep.subr.mxu0 0.0
  %5568 = vmatpush2.msra.mxu0 0.0
  %5569 = vmatprep.subr.mxu0 0.0
  %5570 = vmatpush2.msra.mxu0 0.0
  %5571 = vmatprep.subr.mxu0 0.0
  %5572 = vmatpush2.msra.mxu0 0.0
  %5573 = vmatprep.subr.mxu0 0.0
  %5574 = vmatpush2.msra.mxu0 0.0
  %5575 = vmatprep.mubr.f32.mxu0 0.0
  %5576 = vmatmul.mubr.f32.gmra.mxu0 %v5509
  %v5577 = vpop.f32.mrf.mxu0
  %v5578 = vadd.f32 %v1499, %v5577
  %v5579 = vpop.f32.mrf.mxu0
  %5580 = vdwg.mxu0
  %s5581 = scalar_lea.vmem %s16, 12
  %5582 = vst [vmem:[%s5581] sm:$0x3] %v5578
  // Predicated region
  $region66: #{decoder_net_forward.1} parent=0 // pred_check
    _
  $region67: #{decoder_net_forward.1} parent=0 // pred_check_branch
    %5584 = sbr.rel (0) target = $region69
  $region68: #{decoder_net_forward.1} parent=0 // pred_region
    _
  $region69: #{decoder_net_forward.1} parent=0 // pred_fallthru
    _
  // Predicated region
  $region70: #{decoder_net_forward.1} parent=0 // pred_check
    _
  $region71: #{decoder_net_forward.1} parent=0 // pred_check_branch
    %5586 = sbr.rel (0) target = $region73
  $region72: #{decoder_net_forward.1} parent=0 // pred_region
    _
  $region73: #{decoder_net_forward.1} parent=0 // pred_fallthru
    _

</llo_original>
